<compile_context>
chip_gen: v7x
topology: tpu7x:2x2x1
jax: 0.10.0
libtpu: 0.0.40
codegen_flags: <defaults>
</compile_context>

<pallas_src>
import functools

import jax
import jax.numpy as jnp
from jax.experimental import pallas as pl
from jax.experimental.pallas import tpu as pltpu

EPS = 1e-5
LANE = 128                    # channel dims padded to multiples of this
MXU_DTYPE = jnp.bfloat16      # MXU operand / inter-stage storage dtype


def _round_up(x, m):
    return (x + m - 1) // m * m


def _vmem_budget_bytes():
    """Generation-aware vmem_limit_bytes: ~96 MiB on v5e/v6e (128 MiB VMEM),
    ~48 MiB on v7x (64 MiB VMEM).  Falls back to 48 MiB if the query fails."""
    cap = 64 * 1024 * 1024
    try:
        cap = int(getattr(pltpu.get_tpu_info(), "vmem_capacity_bytes", cap))
    except Exception:
        pass
    return min(cap * 3 // 4, 100 * 1024 * 1024)


def _pick_block_m(m, c_max, vmem_budget, requested):
    """Row tile (multiple of 8) for the flattened M = N*H*W axis."""
    if requested is None:
        if vmem_budget >= 90 * 1024 * 1024:        # v5e / v6e: bigger resident tiles
            requested = 2048 if c_max <= 512 else 1024
        else:                                       # v7x: keep tiles capped
            requested = 1024 if c_max <= 512 else 512
    return min(_round_up(requested, 8), _round_up(m, 8))


# -----------------------------------------------------------------------------
# In-kernel helpers
# -----------------------------------------------------------------------------
def _write_partial_stats(st_ref, y):
    # y: (rows, C) f32 accumulator (pre-cast).  Per-tile sum / sum-of-squares;
    # cross-tile reduction + per-channel finalize happen in the wrapper so the
    # grid axis can stay "parallel" (no revisited accumulator block).
    st_ref[:, 0:1, :] = jnp.sum(y, axis=0, keepdims=True)[None]
    st_ref[:, 1:2, :] = jnp.sum(y * y, axis=0, keepdims=True)[None]


def _bn_relu(v, sc_ref):
    # Folded BN apply (f32): one multiply-add per element, then relu.
    return jnp.maximum(v * sc_ref[0:1, :] + sc_ref[1:2, :], 0.0)


# -----------------------------------------------------------------------------
# Kernels
# -----------------------------------------------------------------------------
def conv1x1_stats_kernel(x_ref, w_ref, y_ref, st_ref):
    # Stage 1: 1x1 conv (matmul) on an M-tile; bf16 store + f32 BN partials.
    xb = x_ref[...].astype(MXU_DTYPE)
    y = jnp.dot(xb, w_ref[...], preferred_element_type=jnp.float32)
    y_ref[...] = y.astype(y_ref.dtype)
    _write_partial_stats(st_ref, y)


def bn_relu_conv1x1_stats_kernel(x_ref, w_ref, sc_ref, y_ref, st_ref, *,
                                 valid_rows):
    # Stage 3: apply previous BN (folded scale/shift, f32) + relu, 1x1 conv,
    # bf16 store + f32 BN partials.  Rows >= valid_rows (M-padding) are masked
    # out of the statistics.
    a = _bn_relu(x_ref[...].astype(jnp.float32), sc_ref)
    y = jnp.dot(a.astype(MXU_DTYPE), w_ref[...],
                preferred_element_type=jnp.float32)
    y_ref[...] = y.astype(y_ref.dtype)
    if valid_rows is not None:
        tm = y.shape[0]
        row = pl.program_id(0) * tm + jax.lax.broadcasted_iota(
            jnp.int32, (tm, 1), 0)
        y = jnp.where(row < valid_rows, y, 0.0)
    _write_partial_stats(st_ref, y)


def bn_relu_conv3x3_stats_kernel(x_ref, w_ref, sc_ref, y_ref, st_ref, ap_ref,
                                 *, h, w):
    # Stage 2 (per image, flat (1, H*W, C) I/O): BN1+relu in f32, write interior
    # of a bf16 zero-halo buffer, then 9 accumulating MXU matmuls over shifted
    # windows (no im2col slab).
    c = x_ref.shape[2]
    hw = h * w
    a = _bn_relu(x_ref[0].astype(jnp.float32), sc_ref)          # (H*W, C) f32

    # Interior write (bf16 — it is the MXU operand dtype anyway).
    ap_ref[1:h + 1, 1:w + 1, :] = a.reshape(h, w, c).astype(MXU_DTYPE)
    # Zero only the halo ring (top/bottom rows, left/right columns).
    zrow = jnp.zeros((1, w + 2, c), MXU_DTYPE)
    ap_ref[0:1, :, :] = zrow
    ap_ref[h + 1:h + 2, :, :] = zrow
    zcol = jnp.zeros((h, 1, c), MXU_DTYPE)
    ap_ref[1:h + 1, 0:1, :] = zcol
    ap_ref[1:h + 1, w + 1:w + 2, :] = zcol

    acc = jnp.zeros((hw, c), jnp.float32)
    for k in range(9):
        ky, kx = divmod(k, 3)
        tap = ap_ref[ky:ky + h, kx:kx + w, :].reshape(hw, c)
        acc = acc + jnp.dot(tap, w_ref[k * c:(k + 1) * c, :],
                            preferred_element_type=jnp.float32)

    y_ref[0] = acc.astype(y_ref.dtype)
    _write_partial_stats(st_ref, acc)


def bn_add_relu_kernel(y_ref, r_ref, sc_ref, o_ref):
    # Stage 4: BN3 apply + residual add + relu, all in f32; lane-dense store.
    v = (y_ref[...].astype(jnp.float32) * sc_ref[0:1, :] + sc_ref[1:2, :]
         + r_ref[...])
    o_ref[...] = jnp.maximum(v, 0.0).astype(o_ref.dtype)


# -----------------------------------------------------------------------------
# Wrapper
# -----------------------------------------------------------------------------
def _bn_scale_shift(partials, gamma, beta, count):
    """partials: (T, 2, C) per-tile [sum, sumsq]; returns folded (2, C)."""
    s = jnp.sum(partials, axis=0)                         # (2, C)
    mean = s[0] / count
    # NOTE: E[x^2]-E[x]^2 can lose precision if |mean| >> std; acceptable here.
    var = jnp.maximum(s[1] / count - mean * mean, 0.0)    # training-mode (biased)
    scale = gamma * jax.lax.rsqrt(var + EPS)
    shift = beta - mean * scale
    return jnp.stack([scale, shift], axis=0)              # (2, C) f32


def pack_bottleneck_params(p, cin):
    """Pad channels to multiples of 128, cast weights to bf16, lay out the 3x3
    weight as (9*C1, C1) rows ordered (ky, kx, cin).  Do this once per block."""
    planes = p['w1'].shape[0]
    cout = p['w3'].shape[0]
    C0 = _round_up(cin, LANE)
    C1 = _round_up(planes, LANE)
    C2 = _round_up(cout, LANE)
    w1m = jnp.pad(p['w1'][:, :, 0, 0].T,
                  ((0, C0 - cin), (0, C1 - planes))).astype(MXU_DTYPE)
    w2m = jnp.pad(jnp.transpose(p['w2'], (2, 3, 1, 0)),        # (3,3,Cin,Cout)
                  ((0, 0), (0, 0), (0, C1 - planes), (0, C1 - planes)))
    w2m = w2m.reshape(9 * C1, C1).astype(MXU_DTYPE)
    w3m = jnp.pad(p['w3'][:, :, 0, 0].T,
                  ((0, C1 - planes), (0, C2 - cout))).astype(MXU_DTYPE)
    pad1 = (0, C1 - planes)
    pad2 = (0, C2 - cout)
    return dict(
        C0=C0, C1=C1, C2=C2, cin=cin, planes=planes, cout=cout,
        w1=w1m, w2=w2m, w3=w3m,
        g1=jnp.pad(p['g1'], pad1), b1=jnp.pad(p['b1'], pad1),
        g2=jnp.pad(p['g2'], pad1), b2=jnp.pad(p['b2'], pad1),
        g3=jnp.pad(p['g3'], pad2), b3=jnp.pad(p['b3'], pad2),
    )


def bottleneck_forward_flat(x2d, pk, n, h, w, *, block_m=None):
    """Core block on the NHWC-flat, 128-padded layout.

    x2d: (n*h*w, C0) float32 (channels-last flat, zero-padded channels).
    Returns (n*h*w, C2) float32 in the same layout (C0 == C2 here)."""
    f32 = jnp.float32
    m = n * h * w
    C0, C1, C2 = pk['C0'], pk['C1'], pk['C2']
    assert x2d.shape == (m, C0)
    assert C0 == C2, "downsample=None path requires inplanes == planes*4"

    vmem_budget = _vmem_budget_bytes()
    tm = _pick_block_m(m, max(C0, C1, C2), vmem_budget, block_m)
    mp = _round_up(m, tm)
    nm = mp // tm
    cp = pltpu.CompilerParams(dimension_semantics=("parallel",),
                              vmem_limit_bytes=vmem_budget)

    xp = x2d if mp == m else jnp.pad(x2d, ((0, mp - m), (0, 0)))

    # ---- stage 1: conv1 (1x1) + BN1 partial stats ----------------------------
    y1, st1 = pl.pallas_call(
        conv1x1_stats_kernel,
        grid=(nm,),
        in_specs=[pl.BlockSpec((tm, C0), lambda i: (i, 0)),
                  pl.BlockSpec((C0, C1), lambda i: (0, 0))],
        out_specs=(pl.BlockSpec((tm, C1), lambda i: (i, 0)),
                   pl.BlockSpec((1, 2, C1), lambda i: (i, 0, 0))),
        out_shape=(jax.ShapeDtypeStruct((mp, C1), MXU_DTYPE),
                   jax.ShapeDtypeStruct((nm, 2, C1), f32)),
        compiler_params=cp,
    )(xp, pk['w1'])
    sc1 = _bn_scale_shift(st1, pk['g1'], pk['b1'], m)

    # ---- stage 2: BN1+relu fused into conv2 (3x3, 9 shifted matmuls) ---------
    y1_img = (y1 if mp == m else y1[:m]).reshape(n, h * w, C1)
    y2, st2 = pl.pallas_call(
        functools.partial(bn_relu_conv3x3_stats_kernel, h=h, w=w),
        grid=(n,),
        in_specs=[pl.BlockSpec((1, h * w, C1), lambda i: (i, 0, 0)),
                  pl.BlockSpec((9 * C1, C1), lambda i: (0, 0)),
                  pl.BlockSpec((2, C1), lambda i: (0, 0))],
        out_specs=(pl.BlockSpec((1, h * w, C1), lambda i: (i, 0, 0)),
                   pl.BlockSpec((1, 2, C1), lambda i: (i, 0, 0))),
        out_shape=(jax.ShapeDtypeStruct((n, h * w, C1), MXU_DTYPE),
                   jax.ShapeDtypeStruct((n, 2, C1), f32)),
        scratch_shapes=[pltpu.VMEM((h + 2, w + 2, C1), MXU_DTYPE)],
        compiler_params=cp,
    )(y1_img, pk['w2'], sc1)
    sc2 = _bn_scale_shift(st2, pk['g2'], pk['b2'], m)

    # ---- stage 3: BN2+relu fused into conv3 (1x1) + BN3 partials -------------
    y2f = y2.reshape(m, C1)
    y2p = y2f if mp == m else jnp.pad(y2f, ((0, mp - m), (0, 0)))
    y3, st3 = pl.pallas_call(
        functools.partial(bn_relu_conv1x1_stats_kernel,
                          valid_rows=None if mp == m else m),
        grid=(nm,),
        in_specs=[pl.BlockSpec((tm, C1), lambda i: (i, 0)),
                  pl.BlockSpec((C1, C2), lambda i: (0, 0)),
                  pl.BlockSpec((2, C1), lambda i: (0, 0))],
        out_specs=(pl.BlockSpec((tm, C2), lambda i: (i, 0)),
                   pl.BlockSpec((1, 2, C2), lambda i: (i, 0, 0))),
        out_shape=(jax.ShapeDtypeStruct((mp, C2), MXU_DTYPE),
                   jax.ShapeDtypeStruct((nm, 2, C2), f32)),
        compiler_params=cp,
    )(y2p, pk['w3'], sc2)
    sc3 = _bn_scale_shift(st3, pk['g3'], pk['b3'], m)

    # ---- stage 4: BN3 apply + residual add + relu (f32) ----------------------
    outp = pl.pallas_call(
        bn_add_relu_kernel,
        grid=(nm,),
        in_specs=[pl.BlockSpec((tm, C2), lambda i: (i, 0)),
                  pl.BlockSpec((tm, C2), lambda i: (i, 0)),
                  pl.BlockSpec((2, C2), lambda i: (0, 0))],
        out_specs=pl.BlockSpec((tm, C2), lambda i: (i, 0)),
        out_shape=jax.ShapeDtypeStruct((mp, C2), f32),
        compiler_params=cp,
    )(y3, xp, sc3)

    return outp if mp == m else outp[:m]


def bottleneck_forward(x_nchw, p, *, block_m=None):
    """NCHW boundary wrapper.  In steady state (stacking blocks) keep the
    activations in the NHWC-flat 128-padded layout and call
    bottleneck_forward_flat directly to avoid per-block transposes."""
    n, cin, h, w = x_nchw.shape
    pk = pack_bottleneck_params(p, cin)
    assert cin == pk['cout'], "downsample=None path requires inplanes == planes*4"

    x2d = jnp.transpose(x_nchw, (0, 2, 3, 1)).reshape(n * h * w, cin)
    x2d = jnp.pad(x2d.astype(jnp.float32), ((0, 0), (0, pk['C0'] - cin)))

    out_flat = bottleneck_forward_flat(x2d, pk, n, h, w, block_m=block_m)
    out = out_flat[:, :pk['cout']].reshape(n, h, w, pk['cout'])
    return jnp.transpose(out, (0, 3, 1, 2)).astype(x_nchw.dtype)


# -----------------------------------------------------------------------------
# Test harness
# -----------------------------------------------------------------------------
def init_params(key, inplanes, planes):
    ks = jax.random.split(key, 9)
    f32 = jnp.float32
    return {
        'w1': 0.1 * jax.random.normal(ks[0], (planes, inplanes, 1, 1), f32),
        'g1': 1.0 + 0.1 * jax.random.normal(ks[1], (planes,), f32),
        'b1': 0.1 * jax.random.normal(ks[2], (planes,), f32),
        'w2': 0.1 * jax.random.normal(ks[3], (planes, planes, 3, 3), f32),
        'g2': 1.0 + 0.1 * jax.random.normal(ks[4], (planes,), f32),
        'b2': 0.1 * jax.random.normal(ks[5], (planes,), f32),
        'w3': 0.1 * jax.random.normal(ks[6], (planes * 4, planes, 1, 1), f32),
        'g3': 1.0 + 0.1 * jax.random.normal(ks[7], (planes * 4,), f32),
        'b3': 0.1 * jax.random.normal(ks[8], (planes * 4,), f32),
    }


def reference_forward(x, p):
    """Pure-JAX reference mirroring the PyTorch forward (training-mode BN)."""
    def conv(x, w, stride=1, pad=0):
        return jax.lax.conv_general_dilated(
            x, w, (stride, stride), [(pad, pad), (pad, pad)],
            dimension_numbers=('NCHW', 'OIHW', 'NCHW'))

    def bn(x, g, b):
        mean = jnp.mean(x, axis=(0, 2, 3), keepdims=True)
        var = jnp.mean(jnp.square(x - mean), axis=(0, 2, 3), keepdims=True)
        return ((x - mean) * jax.lax.rsqrt(var + EPS)
                * g[None, :, None, None] + b[None, :, None, None])

    out = jax.nn.relu(bn(conv(x, p['w1']), p['g1'], p['b1']))
    out = jax.nn.relu(bn(conv(out, p['w2'], 1, 1), p['g2'], p['b2']))
    out = bn(conv(out, p['w3']), p['g3'], p['b3'])
    return jax.nn.relu(out + x)


if __name__ == "__main__":
    key = jax.random.PRNGKey(0)
    k_x, k_p = jax.random.split(key)

    N, planes, H, W = 2, 8, 16, 16
    inplanes = planes * 4                      # required for downsample=None
    x = jax.random.normal(k_x, (N, inplanes, H, W), jnp.float32)
    params = init_params(k_p, inplanes, planes)

    # block_m=192 does not divide M = 2*16*16 = 512, so this exercises the
    # multi-tile grid, the padded-M tail and the masked BN-statistic path.
    fwd = jax.jit(functools.partial(bottleneck_forward, block_m=192))
    out = jax.block_until_ready(fwd(x, params))
    ref = jax.block_until_ready(reference_forward(x, params))

    assert out.shape == (N, inplanes, H, W)
    err = float(jnp.max(jnp.abs(out - ref)))
    # Tolerance accounts for bf16 MXU operands and bf16 inter-stage activation
    # storage (f32 accumulation, f32 BN apply / residual) vs. pure-f32 reference.
    assert jnp.allclose(out, ref, rtol=5e-2, atol=5e-2), err

    print("KERNEL_OK")
</pallas_src>

<mosaic_0001>
module attributes {stable_mosaic.version = 11 : i64} {
  func.func @conv1x1_stats_kernel(%arg0: i32, %arg1: memref<192x128xf32, #tpu.memory_space<vmem>>, %arg2: memref<128x128xbf16, #tpu.memory_space<vmem>>, %arg3: memref<192x128xbf16, #tpu.memory_space<vmem>>, %arg4: memref<1x2x128xf32, #tpu.memory_space<vmem>>) attributes {dimension_semantics = [#tpu.dimension_semantics<parallel>], iteration_bounds = array<i64: 3>, scalar_prefetch = 0 : i64, scratch_operands = 0 : i64, tpu.core_type = #tpu.core_type<tc>, window_params = [{transform_indices = @transform_0, window_bounds = array<i64: 192, 128>}, {pipeline_mode = #tpu.pipeline_mode<synchronous>, transform_indices = @transform_1, window_bounds = array<i64: 128, 128>}, {transform_indices = @transform_2, window_bounds = array<i64: 192, 128>}, {transform_indices = @transform_3, window_bounds = array<i64: 1, 2, 128>}]} {
    %c0 = arith.constant 0 : index
    %c0_0 = arith.constant 0 : index
    %0 = vector.load %arg1[%c0, %c0_0] : memref<192x128xf32, #tpu.memory_space<vmem>>, vector<192x128xf32>
    %1 = arith.truncf %0 : vector<192x128xf32> to vector<192x128xbf16>
    %c0_1 = arith.constant 0 : index
    %c0_2 = arith.constant 0 : index
    %2 = vector.load %arg2[%c0_1, %c0_2] : memref<128x128xbf16, #tpu.memory_space<vmem>>, vector<128x128xbf16>
    %cst = arith.constant dense<0.000000e+00> : vector<192x128xf32>
    %3 = tpu.matmul %1, %2, %cst {dimension_numbers = #tpu.dot_dimension_numbers<[1], [0], [0], [1], [0, 0, 1, 1], [], []>} : vector<192x128xbf16>, vector<128x128xbf16>, vector<192x128xf32> -> vector<192x128xf32>
    %4 = arith.truncf %3 : vector<192x128xf32> to vector<192x128xbf16>
    %c0_3 = arith.constant 0 : index
    %c0_4 = arith.constant 0 : index
    %5 = vector.load %arg3[%c0_3, %c0_4] : memref<192x128xbf16, #tpu.memory_space<vmem>>, vector<192x128xbf16>
    tpu.vector_store %arg3[%c0_3, %c0_4], %4 {strides = array<i32>} : memref<192x128xbf16, #tpu.memory_space<vmem>>, vector<192x128xbf16>,
    %cst_5 = arith.constant dense<0.000000e+00> : vector<128xf32>
    %6 = vector.multi_reduction <add>, %3, %cst_5 [0] : vector<192x128xf32> to vector<128xf32>
    %7 = vector.shape_cast %6 : vector<128xf32> to vector<1x128xf32>
    %8 = vector.shape_cast %7 : vector<1x128xf32> to vector<1x1x128xf32>
    %c0_6 = arith.constant 0 : index
    %c0_7 = arith.constant 0 : index
    %c0_8 = arith.constant 0 : index
    %9 = vector.load %arg4[%c0_6, %c0_7, %c0_8] : memref<1x2x128xf32, #tpu.memory_space<vmem>>, vector<1x1x128xf32>
    tpu.vector_store %arg4[%c0_6, %c0_7, %c0_8], %8 {strides = array<i32>} : memref<1x2x128xf32, #tpu.memory_space<vmem>>, vector<1x1x128xf32>,
    %10 = arith.mulf %3, %3 : vector<192x128xf32>
    %cst_9 = arith.constant dense<0.000000e+00> : vector<128xf32>
    %11 = vector.multi_reduction <add>, %10, %cst_9 [0] : vector<192x128xf32> to vector<128xf32>
    %12 = vector.shape_cast %11 : vector<128xf32> to vector<1x128xf32>
    %13 = vector.shape_cast %12 : vector<1x128xf32> to vector<1x1x128xf32>
    %c0_10 = arith.constant 0 : index
    %c1 = arith.constant 1 : index
    %c0_11 = arith.constant 0 : index
    %14 = vector.load %arg4[%c0_10, %c1, %c0_11] : memref<1x2x128xf32, #tpu.memory_space<vmem>>, vector<1x1x128xf32>
    tpu.vector_store %arg4[%c0_10, %c1, %c0_11], %13 {strides = array<i32>} : memref<1x2x128xf32, #tpu.memory_space<vmem>>, vector<1x1x128xf32>,
    return
  }
  func.func @transform_0(%arg0: i32) -> (i32, i32) {
    %c0_i32 = arith.constant 0 : i32
    %c0_i32_0 = arith.constant 0 : i32
    return %arg0, %c0_i32 : i32, i32
  }
  func.func @transform_1(%arg0: i32) -> (i32, i32) {
    %c0_i32 = arith.constant 0 : i32
    %c0_i32_0 = arith.constant 0 : i32
    %c0_i32_1 = arith.constant 0 : i32
    return %c0_i32, %c0_i32_0 : i32, i32
  }
  func.func @transform_2(%arg0: i32) -> (i32, i32) {
    %c0_i32 = arith.constant 0 : i32
    %c0_i32_0 = arith.constant 0 : i32
    return %arg0, %c0_i32 : i32, i32
  }
  func.func @transform_3(%arg0: i32) -> (i32, i32, i32) {
    %c0_i32 = arith.constant 0 : i32
    %c0_i32_0 = arith.constant 0 : i32
    %c0_i32_1 = arith.constant 0 : i32
    return %arg0, %c0_i32, %c0_i32_0 : i32, i32, i32
  }
}

module attributes {stable_mosaic.version = 11 : i64} {
  func.func @bn_relu_conv3x3_stats_kernel(%arg0: i32, %arg1: memref<1x256x128xbf16, #tpu.memory_space<vmem>>, %arg2: memref<1152x128xbf16, #tpu.memory_space<vmem>>, %arg3: memref<2x128xf32, #tpu.memory_space<vmem>>, %arg4: memref<1x256x128xbf16, #tpu.memory_space<vmem>>, %arg5: memref<1x2x128xf32, #tpu.memory_space<vmem>>, %arg6: memref<18x18x128xbf16, #tpu.memory_space<vmem>>) attributes {dimension_semantics = [#tpu.dimension_semantics<parallel>], iteration_bounds = array<i64: 2>, scalar_prefetch = 0 : i64, scratch_operands = 1 : i64, tpu.core_type = #tpu.core_type<tc>, window_params = [{transform_indices = @transform_0, window_bounds = array<i64: 1, 256, 128>}, {pipeline_mode = #tpu.pipeline_mode<synchronous>, transform_indices = @transform_1, window_bounds = array<i64: 1152, 128>}, {pipeline_mode = #tpu.pipeline_mode<synchronous>, transform_indices = @transform_2, window_bounds = array<i64: 2, 128>}, {transform_indices = @transform_3, window_bounds = array<i64: 1, 256, 128>}, {transform_indices = @transform_4, window_bounds = array<i64: 1, 2, 128>}]} {
    %c0 = arith.constant 0 : index
    %c0_0 = arith.constant 0 : index
    %c0_1 = arith.constant 0 : index
    %0 = vector.load %arg1[%c0, %c0_0, %c0_1] : memref<1x256x128xbf16, #tpu.memory_space<vmem>>, vector<1x256x128xbf16>
    %1 = vector.shape_cast %0 : vector<1x256x128xbf16> to vector<256x128xbf16>
    %2 = arith.extf %1 : vector<256x128xbf16> to vector<256x128xf32>
    %c0_2 = arith.constant 0 : index
    %c0_3 = arith.constant 0 : index
    %3 = vector.load %arg3[%c0_2, %c0_3] : memref<2x128xf32, #tpu.memory_space<vmem>>, vector<1x128xf32>
    %4 = vector.broadcast %3 : vector<1x128xf32> to vector<256x128xf32>
    %5 = arith.mulf %2, %4 : vector<256x128xf32>
    %c1 = arith.constant 1 : index
    %c0_4 = arith.constant 0 : index
    %6 = vector.load %arg3[%c1, %c0_4] : memref<2x128xf32, #tpu.memory_space<vmem>>, vector<1x128xf32>
    %7 = vector.broadcast %6 : vector<1x128xf32> to vector<256x128xf32>
    %8 = arith.addf %5, %7 : vector<256x128xf32>
    %cst = arith.constant 0.000000e+00 : f32
    %9 = vector.broadcast %cst : f32 to vector<256x128xf32>
    %10 = arith.maximumf %8, %9 : vector<256x128xf32>
    %11 = vector.shape_cast %10 : vector<256x128xf32> to vector<16x16x128xf32>
    %12 = arith.truncf %11 : vector<16x16x128xf32> to vector<16x16x128xbf16>
    %c1_5 = arith.constant 1 : index
    %c1_6 = arith.constant 1 : index
    %c0_7 = arith.constant 0 : index
    %13 = vector.load %arg6[%c1_5, %c1_6, %c0_7] : memref<18x18x128xbf16, #tpu.memory_space<vmem>>, vector<16x16x128xbf16>
    tpu.vector_store %arg6[%c1_5, %c1_6, %c0_7], %12 {strides = array<i32>} : memref<18x18x128xbf16, #tpu.memory_space<vmem>>, vector<16x16x128xbf16>,
    %cst_8 = arith.constant 0.000000e+00 : bf16
    %14 = vector.broadcast %cst_8 : bf16 to vector<1x18x128xbf16>
    %c0_9 = arith.constant 0 : index
    %c0_10 = arith.constant 0 : index
    %c0_11 = arith.constant 0 : index
    %15 = vector.load %arg6[%c0_9, %c0_10, %c0_11] : memref<18x18x128xbf16, #tpu.memory_space<vmem>>, vector<1x18x128xbf16>
    tpu.vector_store %arg6[%c0_9, %c0_10, %c0_11], %14 {strides = array<i32>} : memref<18x18x128xbf16, #tpu.memory_space<vmem>>, vector<1x18x128xbf16>,
    %c17 = arith.constant 17 : index
    %c0_12 = arith.constant 0 : index
    %c0_13 = arith.constant 0 : index
    %16 = vector.load %arg6[%c17, %c0_12, %c0_13] : memref<18x18x128xbf16, #tpu.memory_space<vmem>>, vector<1x18x128xbf16>
    tpu.vector_store %arg6[%c17, %c0_12, %c0_13], %14 {strides = array<i32>} : memref<18x18x128xbf16, #tpu.memory_space<vmem>>, vector<1x18x128xbf16>,
    %cst_14 = arith.constant 0.000000e+00 : bf16
    %17 = vector.broadcast %cst_14 : bf16 to vector<16x1x128xbf16>
    %c1_15 = arith.constant 1 : index
    %c0_16 = arith.constant 0 : index
    %c0_17 = arith.constant 0 : index
    %18 = vector.load %arg6[%c1_15, %c0_16, %c0_17] : memref<18x18x128xbf16, #tpu.memory_space<vmem>>, vector<16x1x128xbf16>
    tpu.vector_store %arg6[%c1_15, %c0_16, %c0_17], %17 {strides = array<i32>} : memref<18x18x128xbf16, #tpu.memory_space<vmem>>, vector<16x1x128xbf16>,
    %c1_18 = arith.constant 1 : index
    %c17_19 = arith.constant 17 : index
    %c0_20 = arith.constant 0 : index
    %19 = vector.load %arg6[%c1_18, %c17_19, %c0_20] : memref<18x18x128xbf16, #tpu.memory_space<vmem>>, vector<16x1x128xbf16>
    tpu.vector_store %arg6[%c1_18, %c17_19, %c0_20], %17 {strides = array<i32>} : memref<18x18x128xbf16, #tpu.memory_space<vmem>>, vector<16x1x128xbf16>,
    %cst_21 = arith.constant 0.000000e+00 : f32
    %20 = vector.broadcast %cst_21 : f32 to vector<256x128xf32>
    %c0_22 = arith.constant 0 : index
    %c0_23 = arith.constant 0 : index
    %c0_24 = arith.constant 0 : index
    %21 = vector.load %arg6[%c0_22, %c0_23, %c0_24] : memref<18x18x128xbf16, #tpu.memory_space<vmem>>, vector<16x16x128xbf16>
    %22 = vector.shape_cast %21 : vector<16x16x128xbf16> to vector<256x128xbf16>
    %c0_25 = arith.constant 0 : index
    %c0_26 = arith.constant 0 : index
    %23 = vector.load %arg2[%c0_25, %c0_26] : memref<1152x128xbf16, #tpu.memory_space<vmem>>, vector<128x128xbf16>
    %cst_27 = arith.constant dense<0.000000e+00> : vector<256x128xf32>
    %24 = tpu.matmul %22, %23, %cst_27 {dimension_numbers = #tpu.dot_dimension_numbers<[1], [0], [0], [1], [0, 0, 1, 1], [], []>} : vector<256x128xbf16>, vector<128x128xbf16>, vector<256x128xf32> -> vector<256x128xf32>
    %25 = arith.addf %20, %24 : vector<256x128xf32>
    %c0_28 = arith.constant 0 : index
    %c1_29 = arith.constant 1 : index
    %c0_30 = arith.constant 0 : index
    %26 = vector.load %arg6[%c0_28, %c1_29, %c0_30] : memref<18x18x128xbf16, #tpu.memory_space<vmem>>, vector<16x16x128xbf16>
    %27 = vector.shape_cast %26 : vector<16x16x128xbf16> to vector<256x128xbf16>
    %c128 = arith.constant 128 : index
    %c0_31 = arith.constant 0 : index
    %28 = vector.load %arg2[%c128, %c0_31] : memref<1152x128xbf16, #tpu.memory_space<vmem>>, vector<128x128xbf16>
    %cst_32 = arith.constant dense<0.000000e+00> : vector<256x128xf32>
    %29 = tpu.matmul %27, %28, %cst_32 {dimension_numbers = #tpu.dot_dimension_numbers<[1], [0], [0], [1], [0, 0, 1, 1], [], []>} : vector<256x128xbf16>, vector<128x128xbf16>, vector<256x128xf32> -> vector<256x128xf32>
    %30 = arith.addf %25, %29 : vector<256x128xf32>
    %c0_33 = arith.constant 0 : index
    %c2 = arith.constant 2 : index
    %c0_34 = arith.constant 0 : index
    %31 = vector.load %arg6[%c0_33, %c2, %c0_34] : memref<18x18x128xbf16, #tpu.memory_space<vmem>>, vector<16x16x128xbf16>
    %32 = vector.shape_cast %31 : vector<16x16x128xbf16> to vector<256x128xbf16>
    %c256 = arith.constant 256 : index
    %c0_35 = arith.constant 0 : index
    %33 = vector.load %arg2[%c256, %c0_35] : memref<1152x128xbf16, #tpu.memory_space<vmem>>, vector<128x128xbf16>
    %cst_36 = arith.constant dense<0.000000e+00> : vector<256x128xf32>
    %34 = tpu.matmul %32, %33, %cst_36 {dimension_numbers = #tpu.dot_dimension_numbers<[1], [0], [0], [1], [0, 0, 1, 1], [], []>} : vector<256x128xbf16>, vector<128x128xbf16>, vector<256x128xf32> -> vector<256x128xf32>
    %35 = arith.addf %30, %34 : vector<256x128xf32>
    %c1_37 = arith.constant 1 : index
    %c0_38 = arith.constant 0 : index
    %c0_39 = arith.constant 0 : index
    %36 = vector.load %arg6[%c1_37, %c0_38, %c0_39] : memref<18x18x128xbf16, #tpu.memory_space<vmem>>, vector<16x16x128xbf16>
    %37 = vector.shape_cast %36 : vector<16x16x128xbf16> to vector<256x128xbf16>
    %c384 = arith.constant 384 : index
    %c0_40 = arith.constant 0 : index
    %38 = vector.load %arg2[%c384, %c0_40] : memref<1152x128xbf16, #tpu.memory_space<vmem>>, vector<128x128xbf16>
    %cst_41 = arith.constant dense<0.000000e+00> : vector<256x128xf32>
    %39 = tpu.matmul %37, %38, %cst_41 {dimension_numbers = #tpu.dot_dimension_numbers<[1], [0], [0], [1], [0, 0, 1, 1], [], []>} : vector<256x128xbf16>, vector<128x128xbf16>, vector<256x128xf32> -> vector<256x128xf32>
    %40 = arith.addf %35, %39 : vector<256x128xf32>
    %c1_42 = arith.constant 1 : index
    %c1_43 = arith.constant 1 : index
    %c0_44 = arith.constant 0 : index
    %41 = vector.load %arg6[%c1_42, %c1_43, %c0_44] : memref<18x18x128xbf16, #tpu.memory_space<vmem>>, vector<16x16x128xbf16>
    %42 = vector.shape_cast %41 : vector<16x16x128xbf16> to vector<256x128xbf16>
    %c512 = arith.constant 512 : index
    %c0_45 = arith.constant 0 : index
    %43 = vector.load %arg2[%c512, %c0_45] : memref<1152x128xbf16, #tpu.memory_space<vmem>>, vector<128x128xbf16>
    %cst_46 = arith.constant dense<0.000000e+00> : vector<256x128xf32>
    %44 = tpu.matmul %42, %43, %cst_46 {dimension_numbers = #tpu.dot_dimension_numbers<[1], [0], [0], [1], [0, 0, 1, 1], [], []>} : vector<256x128xbf16>, vector<128x128xbf16>, vector<256x128xf32> -> vector<256x128xf32>
    %45 = arith.addf %40, %44 : vector<256x128xf32>
    %c1_47 = arith.constant 1 : index
    %c2_48 = arith.constant 2 : index
    %c0_49 = arith.constant 0 : index
    %46 = vector.load %arg6[%c1_47, %c2_48, %c0_49] : memref<18x18x128xbf16, #tpu.memory_space<vmem>>, vector<16x16x128xbf16>
    %47 = vector.shape_cast %46 : vector<16x16x128xbf16> to vector<256x128xbf16>
    %c640 = arith.constant 640 : index
    %c0_50 = arith.constant 0 : index
    %48 = vector.load %arg2[%c640, %c0_50] : memref<1152x128xbf16, #tpu.memory_space<vmem>>, vector<128x128xbf16>
    %cst_51 = arith.constant dense<0.000000e+00> : vector<256x128xf32>
    %49 = tpu.matmul %47, %48, %cst_51 {dimension_numbers = #tpu.dot_dimension_numbers<[1], [0], [0], [1], [0, 0, 1, 1], [], []>} : vector<256x128xbf16>, vector<128x128xbf16>, vector<256x128xf32> -> vector<256x128xf32>
    %50 = arith.addf %45, %49 : vector<256x128xf32>
    %c2_52 = arith.constant 2 : index
    %c0_53 = arith.constant 0 : index
    %c0_54 = arith.constant 0 : index
    %51 = vector.load %arg6[%c2_52, %c0_53, %c0_54] : memref<18x18x128xbf16, #tpu.memory_space<vmem>>, vector<16x16x128xbf16>
    %52 = vector.shape_cast %51 : vector<16x16x128xbf16> to vector<256x128xbf16>
    %c768 = arith.constant 768 : index
    %c0_55 = arith.constant 0 : index
    %53 = vector.load %arg2[%c768, %c0_55] : memref<1152x128xbf16, #tpu.memory_space<vmem>>, vector<128x128xbf16>
    %cst_56 = arith.constant dense<0.000000e+00> : vector<256x128xf32>
    %54 = tpu.matmul %52, %53, %cst_56 {dimension_numbers = #tpu.dot_dimension_numbers<[1], [0], [0], [1], [0, 0, 1, 1], [], []>} : vector<256x128xbf16>, vector<128x128xbf16>, vector<256x128xf32> -> vector<256x128xf32>
    %55 = arith.addf %50, %54 : vector<256x128xf32>
    %c2_57 = arith.constant 2 : index
    %c1_58 = arith.constant 1 : index
    %c0_59 = arith.constant 0 : index
    %56 = vector.load %arg6[%c2_57, %c1_58, %c0_59] : memref<18x18x128xbf16, #tpu.memory_space<vmem>>, vector<16x16x128xbf16>
    %57 = vector.shape_cast %56 : vector<16x16x128xbf16> to vector<256x128xbf16>
    %c896 = arith.constant 896 : index
    %c0_60 = arith.constant 0 : index
    %58 = vector.load %arg2[%c896, %c0_60] : memref<1152x128xbf16, #tpu.memory_space<vmem>>, vector<128x128xbf16>
    %cst_61 = arith.constant dense<0.000000e+00> : vector<256x128xf32>
    %59 = tpu.matmul %57, %58, %cst_61 {dimension_numbers = #tpu.dot_dimension_numbers<[1], [0], [0], [1], [0, 0, 1, 1], [], []>} : vector<256x128xbf16>, vector<128x128xbf16>, vector<256x128xf32> -> vector<256x128xf32>
    %60 = arith.addf %55, %59 : vector<256x128xf32>
    %c2_62 = arith.constant 2 : index
    %c2_63 = arith.constant 2 : index
    %c0_64 = arith.constant 0 : index
    %61 = vector.load %arg6[%c2_62, %c2_63, %c0_64] : memref<18x18x128xbf16, #tpu.memory_space<vmem>>, vector<16x16x128xbf16>
    %62 = vector.shape_cast %61 : vector<16x16x128xbf16> to vector<256x128xbf16>
    %c1024 = arith.constant 1024 : index
    %c0_65 = arith.constant 0 : index
    %63 = vector.load %arg2[%c1024, %c0_65] : memref<1152x128xbf16, #tpu.memory_space<vmem>>, vector<128x128xbf16>
    %cst_66 = arith.constant dense<0.000000e+00> : vector<256x128xf32>
    %64 = tpu.matmul %62, %63, %cst_66 {dimension_numbers = #tpu.dot_dimension_numbers<[1], [0], [0], [1], [0, 0, 1, 1], [], []>} : vector<256x128xbf16>, vector<128x128xbf16>, vector<256x128xf32> -> vector<256x128xf32>
    %65 = arith.addf %60, %64 : vector<256x128xf32>
    %66 = arith.truncf %65 : vector<256x128xf32> to vector<256x128xbf16>
    %c0_67 = arith.constant 0 : index
    %c0_68 = arith.constant 0 : index
    %c0_69 = arith.constant 0 : index
    %67 = vector.load %arg4[%c0_67, %c0_68, %c0_69] : memref<1x256x128xbf16, #tpu.memory_space<vmem>>, vector<1x256x128xbf16>
    %68 = vector.shape_cast %67 : vector<1x256x128xbf16> to vector<256x128xbf16>
    %69 = vector.shape_cast %66 : vector<256x128xbf16> to vector<1x256x128xbf16>
    tpu.vector_store %arg4[%c0_67, %c0_68, %c0_69], %69 {strides = array<i32>} : memref<1x256x128xbf16, #tpu.memory_space<vmem>>, vector<1x256x128xbf16>,
    %cst_70 = arith.constant dense<0.000000e+00> : vector<128xf32>
    %70 = vector.multi_reduction <add>, %65, %cst_70 [0] : vector<256x128xf32> to vector<128xf32>
    %71 = vector.shape_cast %70 : vector<128xf32> to vector<1x128xf32>
    %72 = vector.shape_cast %71 : vector<1x128xf32> to vector<1x1x128xf32>
    %c0_71 = arith.constant 0 : index
    %c0_72 = arith.constant 0 : index
    %c0_73 = arith.constant 0 : index
    %73 = vector.load %arg5[%c0_71, %c0_72, %c0_73] : memref<1x2x128xf32, #tpu.memory_space<vmem>>, vector<1x1x128xf32>
    tpu.vector_store %arg5[%c0_71, %c0_72, %c0_73], %72 {strides = array<i32>} : memref<1x2x128xf32, #tpu.memory_space<vmem>>, vector<1x1x128xf32>,
    %74 = arith.mulf %65, %65 : vector<256x128xf32>
    %cst_74 = arith.constant dense<0.000000e+00> : vector<128xf32>
    %75 = vector.multi_reduction <add>, %74, %cst_74 [0] : vector<256x128xf32> to vector<128xf32>
    %76 = vector.shape_cast %75 : vector<128xf32> to vector<1x128xf32>
    %77 = vector.shape_cast %76 : vector<1x128xf32> to vector<1x1x128xf32>
    %c0_75 = arith.constant 0 : index
    %c1_76 = arith.constant 1 : index
    %c0_77 = arith.constant 0 : index
    %78 = vector.load %arg5[%c0_75, %c1_76, %c0_77] : memref<1x2x128xf32, #tpu.memory_space<vmem>>, vector<1x1x128xf32>
    tpu.vector_store %arg5[%c0_75, %c1_76, %c0_77], %77 {strides = array<i32>} : memref<1x2x128xf32, #tpu.memory_space<vmem>>, vector<1x1x128xf32>,
    return
  }
  func.func @transform_0(%arg0: i32) -> (i32, i32, i32) {
    %c0_i32 = arith.constant 0 : i32
    %c0_i32_0 = arith.constant 0 : i32
    %c0_i32_1 = arith.constant 0 : i32
    return %arg0, %c0_i32, %c0_i32_0 : i32, i32, i32
  }
  func.func @transform_1(%arg0: i32) -> (i32, i32) {
    %c0_i32 = arith.constant 0 : i32
    %c0_i32_0 = arith.constant 0 : i32
    %c0_i32_1 = arith.constant 0 : i32
    return %c0_i32, %c0_i32_0 : i32, i32
  }
  func.func @transform_2(%arg0: i32) -> (i32, i32) {
    %c0_i32 = arith.constant 0 : i32
    %c0_i32_0 = arith.constant 0 : i32
    %c0_i32_1 = arith.constant 0 : i32
    return %c0_i32, %c0_i32_0 : i32, i32
  }
  func.func @transform_3(%arg0: i32) -> (i32, i32, i32) {
    %c0_i32 = arith.constant 0 : i32
    %c0_i32_0 = arith.constant 0 : i32
    %c0_i32_1 = arith.constant 0 : i32
    return %arg0, %c0_i32, %c0_i32_0 : i32, i32, i32
  }
  func.func @transform_4(%arg0: i32) -> (i32, i32, i32) {
    %c0_i32 = arith.constant 0 : i32
    %c0_i32_0 = arith.constant 0 : i32
    %c0_i32_1 = arith.constant 0 : i32
    return %arg0, %c0_i32, %c0_i32_0 : i32, i32, i32
  }
}

module attributes {stable_mosaic.version = 11 : i64} {
  func.func @bn_relu_conv1x1_stats_kernel(%arg0: i32, %arg1: memref<192x128xbf16, #tpu.memory_space<vmem>>, %arg2: memref<128x128xbf16, #tpu.memory_space<vmem>>, %arg3: memref<2x128xf32, #tpu.memory_space<vmem>>, %arg4: memref<192x128xbf16, #tpu.memory_space<vmem>>, %arg5: memref<1x2x128xf32, #tpu.memory_space<vmem>>) attributes {dimension_semantics = [#tpu.dimension_semantics<parallel>], iteration_bounds = array<i64: 3>, scalar_prefetch = 0 : i64, scratch_operands = 0 : i64, tpu.core_type = #tpu.core_type<tc>, window_params = [{transform_indices = @transform_0, window_bounds = array<i64: 192, 128>}, {pipeline_mode = #tpu.pipeline_mode<synchronous>, transform_indices = @transform_1, window_bounds = array<i64: 128, 128>}, {pipeline_mode = #tpu.pipeline_mode<synchronous>, transform_indices = @transform_2, window_bounds = array<i64: 2, 128>}, {transform_indices = @transform_3, window_bounds = array<i64: 192, 128>}, {transform_indices = @transform_4, window_bounds = array<i64: 1, 2, 128>}]} {
    %c0 = arith.constant 0 : index
    %c0_0 = arith.constant 0 : index
    %0 = vector.load %arg1[%c0, %c0_0] : memref<192x128xbf16, #tpu.memory_space<vmem>>, vector<192x128xbf16>
    %1 = arith.extf %0 : vector<192x128xbf16> to vector<192x128xf32>
    %c0_1 = arith.constant 0 : index
    %c0_2 = arith.constant 0 : index
    %2 = vector.load %arg3[%c0_1, %c0_2] : memref<2x128xf32, #tpu.memory_space<vmem>>, vector<1x128xf32>
    %3 = vector.broadcast %2 : vector<1x128xf32> to vector<192x128xf32>
    %4 = arith.mulf %1, %3 : vector<192x128xf32>
    %c1 = arith.constant 1 : index
    %c0_3 = arith.constant 0 : index
    %5 = vector.load %arg3[%c1, %c0_3] : memref<2x128xf32, #tpu.memory_space<vmem>>, vector<1x128xf32>
    %6 = vector.broadcast %5 : vector<1x128xf32> to vector<192x128xf32>
    %7 = arith.addf %4, %6 : vector<192x128xf32>
    %cst = arith.constant 0.000000e+00 : f32
    %8 = vector.broadcast %cst : f32 to vector<192x128xf32>
    %9 = arith.maximumf %7, %8 : vector<192x128xf32>
    %10 = arith.truncf %9 : vector<192x128xf32> to vector<192x128xbf16>
    %c0_4 = arith.constant 0 : index
    %c0_5 = arith.constant 0 : index
    %11 = vector.load %arg2[%c0_4, %c0_5] : memref<128x128xbf16, #tpu.memory_space<vmem>>, vector<128x128xbf16>
    %cst_6 = arith.constant dense<0.000000e+00> : vector<192x128xf32>
    %12 = tpu.matmul %10, %11, %cst_6 {dimension_numbers = #tpu.dot_dimension_numbers<[1], [0], [0], [1], [0, 0, 1, 1], [], []>} : vector<192x128xbf16>, vector<128x128xbf16>, vector<192x128xf32> -> vector<192x128xf32>
    %13 = arith.truncf %12 : vector<192x128xf32> to vector<192x128xbf16>
    %c0_7 = arith.constant 0 : index
    %c0_8 = arith.constant 0 : index
    %14 = vector.load %arg4[%c0_7, %c0_8] : memref<192x128xbf16, #tpu.memory_space<vmem>>, vector<192x128xbf16>
    tpu.vector_store %arg4[%c0_7, %c0_8], %13 {strides = array<i32>} : memref<192x128xbf16, #tpu.memory_space<vmem>>, vector<192x128xbf16>,
    %c192_i32 = arith.constant 192 : i32
    %15 = arith.muli %arg0, %c192_i32 : i32
    %16 = tpu.iota {dimensions = array<i32: 0>} : vector<192x1xi32>
    %17 = vector.broadcast %15 : i32 to vector<192x1xi32>
    %18 = arith.addi %17, %16 : vector<192x1xi32>
    %c512_i32 = arith.constant 512 : i32
    %19 = vector.broadcast %c512_i32 : i32 to vector<192x1xi32>
    %20 = arith.cmpi slt, %18, %19 : vector<192x1xi32>
    %cst_9 = arith.constant 0.000000e+00 : f32
    %21 = vector.shape_cast %20 : vector<192x1xi1> to vector<192x1xi1>
    %22 = vector.broadcast %21 : vector<192x1xi1> to vector<192x128xi1>
    %23 = vector.broadcast %cst_9 : f32 to vector<192x128xf32>
    %24 = arith.select %22, %12, %23 : vector<192x128xi1>, vector<192x128xf32>
    %cst_10 = arith.constant dense<0.000000e+00> : vector<128xf32>
    %25 = vector.multi_reduction <add>, %24, %cst_10 [0] : vector<192x128xf32> to vector<128xf32>
    %26 = vector.shape_cast %25 : vector<128xf32> to vector<1x128xf32>
    %27 = vector.shape_cast %26 : vector<1x128xf32> to vector<1x1x128xf32>
    %c0_11 = arith.constant 0 : index
    %c0_12 = arith.constant 0 : index
    %c0_13 = arith.constant 0 : index
    %28 = vector.load %arg5[%c0_11, %c0_12, %c0_13] : memref<1x2x128xf32, #tpu.memory_space<vmem>>, vector<1x1x128xf32>
    tpu.vector_store %arg5[%c0_11, %c0_12, %c0_13], %27 {strides = array<i32>} : memref<1x2x128xf32, #tpu.memory_space<vmem>>, vector<1x1x128xf32>,
    %29 = arith.mulf %24, %24 : vector<192x128xf32>
    %cst_14 = arith.constant dense<0.000000e+00> : vector<128xf32>
    %30 = vector.multi_reduction <add>, %29, %cst_14 [0] : vector<192x128xf32> to vector<128xf32>
    %31 = vector.shape_cast %30 : vector<128xf32> to vector<1x128xf32>
    %32 = vector.shape_cast %31 : vector<1x128xf32> to vector<1x1x128xf32>
    %c0_15 = arith.constant 0 : index
    %c1_16 = arith.constant 1 : index
    %c0_17 = arith.constant 0 : index
    %33 = vector.load %arg5[%c0_15, %c1_16, %c0_17] : memref<1x2x128xf32, #tpu.memory_space<vmem>>, vector<1x1x128xf32>
    tpu.vector_store %arg5[%c0_15, %c1_16, %c0_17], %32 {strides = array<i32>} : memref<1x2x128xf32, #tpu.memory_space<vmem>>, vector<1x1x128xf32>,
    return
  }
  func.func @transform_0(%arg0: i32) -> (i32, i32) {
    %c0_i32 = arith.constant 0 : i32
    %c0_i32_0 = arith.constant 0 : i32
    return %arg0, %c0_i32 : i32, i32
  }
  func.func @transform_1(%arg0: i32) -> (i32, i32) {
    %c0_i32 = arith.constant 0 : i32
    %c0_i32_0 = arith.constant 0 : i32
    %c0_i32_1 = arith.constant 0 : i32
    return %c0_i32, %c0_i32_0 : i32, i32
  }
  func.func @transform_2(%arg0: i32) -> (i32, i32) {
    %c0_i32 = arith.constant 0 : i32
    %c0_i32_0 = arith.constant 0 : i32
    %c0_i32_1 = arith.constant 0 : i32
    return %c0_i32, %c0_i32_0 : i32, i32
  }
  func.func @transform_3(%arg0: i32) -> (i32, i32) {
    %c0_i32 = arith.constant 0 : i32
    %c0_i32_0 = arith.constant 0 : i32
    return %arg0, %c0_i32 : i32, i32
  }
  func.func @transform_4(%arg0: i32) -> (i32, i32, i32) {
    %c0_i32 = arith.constant 0 : i32
    %c0_i32_0 = arith.constant 0 : i32
    %c0_i32_1 = arith.constant 0 : i32
    return %arg0, %c0_i32, %c0_i32_0 : i32, i32, i32
  }
}

module attributes {stable_mosaic.version = 11 : i64} {
  func.func @bn_add_relu_kernel(%arg0: i32, %arg1: memref<192x128xbf16, #tpu.memory_space<vmem>>, %arg2: memref<192x128xf32, #tpu.memory_space<vmem>>, %arg3: memref<2x128xf32, #tpu.memory_space<vmem>>, %arg4: memref<192x128xf32, #tpu.memory_space<vmem>>) attributes {dimension_semantics = [#tpu.dimension_semantics<parallel>], iteration_bounds = array<i64: 3>, scalar_prefetch = 0 : i64, scratch_operands = 0 : i64, tpu.core_type = #tpu.core_type<tc>, window_params = [{transform_indices = @transform_0, window_bounds = array<i64: 192, 128>}, {transform_indices = @transform_1, window_bounds = array<i64: 192, 128>}, {pipeline_mode = #tpu.pipeline_mode<synchronous>, transform_indices = @transform_2, window_bounds = array<i64: 2, 128>}, {transform_indices = @transform_3, window_bounds = array<i64: 192, 128>}]} {
    %c0 = arith.constant 0 : index
    %c0_0 = arith.constant 0 : index
    %0 = vector.load %arg1[%c0, %c0_0] : memref<192x128xbf16, #tpu.memory_space<vmem>>, vector<192x128xbf16>
    %1 = arith.extf %0 : vector<192x128xbf16> to vector<192x128xf32>
    %c0_1 = arith.constant 0 : index
    %c0_2 = arith.constant 0 : index
    %2 = vector.load %arg3[%c0_1, %c0_2] : memref<2x128xf32, #tpu.memory_space<vmem>>, vector<1x128xf32>
    %3 = vector.broadcast %2 : vector<1x128xf32> to vector<192x128xf32>
    %4 = arith.mulf %1, %3 : vector<192x128xf32>
    %c1 = arith.constant 1 : index
    %c0_3 = arith.constant 0 : index
    %5 = vector.load %arg3[%c1, %c0_3] : memref<2x128xf32, #tpu.memory_space<vmem>>, vector<1x128xf32>
    %6 = vector.broadcast %5 : vector<1x128xf32> to vector<192x128xf32>
    %7 = arith.addf %4, %6 : vector<192x128xf32>
    %c0_4 = arith.constant 0 : index
    %c0_5 = arith.constant 0 : index
    %8 = vector.load %arg2[%c0_4, %c0_5] : memref<192x128xf32, #tpu.memory_space<vmem>>, vector<192x128xf32>
    %9 = arith.addf %7, %8 : vector<192x128xf32>
    %cst = arith.constant 0.000000e+00 : f32
    %10 = vector.broadcast %cst : f32 to vector<192x128xf32>
    %11 = arith.maximumf %9, %10 : vector<192x128xf32>
    %c0_6 = arith.constant 0 : index
    %c0_7 = arith.constant 0 : index
    %12 = vector.load %arg4[%c0_6, %c0_7] : memref<192x128xf32, #tpu.memory_space<vmem>>, vector<192x128xf32>
    tpu.vector_store %arg4[%c0_6, %c0_7], %11 {strides = array<i32>} : memref<192x128xf32, #tpu.memory_space<vmem>>, vector<192x128xf32>,
    return
  }
  func.func @transform_0(%arg0: i32) -> (i32, i32) {
    %c0_i32 = arith.constant 0 : i32
    %c0_i32_0 = arith.constant 0 : i32
    return %arg0, %c0_i32 : i32, i32
  }
  func.func @transform_1(%arg0: i32) -> (i32, i32) {
    %c0_i32 = arith.constant 0 : i32
    %c0_i32_0 = arith.constant 0 : i32
    return %arg0, %c0_i32 : i32, i32
  }
  func.func @transform_2(%arg0: i32) -> (i32, i32) {
    %c0_i32 = arith.constant 0 : i32
    %c0_i32_0 = arith.constant 0 : i32
    %c0_i32_1 = arith.constant 0 : i32
    return %c0_i32, %c0_i32_0 : i32, i32
  }
  func.func @transform_3(%arg0: i32) -> (i32, i32) {
    %c0_i32 = arith.constant 0 : i32
    %c0_i32_0 = arith.constant 0 : i32
    return %arg0, %c0_i32 : i32, i32
  }
}

</mosaic_0001>

<llo_original>
// kernel: bottleneck_forward.4
$region0: #{bottleneck_forward.4}
  #allocation0 [shape = 'u32[]', space=smem, size = 0x4, offset = 0x4, fixed_abs, tag = 'smem constant byte address 0x4 - core index']
  #allocation1 [shape = 'u32[144,128]{1,0:T(1,128)}', space=vmem, size = 0x12000, scoped, tag = 'internal scratch']
  %s0 = inlined_call_operand.vmem [shape: f32[576,128], index: 0, kind: input, shape index: {}]
  %s1 = inlined_call_operand.vmem [shape: bf16[128,128], index: 1, kind: input, shape index: {}]
  %s2 = inlined_call_operand.vmem [shape: bf16[576,128], index: 2, kind: output, shape index: {0}]
  %s3 = inlined_call_operand.vmem [shape: f32[3,2,128], index: 3, kind: output, shape index: {1}]
  %4 = xla_tuple %s2, %s3
  %s5 = sld [smem:[#allocation0]]
  $region49: #{bottleneck_forward.4} parent=0
    _
  %s7 = ssub.s32 1, %s5
  %s8 = scalar_select 0, %s7, %s5
  loop: start=0, step=1, limit=5
  $region2: #{bottleneck_forward.4} parent=0 // loop_pre_header
    _
  $region3: #{bottleneck_forward.4} parent=0 // loop_header
    %s10 = sphi 0, %s14
    %p11 = scmp.ge.s32.totalorder %s10, 5
    %s20 = sphi 0, %s22
    %s23 = sphi 0, %s20
    %s24 = sphi 0, %s23
    %s40 = sphi 0, %s24
    %s44 = sphi 0, %s44
    %s46 = sphi 0, %s44
    %s47 = sphi 0, %s46
    %s61 = sphi 0, %s47
    %s67 = sphi 0, %s69
    %s70 = sphi 0, %s67
    %s71 = sphi 0, %s70
    %s87 = sphi 0, %s71
    %s93 = sphi 0, %s95
    %s96 = sphi 0, %s93
    %s97 = sphi 0, %s96
    %s113 = sphi 0, %s97
  $region4: #{bottleneck_forward.4} parent=0 // loop_header_branch
    %13 = sbr.rel (%p11) target = $region8
  $region5: #{bottleneck_forward.4} parent=0 // loop_body
    %s15 = ssub.s32 %s10, 1
    %s16 = ssub.s32 %s10, 2
    %s17 = sadd.s32 %s10, 1
    %s18 = ssub.s32 %s10, %s17
    %p19 = scmp.eq.s32.totalorder %s18, 0
    %s21 = sadd.s32 %s20, 1
    %s22 = scalar_select %p19, %s20, %s21
    %p25 = pneg %p19
    %p26 = scmp.eq.s32.totalorder %s10, 2
    %p27 = por %p25, %p26
    %p28 = scmp.ne.s32.totalorder %s20, %s23
    %p29 = scmp.eq.s32.totalorder %s10, 0
    %p30 = por %p28, %p29
    %p31 = scmp.ne.s32.totalorder %s20, %s23
    %p32 = scmp.eq.s32.totalorder %s15, 2
    %p33 = por %p31, %p32
    %p34 = scmp.ne.s32.totalorder %s23, %s24
    %p35 = scmp.eq.s32.totalorder %s15, 0
    %p36 = por %p34, %p35
    %p37 = scmp.ne.s32.totalorder %s23, %s24
    %p38 = scmp.eq.s32.totalorder %s16, 2
    %p39 = por %p37, %p38
    %p41 = scmp.ne.s32.totalorder %s24, %s40
    %p42 = scmp.eq.s32.totalorder %s16, 0
    %p43 = por %p41, %p42
    %s45 = sadd.s32 %s44, 1
    %p48 = scmp.eq.s32.totalorder %s10, 2
    %p49 = scmp.ne.s32.totalorder %s44, %s46
    %p50 = scmp.eq.s32.totalorder %s10, 0
    %p51 = por %p49, %p50
    %p52 = scmp.ne.s32.totalorder %s44, %s46
    %p53 = scmp.eq.s32.totalorder %s15, 2
    %p54 = por %p52, %p53
    %p55 = scmp.ne.s32.totalorder %s46, %s47
    %p56 = scmp.eq.s32.totalorder %s15, 0
    %p57 = por %p55, %p56
    %p58 = scmp.ne.s32.totalorder %s46, %s47
    %p59 = scmp.eq.s32.totalorder %s16, 2
    %p60 = por %p58, %p59
    %p62 = scmp.ne.s32.totalorder %s47, %s61
    %p63 = scmp.eq.s32.totalorder %s16, 0
    %p64 = por %p62, %p63
    %s65 = ssub.s32 %s10, %s17
    %p66 = scmp.eq.s32.totalorder %s65, 0
    %s68 = sadd.s32 %s67, 1
    %s69 = scalar_select %p66, %s67, %s68
    %p72 = pneg %p66
    %p73 = scmp.eq.s32.totalorder %s10, 2
    %p74 = por %p72, %p73
    %p75 = scmp.ne.s32.totalorder %s67, %s70
    %p76 = scmp.eq.s32.totalorder %s10, 0
    %p77 = por %p75, %p76
    %p78 = scmp.ne.s32.totalorder %s67, %s70
    %p79 = scmp.eq.s32.totalorder %s15, 2
    %p80 = por %p78, %p79
    %p81 = scmp.ne.s32.totalorder %s70, %s71
    %p82 = scmp.eq.s32.totalorder %s15, 0
    %p83 = por %p81, %p82
    %p84 = scmp.ne.s32.totalorder %s70, %s71
    %p85 = scmp.eq.s32.totalorder %s16, 2
    %p86 = por %p84, %p85
    %p88 = scmp.ne.s32.totalorder %s71, %s87
    %p89 = scmp.eq.s32.totalorder %s16, 0
    %p90 = por %p88, %p89
    %s91 = ssub.s32 %s10, %s17
    %p92 = scmp.eq.s32.totalorder %s91, 0
    %s94 = sadd.s32 %s93, 1
    %s95 = scalar_select %p92, %s93, %s94
    %p98 = pneg %p92
    %p99 = scmp.eq.s32.totalorder %s10, 2
    %p100 = por %p98, %p99
    %p101 = scmp.ne.s32.totalorder %s93, %s96
    %p102 = scmp.eq.s32.totalorder %s10, 0
    %p103 = por %p101, %p102
    %p104 = scmp.ne.s32.totalorder %s93, %s96
    %p105 = scmp.eq.s32.totalorder %s15, 2
    %p106 = por %p104, %p105
    %p107 = scmp.ne.s32.totalorder %s96, %s97
    %p108 = scmp.eq.s32.totalorder %s15, 0
    %p109 = por %p107, %p108
    %p110 = scmp.ne.s32.totalorder %s96, %s97
    %p111 = scmp.eq.s32.totalorder %s16, 2
    %p112 = por %p110, %p111
    %p114 = scmp.ne.s32.totalorder %s97, %s113
    %p115 = scmp.eq.s32.totalorder %s16, 0
    %p116 = por %p114, %p115
    %p117 = scmp.le.s32.totalorder 1, %s10
    %p118 = scmp.lt.s32.totalorder %s10, 4
    %p119 = pnand %p117, %p118
    %p120 = pneg %p119
    // Predicated region
    $region9: #{bottleneck_forward.4} parent=5 // pred_check
      _
    $region10: #{bottleneck_forward.4} parent=5 // pred_check_branch
      %122 = sbr.rel (%p119) target = $region12
    $region11: #{bottleneck_forward.4} parent=5 // pred_region
      %s123 = ssub.s32 %s10, 1
      // Predicated region
      $region13: #{bottleneck_forward.4} parent=11 // pred_check
        %p124 = pneg %p57
      $region14: #{bottleneck_forward.4} parent=11 // pred_check_branch
        %126 = sbr.rel (%p124) target = $region16
      $region15: #{bottleneck_forward.4} parent=11 // pred_region
        _
      $region16: #{bottleneck_forward.4} parent=11 // pred_fallthru
        _
    $region12: #{bottleneck_forward.4} parent=5 // pred_fallthru
      _
    %p127 = scmp.lt.s32.totalorder %s10, 3
    // Predicated region
    $region17: #{bottleneck_forward.4} parent=5 // pred_check
      %p128 = pneg %p127
    $region18: #{bottleneck_forward.4} parent=5 // pred_check_branch
      %130 = sbr.rel (%p128) target = $region20
    $region19: #{bottleneck_forward.4} parent=5 // pred_region
      // Predicated region
      $region21: #{bottleneck_forward.4} parent=19 // pred_check
        %p131 = pneg %p30
      $region22: #{bottleneck_forward.4} parent=19 // pred_check_branch
        %133 = sbr.rel (%p131) target = $region24
      $region23: #{bottleneck_forward.4} parent=19 // pred_region
        %s134 = smul.u32 24, %s10
        %p135 = scmp.lt.s32.totalorder %s134, 71
        %s136 = scalar_select %p135, %s134, 71
        %s137 = smul.addr %s136, 8
        %s138 = scalar_lea.vmem %s0, %s137
        %s139 = smul.u32 24, %s10
      $region24: #{bottleneck_forward.4} parent=19 // pred_fallthru
        _
    $region20: #{bottleneck_forward.4} parent=5 // pred_fallthru
      _
    %p140 = scmp.le.s32.totalorder 1, %s10
    %p141 = scmp.lt.s32.totalorder %s10, 4
    %p142 = pnand %p140, %p141
    %p143 = pneg %p142
    // Predicated region
    $region25: #{bottleneck_forward.4} parent=5 // pred_check
      _
    $region26: #{bottleneck_forward.4} parent=5 // pred_check_branch
      %145 = sbr.rel (%p142) target = $region28
    $region27: #{bottleneck_forward.4} parent=5 // pred_region
      %s146 = ssub.s32 %s10, 1
      %s147 = smul.u32 24, %s15
      %p148 = scmp.lt.s32.totalorder %s147, 71
      %s149 = scalar_select %p148, %s147, 71
      %s150 = smul.addr %s149, 8
      %s151 = scalar_lea.vmem %s0, %s150
      %p152 = pneg %p36
      %p153 = pneg %p33
      %p154 = pneg %p57
      %p155 = pneg %p54
      %p156 = pneg %p83
      %p157 = pneg %p80
      %s158 = smul.u32 24, %s15
      %p159 = scmp.lt.s32.totalorder %s158, 71
      %s160 = scalar_select %p159, %s158, 71
      %s161 = smul.addr %s160, 4
      %s162 = scalar_lea.vmem %s2, %s161
      %p163 = pneg %p109
      %p164 = pneg %p106
      %p165 = scmp.lt.s32.totalorder %s15, 2
      %s166 = scalar_select %p165, %s15, 2
      %s167 = smul.addr %s166, 2
      %s168 = scalar_lea.vmem %s3, %s167
      %s169 = smul.u32 24, %s15
      %p170 = scmp.lt.s32.totalorder %s169, 71
      %s171 = scalar_select %p170, %s169, 71
      %s172 = smul.addr %s171, 8
      %s173 = scalar_lea.vmem %s0, %s172
      %s174 = smul.u32 24, %s15
      %s175 = smul.u32 24, %s15
      %p176 = scmp.lt.s32.totalorder %s175, 71
      %s177 = scalar_select %p176, %s175, 71
      %s178 = smul.addr %s177, 4
      %s179 = scalar_lea.vmem %s2, %s178
      %s180 = smul.u32 24, %s15
      %p181 = scmp.lt.s32.totalorder %s15, 2
      %s182 = scalar_select %p181, %s15, 2
      %s183 = smul.addr %s182, 2
      %s184 = scalar_lea.vmem %s3, %s183
      %v186 = vld [vmem:[%s173] sm:$0xff]
      %v187 = vld [vmem:[%s173 + $0x8] sm:$0xff]
      %v188 = vld [vmem:[%s173 + $0x10] sm:$0xff]
      %v189 = vld [vmem:[%s173 + $0x18] sm:$0xff]
      %v190 = vld [vmem:[%s173 + $0x20] sm:$0xff]
      %v191 = vld [vmem:[%s173 + $0x28] sm:$0xff]
      %v192 = vld [vmem:[%s173 + $0x30] sm:$0xff]
      %v193 = vld [vmem:[%s173 + $0x38] sm:$0xff]
      %v194 = vld [vmem:[%s173 + $0x40] sm:$0xff]
      %v195 = vld [vmem:[%s173 + $0x48] sm:$0xff]
      %v196 = vld [vmem:[%s173 + $0x50] sm:$0xff]
      %v197 = vld [vmem:[%s173 + $0x58] sm:$0xff]
      %v198 = vld [vmem:[%s173 + $0x60] sm:$0xff]
      %v199 = vld [vmem:[%s173 + $0x68] sm:$0xff]
      %v200 = vld [vmem:[%s173 + $0x70] sm:$0xff]
      %v201 = vld [vmem:[%s173 + $0x78] sm:$0xff]
      %v202 = vld [vmem:[%s173 + $0x80] sm:$0xff]
      %v203 = vld [vmem:[%s173 + $0x88] sm:$0xff]
      %v204 = vld [vmem:[%s173 + $0x90] sm:$0xff]
      %v205 = vld [vmem:[%s173 + $0x98] sm:$0xff]
      %v206 = vld [vmem:[%s173 + $0xa0] sm:$0xff]
      %v207 = vld [vmem:[%s173 + $0xa8] sm:$0xff]
      %v208 = vld [vmem:[%s173 + $0xb0] sm:$0xff]
      %v209 = vld [vmem:[%s173 + $0xb8] sm:$0xff]
      %v210 = vpack.c.bf16 %v187, %v186
      %v211 = vpack.c.bf16 %v189, %v188
      %v212 = vpack.c.bf16 %v191, %v190
      %v213 = vpack.c.bf16 %v193, %v192
      %v214 = vpack.c.bf16 %v195, %v194
      %v215 = vpack.c.bf16 %v197, %v196
      %v216 = vpack.c.bf16 %v199, %v198
      %v217 = vpack.c.bf16 %v201, %v200
      %v218 = vpack.c.bf16 %v203, %v202
      %v219 = vpack.c.bf16 %v205, %v204
      %v220 = vpack.c.bf16 %v207, %v206
      %v221 = vpack.c.bf16 %v209, %v208
      %v222 = vld [vmem:[%s1] sm:$0xf]
      %v223 = vld [vmem:[%s1 + $0x4] sm:$0xf]
      %v224 = vld [vmem:[%s1 + $0x8] sm:$0xf]
      %v225 = vld [vmem:[%s1 + $0xc] sm:$0xf]
      %v226 = vld [vmem:[%s1 + $0x10] sm:$0xf]
      %v227 = vld [vmem:[%s1 + $0x14] sm:$0xf]
      %v228 = vld [vmem:[%s1 + $0x18] sm:$0xf]
      %v229 = vld [vmem:[%s1 + $0x1c] sm:$0xf]
      %v230 = vld [vmem:[%s1 + $0x20] sm:$0xf]
      %v231 = vld [vmem:[%s1 + $0x24] sm:$0xf]
      %v232 = vld [vmem:[%s1 + $0x28] sm:$0xf]
      %v233 = vld [vmem:[%s1 + $0x2c] sm:$0xf]
      %v234 = vld [vmem:[%s1 + $0x30] sm:$0xf]
      %v235 = vld [vmem:[%s1 + $0x34] sm:$0xf]
      %v236 = vld [vmem:[%s1 + $0x38] sm:$0xf]
      %v237 = vld [vmem:[%s1 + $0x3c] sm:$0xf]
      %v254 = vunpack.c.l.b16 %v222
      %v255 = vunpack.c.l.b16 %v223
      %v256 = vunpack.c.l.b16 %v224
      %v257 = vunpack.c.l.b16 %v225
      %v258 = vunpack.c.l.b16 %v226
      %v259 = vunpack.c.l.b16 %v227
      %v260 = vunpack.c.l.b16 %v228
      %v261 = vunpack.c.l.b16 %v229
      %v262 = vunpack.c.l.b16 %v230
      %v263 = vunpack.c.l.b16 %v231
      %v264 = vunpack.c.l.b16 %v232
      %v265 = vunpack.c.l.b16 %v233
      %v266 = vunpack.c.l.b16 %v234
      %v267 = vunpack.c.l.b16 %v235
      %v268 = vunpack.c.l.b16 %v236
      %v269 = vunpack.c.l.b16 %v237
      %v270 = vpack.c.b16 %v255, %v254
      %v271 = vpack.c.b16 %v257, %v256
      %v272 = vpack.c.b16 %v259, %v258
      %v273 = vpack.c.b16 %v261, %v260
      %v274 = vpack.c.b16 %v263, %v262
      %v275 = vpack.c.b16 %v265, %v264
      %v276 = vpack.c.b16 %v267, %v266
      %v277 = vpack.c.b16 %v269, %v268
      %286 = vmatprep.subr.bf16.mxu0 0
      %287 = vmatpush1.bf16.msra.mxu0 %v270
      %288 = vmatprep.subr.bf16.mxu0 0
      %289 = vmatpush1.bf16.msra.mxu0 %v271
      %290 = vmatprep.subr.bf16.mxu0 0
      %291 = vmatpush1.bf16.msra.mxu0 %v272
      %292 = vmatprep.subr.bf16.mxu0 0
      %293 = vmatpush1.bf16.msra.mxu0 %v273
      %294 = vmatprep.subr.bf16.mxu0 0
      %295 = vmatpush1.bf16.msra.mxu0 %v274
      %296 = vmatprep.subr.bf16.mxu0 0
      %297 = vmatpush1.bf16.msra.mxu0 %v275
      %298 = vmatprep.subr.bf16.mxu0 0
      %299 = vmatpush1.bf16.msra.mxu0 %v276
      %300 = vmatprep.subr.bf16.mxu0 0
      %301 = vmatpush1.bf16.msra.mxu0 %v277
      %302 = vmatprep.subr.bf16.mxu0 0
      %303 = vmatpush1.bf16.msra.mxu0 0
      %304 = vmatprep.subr.bf16.mxu0 0
      %305 = vmatpush1.bf16.msra.mxu0 0
      %306 = vmatprep.subr.bf16.mxu0 0
      %307 = vmatpush1.bf16.msra.mxu0 0
      %308 = vmatprep.subr.bf16.mxu0 0
      %309 = vmatpush1.bf16.msra.mxu0 0
      %310 = vmatprep.subr.bf16.mxu0 0
      %311 = vmatpush1.bf16.msra.mxu0 0
      %312 = vmatprep.subr.bf16.mxu0 0
      %313 = vmatpush1.bf16.msra.mxu0 0
      %314 = vmatprep.subr.bf16.mxu0 0
      %315 = vmatpush1.bf16.msra.mxu0 0
      %316 = vmatprep.subr.bf16.mxu0 0
      %317 = vmatpush1.bf16.msra.mxu0 0
      %318 = vmatprep.mubr.bf16.mxu0 0
      %319 = vmatmul.mubr.bf16.gmra.mrb[0].mxu0 %v210
      %v320 = vpop.f32.mrb[0].mxu0
      %v321 = vadd.f32 0.0, %v320
      %v322 = vpop.f32.mrb[0].mxu0
      %v323 = vpop.f32.mrb[0].mxu0
      %v324 = vadd.f32 0.0, %v323
      %v325 = vpop.f32.mrb[0].mxu0
      %326 = vmatprep.mubr.bf16.mxu0 0
      %327 = vmatmul.mubr.bf16.gmra.mrb[0].mxu0 %v211
      %v328 = vpop.f32.mrb[0].mxu0
      %v329 = vadd.f32 0.0, %v328
      %v330 = vpop.f32.mrb[0].mxu0
      %v331 = vpop.f32.mrb[0].mxu0
      %v332 = vadd.f32 0.0, %v331
      %v333 = vpop.f32.mrb[0].mxu0
      %334 = vmatprep.mubr.bf16.mxu0 0
      %335 = vmatmul.mubr.bf16.gmra.mrb[0].mxu0 %v212
      %v336 = vpop.f32.mrb[0].mxu0
      %v337 = vadd.f32 0.0, %v336
      %v338 = vpop.f32.mrb[0].mxu0
      %v339 = vpop.f32.mrb[0].mxu0
      %v340 = vadd.f32 0.0, %v339
      %v341 = vpop.f32.mrb[0].mxu0
      %342 = vmatprep.mubr.bf16.mxu0 0
      %343 = vmatmul.mubr.bf16.gmra.mrb[0].mxu0 %v213
      %v344 = vpop.f32.mrb[0].mxu0
      %v345 = vadd.f32 0.0, %v344
      %v346 = vpop.f32.mrb[0].mxu0
      %v347 = vpop.f32.mrb[0].mxu0
      %v348 = vadd.f32 0.0, %v347
      %v349 = vpop.f32.mrb[0].mxu0
      %350 = vmatprep.mubr.bf16.mxu0 0
      %351 = vmatmul.mubr.bf16.gmra.mrb[0].mxu0 %v214
      %v352 = vpop.f32.mrb[0].mxu0
      %v353 = vadd.f32 0.0, %v352
      %v354 = vpop.f32.mrb[0].mxu0
      %v355 = vpop.f32.mrb[0].mxu0
      %v356 = vadd.f32 0.0, %v355
      %v357 = vpop.f32.mrb[0].mxu0
      %358 = vmatprep.mubr.bf16.mxu0 0
      %359 = vmatmul.mubr.bf16.gmra.mrb[0].mxu0 %v215
      %v360 = vpop.f32.mrb[0].mxu0
      %v361 = vadd.f32 0.0, %v360
      %v362 = vpop.f32.mrb[0].mxu0
      %v363 = vpop.f32.mrb[0].mxu0
      %v364 = vadd.f32 0.0, %v363
      %v365 = vpop.f32.mrb[0].mxu0
      %366 = vmatprep.mubr.bf16.mxu0 0
      %367 = vmatmul.mubr.bf16.gmra.mrb[0].mxu0 %v216
      %v368 = vpop.f32.mrb[0].mxu0
      %v369 = vadd.f32 0.0, %v368
      %v370 = vpop.f32.mrb[0].mxu0
      %v371 = vpop.f32.mrb[0].mxu0
      %v372 = vadd.f32 0.0, %v371
      %v373 = vpop.f32.mrb[0].mxu0
      %374 = vmatprep.mubr.bf16.mxu0 0
      %375 = vmatmul.mubr.bf16.gmra.mrb[0].mxu0 %v217
      %v376 = vpop.f32.mrb[0].mxu0
      %v377 = vadd.f32 0.0, %v376
      %v378 = vpop.f32.mrb[0].mxu0
      %v379 = vpop.f32.mrb[0].mxu0
      %v380 = vadd.f32 0.0, %v379
      %v381 = vpop.f32.mrb[0].mxu0
      %382 = vmatprep.mubr.bf16.mxu0 0
      %383 = vmatmul.mubr.bf16.gmra.mrb[0].mxu0 %v218
      %v384 = vpop.f32.mrb[0].mxu0
      %v385 = vadd.f32 0.0, %v384
      %v386 = vpop.f32.mrb[0].mxu0
      %v387 = vpop.f32.mrb[0].mxu0
      %v388 = vadd.f32 0.0, %v387
      %v389 = vpop.f32.mrb[0].mxu0
      %390 = vmatprep.mubr.bf16.mxu0 0
      %391 = vmatmul.mubr.bf16.gmra.mrb[0].mxu0 %v219
      %v392 = vpop.f32.mrb[0].mxu0
      %v393 = vadd.f32 0.0, %v392
      %v394 = vpop.f32.mrb[0].mxu0
      %v395 = vpop.f32.mrb[0].mxu0
      %v396 = vadd.f32 0.0, %v395
      %v397 = vpop.f32.mrb[0].mxu0
      %398 = vmatprep.mubr.bf16.mxu0 0
      %399 = vmatmul.mubr.bf16.gmra.mrb[0].mxu0 %v220
      %v400 = vpop.f32.mrb[0].mxu0
      %v401 = vadd.f32 0.0, %v400
      %v402 = vpop.f32.mrb[0].mxu0
      %v403 = vpop.f32.mrb[0].mxu0
      %v404 = vadd.f32 0.0, %v403
      %v405 = vpop.f32.mrb[0].mxu0
      %406 = vmatprep.mubr.bf16.mxu0 0
      %407 = vmatmul.mubr.bf16.gmra.mrb[0].mxu0 %v221
      %v408 = vpop.f32.mrb[0].mxu0
      %v409 = vadd.f32 0.0, %v408
      %v410 = vpop.f32.mrb[0].mxu0
      %v411 = vpop.f32.mrb[0].mxu0
      %v412 = vadd.f32 0.0, %v411
      %v413 = vpop.f32.mrb[0].mxu0
      %414 = vdwg.mxu0
      %v415 = vpack.c.bf16 %v324, %v321
      %v416 = vpack.c.bf16 %v332, %v329
      %v417 = vpack.c.bf16 %v340, %v337
      %v418 = vpack.c.bf16 %v348, %v345
      %v419 = vpack.c.bf16 %v356, %v353
      %v420 = vpack.c.bf16 %v364, %v361
      %v421 = vpack.c.bf16 %v372, %v369
      %v422 = vpack.c.bf16 %v380, %v377
      %v423 = vpack.c.bf16 %v388, %v385
      %v424 = vpack.c.bf16 %v396, %v393
      %v425 = vpack.c.bf16 %v404, %v401
      %v426 = vpack.c.bf16 %v412, %v409
      %v439 = vunpack.c.l.b16 %v415
      %v440 = vunpack.c.h.b16 %v415
      %v441 = vunpack.c.l.b16 %v416
      %v442 = vunpack.c.h.b16 %v416
      %v443 = vunpack.c.l.b16 %v417
      %v444 = vunpack.c.h.b16 %v417
      %v445 = vunpack.c.l.b16 %v418
      %v446 = vunpack.c.h.b16 %v418
      %v447 = vunpack.c.l.b16 %v419
      %v448 = vunpack.c.h.b16 %v419
      %v449 = vunpack.c.l.b16 %v420
      %v450 = vunpack.c.h.b16 %v420
      %v451 = vunpack.c.l.b16 %v421
      %v452 = vunpack.c.h.b16 %v421
      %v453 = vunpack.c.l.b16 %v422
      %v454 = vunpack.c.h.b16 %v422
      %v455 = vunpack.c.l.b16 %v423
      %v456 = vunpack.c.h.b16 %v423
      %v457 = vunpack.c.l.b16 %v424
      %v458 = vunpack.c.h.b16 %v424
      %v459 = vunpack.c.l.b16 %v425
      %v460 = vunpack.c.h.b16 %v425
      %v461 = vunpack.c.l.b16 %v426
      %v462 = vunpack.c.h.b16 %v426
      %v463 = vpack.c.b16 %v439, %v439
      %v464 = vpack.c.b16 %v440, %v440
      %v465 = vpack.c.b16 %v441, %v441
      %v466 = vpack.c.b16 %v442, %v442
      %v467 = vpack.c.b16 %v443, %v443
      %v468 = vpack.c.b16 %v444, %v444
      %v469 = vpack.c.b16 %v445, %v445
      %v470 = vpack.c.b16 %v446, %v446
      %v471 = vpack.c.b16 %v447, %v447
      %v472 = vpack.c.b16 %v448, %v448
      %v473 = vpack.c.b16 %v449, %v449
      %v474 = vpack.c.b16 %v450, %v450
      %v475 = vpack.c.b16 %v451, %v451
      %v476 = vpack.c.b16 %v452, %v452
      %v477 = vpack.c.b16 %v453, %v453
      %v478 = vpack.c.b16 %v454, %v454
      %v479 = vpack.c.b16 %v455, %v455
      %v480 = vpack.c.b16 %v456, %v456
      %v481 = vpack.c.b16 %v457, %v457
      %v482 = vpack.c.b16 %v458, %v458
      %v483 = vpack.c.b16 %v459, %v459
      %v484 = vpack.c.b16 %v460, %v460
      %v485 = vpack.c.b16 %v461, %v461
      %v486 = vpack.c.b16 %v462, %v462
      %511 = vst [vmem:[%s179] sm:$0xf] %v463
      %512 = vst [vmem:[%s179 + $0x4] sm:$0xf] %v464
      %513 = vst [vmem:[%s179 + $0x8] sm:$0xf] %v465
      %514 = vst [vmem:[%s179 + $0xc] sm:$0xf] %v466
      %515 = vst [vmem:[%s179 + $0x10] sm:$0xf] %v467
      %516 = vst [vmem:[%s179 + $0x14] sm:$0xf] %v468
      %517 = vst [vmem:[%s179 + $0x18] sm:$0xf] %v469
      %518 = vst [vmem:[%s179 + $0x1c] sm:$0xf] %v470
      %519 = vst [vmem:[%s179 + $0x20] sm:$0xf] %v471
      %520 = vst [vmem:[%s179 + $0x24] sm:$0xf] %v472
      %521 = vst [vmem:[%s179 + $0x28] sm:$0xf] %v473
      %522 = vst [vmem:[%s179 + $0x2c] sm:$0xf] %v474
      %523 = vst [vmem:[%s179 + $0x30] sm:$0xf] %v475
      %524 = vst [vmem:[%s179 + $0x34] sm:$0xf] %v476
      %525 = vst [vmem:[%s179 + $0x38] sm:$0xf] %v477
      %526 = vst [vmem:[%s179 + $0x3c] sm:$0xf] %v478
      %527 = vst [vmem:[%s179 + $0x40] sm:$0xf] %v479
      %528 = vst [vmem:[%s179 + $0x44] sm:$0xf] %v480
      %529 = vst [vmem:[%s179 + $0x48] sm:$0xf] %v481
      %530 = vst [vmem:[%s179 + $0x4c] sm:$0xf] %v482
      %531 = vst [vmem:[%s179 + $0x50] sm:$0xf] %v483
      %532 = vst [vmem:[%s179 + $0x54] sm:$0xf] %v484
      %533 = vst [vmem:[%s179 + $0x58] sm:$0xf] %v485
      %534 = vst [vmem:[%s179 + $0x5c] sm:$0xf] %v486
      %v535 = vadd.f32 %v321, %v324
      %v536 = vadd.f32 %v535, %v329
      %v537 = vadd.f32 %v536, %v332
      %v538 = vadd.f32 %v537, %v337
      %v539 = vadd.f32 %v538, %v340
      %v540 = vadd.f32 %v539, %v345
      %v541 = vadd.f32 %v540, %v348
      %v542 = vadd.f32 %v541, %v353
      %v543 = vadd.f32 %v542, %v356
      %v544 = vadd.f32 %v543, %v361
      %v545 = vadd.f32 %v544, %v364
      %v546 = vadd.f32 %v545, %v369
      %v547 = vadd.f32 %v546, %v372
      %v548 = vadd.f32 %v547, %v377
      %v549 = vadd.f32 %v548, %v380
      %v550 = vadd.f32 %v549, %v385
      %v551 = vadd.f32 %v550, %v388
      %v552 = vadd.f32 %v551, %v393
      %v553 = vadd.f32 %v552, %v396
      %v554 = vadd.f32 %v553, %v401
      %v555 = vadd.f32 %v554, %v404
      %v556 = vadd.f32 %v555, %v409
      %v557 = vadd.f32 %v556, %v412
      %v558 = vrot.slane %v557, 4
      %v559 = vadd.f32 %v557, %v558
      %v560 = vrot.slane %v559, 2
      %v561 = vadd.f32 %v559, %v560
      %v562 = vrot.slane %v561, 1
      %v563 = vadd.f32 %v561, %v562
      %564 = vst [vmem:[%s184] sm:$0x1] %v563
      %v565 = vmul.f32 %v321, %v321
      %v566 = vmul.f32 %v324, %v324
      %v567 = vmul.f32 %v329, %v329
      %v568 = vmul.f32 %v332, %v332
      %v569 = vmul.f32 %v337, %v337
      %v570 = vmul.f32 %v340, %v340
      %v571 = vmul.f32 %v345, %v345
      %v572 = vmul.f32 %v348, %v348
      %v573 = vmul.f32 %v353, %v353
      %v574 = vmul.f32 %v356, %v356
      %v575 = vmul.f32 %v361, %v361
      %v576 = vmul.f32 %v364, %v364
      %v577 = vmul.f32 %v369, %v369
      %v578 = vmul.f32 %v372, %v372
      %v579 = vmul.f32 %v377, %v377
      %v580 = vmul.f32 %v380, %v380
      %v581 = vmul.f32 %v385, %v385
      %v582 = vmul.f32 %v388, %v388
      %v583 = vmul.f32 %v393, %v393
      %v584 = vmul.f32 %v396, %v396
      %v585 = vmul.f32 %v401, %v401
      %v586 = vmul.f32 %v404, %v404
      %v587 = vmul.f32 %v409, %v409
      %v588 = vmul.f32 %v412, %v412
      %v589 = vadd.f32 %v565, %v566
      %v590 = vadd.f32 %v589, %v567
      %v591 = vadd.f32 %v590, %v568
      %v592 = vadd.f32 %v591, %v569
      %v593 = vadd.f32 %v592, %v570
      %v594 = vadd.f32 %v593, %v571
      %v595 = vadd.f32 %v594, %v572
      %v596 = vadd.f32 %v595, %v573
      %v597 = vadd.f32 %v596, %v574
      %v598 = vadd.f32 %v597, %v575
      %v599 = vadd.f32 %v598, %v576
      %v600 = vadd.f32 %v599, %v577
      %v601 = vadd.f32 %v600, %v578
      %v602 = vadd.f32 %v601, %v579
      %v603 = vadd.f32 %v602, %v580
      %v604 = vadd.f32 %v603, %v581
      %v605 = vadd.f32 %v604, %v582
      %v606 = vadd.f32 %v605, %v583
      %v607 = vadd.f32 %v606, %v584
      %v608 = vadd.f32 %v607, %v585
      %v609 = vadd.f32 %v608, %v586
      %v610 = vadd.f32 %v609, %v587
      %v611 = vadd.f32 %v610, %v588
      %v612 = vrot.slane %v611, 4
      %v613 = vadd.f32 %v611, %v612
      %v614 = vrot.slane %v613, 2
      %v615 = vadd.f32 %v613, %v614
      %v616 = vrot.slane %v615, 1
      %v617 = vadd.f32 %v615, %v616
      %618 = vst [vmem:[%s184 + $0x1] sm:$0x1] %v617
      %s619 = smul.u32 24, %s15
      %p620 = scmp.lt.s32.totalorder %s619, 71
      %s621 = scalar_select %p620, %s619, 71
      %s622 = smul.addr %s621, 4
      %s623 = scalar_lea.vmem %s2, %s622
      %p624 = scmp.lt.s32.totalorder %s15, 2
      %s625 = scalar_select %p624, %s15, 2
      %s626 = smul.addr %s625, 2
      %s627 = scalar_lea.vmem %s3, %s626
      // Predicated region
      $region29: #{bottleneck_forward.4} parent=27 // pred_check
        %p628 = pneg %p80
      $region30: #{bottleneck_forward.4} parent=27 // pred_check_branch
        %630 = sbr.rel (%p628) target = $region32
      $region31: #{bottleneck_forward.4} parent=27 // pred_region
        %s631 = smul.u32 24, %s15
      $region32: #{bottleneck_forward.4} parent=27 // pred_fallthru
        _
      // Predicated region
      $region33: #{bottleneck_forward.4} parent=27 // pred_check
        %p632 = pneg %p106
      $region34: #{bottleneck_forward.4} parent=27 // pred_check_branch
        %634 = sbr.rel (%p632) target = $region36
      $region35: #{bottleneck_forward.4} parent=27 // pred_region
        _
      $region36: #{bottleneck_forward.4} parent=27 // pred_fallthru
        _
    $region28: #{bottleneck_forward.4} parent=5 // pred_fallthru
      _
    %p635 = scmp.le.s32.totalorder 2, %s10
    // Predicated region
    $region37: #{bottleneck_forward.4} parent=5 // pred_check
      %p636 = pneg %p635
    $region38: #{bottleneck_forward.4} parent=5 // pred_check_branch
      %638 = sbr.rel (%p636) target = $region40
    $region39: #{bottleneck_forward.4} parent=5 // pred_region
      %s639 = ssub.s32 %s10, 2
      // Predicated region
      $region41: #{bottleneck_forward.4} parent=39 // pred_check
        %p640 = pneg %p86
      $region42: #{bottleneck_forward.4} parent=39 // pred_check_branch
        %642 = sbr.rel (%p640) target = $region44
      $region43: #{bottleneck_forward.4} parent=39 // pred_region
        %s643 = smul.u32 24, %s16
        %p644 = scmp.lt.s32.totalorder %s643, 71
        %s645 = scalar_select %p644, %s643, 71
        %s646 = smul.addr %s645, 4
        %s647 = scalar_lea.vmem %s2, %s646
      $region44: #{bottleneck_forward.4} parent=39 // pred_fallthru
        _
      // Predicated region
      $region45: #{bottleneck_forward.4} parent=39 // pred_check
        %p648 = pneg %p112
      $region46: #{bottleneck_forward.4} parent=39 // pred_check_branch
        %650 = sbr.rel (%p648) target = $region48
      $region47: #{bottleneck_forward.4} parent=39 // pred_region
        %p651 = scmp.lt.s32.totalorder %s16, 2
        %s652 = scalar_select %p651, %s16, 2
        %s653 = smul.addr %s652, 2
        %s654 = scalar_lea.vmem %s3, %s653
      $region48: #{bottleneck_forward.4} parent=39 // pred_fallthru
        _
    $region40: #{bottleneck_forward.4} parent=5 // pred_fallthru
      _
  $region6: #{bottleneck_forward.4} parent=0 // loop_footer
    %s14 = sadd.s32 1, %s10
  $region7: #{bottleneck_forward.4} parent=0 // loop_footer_branch
    %9 = sbr.rel target = $region3
  $region8: #{bottleneck_forward.4} parent=0 // loop_exit
    _

// kernel: bottleneck_forward.7
$region0: #{bottleneck_forward.7}
  #allocation0 [shape = 'u32[]', space=smem, size = 0x4, offset = 0x4, fixed_abs, tag = 'smem constant byte address 0x4 - core index']
  #allocation1 [shape = 'u32[144,128]{1,0:T(1,128)}', space=vmem, size = 0x12000, scoped, tag = 'internal scratch']
  %s0 = inlined_call_operand.vmem [shape: bf16[576,128], index: 0, kind: input, shape index: {}]
  %s1 = inlined_call_operand.vmem [shape: f32[576,128], index: 1, kind: input, shape index: {}]
  %s2 = inlined_call_operand.vmem [shape: f32[2,128], index: 2, kind: input, shape index: {}]
  %s3 = inlined_call_operand.vmem [shape: f32[576,128], index: 3, kind: output, shape index: {}]
  %s4 = sld [smem:[#allocation0]]
  $region45: #{bottleneck_forward.7} parent=0
    _
  %s6 = ssub.s32 1, %s4
  %s7 = scalar_select 0, %s6, %s4
  loop: start=0, step=1, limit=5
  $region2: #{bottleneck_forward.7} parent=0 // loop_pre_header
    _
  $region3: #{bottleneck_forward.7} parent=0 // loop_header
    %s9 = sphi 0, %s13
    %p10 = scmp.ge.s32.totalorder %s9, 5
    %s19 = sphi 0, %s21
    %s22 = sphi 0, %s19
    %s23 = sphi 0, %s22
    %s39 = sphi 0, %s23
    %s45 = sphi 0, %s47
    %s48 = sphi 0, %s45
    %s49 = sphi 0, %s48
    %s65 = sphi 0, %s49
    %s69 = sphi 0, %s69
    %s71 = sphi 0, %s69
    %s72 = sphi 0, %s71
    %s86 = sphi 0, %s72
    %s92 = sphi 0, %s94
    %s95 = sphi 0, %s92
    %s96 = sphi 0, %s95
    %s112 = sphi 0, %s96
  $region4: #{bottleneck_forward.7} parent=0 // loop_header_branch
    %12 = sbr.rel (%p10) target = $region8
  $region5: #{bottleneck_forward.7} parent=0 // loop_body
    %s14 = ssub.s32 %s9, 1
    %s15 = ssub.s32 %s9, 2
    %s16 = sadd.s32 %s9, 1
    %s17 = ssub.s32 %s9, %s16
    %p18 = scmp.eq.s32.totalorder %s17, 0
    %s20 = sadd.s32 %s19, 1
    %s21 = scalar_select %p18, %s19, %s20
    %p24 = pneg %p18
    %p25 = scmp.eq.s32.totalorder %s9, 2
    %p26 = por %p24, %p25
    %p27 = scmp.ne.s32.totalorder %s19, %s22
    %p28 = scmp.eq.s32.totalorder %s9, 0
    %p29 = por %p27, %p28
    %p30 = scmp.ne.s32.totalorder %s19, %s22
    %p31 = scmp.eq.s32.totalorder %s14, 2
    %p32 = por %p30, %p31
    %p33 = scmp.ne.s32.totalorder %s22, %s23
    %p34 = scmp.eq.s32.totalorder %s14, 0
    %p35 = por %p33, %p34
    %p36 = scmp.ne.s32.totalorder %s22, %s23
    %p37 = scmp.eq.s32.totalorder %s15, 2
    %p38 = por %p36, %p37
    %p40 = scmp.ne.s32.totalorder %s23, %s39
    %p41 = scmp.eq.s32.totalorder %s15, 0
    %p42 = por %p40, %p41
    %s43 = ssub.s32 %s9, %s16
    %p44 = scmp.eq.s32.totalorder %s43, 0
    %s46 = sadd.s32 %s45, 1
    %s47 = scalar_select %p44, %s45, %s46
    %p50 = pneg %p44
    %p51 = scmp.eq.s32.totalorder %s9, 2
    %p52 = por %p50, %p51
    %p53 = scmp.ne.s32.totalorder %s45, %s48
    %p54 = scmp.eq.s32.totalorder %s9, 0
    %p55 = por %p53, %p54
    %p56 = scmp.ne.s32.totalorder %s45, %s48
    %p57 = scmp.eq.s32.totalorder %s14, 2
    %p58 = por %p56, %p57
    %p59 = scmp.ne.s32.totalorder %s48, %s49
    %p60 = scmp.eq.s32.totalorder %s14, 0
    %p61 = por %p59, %p60
    %p62 = scmp.ne.s32.totalorder %s48, %s49
    %p63 = scmp.eq.s32.totalorder %s15, 2
    %p64 = por %p62, %p63
    %p66 = scmp.ne.s32.totalorder %s49, %s65
    %p67 = scmp.eq.s32.totalorder %s15, 0
    %p68 = por %p66, %p67
    %s70 = sadd.s32 %s69, 1
    %p73 = scmp.eq.s32.totalorder %s9, 2
    %p74 = scmp.ne.s32.totalorder %s69, %s71
    %p75 = scmp.eq.s32.totalorder %s9, 0
    %p76 = por %p74, %p75
    %p77 = scmp.ne.s32.totalorder %s69, %s71
    %p78 = scmp.eq.s32.totalorder %s14, 2
    %p79 = por %p77, %p78
    %p80 = scmp.ne.s32.totalorder %s71, %s72
    %p81 = scmp.eq.s32.totalorder %s14, 0
    %p82 = por %p80, %p81
    %p83 = scmp.ne.s32.totalorder %s71, %s72
    %p84 = scmp.eq.s32.totalorder %s15, 2
    %p85 = por %p83, %p84
    %p87 = scmp.ne.s32.totalorder %s72, %s86
    %p88 = scmp.eq.s32.totalorder %s15, 0
    %p89 = por %p87, %p88
    %s90 = ssub.s32 %s9, %s16
    %p91 = scmp.eq.s32.totalorder %s90, 0
    %s93 = sadd.s32 %s92, 1
    %s94 = scalar_select %p91, %s92, %s93
    %p97 = pneg %p91
    %p98 = scmp.eq.s32.totalorder %s9, 2
    %p99 = por %p97, %p98
    %p100 = scmp.ne.s32.totalorder %s92, %s95
    %p101 = scmp.eq.s32.totalorder %s9, 0
    %p102 = por %p100, %p101
    %p103 = scmp.ne.s32.totalorder %s92, %s95
    %p104 = scmp.eq.s32.totalorder %s14, 2
    %p105 = por %p103, %p104
    %p106 = scmp.ne.s32.totalorder %s95, %s96
    %p107 = scmp.eq.s32.totalorder %s14, 0
    %p108 = por %p106, %p107
    %p109 = scmp.ne.s32.totalorder %s95, %s96
    %p110 = scmp.eq.s32.totalorder %s15, 2
    %p111 = por %p109, %p110
    %p113 = scmp.ne.s32.totalorder %s96, %s112
    %p114 = scmp.eq.s32.totalorder %s15, 0
    %p115 = por %p113, %p114
    %p116 = scmp.le.s32.totalorder 1, %s9
    %p117 = scmp.lt.s32.totalorder %s9, 4
    %p118 = pnand %p116, %p117
    %p119 = pneg %p118
    // Predicated region
    $region9: #{bottleneck_forward.7} parent=5 // pred_check
      _
    $region10: #{bottleneck_forward.7} parent=5 // pred_check_branch
      %121 = sbr.rel (%p118) target = $region12
    $region11: #{bottleneck_forward.7} parent=5 // pred_region
      %s122 = ssub.s32 %s9, 1
      // Predicated region
      $region13: #{bottleneck_forward.7} parent=11 // pred_check
        %p123 = pneg %p82
      $region14: #{bottleneck_forward.7} parent=11 // pred_check_branch
        %125 = sbr.rel (%p123) target = $region16
      $region15: #{bottleneck_forward.7} parent=11 // pred_region
        _
      $region16: #{bottleneck_forward.7} parent=11 // pred_fallthru
        _
    $region12: #{bottleneck_forward.7} parent=5 // pred_fallthru
      _
    %p126 = scmp.lt.s32.totalorder %s9, 3
    // Predicated region
    $region17: #{bottleneck_forward.7} parent=5 // pred_check
      %p127 = pneg %p126
    $region18: #{bottleneck_forward.7} parent=5 // pred_check_branch
      %129 = sbr.rel (%p127) target = $region20
    $region19: #{bottleneck_forward.7} parent=5 // pred_region
      // Predicated region
      $region21: #{bottleneck_forward.7} parent=19 // pred_check
        %p130 = pneg %p29
      $region22: #{bottleneck_forward.7} parent=19 // pred_check_branch
        %132 = sbr.rel (%p130) target = $region24
      $region23: #{bottleneck_forward.7} parent=19 // pred_region
        %s133 = smul.u32 24, %s9
        %p134 = scmp.lt.s32.totalorder %s133, 71
        %s135 = scalar_select %p134, %s133, 71
        %s136 = smul.addr %s135, 4
        %s137 = scalar_lea.vmem %s0, %s136
        %s138 = smul.u32 24, %s9
      $region24: #{bottleneck_forward.7} parent=19 // pred_fallthru
        _
      // Predicated region
      $region25: #{bottleneck_forward.7} parent=19 // pred_check
        %p139 = pneg %p55
      $region26: #{bottleneck_forward.7} parent=19 // pred_check_branch
        %141 = sbr.rel (%p139) target = $region28
      $region27: #{bottleneck_forward.7} parent=19 // pred_region
        %s142 = smul.u32 24, %s9
        %p143 = scmp.lt.s32.totalorder %s142, 71
        %s144 = scalar_select %p143, %s142, 71
        %s145 = smul.addr %s144, 8
        %s146 = scalar_lea.vmem %s1, %s145
        %s147 = smul.u32 24, %s9
      $region28: #{bottleneck_forward.7} parent=19 // pred_fallthru
        _
    $region20: #{bottleneck_forward.7} parent=5 // pred_fallthru
      _
    %p148 = scmp.le.s32.totalorder 1, %s9
    %p149 = scmp.lt.s32.totalorder %s9, 4
    %p150 = pnand %p148, %p149
    %p151 = pneg %p150
    // Predicated region
    $region29: #{bottleneck_forward.7} parent=5 // pred_check
      _
    $region30: #{bottleneck_forward.7} parent=5 // pred_check_branch
      %153 = sbr.rel (%p150) target = $region32
    $region31: #{bottleneck_forward.7} parent=5 // pred_region
      %s154 = ssub.s32 %s9, 1
      %s155 = smul.u32 24, %s14
      %p156 = scmp.lt.s32.totalorder %s155, 71
      %s157 = scalar_select %p156, %s155, 71
      %s158 = smul.addr %s157, 4
      %s159 = scalar_lea.vmem %s0, %s158
      %p160 = pneg %p35
      %p161 = pneg %p32
      %s162 = smul.u32 24, %s14
      %p163 = scmp.lt.s32.totalorder %s162, 71
      %s164 = scalar_select %p163, %s162, 71
      %s165 = smul.addr %s164, 8
      %s166 = scalar_lea.vmem %s1, %s165
      %p167 = pneg %p61
      %p168 = pneg %p58
      %p169 = pneg %p82
      %p170 = pneg %p79
      %p171 = pneg %p108
      %p172 = pneg %p105
      %s173 = smul.u32 24, %s14
      %p174 = scmp.lt.s32.totalorder %s173, 71
      %s175 = scalar_select %p174, %s173, 71
      %s176 = smul.addr %s175, 8
      %s177 = scalar_lea.vmem %s3, %s176
      %s178 = smul.u32 24, %s14
      %p179 = scmp.lt.s32.totalorder %s178, 71
      %s180 = scalar_select %p179, %s178, 71
      %s181 = smul.addr %s180, 4
      %s182 = scalar_lea.vmem %s0, %s181
      %s183 = smul.u32 24, %s14
      %s184 = smul.u32 24, %s14
      %p185 = scmp.lt.s32.totalorder %s184, 71
      %s186 = scalar_select %p185, %s184, 71
      %s187 = smul.addr %s186, 8
      %s188 = scalar_lea.vmem %s1, %s187
      %s189 = smul.u32 24, %s14
      %s190 = smul.u32 24, %s14
      %p191 = scmp.lt.s32.totalorder %s190, 71
      %s192 = scalar_select %p191, %s190, 71
      %s193 = smul.addr %s192, 8
      %s194 = scalar_lea.vmem %s3, %s193
      %s195 = smul.u32 24, %s14
      %v196 = vld [vmem:[%s182] sm:$0xf]
      %v197 = vld [vmem:[%s182 + $0x4] sm:$0xf]
      %v198 = vld [vmem:[%s182 + $0x8] sm:$0xf]
      %v199 = vld [vmem:[%s182 + $0xc] sm:$0xf]
      %v200 = vld [vmem:[%s182 + $0x10] sm:$0xf]
      %v201 = vld [vmem:[%s182 + $0x14] sm:$0xf]
      %v202 = vld [vmem:[%s182 + $0x18] sm:$0xf]
      %v203 = vld [vmem:[%s182 + $0x1c] sm:$0xf]
      %v204 = vld [vmem:[%s182 + $0x20] sm:$0xf]
      %v205 = vld [vmem:[%s182 + $0x24] sm:$0xf]
      %v206 = vld [vmem:[%s182 + $0x28] sm:$0xf]
      %v207 = vld [vmem:[%s182 + $0x2c] sm:$0xf]
      %v208 = vld [vmem:[%s182 + $0x30] sm:$0xf]
      %v209 = vld [vmem:[%s182 + $0x34] sm:$0xf]
      %v210 = vld [vmem:[%s182 + $0x38] sm:$0xf]
      %v211 = vld [vmem:[%s182 + $0x3c] sm:$0xf]
      %v212 = vld [vmem:[%s182 + $0x40] sm:$0xf]
      %v213 = vld [vmem:[%s182 + $0x44] sm:$0xf]
      %v214 = vld [vmem:[%s182 + $0x48] sm:$0xf]
      %v215 = vld [vmem:[%s182 + $0x4c] sm:$0xf]
      %v216 = vld [vmem:[%s182 + $0x50] sm:$0xf]
      %v217 = vld [vmem:[%s182 + $0x54] sm:$0xf]
      %v218 = vld [vmem:[%s182 + $0x58] sm:$0xf]
      %v219 = vld [vmem:[%s182 + $0x5c] sm:$0xf]
      %v220 = vunpack.c.l.bf16 %v196
      %v221 = vunpack.c.l.bf16 %v197
      %v222 = vunpack.c.l.bf16 %v198
      %v223 = vunpack.c.l.bf16 %v199
      %v224 = vunpack.c.l.bf16 %v200
      %v225 = vunpack.c.l.bf16 %v201
      %v226 = vunpack.c.l.bf16 %v202
      %v227 = vunpack.c.l.bf16 %v203
      %v228 = vunpack.c.l.bf16 %v204
      %v229 = vunpack.c.l.bf16 %v205
      %v230 = vunpack.c.l.bf16 %v206
      %v231 = vunpack.c.l.bf16 %v207
      %v232 = vunpack.c.l.bf16 %v208
      %v233 = vunpack.c.l.bf16 %v209
      %v234 = vunpack.c.l.bf16 %v210
      %v235 = vunpack.c.l.bf16 %v211
      %v236 = vunpack.c.l.bf16 %v212
      %v237 = vunpack.c.l.bf16 %v213
      %v238 = vunpack.c.l.bf16 %v214
      %v239 = vunpack.c.l.bf16 %v215
      %v240 = vunpack.c.l.bf16 %v216
      %v241 = vunpack.c.l.bf16 %v217
      %v242 = vunpack.c.l.bf16 %v218
      %v243 = vunpack.c.l.bf16 %v219
      %v244 = vld [vmem:[%s2] sm:$0x1]
      %v245 = vlaneseq
      %v246 = vshrl.u32 %v245, 7
      %v247 = vsub.s32 0, %v246
      %v248 = vrot.slane %v244, %v247
      %v249 = vmul.f32 %v220, %v248
      %v250 = vmul.f32 %v221, %v248
      %v251 = vmul.f32 %v222, %v248
      %v252 = vmul.f32 %v223, %v248
      %v253 = vmul.f32 %v224, %v248
      %v254 = vmul.f32 %v225, %v248
      %v255 = vmul.f32 %v226, %v248
      %v256 = vmul.f32 %v227, %v248
      %v257 = vmul.f32 %v228, %v248
      %v258 = vmul.f32 %v229, %v248
      %v259 = vmul.f32 %v230, %v248
      %v260 = vmul.f32 %v231, %v248
      %v261 = vmul.f32 %v232, %v248
      %v262 = vmul.f32 %v233, %v248
      %v263 = vmul.f32 %v234, %v248
      %v264 = vmul.f32 %v235, %v248
      %v265 = vmul.f32 %v236, %v248
      %v266 = vmul.f32 %v237, %v248
      %v267 = vmul.f32 %v238, %v248
      %v268 = vmul.f32 %v239, %v248
      %v269 = vmul.f32 %v240, %v248
      %v270 = vmul.f32 %v241, %v248
      %v271 = vmul.f32 %v242, %v248
      %v272 = vmul.f32 %v243, %v248
      %v273 = vld [vmem:[%s2 + $0x1] sm:$0x1]
      %v274 = vlaneseq
      %v275 = vshrl.u32 %v274, 7
      %v276 = vsub.s32 0, %v275
      %v277 = vrot.slane %v273, %v276
      %v278 = vadd.f32 %v249, %v277
      %v279 = vadd.f32 %v250, %v277
      %v280 = vadd.f32 %v251, %v277
      %v281 = vadd.f32 %v252, %v277
      %v282 = vadd.f32 %v253, %v277
      %v283 = vadd.f32 %v254, %v277
      %v284 = vadd.f32 %v255, %v277
      %v285 = vadd.f32 %v256, %v277
      %v286 = vadd.f32 %v257, %v277
      %v287 = vadd.f32 %v258, %v277
      %v288 = vadd.f32 %v259, %v277
      %v289 = vadd.f32 %v260, %v277
      %v290 = vadd.f32 %v261, %v277
      %v291 = vadd.f32 %v262, %v277
      %v292 = vadd.f32 %v263, %v277
      %v293 = vadd.f32 %v264, %v277
      %v294 = vadd.f32 %v265, %v277
      %v295 = vadd.f32 %v266, %v277
      %v296 = vadd.f32 %v267, %v277
      %v297 = vadd.f32 %v268, %v277
      %v298 = vadd.f32 %v269, %v277
      %v299 = vadd.f32 %v270, %v277
      %v300 = vadd.f32 %v271, %v277
      %v301 = vadd.f32 %v272, %v277
      %v302 = vld [vmem:[%s188] sm:$0xff]
      %v303 = vld [vmem:[%s188 + $0x8] sm:$0xff]
      %v304 = vld [vmem:[%s188 + $0x10] sm:$0xff]
      %v305 = vld [vmem:[%s188 + $0x18] sm:$0xff]
      %v306 = vld [vmem:[%s188 + $0x20] sm:$0xff]
      %v307 = vld [vmem:[%s188 + $0x28] sm:$0xff]
      %v308 = vld [vmem:[%s188 + $0x30] sm:$0xff]
      %v309 = vld [vmem:[%s188 + $0x38] sm:$0xff]
      %v310 = vld [vmem:[%s188 + $0x40] sm:$0xff]
      %v311 = vld [vmem:[%s188 + $0x48] sm:$0xff]
      %v312 = vld [vmem:[%s188 + $0x50] sm:$0xff]
      %v313 = vld [vmem:[%s188 + $0x58] sm:$0xff]
      %v314 = vld [vmem:[%s188 + $0x60] sm:$0xff]
      %v315 = vld [vmem:[%s188 + $0x68] sm:$0xff]
      %v316 = vld [vmem:[%s188 + $0x70] sm:$0xff]
      %v317 = vld [vmem:[%s188 + $0x78] sm:$0xff]
      %v318 = vld [vmem:[%s188 + $0x80] sm:$0xff]
      %v319 = vld [vmem:[%s188 + $0x88] sm:$0xff]
      %v320 = vld [vmem:[%s188 + $0x90] sm:$0xff]
      %v321 = vld [vmem:[%s188 + $0x98] sm:$0xff]
      %v322 = vld [vmem:[%s188 + $0xa0] sm:$0xff]
      %v323 = vld [vmem:[%s188 + $0xa8] sm:$0xff]
      %v324 = vld [vmem:[%s188 + $0xb0] sm:$0xff]
      %v325 = vld [vmem:[%s188 + $0xb8] sm:$0xff]
      %v326 = vadd.f32 %v278, %v302
      %v327 = vadd.f32 %v279, %v303
      %v328 = vadd.f32 %v280, %v304
      %v329 = vadd.f32 %v281, %v305
      %v330 = vadd.f32 %v282, %v306
      %v331 = vadd.f32 %v283, %v307
      %v332 = vadd.f32 %v284, %v308
      %v333 = vadd.f32 %v285, %v309
      %v334 = vadd.f32 %v286, %v310
      %v335 = vadd.f32 %v287, %v311
      %v336 = vadd.f32 %v288, %v312
      %v337 = vadd.f32 %v289, %v313
      %v338 = vadd.f32 %v290, %v314
      %v339 = vadd.f32 %v291, %v315
      %v340 = vadd.f32 %v292, %v316
      %v341 = vadd.f32 %v293, %v317
      %v342 = vadd.f32 %v294, %v318
      %v343 = vadd.f32 %v295, %v319
      %v344 = vadd.f32 %v296, %v320
      %v345 = vadd.f32 %v297, %v321
      %v346 = vadd.f32 %v298, %v322
      %v347 = vadd.f32 %v299, %v323
      %v348 = vadd.f32 %v300, %v324
      %v349 = vadd.f32 %v301, %v325
      %v350 = vmax.f32 %v326, 0.0
      %v351 = vmax.f32 %v327, 0.0
      %v352 = vmax.f32 %v328, 0.0
      %v353 = vmax.f32 %v329, 0.0
      %v354 = vmax.f32 %v330, 0.0
      %v355 = vmax.f32 %v331, 0.0
      %v356 = vmax.f32 %v332, 0.0
      %v357 = vmax.f32 %v333, 0.0
      %v358 = vmax.f32 %v334, 0.0
      %v359 = vmax.f32 %v335, 0.0
      %v360 = vmax.f32 %v336, 0.0
      %v361 = vmax.f32 %v337, 0.0
      %v362 = vmax.f32 %v338, 0.0
      %v363 = vmax.f32 %v339, 0.0
      %v364 = vmax.f32 %v340, 0.0
      %v365 = vmax.f32 %v341, 0.0
      %v366 = vmax.f32 %v342, 0.0
      %v367 = vmax.f32 %v343, 0.0
      %v368 = vmax.f32 %v344, 0.0
      %v369 = vmax.f32 %v345, 0.0
      %v370 = vmax.f32 %v346, 0.0
      %v371 = vmax.f32 %v347, 0.0
      %v372 = vmax.f32 %v348, 0.0
      %v373 = vmax.f32 %v349, 0.0
      %374 = vst [vmem:[%s194] sm:$0xff] %v350
      %375 = vst [vmem:[%s194 + $0x8] sm:$0xff] %v351
      %376 = vst [vmem:[%s194 + $0x10] sm:$0xff] %v352
      %377 = vst [vmem:[%s194 + $0x18] sm:$0xff] %v353
      %378 = vst [vmem:[%s194 + $0x20] sm:$0xff] %v354
      %379 = vst [vmem:[%s194 + $0x28] sm:$0xff] %v355
      %380 = vst [vmem:[%s194 + $0x30] sm:$0xff] %v356
      %381 = vst [vmem:[%s194 + $0x38] sm:$0xff] %v357
      %382 = vst [vmem:[%s194 + $0x40] sm:$0xff] %v358
      %383 = vst [vmem:[%s194 + $0x48] sm:$0xff] %v359
      %384 = vst [vmem:[%s194 + $0x50] sm:$0xff] %v360
      %385 = vst [vmem:[%s194 + $0x58] sm:$0xff] %v361
      %386 = vst [vmem:[%s194 + $0x60] sm:$0xff] %v362
      %387 = vst [vmem:[%s194 + $0x68] sm:$0xff] %v363
      %388 = vst [vmem:[%s194 + $0x70] sm:$0xff] %v364
      %389 = vst [vmem:[%s194 + $0x78] sm:$0xff] %v365
      %390 = vst [vmem:[%s194 + $0x80] sm:$0xff] %v366
      %391 = vst [vmem:[%s194 + $0x88] sm:$0xff] %v367
      %392 = vst [vmem:[%s194 + $0x90] sm:$0xff] %v368
      %393 = vst [vmem:[%s194 + $0x98] sm:$0xff] %v369
      %394 = vst [vmem:[%s194 + $0xa0] sm:$0xff] %v370
      %395 = vst [vmem:[%s194 + $0xa8] sm:$0xff] %v371
      %396 = vst [vmem:[%s194 + $0xb0] sm:$0xff] %v372
      %397 = vst [vmem:[%s194 + $0xb8] sm:$0xff] %v373
      %s398 = smul.u32 24, %s14
      %p399 = scmp.lt.s32.totalorder %s398, 71
      %s400 = scalar_select %p399, %s398, 71
      %s401 = smul.addr %s400, 8
      %s402 = scalar_lea.vmem %s3, %s401
      // Predicated region
      $region33: #{bottleneck_forward.7} parent=31 // pred_check
        %p403 = pneg %p105
      $region34: #{bottleneck_forward.7} parent=31 // pred_check_branch
        %405 = sbr.rel (%p403) target = $region36
      $region35: #{bottleneck_forward.7} parent=31 // pred_region
        %s406 = smul.u32 24, %s14
      $region36: #{bottleneck_forward.7} parent=31 // pred_fallthru
        _
    $region32: #{bottleneck_forward.7} parent=5 // pred_fallthru
      _
    %p407 = scmp.le.s32.totalorder 2, %s9
    // Predicated region
    $region37: #{bottleneck_forward.7} parent=5 // pred_check
      %p408 = pneg %p407
    $region38: #{bottleneck_forward.7} parent=5 // pred_check_branch
      %410 = sbr.rel (%p408) target = $region40
    $region39: #{bottleneck_forward.7} parent=5 // pred_region
      %s411 = ssub.s32 %s9, 2
      // Predicated region
      $region41: #{bottleneck_forward.7} parent=39 // pred_check
        %p412 = pneg %p111
      $region42: #{bottleneck_forward.7} parent=39 // pred_check_branch
        %414 = sbr.rel (%p412) target = $region44
      $region43: #{bottleneck_forward.7} parent=39 // pred_region
        %s415 = smul.u32 24, %s15
        %p416 = scmp.lt.s32.totalorder %s415, 71
        %s417 = scalar_select %p416, %s415, 71
        %s418 = smul.addr %s417, 8
        %s419 = scalar_lea.vmem %s3, %s418
      $region44: #{bottleneck_forward.7} parent=39 // pred_fallthru
        _
    $region40: #{bottleneck_forward.7} parent=5 // pred_fallthru
      _
  $region6: #{bottleneck_forward.7} parent=0 // loop_footer
    %s13 = sadd.s32 1, %s9
  $region7: #{bottleneck_forward.7} parent=0 // loop_footer_branch
    %8 = sbr.rel target = $region3
  $region8: #{bottleneck_forward.7} parent=0 // loop_exit
    _

// kernel: bottleneck_forward.6
$region0: #{bottleneck_forward.6}
  #allocation0 [shape = 'u32[]', space=smem, size = 0x4, offset = 0x4, fixed_abs, tag = 'smem constant byte address 0x4 - core index']
  #allocation1 [shape = 'u32[144,128]{1,0:T(1,128)}', space=vmem, size = 0x12000, scoped, tag = 'internal scratch']
  %s0 = inlined_call_operand.vmem [shape: bf16[576,128], index: 0, kind: input, shape index: {}]
  %s1 = inlined_call_operand.vmem [shape: bf16[128,128], index: 1, kind: input, shape index: {}]
  %s2 = inlined_call_operand.vmem [shape: f32[2,128], index: 2, kind: input, shape index: {}]
  %s3 = inlined_call_operand.vmem [shape: bf16[576,128], index: 3, kind: output, shape index: {0}]
  %s4 = inlined_call_operand.vmem [shape: f32[3,2,128], index: 4, kind: output, shape index: {1}]
  %5 = xla_tuple %s3, %s4
  %s6 = sld [smem:[#allocation0]]
  $region53: #{bottleneck_forward.6} parent=0
    _
  %s8 = ssub.s32 1, %s6
  %s9 = scalar_select 0, %s8, %s6
  loop: start=0, step=1, limit=5
  $region2: #{bottleneck_forward.6} parent=0 // loop_pre_header
    _
  $region3: #{bottleneck_forward.6} parent=0 // loop_header
    %s11 = sphi 0, %s15
    %p12 = scmp.ge.s32.totalorder %s11, 5
    %s21 = sphi 0, %s23
    %s24 = sphi 0, %s21
    %s25 = sphi 0, %s24
    %s41 = sphi 0, %s25
    %s45 = sphi 0, %s45
    %s47 = sphi 0, %s45
    %s48 = sphi 0, %s47
    %s62 = sphi 0, %s48
    %s66 = sphi 0, %s66
    %s68 = sphi 0, %s66
    %s69 = sphi 0, %s68
    %s83 = sphi 0, %s69
    %s89 = sphi 0, %s91
    %s92 = sphi 0, %s89
    %s93 = sphi 0, %s92
    %s109 = sphi 0, %s93
    %s115 = sphi 0, %s117
    %s118 = sphi 0, %s115
    %s119 = sphi 0, %s118
    %s135 = sphi 0, %s119
  $region4: #{bottleneck_forward.6} parent=0 // loop_header_branch
    %14 = sbr.rel (%p12) target = $region8
  $region5: #{bottleneck_forward.6} parent=0 // loop_body
    %s16 = ssub.s32 %s11, 1
    %s17 = ssub.s32 %s11, 2
    %s18 = sadd.s32 %s11, 1
    %s19 = ssub.s32 %s11, %s18
    %p20 = scmp.eq.s32.totalorder %s19, 0
    %s22 = sadd.s32 %s21, 1
    %s23 = scalar_select %p20, %s21, %s22
    %p26 = pneg %p20
    %p27 = scmp.eq.s32.totalorder %s11, 2
    %p28 = por %p26, %p27
    %p29 = scmp.ne.s32.totalorder %s21, %s24
    %p30 = scmp.eq.s32.totalorder %s11, 0
    %p31 = por %p29, %p30
    %p32 = scmp.ne.s32.totalorder %s21, %s24
    %p33 = scmp.eq.s32.totalorder %s16, 2
    %p34 = por %p32, %p33
    %p35 = scmp.ne.s32.totalorder %s24, %s25
    %p36 = scmp.eq.s32.totalorder %s16, 0
    %p37 = por %p35, %p36
    %p38 = scmp.ne.s32.totalorder %s24, %s25
    %p39 = scmp.eq.s32.totalorder %s17, 2
    %p40 = por %p38, %p39
    %p42 = scmp.ne.s32.totalorder %s25, %s41
    %p43 = scmp.eq.s32.totalorder %s17, 0
    %p44 = por %p42, %p43
    %s46 = sadd.s32 %s45, 1
    %p49 = scmp.eq.s32.totalorder %s11, 2
    %p50 = scmp.ne.s32.totalorder %s45, %s47
    %p51 = scmp.eq.s32.totalorder %s11, 0
    %p52 = por %p50, %p51
    %p53 = scmp.ne.s32.totalorder %s45, %s47
    %p54 = scmp.eq.s32.totalorder %s16, 2
    %p55 = por %p53, %p54
    %p56 = scmp.ne.s32.totalorder %s47, %s48
    %p57 = scmp.eq.s32.totalorder %s16, 0
    %p58 = por %p56, %p57
    %p59 = scmp.ne.s32.totalorder %s47, %s48
    %p60 = scmp.eq.s32.totalorder %s17, 2
    %p61 = por %p59, %p60
    %p63 = scmp.ne.s32.totalorder %s48, %s62
    %p64 = scmp.eq.s32.totalorder %s17, 0
    %p65 = por %p63, %p64
    %s67 = sadd.s32 %s66, 1
    %p70 = scmp.eq.s32.totalorder %s11, 2
    %p71 = scmp.ne.s32.totalorder %s66, %s68
    %p72 = scmp.eq.s32.totalorder %s11, 0
    %p73 = por %p71, %p72
    %p74 = scmp.ne.s32.totalorder %s66, %s68
    %p75 = scmp.eq.s32.totalorder %s16, 2
    %p76 = por %p74, %p75
    %p77 = scmp.ne.s32.totalorder %s68, %s69
    %p78 = scmp.eq.s32.totalorder %s16, 0
    %p79 = por %p77, %p78
    %p80 = scmp.ne.s32.totalorder %s68, %s69
    %p81 = scmp.eq.s32.totalorder %s17, 2
    %p82 = por %p80, %p81
    %p84 = scmp.ne.s32.totalorder %s69, %s83
    %p85 = scmp.eq.s32.totalorder %s17, 0
    %p86 = por %p84, %p85
    %s87 = ssub.s32 %s11, %s18
    %p88 = scmp.eq.s32.totalorder %s87, 0
    %s90 = sadd.s32 %s89, 1
    %s91 = scalar_select %p88, %s89, %s90
    %p94 = pneg %p88
    %p95 = scmp.eq.s32.totalorder %s11, 2
    %p96 = por %p94, %p95
    %p97 = scmp.ne.s32.totalorder %s89, %s92
    %p98 = scmp.eq.s32.totalorder %s11, 0
    %p99 = por %p97, %p98
    %p100 = scmp.ne.s32.totalorder %s89, %s92
    %p101 = scmp.eq.s32.totalorder %s16, 2
    %p102 = por %p100, %p101
    %p103 = scmp.ne.s32.totalorder %s92, %s93
    %p104 = scmp.eq.s32.totalorder %s16, 0
    %p105 = por %p103, %p104
    %p106 = scmp.ne.s32.totalorder %s92, %s93
    %p107 = scmp.eq.s32.totalorder %s17, 2
    %p108 = por %p106, %p107
    %p110 = scmp.ne.s32.totalorder %s93, %s109
    %p111 = scmp.eq.s32.totalorder %s17, 0
    %p112 = por %p110, %p111
    %s113 = ssub.s32 %s11, %s18
    %p114 = scmp.eq.s32.totalorder %s113, 0
    %s116 = sadd.s32 %s115, 1
    %s117 = scalar_select %p114, %s115, %s116
    %p120 = pneg %p114
    %p121 = scmp.eq.s32.totalorder %s11, 2
    %p122 = por %p120, %p121
    %p123 = scmp.ne.s32.totalorder %s115, %s118
    %p124 = scmp.eq.s32.totalorder %s11, 0
    %p125 = por %p123, %p124
    %p126 = scmp.ne.s32.totalorder %s115, %s118
    %p127 = scmp.eq.s32.totalorder %s16, 2
    %p128 = por %p126, %p127
    %p129 = scmp.ne.s32.totalorder %s118, %s119
    %p130 = scmp.eq.s32.totalorder %s16, 0
    %p131 = por %p129, %p130
    %p132 = scmp.ne.s32.totalorder %s118, %s119
    %p133 = scmp.eq.s32.totalorder %s17, 2
    %p134 = por %p132, %p133
    %p136 = scmp.ne.s32.totalorder %s119, %s135
    %p137 = scmp.eq.s32.totalorder %s17, 0
    %p138 = por %p136, %p137
    %p139 = scmp.le.s32.totalorder 1, %s11
    %p140 = scmp.lt.s32.totalorder %s11, 4
    %p141 = pnand %p139, %p140
    %p142 = pneg %p141
    // Predicated region
    $region9: #{bottleneck_forward.6} parent=5 // pred_check
      _
    $region10: #{bottleneck_forward.6} parent=5 // pred_check_branch
      %144 = sbr.rel (%p141) target = $region12
    $region11: #{bottleneck_forward.6} parent=5 // pred_region
      %s145 = ssub.s32 %s11, 1
      // Predicated region
      $region13: #{bottleneck_forward.6} parent=11 // pred_check
        %p146 = pneg %p58
      $region14: #{bottleneck_forward.6} parent=11 // pred_check_branch
        %148 = sbr.rel (%p146) target = $region16
      $region15: #{bottleneck_forward.6} parent=11 // pred_region
        _
      $region16: #{bottleneck_forward.6} parent=11 // pred_fallthru
        _
      // Predicated region
      $region17: #{bottleneck_forward.6} parent=11 // pred_check
        %p149 = pneg %p79
      $region18: #{bottleneck_forward.6} parent=11 // pred_check_branch
        %151 = sbr.rel (%p149) target = $region20
      $region19: #{bottleneck_forward.6} parent=11 // pred_region
        _
      $region20: #{bottleneck_forward.6} parent=11 // pred_fallthru
        _
    $region12: #{bottleneck_forward.6} parent=5 // pred_fallthru
      _
    %p152 = scmp.lt.s32.totalorder %s11, 3
    // Predicated region
    $region21: #{bottleneck_forward.6} parent=5 // pred_check
      %p153 = pneg %p152
    $region22: #{bottleneck_forward.6} parent=5 // pred_check_branch
      %155 = sbr.rel (%p153) target = $region24
    $region23: #{bottleneck_forward.6} parent=5 // pred_region
      // Predicated region
      $region25: #{bottleneck_forward.6} parent=23 // pred_check
        %p156 = pneg %p31
      $region26: #{bottleneck_forward.6} parent=23 // pred_check_branch
        %158 = sbr.rel (%p156) target = $region28
      $region27: #{bottleneck_forward.6} parent=23 // pred_region
        %s159 = smul.u32 24, %s11
        %p160 = scmp.lt.s32.totalorder %s159, 71
        %s161 = scalar_select %p160, %s159, 71
        %s162 = smul.addr %s161, 4
        %s163 = scalar_lea.vmem %s0, %s162
        %s164 = smul.u32 24, %s11
      $region28: #{bottleneck_forward.6} parent=23 // pred_fallthru
        _
    $region24: #{bottleneck_forward.6} parent=5 // pred_fallthru
      _
    %p165 = scmp.le.s32.totalorder 1, %s11
    %p166 = scmp.lt.s32.totalorder %s11, 4
    %p167 = pnand %p165, %p166
    %p168 = pneg %p167
    // Predicated region
    $region29: #{bottleneck_forward.6} parent=5 // pred_check
      _
    $region30: #{bottleneck_forward.6} parent=5 // pred_check_branch
      %170 = sbr.rel (%p167) target = $region32
    $region31: #{bottleneck_forward.6} parent=5 // pred_region
      %s171 = ssub.s32 %s11, 1
      %s172 = smul.u32 24, %s16
      %p173 = scmp.lt.s32.totalorder %s172, 71
      %s174 = scalar_select %p173, %s172, 71
      %s175 = smul.addr %s174, 4
      %s176 = scalar_lea.vmem %s0, %s175
      %p177 = pneg %p37
      %p178 = pneg %p34
      %p179 = pneg %p58
      %p180 = pneg %p55
      %p181 = pneg %p79
      %p182 = pneg %p76
      %p183 = pneg %p105
      %p184 = pneg %p102
      %s185 = smul.u32 24, %s16
      %p186 = scmp.lt.s32.totalorder %s185, 71
      %s187 = scalar_select %p186, %s185, 71
      %s188 = smul.addr %s187, 4
      %s189 = scalar_lea.vmem %s3, %s188
      %p190 = pneg %p131
      %p191 = pneg %p128
      %p192 = scmp.lt.s32.totalorder %s16, 2
      %s193 = scalar_select %p192, %s16, 2
      %s194 = smul.addr %s193, 2
      %s195 = scalar_lea.vmem %s4, %s194
      %s196 = smul.u32 24, %s16
      %p197 = scmp.lt.s32.totalorder %s196, 71
      %s198 = scalar_select %p197, %s196, 71
      %s199 = smul.addr %s198, 4
      %s200 = scalar_lea.vmem %s0, %s199
      %s201 = smul.u32 24, %s16
      %s202 = smul.u32 24, %s16
      %p203 = scmp.lt.s32.totalorder %s202, 71
      %s204 = scalar_select %p203, %s202, 71
      %s205 = smul.addr %s204, 4
      %s206 = scalar_lea.vmem %s3, %s205
      %s207 = smul.u32 24, %s16
      %p208 = scmp.lt.s32.totalorder %s16, 2
      %s209 = scalar_select %p208, %s16, 2
      %s210 = smul.addr %s209, 2
      %s211 = scalar_lea.vmem %s4, %s210
      %v213 = vld [vmem:[%s200] sm:$0xf]
      %v214 = vld [vmem:[%s200 + $0x4] sm:$0xf]
      %v215 = vld [vmem:[%s200 + $0x8] sm:$0xf]
      %v216 = vld [vmem:[%s200 + $0xc] sm:$0xf]
      %v217 = vld [vmem:[%s200 + $0x10] sm:$0xf]
      %v218 = vld [vmem:[%s200 + $0x14] sm:$0xf]
      %v219 = vld [vmem:[%s200 + $0x18] sm:$0xf]
      %v220 = vld [vmem:[%s200 + $0x1c] sm:$0xf]
      %v221 = vld [vmem:[%s200 + $0x20] sm:$0xf]
      %v222 = vld [vmem:[%s200 + $0x24] sm:$0xf]
      %v223 = vld [vmem:[%s200 + $0x28] sm:$0xf]
      %v224 = vld [vmem:[%s200 + $0x2c] sm:$0xf]
      %v225 = vld [vmem:[%s200 + $0x30] sm:$0xf]
      %v226 = vld [vmem:[%s200 + $0x34] sm:$0xf]
      %v227 = vld [vmem:[%s200 + $0x38] sm:$0xf]
      %v228 = vld [vmem:[%s200 + $0x3c] sm:$0xf]
      %v229 = vld [vmem:[%s200 + $0x40] sm:$0xf]
      %v230 = vld [vmem:[%s200 + $0x44] sm:$0xf]
      %v231 = vld [vmem:[%s200 + $0x48] sm:$0xf]
      %v232 = vld [vmem:[%s200 + $0x4c] sm:$0xf]
      %v233 = vld [vmem:[%s200 + $0x50] sm:$0xf]
      %v234 = vld [vmem:[%s200 + $0x54] sm:$0xf]
      %v235 = vld [vmem:[%s200 + $0x58] sm:$0xf]
      %v236 = vld [vmem:[%s200 + $0x5c] sm:$0xf]
      %v237 = vunpack.c.l.bf16 %v213
      %v238 = vunpack.c.l.bf16 %v214
      %v239 = vunpack.c.l.bf16 %v215
      %v240 = vunpack.c.l.bf16 %v216
      %v241 = vunpack.c.l.bf16 %v217
      %v242 = vunpack.c.l.bf16 %v218
      %v243 = vunpack.c.l.bf16 %v219
      %v244 = vunpack.c.l.bf16 %v220
      %v245 = vunpack.c.l.bf16 %v221
      %v246 = vunpack.c.l.bf16 %v222
      %v247 = vunpack.c.l.bf16 %v223
      %v248 = vunpack.c.l.bf16 %v224
      %v249 = vunpack.c.l.bf16 %v225
      %v250 = vunpack.c.l.bf16 %v226
      %v251 = vunpack.c.l.bf16 %v227
      %v252 = vunpack.c.l.bf16 %v228
      %v253 = vunpack.c.l.bf16 %v229
      %v254 = vunpack.c.l.bf16 %v230
      %v255 = vunpack.c.l.bf16 %v231
      %v256 = vunpack.c.l.bf16 %v232
      %v257 = vunpack.c.l.bf16 %v233
      %v258 = vunpack.c.l.bf16 %v234
      %v259 = vunpack.c.l.bf16 %v235
      %v260 = vunpack.c.l.bf16 %v236
      %v261 = vld [vmem:[%s2] sm:$0x1]
      %v262 = vlaneseq
      %v263 = vshrl.u32 %v262, 7
      %v264 = vsub.s32 0, %v263
      %v265 = vrot.slane %v261, %v264
      %v266 = vmul.f32 %v237, %v265
      %v267 = vmul.f32 %v238, %v265
      %v268 = vmul.f32 %v239, %v265
      %v269 = vmul.f32 %v240, %v265
      %v270 = vmul.f32 %v241, %v265
      %v271 = vmul.f32 %v242, %v265
      %v272 = vmul.f32 %v243, %v265
      %v273 = vmul.f32 %v244, %v265
      %v274 = vmul.f32 %v245, %v265
      %v275 = vmul.f32 %v246, %v265
      %v276 = vmul.f32 %v247, %v265
      %v277 = vmul.f32 %v248, %v265
      %v278 = vmul.f32 %v249, %v265
      %v279 = vmul.f32 %v250, %v265
      %v280 = vmul.f32 %v251, %v265
      %v281 = vmul.f32 %v252, %v265
      %v282 = vmul.f32 %v253, %v265
      %v283 = vmul.f32 %v254, %v265
      %v284 = vmul.f32 %v255, %v265
      %v285 = vmul.f32 %v256, %v265
      %v286 = vmul.f32 %v257, %v265
      %v287 = vmul.f32 %v258, %v265
      %v288 = vmul.f32 %v259, %v265
      %v289 = vmul.f32 %v260, %v265
      %v290 = vld [vmem:[%s2 + $0x1] sm:$0x1]
      %v291 = vlaneseq
      %v292 = vshrl.u32 %v291, 7
      %v293 = vsub.s32 0, %v292
      %v294 = vrot.slane %v290, %v293
      %v295 = vadd.f32 %v266, %v294
      %v296 = vadd.f32 %v267, %v294
      %v297 = vadd.f32 %v268, %v294
      %v298 = vadd.f32 %v269, %v294
      %v299 = vadd.f32 %v270, %v294
      %v300 = vadd.f32 %v271, %v294
      %v301 = vadd.f32 %v272, %v294
      %v302 = vadd.f32 %v273, %v294
      %v303 = vadd.f32 %v274, %v294
      %v304 = vadd.f32 %v275, %v294
      %v305 = vadd.f32 %v276, %v294
      %v306 = vadd.f32 %v277, %v294
      %v307 = vadd.f32 %v278, %v294
      %v308 = vadd.f32 %v279, %v294
      %v309 = vadd.f32 %v280, %v294
      %v310 = vadd.f32 %v281, %v294
      %v311 = vadd.f32 %v282, %v294
      %v312 = vadd.f32 %v283, %v294
      %v313 = vadd.f32 %v284, %v294
      %v314 = vadd.f32 %v285, %v294
      %v315 = vadd.f32 %v286, %v294
      %v316 = vadd.f32 %v287, %v294
      %v317 = vadd.f32 %v288, %v294
      %v318 = vadd.f32 %v289, %v294
      %v319 = vmax.f32 %v295, 0.0
      %v320 = vmax.f32 %v296, 0.0
      %v321 = vmax.f32 %v297, 0.0
      %v322 = vmax.f32 %v298, 0.0
      %v323 = vmax.f32 %v299, 0.0
      %v324 = vmax.f32 %v300, 0.0
      %v325 = vmax.f32 %v301, 0.0
      %v326 = vmax.f32 %v302, 0.0
      %v327 = vmax.f32 %v303, 0.0
      %v328 = vmax.f32 %v304, 0.0
      %v329 = vmax.f32 %v305, 0.0
      %v330 = vmax.f32 %v306, 0.0
      %v331 = vmax.f32 %v307, 0.0
      %v332 = vmax.f32 %v308, 0.0
      %v333 = vmax.f32 %v309, 0.0
      %v334 = vmax.f32 %v310, 0.0
      %v335 = vmax.f32 %v311, 0.0
      %v336 = vmax.f32 %v312, 0.0
      %v337 = vmax.f32 %v313, 0.0
      %v338 = vmax.f32 %v314, 0.0
      %v339 = vmax.f32 %v315, 0.0
      %v340 = vmax.f32 %v316, 0.0
      %v341 = vmax.f32 %v317, 0.0
      %v342 = vmax.f32 %v318, 0.0
      %v343 = vpack.c.bf16 %v320, %v319
      %v344 = vpack.c.bf16 %v322, %v321
      %v345 = vpack.c.bf16 %v324, %v323
      %v346 = vpack.c.bf16 %v326, %v325
      %v347 = vpack.c.bf16 %v328, %v327
      %v348 = vpack.c.bf16 %v330, %v329
      %v349 = vpack.c.bf16 %v332, %v331
      %v350 = vpack.c.bf16 %v334, %v333
      %v351 = vpack.c.bf16 %v336, %v335
      %v352 = vpack.c.bf16 %v338, %v337
      %v353 = vpack.c.bf16 %v340, %v339
      %v354 = vpack.c.bf16 %v342, %v341
      %v355 = vld [vmem:[%s1] sm:$0xf]
      %v356 = vld [vmem:[%s1 + $0x4] sm:$0xf]
      %v357 = vld [vmem:[%s1 + $0x8] sm:$0xf]
      %v358 = vld [vmem:[%s1 + $0xc] sm:$0xf]
      %v359 = vld [vmem:[%s1 + $0x10] sm:$0xf]
      %v360 = vld [vmem:[%s1 + $0x14] sm:$0xf]
      %v361 = vld [vmem:[%s1 + $0x18] sm:$0xf]
      %v362 = vld [vmem:[%s1 + $0x1c] sm:$0xf]
      %v363 = vld [vmem:[%s1 + $0x20] sm:$0xf]
      %v364 = vld [vmem:[%s1 + $0x24] sm:$0xf]
      %v365 = vld [vmem:[%s1 + $0x28] sm:$0xf]
      %v366 = vld [vmem:[%s1 + $0x2c] sm:$0xf]
      %v367 = vld [vmem:[%s1 + $0x30] sm:$0xf]
      %v368 = vld [vmem:[%s1 + $0x34] sm:$0xf]
      %v369 = vld [vmem:[%s1 + $0x38] sm:$0xf]
      %v370 = vld [vmem:[%s1 + $0x3c] sm:$0xf]
      %v387 = vunpack.c.l.b16 %v355
      %v388 = vunpack.c.l.b16 %v356
      %v389 = vunpack.c.l.b16 %v357
      %v390 = vunpack.c.l.b16 %v358
      %v391 = vunpack.c.l.b16 %v359
      %v392 = vunpack.c.l.b16 %v360
      %v393 = vunpack.c.l.b16 %v361
      %v394 = vunpack.c.l.b16 %v362
      %v395 = vunpack.c.l.b16 %v363
      %v396 = vunpack.c.l.b16 %v364
      %v397 = vunpack.c.l.b16 %v365
      %v398 = vunpack.c.l.b16 %v366
      %v399 = vunpack.c.l.b16 %v367
      %v400 = vunpack.c.l.b16 %v368
      %v401 = vunpack.c.l.b16 %v369
      %v402 = vunpack.c.l.b16 %v370
      %v403 = vpack.c.b16 %v388, %v387
      %v404 = vpack.c.b16 %v390, %v389
      %v405 = vpack.c.b16 %v392, %v391
      %v406 = vpack.c.b16 %v394, %v393
      %v407 = vpack.c.b16 %v396, %v395
      %v408 = vpack.c.b16 %v398, %v397
      %v409 = vpack.c.b16 %v400, %v399
      %v410 = vpack.c.b16 %v402, %v401
      %419 = vmatprep.subr.bf16.mxu0 0
      %420 = vmatpush1.bf16.msra.mxu0 %v403
      %421 = vmatprep.subr.bf16.mxu0 0
      %422 = vmatpush1.bf16.msra.mxu0 %v404
      %423 = vmatprep.subr.bf16.mxu0 0
      %424 = vmatpush1.bf16.msra.mxu0 %v405
      %425 = vmatprep.subr.bf16.mxu0 0
      %426 = vmatpush1.bf16.msra.mxu0 %v406
      %427 = vmatprep.subr.bf16.mxu0 0
      %428 = vmatpush1.bf16.msra.mxu0 %v407
      %429 = vmatprep.subr.bf16.mxu0 0
      %430 = vmatpush1.bf16.msra.mxu0 %v408
      %431 = vmatprep.subr.bf16.mxu0 0
      %432 = vmatpush1.bf16.msra.mxu0 %v409
      %433 = vmatprep.subr.bf16.mxu0 0
      %434 = vmatpush1.bf16.msra.mxu0 %v410
      %435 = vmatprep.subr.bf16.mxu0 0
      %436 = vmatpush1.bf16.msra.mxu0 0
      %437 = vmatprep.subr.bf16.mxu0 0
      %438 = vmatpush1.bf16.msra.mxu0 0
      %439 = vmatprep.subr.bf16.mxu0 0
      %440 = vmatpush1.bf16.msra.mxu0 0
      %441 = vmatprep.subr.bf16.mxu0 0
      %442 = vmatpush1.bf16.msra.mxu0 0
      %443 = vmatprep.subr.bf16.mxu0 0
      %444 = vmatpush1.bf16.msra.mxu0 0
      %445 = vmatprep.subr.bf16.mxu0 0
      %446 = vmatpush1.bf16.msra.mxu0 0
      %447 = vmatprep.subr.bf16.mxu0 0
      %448 = vmatpush1.bf16.msra.mxu0 0
      %449 = vmatprep.subr.bf16.mxu0 0
      %450 = vmatpush1.bf16.msra.mxu0 0
      %451 = vmatprep.mubr.bf16.mxu0 0
      %452 = vmatmul.mubr.bf16.gmra.mrb[0].mxu0 %v343
      %v453 = vpop.f32.mrb[0].mxu0
      %v454 = vadd.f32 0.0, %v453
      %v455 = vpop.f32.mrb[0].mxu0
      %v456 = vpop.f32.mrb[0].mxu0
      %v457 = vadd.f32 0.0, %v456
      %v458 = vpop.f32.mrb[0].mxu0
      %459 = vmatprep.mubr.bf16.mxu0 0
      %460 = vmatmul.mubr.bf16.gmra.mrb[0].mxu0 %v344
      %v461 = vpop.f32.mrb[0].mxu0
      %v462 = vadd.f32 0.0, %v461
      %v463 = vpop.f32.mrb[0].mxu0
      %v464 = vpop.f32.mrb[0].mxu0
      %v465 = vadd.f32 0.0, %v464
      %v466 = vpop.f32.mrb[0].mxu0
      %467 = vmatprep.mubr.bf16.mxu0 0
      %468 = vmatmul.mubr.bf16.gmra.mrb[0].mxu0 %v345
      %v469 = vpop.f32.mrb[0].mxu0
      %v470 = vadd.f32 0.0, %v469
      %v471 = vpop.f32.mrb[0].mxu0
      %v472 = vpop.f32.mrb[0].mxu0
      %v473 = vadd.f32 0.0, %v472
      %v474 = vpop.f32.mrb[0].mxu0
      %475 = vmatprep.mubr.bf16.mxu0 0
      %476 = vmatmul.mubr.bf16.gmra.mrb[0].mxu0 %v346
      %v477 = vpop.f32.mrb[0].mxu0
      %v478 = vadd.f32 0.0, %v477
      %v479 = vpop.f32.mrb[0].mxu0
      %v480 = vpop.f32.mrb[0].mxu0
      %v481 = vadd.f32 0.0, %v480
      %v482 = vpop.f32.mrb[0].mxu0
      %483 = vmatprep.mubr.bf16.mxu0 0
      %484 = vmatmul.mubr.bf16.gmra.mrb[0].mxu0 %v347
      %v485 = vpop.f32.mrb[0].mxu0
      %v486 = vadd.f32 0.0, %v485
      %v487 = vpop.f32.mrb[0].mxu0
      %v488 = vpop.f32.mrb[0].mxu0
      %v489 = vadd.f32 0.0, %v488
      %v490 = vpop.f32.mrb[0].mxu0
      %491 = vmatprep.mubr.bf16.mxu0 0
      %492 = vmatmul.mubr.bf16.gmra.mrb[0].mxu0 %v348
      %v493 = vpop.f32.mrb[0].mxu0
      %v494 = vadd.f32 0.0, %v493
      %v495 = vpop.f32.mrb[0].mxu0
      %v496 = vpop.f32.mrb[0].mxu0
      %v497 = vadd.f32 0.0, %v496
      %v498 = vpop.f32.mrb[0].mxu0
      %499 = vmatprep.mubr.bf16.mxu0 0
      %500 = vmatmul.mubr.bf16.gmra.mrb[0].mxu0 %v349
      %v501 = vpop.f32.mrb[0].mxu0
      %v502 = vadd.f32 0.0, %v501
      %v503 = vpop.f32.mrb[0].mxu0
      %v504 = vpop.f32.mrb[0].mxu0
      %v505 = vadd.f32 0.0, %v504
      %v506 = vpop.f32.mrb[0].mxu0
      %507 = vmatprep.mubr.bf16.mxu0 0
      %508 = vmatmul.mubr.bf16.gmra.mrb[0].mxu0 %v350
      %v509 = vpop.f32.mrb[0].mxu0
      %v510 = vadd.f32 0.0, %v509
      %v511 = vpop.f32.mrb[0].mxu0
      %v512 = vpop.f32.mrb[0].mxu0
      %v513 = vadd.f32 0.0, %v512
      %v514 = vpop.f32.mrb[0].mxu0
      %515 = vmatprep.mubr.bf16.mxu0 0
      %516 = vmatmul.mubr.bf16.gmra.mrb[0].mxu0 %v351
      %v517 = vpop.f32.mrb[0].mxu0
      %v518 = vadd.f32 0.0, %v517
      %v519 = vpop.f32.mrb[0].mxu0
      %v520 = vpop.f32.mrb[0].mxu0
      %v521 = vadd.f32 0.0, %v520
      %v522 = vpop.f32.mrb[0].mxu0
      %523 = vmatprep.mubr.bf16.mxu0 0
      %524 = vmatmul.mubr.bf16.gmra.mrb[0].mxu0 %v352
      %v525 = vpop.f32.mrb[0].mxu0
      %v526 = vadd.f32 0.0, %v525
      %v527 = vpop.f32.mrb[0].mxu0
      %v528 = vpop.f32.mrb[0].mxu0
      %v529 = vadd.f32 0.0, %v528
      %v530 = vpop.f32.mrb[0].mxu0
      %531 = vmatprep.mubr.bf16.mxu0 0
      %532 = vmatmul.mubr.bf16.gmra.mrb[0].mxu0 %v353
      %v533 = vpop.f32.mrb[0].mxu0
      %v534 = vadd.f32 0.0, %v533
      %v535 = vpop.f32.mrb[0].mxu0
      %v536 = vpop.f32.mrb[0].mxu0
      %v537 = vadd.f32 0.0, %v536
      %v538 = vpop.f32.mrb[0].mxu0
      %539 = vmatprep.mubr.bf16.mxu0 0
      %540 = vmatmul.mubr.bf16.gmra.mrb[0].mxu0 %v354
      %v541 = vpop.f32.mrb[0].mxu0
      %v542 = vadd.f32 0.0, %v541
      %v543 = vpop.f32.mrb[0].mxu0
      %v544 = vpop.f32.mrb[0].mxu0
      %v545 = vadd.f32 0.0, %v544
      %v546 = vpop.f32.mrb[0].mxu0
      %547 = vdwg.mxu0
      %v548 = vpack.c.bf16 %v457, %v454
      %v549 = vpack.c.bf16 %v465, %v462
      %v550 = vpack.c.bf16 %v473, %v470
      %v551 = vpack.c.bf16 %v481, %v478
      %v552 = vpack.c.bf16 %v489, %v486
      %v553 = vpack.c.bf16 %v497, %v494
      %v554 = vpack.c.bf16 %v505, %v502
      %v555 = vpack.c.bf16 %v513, %v510
      %v556 = vpack.c.bf16 %v521, %v518
      %v557 = vpack.c.bf16 %v529, %v526
      %v558 = vpack.c.bf16 %v537, %v534
      %v559 = vpack.c.bf16 %v545, %v542
      %v572 = vunpack.c.l.b16 %v548
      %v573 = vunpack.c.h.b16 %v548
      %v574 = vunpack.c.l.b16 %v549
      %v575 = vunpack.c.h.b16 %v549
      %v576 = vunpack.c.l.b16 %v550
      %v577 = vunpack.c.h.b16 %v550
      %v578 = vunpack.c.l.b16 %v551
      %v579 = vunpack.c.h.b16 %v551
      %v580 = vunpack.c.l.b16 %v552
      %v581 = vunpack.c.h.b16 %v552
      %v582 = vunpack.c.l.b16 %v553
      %v583 = vunpack.c.h.b16 %v553
      %v584 = vunpack.c.l.b16 %v554
      %v585 = vunpack.c.h.b16 %v554
      %v586 = vunpack.c.l.b16 %v555
      %v587 = vunpack.c.h.b16 %v555
      %v588 = vunpack.c.l.b16 %v556
      %v589 = vunpack.c.h.b16 %v556
      %v590 = vunpack.c.l.b16 %v557
      %v591 = vunpack.c.h.b16 %v557
      %v592 = vunpack.c.l.b16 %v558
      %v593 = vunpack.c.h.b16 %v558
      %v594 = vunpack.c.l.b16 %v559
      %v595 = vunpack.c.h.b16 %v559
      %v596 = vpack.c.b16 %v572, %v572
      %v597 = vpack.c.b16 %v573, %v573
      %v598 = vpack.c.b16 %v574, %v574
      %v599 = vpack.c.b16 %v575, %v575
      %v600 = vpack.c.b16 %v576, %v576
      %v601 = vpack.c.b16 %v577, %v577
      %v602 = vpack.c.b16 %v578, %v578
      %v603 = vpack.c.b16 %v579, %v579
      %v604 = vpack.c.b16 %v580, %v580
      %v605 = vpack.c.b16 %v581, %v581
      %v606 = vpack.c.b16 %v582, %v582
      %v607 = vpack.c.b16 %v583, %v583
      %v608 = vpack.c.b16 %v584, %v584
      %v609 = vpack.c.b16 %v585, %v585
      %v610 = vpack.c.b16 %v586, %v586
      %v611 = vpack.c.b16 %v587, %v587
      %v612 = vpack.c.b16 %v588, %v588
      %v613 = vpack.c.b16 %v589, %v589
      %v614 = vpack.c.b16 %v590, %v590
      %v615 = vpack.c.b16 %v591, %v591
      %v616 = vpack.c.b16 %v592, %v592
      %v617 = vpack.c.b16 %v593, %v593
      %v618 = vpack.c.b16 %v594, %v594
      %v619 = vpack.c.b16 %v595, %v595
      %644 = vst [vmem:[%s206] sm:$0xf] %v596
      %645 = vst [vmem:[%s206 + $0x4] sm:$0xf] %v597
      %646 = vst [vmem:[%s206 + $0x8] sm:$0xf] %v598
      %647 = vst [vmem:[%s206 + $0xc] sm:$0xf] %v599
      %648 = vst [vmem:[%s206 + $0x10] sm:$0xf] %v600
      %649 = vst [vmem:[%s206 + $0x14] sm:$0xf] %v601
      %650 = vst [vmem:[%s206 + $0x18] sm:$0xf] %v602
      %651 = vst [vmem:[%s206 + $0x1c] sm:$0xf] %v603
      %652 = vst [vmem:[%s206 + $0x20] sm:$0xf] %v604
      %653 = vst [vmem:[%s206 + $0x24] sm:$0xf] %v605
      %654 = vst [vmem:[%s206 + $0x28] sm:$0xf] %v606
      %655 = vst [vmem:[%s206 + $0x2c] sm:$0xf] %v607
      %656 = vst [vmem:[%s206 + $0x30] sm:$0xf] %v608
      %657 = vst [vmem:[%s206 + $0x34] sm:$0xf] %v609
      %658 = vst [vmem:[%s206 + $0x38] sm:$0xf] %v610
      %659 = vst [vmem:[%s206 + $0x3c] sm:$0xf] %v611
      %660 = vst [vmem:[%s206 + $0x40] sm:$0xf] %v612
      %661 = vst [vmem:[%s206 + $0x44] sm:$0xf] %v613
      %662 = vst [vmem:[%s206 + $0x48] sm:$0xf] %v614
      %663 = vst [vmem:[%s206 + $0x4c] sm:$0xf] %v615
      %664 = vst [vmem:[%s206 + $0x50] sm:$0xf] %v616
      %665 = vst [vmem:[%s206 + $0x54] sm:$0xf] %v617
      %666 = vst [vmem:[%s206 + $0x58] sm:$0xf] %v618
      %667 = vst [vmem:[%s206 + $0x5c] sm:$0xf] %v619
      %s668 = smul.u32 %s16, 192
      %v669 = vlaneseq
      %v670 = vshrl.u32 %v669, 7
      %v671 = vadd.s32 %v670, 8
      %v672 = vadd.s32 %v670, 16
      %v673 = vadd.s32 %v670, 24
      %v674 = vadd.s32 %v670, 32
      %v675 = vadd.s32 %v670, 40
      %v676 = vadd.s32 %v670, 48
      %v677 = vadd.s32 %v670, 56
      %v678 = vadd.s32 %v670, 64
      %v679 = vadd.s32 %v670, 72
      %v680 = vadd.s32 %v670, 80
      %v681 = vadd.s32 %v670, 88
      %v682 = vadd.s32 %v670, 96
      %v683 = vadd.s32 %v670, 104
      %v684 = vadd.s32 %v670, 112
      %v685 = vadd.s32 %v670, 120
      %v686 = vadd.s32 %v670, 128
      %v687 = vadd.s32 %v670, 136
      %v688 = vadd.s32 %v670, 144
      %v689 = vadd.s32 %v670, 152
      %v690 = vadd.s32 %v670, 160
      %v691 = vadd.s32 %v670, 168
      %v692 = vadd.s32 %v670, 176
      %v693 = vadd.s32 %v670, 184
      %v694 = vstv %s668
      %v695 = vadd.s32 %v694, %v670
      %v696 = vadd.s32 %v694, %v671
      %v697 = vadd.s32 %v694, %v672
      %v698 = vadd.s32 %v694, %v673
      %v699 = vadd.s32 %v694, %v674
      %v700 = vadd.s32 %v694, %v675
      %v701 = vadd.s32 %v694, %v676
      %v702 = vadd.s32 %v694, %v677
      %v703 = vadd.s32 %v694, %v678
      %v704 = vadd.s32 %v694, %v679
      %v705 = vadd.s32 %v694, %v680
      %v706 = vadd.s32 %v694, %v681
      %v707 = vadd.s32 %v694, %v682
      %v708 = vadd.s32 %v694, %v683
      %v709 = vadd.s32 %v694, %v684
      %v710 = vadd.s32 %v694, %v685
      %v711 = vadd.s32 %v694, %v686
      %v712 = vadd.s32 %v694, %v687
      %v713 = vadd.s32 %v694, %v688
      %v714 = vadd.s32 %v694, %v689
      %v715 = vadd.s32 %v694, %v690
      %v716 = vadd.s32 %v694, %v691
      %v717 = vadd.s32 %v694, %v692
      %v718 = vadd.s32 %v694, %v693
      %vm719 = vcmp.lt.s32.totalorder %v695, 512
      %vm720 = vcmp.lt.s32.totalorder %v696, 512
      %vm721 = vcmp.lt.s32.totalorder %v697, 512
      %vm722 = vcmp.lt.s32.totalorder %v698, 512
      %vm723 = vcmp.lt.s32.totalorder %v699, 512
      %vm724 = vcmp.lt.s32.totalorder %v700, 512
      %vm725 = vcmp.lt.s32.totalorder %v701, 512
      %vm726 = vcmp.lt.s32.totalorder %v702, 512
      %vm727 = vcmp.lt.s32.totalorder %v703, 512
      %vm728 = vcmp.lt.s32.totalorder %v704, 512
      %vm729 = vcmp.lt.s32.totalorder %v705, 512
      %vm730 = vcmp.lt.s32.totalorder %v706, 512
      %vm731 = vcmp.lt.s32.totalorder %v707, 512
      %vm732 = vcmp.lt.s32.totalorder %v708, 512
      %vm733 = vcmp.lt.s32.totalorder %v709, 512
      %vm734 = vcmp.lt.s32.totalorder %v710, 512
      %vm735 = vcmp.lt.s32.totalorder %v711, 512
      %vm736 = vcmp.lt.s32.totalorder %v712, 512
      %vm737 = vcmp.lt.s32.totalorder %v713, 512
      %vm738 = vcmp.lt.s32.totalorder %v714, 512
      %vm739 = vcmp.lt.s32.totalorder %v715, 512
      %vm740 = vcmp.lt.s32.totalorder %v716, 512
      %vm741 = vcmp.lt.s32.totalorder %v717, 512
      %vm742 = vcmp.lt.s32.totalorder %v718, 512
      %v743 = vsel %vm719, 1, 0
      %v744 = vsel %vm720, 1, 0
      %v745 = vsel %vm721, 1, 0
      %v746 = vsel %vm722, 1, 0
      %v747 = vsel %vm723, 1, 0
      %v748 = vsel %vm724, 1, 0
      %v749 = vsel %vm725, 1, 0
      %v750 = vsel %vm726, 1, 0
      %v751 = vsel %vm727, 1, 0
      %v752 = vsel %vm728, 1, 0
      %v753 = vsel %vm729, 1, 0
      %v754 = vsel %vm730, 1, 0
      %v755 = vsel %vm731, 1, 0
      %v756 = vsel %vm732, 1, 0
      %v757 = vsel %vm733, 1, 0
      %v758 = vsel %vm734, 1, 0
      %v759 = vsel %vm735, 1, 0
      %v760 = vsel %vm736, 1, 0
      %v761 = vsel %vm737, 1, 0
      %v762 = vsel %vm738, 1, 0
      %v763 = vsel %vm739, 1, 0
      %v764 = vsel %vm740, 1, 0
      %v765 = vsel %vm741, 1, 0
      %v766 = vsel %vm742, 1, 0
      %vm767 = vcmp.eq.s32.totalorder %v743, 1
      %vm768 = vcmp.eq.s32.totalorder %v744, 1
      %vm769 = vcmp.eq.s32.totalorder %v745, 1
      %vm770 = vcmp.eq.s32.totalorder %v746, 1
      %vm771 = vcmp.eq.s32.totalorder %v747, 1
      %vm772 = vcmp.eq.s32.totalorder %v748, 1
      %vm773 = vcmp.eq.s32.totalorder %v749, 1
      %vm774 = vcmp.eq.s32.totalorder %v750, 1
      %vm775 = vcmp.eq.s32.totalorder %v751, 1
      %vm776 = vcmp.eq.s32.totalorder %v752, 1
      %vm777 = vcmp.eq.s32.totalorder %v753, 1
      %vm778 = vcmp.eq.s32.totalorder %v754, 1
      %vm779 = vcmp.eq.s32.totalorder %v755, 1
      %vm780 = vcmp.eq.s32.totalorder %v756, 1
      %vm781 = vcmp.eq.s32.totalorder %v757, 1
      %vm782 = vcmp.eq.s32.totalorder %v758, 1
      %vm783 = vcmp.eq.s32.totalorder %v759, 1
      %vm784 = vcmp.eq.s32.totalorder %v760, 1
      %vm785 = vcmp.eq.s32.totalorder %v761, 1
      %vm786 = vcmp.eq.s32.totalorder %v762, 1
      %vm787 = vcmp.eq.s32.totalorder %v763, 1
      %vm788 = vcmp.eq.s32.totalorder %v764, 1
      %vm789 = vcmp.eq.s32.totalorder %v765, 1
      %vm790 = vcmp.eq.s32.totalorder %v766, 1
      %v791 = vsel %vm767, %v454, 0.0
      %v792 = vsel %vm768, %v457, 0.0
      %v793 = vsel %vm769, %v462, 0.0
      %v794 = vsel %vm770, %v465, 0.0
      %v795 = vsel %vm771, %v470, 0.0
      %v796 = vsel %vm772, %v473, 0.0
      %v797 = vsel %vm773, %v478, 0.0
      %v798 = vsel %vm774, %v481, 0.0
      %v799 = vsel %vm775, %v486, 0.0
      %v800 = vsel %vm776, %v489, 0.0
      %v801 = vsel %vm777, %v494, 0.0
      %v802 = vsel %vm778, %v497, 0.0
      %v803 = vsel %vm779, %v502, 0.0
      %v804 = vsel %vm780, %v505, 0.0
      %v805 = vsel %vm781, %v510, 0.0
      %v806 = vsel %vm782, %v513, 0.0
      %v807 = vsel %vm783, %v518, 0.0
      %v808 = vsel %vm784, %v521, 0.0
      %v809 = vsel %vm785, %v526, 0.0
      %v810 = vsel %vm786, %v529, 0.0
      %v811 = vsel %vm787, %v534, 0.0
      %v812 = vsel %vm788, %v537, 0.0
      %v813 = vsel %vm789, %v542, 0.0
      %v814 = vsel %vm790, %v545, 0.0
      %v815 = vadd.f32 %v791, %v792
      %v816 = vadd.f32 %v815, %v793
      %v817 = vadd.f32 %v816, %v794
      %v818 = vadd.f32 %v817, %v795
      %v819 = vadd.f32 %v818, %v796
      %v820 = vadd.f32 %v819, %v797
      %v821 = vadd.f32 %v820, %v798
      %v822 = vadd.f32 %v821, %v799
      %v823 = vadd.f32 %v822, %v800
      %v824 = vadd.f32 %v823, %v801
      %v825 = vadd.f32 %v824, %v802
      %v826 = vadd.f32 %v825, %v803
      %v827 = vadd.f32 %v826, %v804
      %v828 = vadd.f32 %v827, %v805
      %v829 = vadd.f32 %v828, %v806
      %v830 = vadd.f32 %v829, %v807
      %v831 = vadd.f32 %v830, %v808
      %v832 = vadd.f32 %v831, %v809
      %v833 = vadd.f32 %v832, %v810
      %v834 = vadd.f32 %v833, %v811
      %v835 = vadd.f32 %v834, %v812
      %v836 = vadd.f32 %v835, %v813
      %v837 = vadd.f32 %v836, %v814
      %v838 = vrot.slane %v837, 4
      %v839 = vadd.f32 %v837, %v838
      %v840 = vrot.slane %v839, 2
      %v841 = vadd.f32 %v839, %v840
      %v842 = vrot.slane %v841, 1
      %v843 = vadd.f32 %v841, %v842
      %844 = vst [vmem:[%s211] sm:$0x1] %v843
      %v845 = vmul.f32 %v791, %v791
      %v846 = vmul.f32 %v792, %v792
      %v847 = vmul.f32 %v793, %v793
      %v848 = vmul.f32 %v794, %v794
      %v849 = vmul.f32 %v795, %v795
      %v850 = vmul.f32 %v796, %v796
      %v851 = vmul.f32 %v797, %v797
      %v852 = vmul.f32 %v798, %v798
      %v853 = vmul.f32 %v799, %v799
      %v854 = vmul.f32 %v800, %v800
      %v855 = vmul.f32 %v801, %v801
      %v856 = vmul.f32 %v802, %v802
      %v857 = vmul.f32 %v803, %v803
      %v858 = vmul.f32 %v804, %v804
      %v859 = vmul.f32 %v805, %v805
      %v860 = vmul.f32 %v806, %v806
      %v861 = vmul.f32 %v807, %v807
      %v862 = vmul.f32 %v808, %v808
      %v863 = vmul.f32 %v809, %v809
      %v864 = vmul.f32 %v810, %v810
      %v865 = vmul.f32 %v811, %v811
      %v866 = vmul.f32 %v812, %v812
      %v867 = vmul.f32 %v813, %v813
      %v868 = vmul.f32 %v814, %v814
      %v869 = vadd.f32 %v845, %v846
      %v870 = vadd.f32 %v869, %v847
      %v871 = vadd.f32 %v870, %v848
      %v872 = vadd.f32 %v871, %v849
      %v873 = vadd.f32 %v872, %v850
      %v874 = vadd.f32 %v873, %v851
      %v875 = vadd.f32 %v874, %v852
      %v876 = vadd.f32 %v875, %v853
      %v877 = vadd.f32 %v876, %v854
      %v878 = vadd.f32 %v877, %v855
      %v879 = vadd.f32 %v878, %v856
      %v880 = vadd.f32 %v879, %v857
      %v881 = vadd.f32 %v880, %v858
      %v882 = vadd.f32 %v881, %v859
      %v883 = vadd.f32 %v882, %v860
      %v884 = vadd.f32 %v883, %v861
      %v885 = vadd.f32 %v884, %v862
      %v886 = vadd.f32 %v885, %v863
      %v887 = vadd.f32 %v886, %v864
      %v888 = vadd.f32 %v887, %v865
      %v889 = vadd.f32 %v888, %v866
      %v890 = vadd.f32 %v889, %v867
      %v891 = vadd.f32 %v890, %v868
      %v892 = vrot.slane %v891, 4
      %v893 = vadd.f32 %v891, %v892
      %v894 = vrot.slane %v893, 2
      %v895 = vadd.f32 %v893, %v894
      %v896 = vrot.slane %v895, 1
      %v897 = vadd.f32 %v895, %v896
      %898 = vst [vmem:[%s211 + $0x1] sm:$0x1] %v897
      %s899 = smul.u32 24, %s16
      %p900 = scmp.lt.s32.totalorder %s899, 71
      %s901 = scalar_select %p900, %s899, 71
      %s902 = smul.addr %s901, 4
      %s903 = scalar_lea.vmem %s3, %s902
      %p904 = scmp.lt.s32.totalorder %s16, 2
      %s905 = scalar_select %p904, %s16, 2
      %s906 = smul.addr %s905, 2
      %s907 = scalar_lea.vmem %s4, %s906
      // Predicated region
      $region33: #{bottleneck_forward.6} parent=31 // pred_check
        %p908 = pneg %p102
      $region34: #{bottleneck_forward.6} parent=31 // pred_check_branch
        %910 = sbr.rel (%p908) target = $region36
      $region35: #{bottleneck_forward.6} parent=31 // pred_region
        %s911 = smul.u32 24, %s16
      $region36: #{bottleneck_forward.6} parent=31 // pred_fallthru
        _
      // Predicated region
      $region37: #{bottleneck_forward.6} parent=31 // pred_check
        %p912 = pneg %p128
      $region38: #{bottleneck_forward.6} parent=31 // pred_check_branch
        %914 = sbr.rel (%p912) target = $region40
      $region39: #{bottleneck_forward.6} parent=31 // pred_region
        _
      $region40: #{bottleneck_forward.6} parent=31 // pred_fallthru
        _
    $region32: #{bottleneck_forward.6} parent=5 // pred_fallthru
      _
    %p915 = scmp.le.s32.totalorder 2, %s11
    // Predicated region
    $region41: #{bottleneck_forward.6} parent=5 // pred_check
      %p916 = pneg %p915
    $region42: #{bottleneck_forward.6} parent=5 // pred_check_branch
      %918 = sbr.rel (%p916) target = $region44
    $region43: #{bottleneck_forward.6} parent=5 // pred_region
      %s919 = ssub.s32 %s11, 2
      // Predicated region
      $region45: #{bottleneck_forward.6} parent=43 // pred_check
        %p920 = pneg %p108
      $region46: #{bottleneck_forward.6} parent=43 // pred_check_branch
        %922 = sbr.rel (%p920) target = $region48
      $region47: #{bottleneck_forward.6} parent=43 // pred_region
        %s923 = smul.u32 24, %s17
        %p924 = scmp.lt.s32.totalorder %s923, 71
        %s925 = scalar_select %p924, %s923, 71
        %s926 = smul.addr %s925, 4
        %s927 = scalar_lea.vmem %s3, %s926
      $region48: #{bottleneck_forward.6} parent=43 // pred_fallthru
        _
      // Predicated region
      $region49: #{bottleneck_forward.6} parent=43 // pred_check
        %p928 = pneg %p134
      $region50: #{bottleneck_forward.6} parent=43 // pred_check_branch
        %930 = sbr.rel (%p928) target = $region52
      $region51: #{bottleneck_forward.6} parent=43 // pred_region
        %p931 = scmp.lt.s32.totalorder %s17, 2
        %s932 = scalar_select %p931, %s17, 2
        %s933 = smul.addr %s932, 2
        %s934 = scalar_lea.vmem %s4, %s933
      $region52: #{bottleneck_forward.6} parent=43 // pred_fallthru
        _
    $region44: #{bottleneck_forward.6} parent=5 // pred_fallthru
      _
  $region6: #{bottleneck_forward.6} parent=0 // loop_footer
    %s15 = sadd.s32 1, %s11
  $region7: #{bottleneck_forward.6} parent=0 // loop_footer_branch
    %10 = sbr.rel target = $region3
  $region8: #{bottleneck_forward.6} parent=0 // loop_exit
    _

// kernel: bottleneck_forward.5
$region0: #{bottleneck_forward.5}
  #allocation0 [shape = 'u32[]', space=smem, size = 0x4, offset = 0x4, fixed_abs, tag = 'smem constant byte address 0x4 - core index']
  #allocation1 [shape = 'u32[144,128]{1,0:T(1,128)}', space=vmem, size = 0x12000, scoped, tag = 'internal scratch']
  #allocation2 [shape = 'bf16[18,18,128]{2,1,0:T(8,128)(2,1)}', space=vmem, size = 0x1b000, scoped, tag = 'scratch operand']
  %s0 = inlined_call_operand.vmem [shape: bf16[2,256,128], index: 0, kind: input, shape index: {}]
  %s1 = inlined_call_operand.vmem [shape: bf16[1152,128], index: 1, kind: input, shape index: {}]
  %s2 = inlined_call_operand.vmem [shape: f32[2,128], index: 2, kind: input, shape index: {}]
  %s3 = inlined_call_operand.vmem [shape: bf16[2,256,128], index: 3, kind: output, shape index: {0}]
  %s4 = inlined_call_operand.vmem [shape: f32[2,2,128], index: 4, kind: output, shape index: {1}]
  %5 = xla_tuple %s3, %s4
  %s6 = sld [smem:[#allocation0]]
  $region53: #{bottleneck_forward.5} parent=0
    _
  %s8 = ssub.s32 1, %s6
  %s9 = scalar_select 0, %s8, %s6
  loop: start=0, step=1, limit=4
  $region2: #{bottleneck_forward.5} parent=0 // loop_pre_header
    _
  $region3: #{bottleneck_forward.5} parent=0 // loop_header
    %s11 = sphi 0, %s15
    %p12 = scmp.ge.s32.totalorder %s11, 4
    %s21 = sphi 0, %s23
    %s24 = sphi 0, %s21
    %s25 = sphi 0, %s24
    %s41 = sphi 0, %s25
    %s45 = sphi 0, %s45
    %s47 = sphi 0, %s45
    %s48 = sphi 0, %s47
    %s62 = sphi 0, %s48
    %s66 = sphi 0, %s66
    %s68 = sphi 0, %s66
    %s69 = sphi 0, %s68
    %s83 = sphi 0, %s69
    %s89 = sphi 0, %s91
    %s92 = sphi 0, %s89
    %s93 = sphi 0, %s92
    %s109 = sphi 0, %s93
    %s115 = sphi 0, %s117
    %s118 = sphi 0, %s115
    %s119 = sphi 0, %s118
    %s135 = sphi 0, %s119
  $region4: #{bottleneck_forward.5} parent=0 // loop_header_branch
    %14 = sbr.rel (%p12) target = $region8
  $region5: #{bottleneck_forward.5} parent=0 // loop_body
    %s16 = ssub.s32 %s11, 1
    %s17 = ssub.s32 %s11, 2
    %s18 = sadd.s32 %s11, 1
    %s19 = ssub.s32 %s11, %s18
    %p20 = scmp.eq.s32.totalorder %s19, 0
    %s22 = sadd.s32 %s21, 1
    %s23 = scalar_select %p20, %s21, %s22
    %p26 = pneg %p20
    %p27 = scmp.eq.s32.totalorder %s11, 1
    %p28 = por %p26, %p27
    %p29 = scmp.ne.s32.totalorder %s21, %s24
    %p30 = scmp.eq.s32.totalorder %s11, 0
    %p31 = por %p29, %p30
    %p32 = scmp.ne.s32.totalorder %s21, %s24
    %p33 = scmp.eq.s32.totalorder %s16, 1
    %p34 = por %p32, %p33
    %p35 = scmp.ne.s32.totalorder %s24, %s25
    %p36 = scmp.eq.s32.totalorder %s16, 0
    %p37 = por %p35, %p36
    %p38 = scmp.ne.s32.totalorder %s24, %s25
    %p39 = scmp.eq.s32.totalorder %s17, 1
    %p40 = por %p38, %p39
    %p42 = scmp.ne.s32.totalorder %s25, %s41
    %p43 = scmp.eq.s32.totalorder %s17, 0
    %p44 = por %p42, %p43
    %s46 = sadd.s32 %s45, 1
    %p49 = scmp.eq.s32.totalorder %s11, 1
    %p50 = scmp.ne.s32.totalorder %s45, %s47
    %p51 = scmp.eq.s32.totalorder %s11, 0
    %p52 = por %p50, %p51
    %p53 = scmp.ne.s32.totalorder %s45, %s47
    %p54 = scmp.eq.s32.totalorder %s16, 1
    %p55 = por %p53, %p54
    %p56 = scmp.ne.s32.totalorder %s47, %s48
    %p57 = scmp.eq.s32.totalorder %s16, 0
    %p58 = por %p56, %p57
    %p59 = scmp.ne.s32.totalorder %s47, %s48
    %p60 = scmp.eq.s32.totalorder %s17, 1
    %p61 = por %p59, %p60
    %p63 = scmp.ne.s32.totalorder %s48, %s62
    %p64 = scmp.eq.s32.totalorder %s17, 0
    %p65 = por %p63, %p64
    %s67 = sadd.s32 %s66, 1
    %p70 = scmp.eq.s32.totalorder %s11, 1
    %p71 = scmp.ne.s32.totalorder %s66, %s68
    %p72 = scmp.eq.s32.totalorder %s11, 0
    %p73 = por %p71, %p72
    %p74 = scmp.ne.s32.totalorder %s66, %s68
    %p75 = scmp.eq.s32.totalorder %s16, 1
    %p76 = por %p74, %p75
    %p77 = scmp.ne.s32.totalorder %s68, %s69
    %p78 = scmp.eq.s32.totalorder %s16, 0
    %p79 = por %p77, %p78
    %p80 = scmp.ne.s32.totalorder %s68, %s69
    %p81 = scmp.eq.s32.totalorder %s17, 1
    %p82 = por %p80, %p81
    %p84 = scmp.ne.s32.totalorder %s69, %s83
    %p85 = scmp.eq.s32.totalorder %s17, 0
    %p86 = por %p84, %p85
    %s87 = ssub.s32 %s11, %s18
    %p88 = scmp.eq.s32.totalorder %s87, 0
    %s90 = sadd.s32 %s89, 1
    %s91 = scalar_select %p88, %s89, %s90
    %p94 = pneg %p88
    %p95 = scmp.eq.s32.totalorder %s11, 1
    %p96 = por %p94, %p95
    %p97 = scmp.ne.s32.totalorder %s89, %s92
    %p98 = scmp.eq.s32.totalorder %s11, 0
    %p99 = por %p97, %p98
    %p100 = scmp.ne.s32.totalorder %s89, %s92
    %p101 = scmp.eq.s32.totalorder %s16, 1
    %p102 = por %p100, %p101
    %p103 = scmp.ne.s32.totalorder %s92, %s93
    %p104 = scmp.eq.s32.totalorder %s16, 0
    %p105 = por %p103, %p104
    %p106 = scmp.ne.s32.totalorder %s92, %s93
    %p107 = scmp.eq.s32.totalorder %s17, 1
    %p108 = por %p106, %p107
    %p110 = scmp.ne.s32.totalorder %s93, %s109
    %p111 = scmp.eq.s32.totalorder %s17, 0
    %p112 = por %p110, %p111
    %s113 = ssub.s32 %s11, %s18
    %p114 = scmp.eq.s32.totalorder %s113, 0
    %s116 = sadd.s32 %s115, 1
    %s117 = scalar_select %p114, %s115, %s116
    %p120 = pneg %p114
    %p121 = scmp.eq.s32.totalorder %s11, 1
    %p122 = por %p120, %p121
    %p123 = scmp.ne.s32.totalorder %s115, %s118
    %p124 = scmp.eq.s32.totalorder %s11, 0
    %p125 = por %p123, %p124
    %p126 = scmp.ne.s32.totalorder %s115, %s118
    %p127 = scmp.eq.s32.totalorder %s16, 1
    %p128 = por %p126, %p127
    %p129 = scmp.ne.s32.totalorder %s118, %s119
    %p130 = scmp.eq.s32.totalorder %s16, 0
    %p131 = por %p129, %p130
    %p132 = scmp.ne.s32.totalorder %s118, %s119
    %p133 = scmp.eq.s32.totalorder %s17, 1
    %p134 = por %p132, %p133
    %p136 = scmp.ne.s32.totalorder %s119, %s135
    %p137 = scmp.eq.s32.totalorder %s17, 0
    %p138 = por %p136, %p137
    %p139 = scmp.le.s32.totalorder 1, %s11
    %p140 = scmp.lt.s32.totalorder %s11, 3
    %p141 = pnand %p139, %p140
    %p142 = pneg %p141
    // Predicated region
    $region9: #{bottleneck_forward.5} parent=5 // pred_check
      _
    $region10: #{bottleneck_forward.5} parent=5 // pred_check_branch
      %144 = sbr.rel (%p141) target = $region12
    $region11: #{bottleneck_forward.5} parent=5 // pred_region
      %s145 = ssub.s32 %s11, 1
      // Predicated region
      $region13: #{bottleneck_forward.5} parent=11 // pred_check
        %p146 = pneg %p58
      $region14: #{bottleneck_forward.5} parent=11 // pred_check_branch
        %148 = sbr.rel (%p146) target = $region16
      $region15: #{bottleneck_forward.5} parent=11 // pred_region
        _
      $region16: #{bottleneck_forward.5} parent=11 // pred_fallthru
        _
      // Predicated region
      $region17: #{bottleneck_forward.5} parent=11 // pred_check
        %p149 = pneg %p79
      $region18: #{bottleneck_forward.5} parent=11 // pred_check_branch
        %151 = sbr.rel (%p149) target = $region20
      $region19: #{bottleneck_forward.5} parent=11 // pred_region
        _
      $region20: #{bottleneck_forward.5} parent=11 // pred_fallthru
        _
    $region12: #{bottleneck_forward.5} parent=5 // pred_fallthru
      _
    %p152 = scmp.lt.s32.totalorder %s11, 2
    // Predicated region
    $region21: #{bottleneck_forward.5} parent=5 // pred_check
      %p153 = pneg %p152
    $region22: #{bottleneck_forward.5} parent=5 // pred_check_branch
      %155 = sbr.rel (%p153) target = $region24
    $region23: #{bottleneck_forward.5} parent=5 // pred_region
      // Predicated region
      $region25: #{bottleneck_forward.5} parent=23 // pred_check
        %p156 = pneg %p31
      $region26: #{bottleneck_forward.5} parent=23 // pred_check_branch
        %158 = sbr.rel (%p156) target = $region28
      $region27: #{bottleneck_forward.5} parent=23 // pred_region
        %p159 = scmp.lt.s32.totalorder %s11, 1
        %s160 = scalar_select %p159, %s11, 1
        %s161 = smul.addr %s160, 32
        %s162 = smul.addr %s161, 4
        %s163 = scalar_lea.vmem %s0, %s162
      $region28: #{bottleneck_forward.5} parent=23 // pred_fallthru
        _
    $region24: #{bottleneck_forward.5} parent=5 // pred_fallthru
      _
    %p164 = scmp.le.s32.totalorder 1, %s11
    %p165 = scmp.lt.s32.totalorder %s11, 3
    %p166 = pnand %p164, %p165
    %p167 = pneg %p166
    // Predicated region
    $region29: #{bottleneck_forward.5} parent=5 // pred_check
      _
    $region30: #{bottleneck_forward.5} parent=5 // pred_check_branch
      %169 = sbr.rel (%p166) target = $region32
    $region31: #{bottleneck_forward.5} parent=5 // pred_region
      %s170 = ssub.s32 %s11, 1
      %p171 = scmp.lt.s32.totalorder %s16, 1
      %s172 = scalar_select %p171, %s16, 1
      %s173 = smul.addr %s172, 32
      %s174 = smul.addr %s173, 4
      %s175 = scalar_lea.vmem %s0, %s174
      %p176 = pneg %p37
      %p177 = pneg %p34
      %p178 = pneg %p58
      %p179 = pneg %p55
      %p180 = pneg %p79
      %p181 = pneg %p76
      %p182 = pneg %p105
      %p183 = pneg %p102
      %p184 = scmp.lt.s32.totalorder %s16, 1
      %s185 = scalar_select %p184, %s16, 1
      %s186 = smul.addr %s185, 32
      %s187 = smul.addr %s186, 4
      %s188 = scalar_lea.vmem %s3, %s187
      %p189 = pneg %p131
      %p190 = pneg %p128
      %p191 = scmp.lt.s32.totalorder %s16, 1
      %s192 = scalar_select %p191, %s16, 1
      %s193 = smul.addr %s192, 2
      %s194 = scalar_lea.vmem %s4, %s193
      %p195 = scmp.lt.s32.totalorder %s16, 1
      %s196 = scalar_select %p195, %s16, 1
      %s197 = smul.addr %s196, 32
      %s198 = smul.addr %s197, 4
      %s199 = scalar_lea.vmem %s0, %s198
      %p200 = scmp.lt.s32.totalorder %s16, 1
      %s201 = scalar_select %p200, %s16, 1
      %s202 = smul.addr %s201, 32
      %s203 = smul.addr %s202, 4
      %s204 = scalar_lea.vmem %s3, %s203
      %p205 = scmp.lt.s32.totalorder %s16, 1
      %s206 = scalar_select %p205, %s16, 1
      %s207 = smul.addr %s206, 2
      %s208 = scalar_lea.vmem %s4, %s207
      %v210 = vld [vmem:[%s199] sm:$0xf]
      %v211 = vld [vmem:[%s199 + $0x4] sm:$0xf]
      %v212 = vld [vmem:[%s199 + $0x8] sm:$0xf]
      %v213 = vld [vmem:[%s199 + $0xc] sm:$0xf]
      %v214 = vld [vmem:[%s199 + $0x10] sm:$0xf]
      %v215 = vld [vmem:[%s199 + $0x14] sm:$0xf]
      %v216 = vld [vmem:[%s199 + $0x18] sm:$0xf]
      %v217 = vld [vmem:[%s199 + $0x1c] sm:$0xf]
      %v218 = vld [vmem:[%s199 + $0x20] sm:$0xf]
      %v219 = vld [vmem:[%s199 + $0x24] sm:$0xf]
      %v220 = vld [vmem:[%s199 + $0x28] sm:$0xf]
      %v221 = vld [vmem:[%s199 + $0x2c] sm:$0xf]
      %v222 = vld [vmem:[%s199 + $0x30] sm:$0xf]
      %v223 = vld [vmem:[%s199 + $0x34] sm:$0xf]
      %v224 = vld [vmem:[%s199 + $0x38] sm:$0xf]
      %v225 = vld [vmem:[%s199 + $0x3c] sm:$0xf]
      %v226 = vld [vmem:[%s199 + $0x40] sm:$0xf]
      %v227 = vld [vmem:[%s199 + $0x44] sm:$0xf]
      %v228 = vld [vmem:[%s199 + $0x48] sm:$0xf]
      %v229 = vld [vmem:[%s199 + $0x4c] sm:$0xf]
      %v230 = vld [vmem:[%s199 + $0x50] sm:$0xf]
      %v231 = vld [vmem:[%s199 + $0x54] sm:$0xf]
      %v232 = vld [vmem:[%s199 + $0x58] sm:$0xf]
      %v233 = vld [vmem:[%s199 + $0x5c] sm:$0xf]
      %v234 = vld [vmem:[%s199 + $0x60] sm:$0xf]
      %v235 = vld [vmem:[%s199 + $0x64] sm:$0xf]
      %v236 = vld [vmem:[%s199 + $0x68] sm:$0xf]
      %v237 = vld [vmem:[%s199 + $0x6c] sm:$0xf]
      %v238 = vld [vmem:[%s199 + $0x70] sm:$0xf]
      %v239 = vld [vmem:[%s199 + $0x74] sm:$0xf]
      %v240 = vld [vmem:[%s199 + $0x78] sm:$0xf]
      %v241 = vld [vmem:[%s199 + $0x7c] sm:$0xf]
      %v242 = vunpack.c.l.bf16 %v210
      %v243 = vunpack.c.l.bf16 %v211
      %v244 = vunpack.c.l.bf16 %v212
      %v245 = vunpack.c.l.bf16 %v213
      %v246 = vunpack.c.l.bf16 %v214
      %v247 = vunpack.c.l.bf16 %v215
      %v248 = vunpack.c.l.bf16 %v216
      %v249 = vunpack.c.l.bf16 %v217
      %v250 = vunpack.c.l.bf16 %v218
      %v251 = vunpack.c.l.bf16 %v219
      %v252 = vunpack.c.l.bf16 %v220
      %v253 = vunpack.c.l.bf16 %v221
      %v254 = vunpack.c.l.bf16 %v222
      %v255 = vunpack.c.l.bf16 %v223
      %v256 = vunpack.c.l.bf16 %v224
      %v257 = vunpack.c.l.bf16 %v225
      %v258 = vunpack.c.l.bf16 %v226
      %v259 = vunpack.c.l.bf16 %v227
      %v260 = vunpack.c.l.bf16 %v228
      %v261 = vunpack.c.l.bf16 %v229
      %v262 = vunpack.c.l.bf16 %v230
      %v263 = vunpack.c.l.bf16 %v231
      %v264 = vunpack.c.l.bf16 %v232
      %v265 = vunpack.c.l.bf16 %v233
      %v266 = vunpack.c.l.bf16 %v234
      %v267 = vunpack.c.l.bf16 %v235
      %v268 = vunpack.c.l.bf16 %v236
      %v269 = vunpack.c.l.bf16 %v237
      %v270 = vunpack.c.l.bf16 %v238
      %v271 = vunpack.c.l.bf16 %v239
      %v272 = vunpack.c.l.bf16 %v240
      %v273 = vunpack.c.l.bf16 %v241
      %v274 = vld [vmem:[%s2] sm:$0x1]
      %v275 = vlaneseq
      %v276 = vshrl.u32 %v275, 7
      %v277 = vsub.s32 0, %v276
      %v278 = vrot.slane %v274, %v277
      %v279 = vmul.f32 %v242, %v278
      %v280 = vmul.f32 %v243, %v278
      %v281 = vmul.f32 %v244, %v278
      %v282 = vmul.f32 %v245, %v278
      %v283 = vmul.f32 %v246, %v278
      %v284 = vmul.f32 %v247, %v278
      %v285 = vmul.f32 %v248, %v278
      %v286 = vmul.f32 %v249, %v278
      %v287 = vmul.f32 %v250, %v278
      %v288 = vmul.f32 %v251, %v278
      %v289 = vmul.f32 %v252, %v278
      %v290 = vmul.f32 %v253, %v278
      %v291 = vmul.f32 %v254, %v278
      %v292 = vmul.f32 %v255, %v278
      %v293 = vmul.f32 %v256, %v278
      %v294 = vmul.f32 %v257, %v278
      %v295 = vmul.f32 %v258, %v278
      %v296 = vmul.f32 %v259, %v278
      %v297 = vmul.f32 %v260, %v278
      %v298 = vmul.f32 %v261, %v278
      %v299 = vmul.f32 %v262, %v278
      %v300 = vmul.f32 %v263, %v278
      %v301 = vmul.f32 %v264, %v278
      %v302 = vmul.f32 %v265, %v278
      %v303 = vmul.f32 %v266, %v278
      %v304 = vmul.f32 %v267, %v278
      %v305 = vmul.f32 %v268, %v278
      %v306 = vmul.f32 %v269, %v278
      %v307 = vmul.f32 %v270, %v278
      %v308 = vmul.f32 %v271, %v278
      %v309 = vmul.f32 %v272, %v278
      %v310 = vmul.f32 %v273, %v278
      %v311 = vld [vmem:[%s2 + $0x1] sm:$0x1]
      %v312 = vlaneseq
      %v313 = vshrl.u32 %v312, 7
      %v314 = vsub.s32 0, %v313
      %v315 = vrot.slane %v311, %v314
      %v316 = vadd.f32 %v279, %v315
      %v317 = vadd.f32 %v280, %v315
      %v318 = vadd.f32 %v281, %v315
      %v319 = vadd.f32 %v282, %v315
      %v320 = vadd.f32 %v283, %v315
      %v321 = vadd.f32 %v284, %v315
      %v322 = vadd.f32 %v285, %v315
      %v323 = vadd.f32 %v286, %v315
      %v324 = vadd.f32 %v287, %v315
      %v325 = vadd.f32 %v288, %v315
      %v326 = vadd.f32 %v289, %v315
      %v327 = vadd.f32 %v290, %v315
      %v328 = vadd.f32 %v291, %v315
      %v329 = vadd.f32 %v292, %v315
      %v330 = vadd.f32 %v293, %v315
      %v331 = vadd.f32 %v294, %v315
      %v332 = vadd.f32 %v295, %v315
      %v333 = vadd.f32 %v296, %v315
      %v334 = vadd.f32 %v297, %v315
      %v335 = vadd.f32 %v298, %v315
      %v336 = vadd.f32 %v299, %v315
      %v337 = vadd.f32 %v300, %v315
      %v338 = vadd.f32 %v301, %v315
      %v339 = vadd.f32 %v302, %v315
      %v340 = vadd.f32 %v303, %v315
      %v341 = vadd.f32 %v304, %v315
      %v342 = vadd.f32 %v305, %v315
      %v343 = vadd.f32 %v306, %v315
      %v344 = vadd.f32 %v307, %v315
      %v345 = vadd.f32 %v308, %v315
      %v346 = vadd.f32 %v309, %v315
      %v347 = vadd.f32 %v310, %v315
      %v348 = vmax.f32 %v316, 0.0
      %v349 = vmax.f32 %v317, 0.0
      %v350 = vmax.f32 %v318, 0.0
      %v351 = vmax.f32 %v319, 0.0
      %v352 = vmax.f32 %v320, 0.0
      %v353 = vmax.f32 %v321, 0.0
      %v354 = vmax.f32 %v322, 0.0
      %v355 = vmax.f32 %v323, 0.0
      %v356 = vmax.f32 %v324, 0.0
      %v357 = vmax.f32 %v325, 0.0
      %v358 = vmax.f32 %v326, 0.0
      %v359 = vmax.f32 %v327, 0.0
      %v360 = vmax.f32 %v328, 0.0
      %v361 = vmax.f32 %v329, 0.0
      %v362 = vmax.f32 %v330, 0.0
      %v363 = vmax.f32 %v331, 0.0
      %v364 = vmax.f32 %v332, 0.0
      %v365 = vmax.f32 %v333, 0.0
      %v366 = vmax.f32 %v334, 0.0
      %v367 = vmax.f32 %v335, 0.0
      %v368 = vmax.f32 %v336, 0.0
      %v369 = vmax.f32 %v337, 0.0
      %v370 = vmax.f32 %v338, 0.0
      %v371 = vmax.f32 %v339, 0.0
      %v372 = vmax.f32 %v340, 0.0
      %v373 = vmax.f32 %v341, 0.0
      %v374 = vmax.f32 %v342, 0.0
      %v375 = vmax.f32 %v343, 0.0
      %v376 = vmax.f32 %v344, 0.0
      %v377 = vmax.f32 %v345, 0.0
      %v378 = vmax.f32 %v346, 0.0
      %v379 = vmax.f32 %v347, 0.0
      %v380 = vpack.c.bf16 %v349, %v348
      %v381 = vpack.c.bf16 %v351, %v350
      %v382 = vpack.c.bf16 %v353, %v352
      %v383 = vpack.c.bf16 %v355, %v354
      %v384 = vpack.c.bf16 %v357, %v356
      %v385 = vpack.c.bf16 %v359, %v358
      %v386 = vpack.c.bf16 %v361, %v360
      %v387 = vpack.c.bf16 %v363, %v362
      %v388 = vpack.c.bf16 %v365, %v364
      %v389 = vpack.c.bf16 %v367, %v366
      %v390 = vpack.c.bf16 %v369, %v368
      %v391 = vpack.c.bf16 %v371, %v370
      %v392 = vpack.c.bf16 %v373, %v372
      %v393 = vpack.c.bf16 %v375, %v374
      %v394 = vpack.c.bf16 %v377, %v376
      %v395 = vpack.c.bf16 %v379, %v378
      %v412 = vunpack.c.l.b16 %v380
      %v413 = vunpack.c.h.b16 %v380
      %v414 = vunpack.c.l.b16 %v381
      %v415 = vunpack.c.h.b16 %v381
      %v416 = vunpack.c.l.b16 %v382
      %v417 = vunpack.c.h.b16 %v382
      %v418 = vunpack.c.l.b16 %v383
      %v419 = vunpack.c.h.b16 %v383
      %v420 = vunpack.c.l.b16 %v384
      %v421 = vunpack.c.h.b16 %v384
      %v422 = vunpack.c.l.b16 %v385
      %v423 = vunpack.c.h.b16 %v385
      %v424 = vunpack.c.l.b16 %v386
      %v425 = vunpack.c.h.b16 %v386
      %v426 = vunpack.c.l.b16 %v387
      %v427 = vunpack.c.h.b16 %v387
      %v428 = vunpack.c.l.b16 %v388
      %v429 = vunpack.c.h.b16 %v388
      %v430 = vunpack.c.l.b16 %v389
      %v431 = vunpack.c.h.b16 %v389
      %v432 = vunpack.c.l.b16 %v390
      %v433 = vunpack.c.h.b16 %v390
      %v434 = vunpack.c.l.b16 %v391
      %v435 = vunpack.c.h.b16 %v391
      %v436 = vunpack.c.l.b16 %v392
      %v437 = vunpack.c.h.b16 %v392
      %v438 = vunpack.c.l.b16 %v393
      %v439 = vunpack.c.h.b16 %v393
      %v440 = vunpack.c.l.b16 %v394
      %v441 = vunpack.c.h.b16 %v394
      %v442 = vunpack.c.l.b16 %v395
      %v443 = vunpack.c.h.b16 %v395
      %v444 = vpack.c.b16 %v412, %v412
      %v445 = vpack.c.b16 %v413, %v413
      %v446 = vpack.c.b16 %v414, %v414
      %v447 = vpack.c.b16 %v415, %v415
      %v448 = vpack.c.b16 %v416, %v416
      %v449 = vpack.c.b16 %v417, %v417
      %v450 = vpack.c.b16 %v418, %v418
      %v451 = vpack.c.b16 %v419, %v419
      %v452 = vpack.c.b16 %v420, %v420
      %v453 = vpack.c.b16 %v421, %v421
      %v454 = vpack.c.b16 %v422, %v422
      %v455 = vpack.c.b16 %v423, %v423
      %v456 = vpack.c.b16 %v424, %v424
      %v457 = vpack.c.b16 %v425, %v425
      %v458 = vpack.c.b16 %v426, %v426
      %v459 = vpack.c.b16 %v427, %v427
      %v460 = vpack.c.b16 %v428, %v428
      %v461 = vpack.c.b16 %v429, %v429
      %v462 = vpack.c.b16 %v430, %v430
      %v463 = vpack.c.b16 %v431, %v431
      %v464 = vpack.c.b16 %v432, %v432
      %v465 = vpack.c.b16 %v433, %v433
      %v466 = vpack.c.b16 %v434, %v434
      %v467 = vpack.c.b16 %v435, %v435
      %v468 = vpack.c.b16 %v436, %v436
      %v469 = vpack.c.b16 %v437, %v437
      %v470 = vpack.c.b16 %v438, %v438
      %v471 = vpack.c.b16 %v439, %v439
      %v472 = vpack.c.b16 %v440, %v440
      %v473 = vpack.c.b16 %v441, %v441
      %v474 = vpack.c.b16 %v442, %v442
      %v475 = vpack.c.b16 %v443, %v443
      %vm476 = vsmask.f32 256
      %vm477 = vsmask.f32 4368
      %vm478 = vmor %vm476, %vm477
      %v480 = vshrl.u32 %v444, 16
      %v482 = vrot.slane %v480, 7
      %v483 = vshll.u32 %v444, 16
      %v485 = vor.u32 %v482, %v483
      %v486 = vrot.slane %v482, 4
      %v488 = vshrl.u32 %v445, 16
      %v490 = vrot.slane %v488, 7
      %v491 = vshll.u32 %v445, 16
      %v493 = vor.u32 %v490, %v491
      %v494 = vsel %vm478, %v486, %v493
      %v495 = vrot.slane %v490, 4
      %v497 = vshrl.u32 %v446, 16
      %v499 = vrot.slane %v497, 7
      %v500 = vshll.u32 %v446, 16
      %v502 = vor.u32 %v499, %v500
      %v503 = vrot.slane %v499, 4
      %v505 = vshrl.u32 %v447, 16
      %v507 = vrot.slane %v505, 7
      %v508 = vshll.u32 %v447, 16
      %v510 = vor.u32 %v507, %v508
      %v511 = vsel %vm478, %v503, %v510
      %v512 = vrot.slane %v507, 4
      %v514 = vshrl.u32 %v448, 16
      %v516 = vrot.slane %v514, 7
      %v517 = vshll.u32 %v448, 16
      %v519 = vor.u32 %v516, %v517
      %v520 = vrot.slane %v516, 4
      %v522 = vshrl.u32 %v449, 16
      %v524 = vrot.slane %v522, 7
      %v525 = vshll.u32 %v449, 16
      %v527 = vor.u32 %v524, %v525
      %v528 = vsel %vm478, %v520, %v527
      %v529 = vrot.slane %v524, 4
      %v531 = vshrl.u32 %v450, 16
      %v533 = vrot.slane %v531, 7
      %v534 = vshll.u32 %v450, 16
      %v536 = vor.u32 %v533, %v534
      %v537 = vrot.slane %v533, 4
      %v539 = vshrl.u32 %v451, 16
      %v541 = vrot.slane %v539, 7
      %v542 = vshll.u32 %v451, 16
      %v544 = vor.u32 %v541, %v542
      %v545 = vsel %vm478, %v537, %v544
      %v546 = vrot.slane %v541, 4
      %v548 = vshrl.u32 %v452, 16
      %v550 = vrot.slane %v548, 7
      %v551 = vshll.u32 %v452, 16
      %v553 = vor.u32 %v550, %v551
      %v554 = vrot.slane %v550, 4
      %v556 = vshrl.u32 %v453, 16
      %v558 = vrot.slane %v556, 7
      %v559 = vshll.u32 %v453, 16
      %v561 = vor.u32 %v558, %v559
      %v562 = vsel %vm478, %v554, %v561
      %v563 = vrot.slane %v558, 4
      %v565 = vshrl.u32 %v454, 16
      %v567 = vrot.slane %v565, 7
      %v568 = vshll.u32 %v454, 16
      %v570 = vor.u32 %v567, %v568
      %v571 = vrot.slane %v567, 4
      %v573 = vshrl.u32 %v455, 16
      %v575 = vrot.slane %v573, 7
      %v576 = vshll.u32 %v455, 16
      %v578 = vor.u32 %v575, %v576
      %v579 = vsel %vm478, %v571, %v578
      %v580 = vrot.slane %v575, 4
      %v582 = vshrl.u32 %v456, 16
      %v584 = vrot.slane %v582, 7
      %v585 = vshll.u32 %v456, 16
      %v587 = vor.u32 %v584, %v585
      %v588 = vrot.slane %v584, 4
      %v590 = vshrl.u32 %v457, 16
      %v592 = vrot.slane %v590, 7
      %v593 = vshll.u32 %v457, 16
      %v595 = vor.u32 %v592, %v593
      %v596 = vsel %vm478, %v588, %v595
      %v597 = vrot.slane %v592, 4
      %v599 = vshrl.u32 %v458, 16
      %v601 = vrot.slane %v599, 7
      %v602 = vshll.u32 %v458, 16
      %v604 = vor.u32 %v601, %v602
      %v605 = vrot.slane %v601, 4
      %v607 = vshrl.u32 %v459, 16
      %v609 = vrot.slane %v607, 7
      %v610 = vshll.u32 %v459, 16
      %v612 = vor.u32 %v609, %v610
      %v613 = vsel %vm478, %v605, %v612
      %v614 = vrot.slane %v609, 4
      %v616 = vshrl.u32 %v460, 16
      %v618 = vrot.slane %v616, 7
      %v619 = vshll.u32 %v460, 16
      %v621 = vor.u32 %v618, %v619
      %v622 = vrot.slane %v618, 4
      %v624 = vshrl.u32 %v461, 16
      %v626 = vrot.slane %v624, 7
      %v627 = vshll.u32 %v461, 16
      %v629 = vor.u32 %v626, %v627
      %v630 = vsel %vm478, %v622, %v629
      %v631 = vrot.slane %v626, 4
      %v633 = vshrl.u32 %v462, 16
      %v635 = vrot.slane %v633, 7
      %v636 = vshll.u32 %v462, 16
      %v638 = vor.u32 %v635, %v636
      %v639 = vrot.slane %v635, 4
      %v641 = vshrl.u32 %v463, 16
      %v643 = vrot.slane %v641, 7
      %v644 = vshll.u32 %v463, 16
      %v646 = vor.u32 %v643, %v644
      %v647 = vsel %vm478, %v639, %v646
      %v648 = vrot.slane %v643, 4
      %v650 = vshrl.u32 %v464, 16
      %v652 = vrot.slane %v650, 7
      %v653 = vshll.u32 %v464, 16
      %v655 = vor.u32 %v652, %v653
      %v656 = vrot.slane %v652, 4
      %v658 = vshrl.u32 %v465, 16
      %v660 = vrot.slane %v658, 7
      %v661 = vshll.u32 %v465, 16
      %v663 = vor.u32 %v660, %v661
      %v664 = vsel %vm478, %v656, %v663
      %v665 = vrot.slane %v660, 4
      %v667 = vshrl.u32 %v466, 16
      %v669 = vrot.slane %v667, 7
      %v670 = vshll.u32 %v466, 16
      %v672 = vor.u32 %v669, %v670
      %v673 = vrot.slane %v669, 4
      %v675 = vshrl.u32 %v467, 16
      %v677 = vrot.slane %v675, 7
      %v678 = vshll.u32 %v467, 16
      %v680 = vor.u32 %v677, %v678
      %v681 = vsel %vm478, %v673, %v680
      %v682 = vrot.slane %v677, 4
      %v684 = vshrl.u32 %v468, 16
      %v686 = vrot.slane %v684, 7
      %v687 = vshll.u32 %v468, 16
      %v689 = vor.u32 %v686, %v687
      %v690 = vrot.slane %v686, 4
      %v692 = vshrl.u32 %v469, 16
      %v694 = vrot.slane %v692, 7
      %v695 = vshll.u32 %v469, 16
      %v697 = vor.u32 %v694, %v695
      %v698 = vsel %vm478, %v690, %v697
      %v699 = vrot.slane %v694, 4
      %v701 = vshrl.u32 %v470, 16
      %v703 = vrot.slane %v701, 7
      %v704 = vshll.u32 %v470, 16
      %v706 = vor.u32 %v703, %v704
      %v707 = vrot.slane %v703, 4
      %v709 = vshrl.u32 %v471, 16
      %v711 = vrot.slane %v709, 7
      %v712 = vshll.u32 %v471, 16
      %v714 = vor.u32 %v711, %v712
      %v715 = vsel %vm478, %v707, %v714
      %v716 = vrot.slane %v711, 4
      %v718 = vshrl.u32 %v472, 16
      %v720 = vrot.slane %v718, 7
      %v721 = vshll.u32 %v472, 16
      %v723 = vor.u32 %v720, %v721
      %v724 = vrot.slane %v720, 4
      %v726 = vshrl.u32 %v473, 16
      %v728 = vrot.slane %v726, 7
      %v729 = vshll.u32 %v473, 16
      %v731 = vor.u32 %v728, %v729
      %v732 = vsel %vm478, %v724, %v731
      %v733 = vrot.slane %v728, 4
      %v735 = vshrl.u32 %v474, 16
      %v737 = vrot.slane %v735, 7
      %v738 = vshll.u32 %v474, 16
      %v740 = vor.u32 %v737, %v738
      %v741 = vrot.slane %v737, 4
      %v743 = vshrl.u32 %v475, 16
      %v745 = vrot.slane %v743, 7
      %v746 = vshll.u32 %v475, 16
      %v748 = vor.u32 %v745, %v746
      %v749 = vsel %vm478, %v741, %v748
      %v750 = vrot.slane %v745, 4
      %s799 = scalar_lea.vmem [#allocation2], 12
      %vm800 = vcmask 1043456
      %vm801 = vsmask.f32 7938
      %vm802 = vmand %vm800, %vm801
      %v803 = vld [vmem:[%s799] sm:$0xf]
      %v804 = vsel %vm802, %v485, %v803
      %805 = vst [vmem:[%s799] sm:$0xf] %v804
      %806 = vst [vmem:[%s799 + $0x4] sm:$0xf] %v494
      %vm807 = vcmask 1040384
      %vm808 = vmand %vm807, %vm476
      %v809 = vld [vmem:[%s799 + $0x8] sm:$0x1]
      %v810 = vsel %vm808, %v495, %v809
      %811 = vst [vmem:[%s799 + $0x8] sm:$0x1] %v810
      %v812 = vld [vmem:[%s799 + $0xc] sm:$0xf]
      %v813 = vsel %vm802, %v502, %v812
      %814 = vst [vmem:[%s799 + $0xc] sm:$0xf] %v813
      %815 = vst [vmem:[%s799 + $0x10] sm:$0xf] %v511
      %v816 = vld [vmem:[%s799 + $0x14] sm:$0x1]
      %v817 = vsel %vm808, %v512, %v816
      %818 = vst [vmem:[%s799 + $0x14] sm:$0x1] %v817
      %v819 = vld [vmem:[%s799 + $0x18] sm:$0xf]
      %v820 = vsel %vm802, %v519, %v819
      %821 = vst [vmem:[%s799 + $0x18] sm:$0xf] %v820
      %822 = vst [vmem:[%s799 + $0x1c] sm:$0xf] %v528
      %v823 = vld [vmem:[%s799 + $0x20] sm:$0x1]
      %v824 = vsel %vm808, %v529, %v823
      %825 = vst [vmem:[%s799 + $0x20] sm:$0x1] %v824
      %v826 = vld [vmem:[%s799 + $0x24] sm:$0xf]
      %v827 = vsel %vm802, %v536, %v826
      %828 = vst [vmem:[%s799 + $0x24] sm:$0xf] %v827
      %829 = vst [vmem:[%s799 + $0x28] sm:$0xf] %v545
      %v830 = vld [vmem:[%s799 + $0x2c] sm:$0x1]
      %v831 = vsel %vm808, %v546, %v830
      %832 = vst [vmem:[%s799 + $0x2c] sm:$0x1] %v831
      %v833 = vld [vmem:[%s799 + $0x30] sm:$0xf]
      %v834 = vsel %vm802, %v553, %v833
      %835 = vst [vmem:[%s799 + $0x30] sm:$0xf] %v834
      %836 = vst [vmem:[%s799 + $0x34] sm:$0xf] %v562
      %v837 = vld [vmem:[%s799 + $0x38] sm:$0x1]
      %v838 = vsel %vm808, %v563, %v837
      %839 = vst [vmem:[%s799 + $0x38] sm:$0x1] %v838
      %v840 = vld [vmem:[%s799 + $0x3c] sm:$0xf]
      %v841 = vsel %vm802, %v570, %v840
      %842 = vst [vmem:[%s799 + $0x3c] sm:$0xf] %v841
      %843 = vst [vmem:[%s799 + $0x40] sm:$0xf] %v579
      %v844 = vld [vmem:[%s799 + $0x44] sm:$0x1]
      %v845 = vsel %vm808, %v580, %v844
      %846 = vst [vmem:[%s799 + $0x44] sm:$0x1] %v845
      %v847 = vld [vmem:[%s799 + $0x48] sm:$0xf]
      %v848 = vsel %vm802, %v587, %v847
      %849 = vst [vmem:[%s799 + $0x48] sm:$0xf] %v848
      %850 = vst [vmem:[%s799 + $0x4c] sm:$0xf] %v596
      %v851 = vld [vmem:[%s799 + $0x50] sm:$0x1]
      %v852 = vsel %vm808, %v597, %v851
      %853 = vst [vmem:[%s799 + $0x50] sm:$0x1] %v852
      %v854 = vld [vmem:[%s799 + $0x54] sm:$0xf]
      %v855 = vsel %vm802, %v604, %v854
      %856 = vst [vmem:[%s799 + $0x54] sm:$0xf] %v855
      %857 = vst [vmem:[%s799 + $0x58] sm:$0xf] %v613
      %v858 = vld [vmem:[%s799 + $0x5c] sm:$0x1]
      %v859 = vsel %vm808, %v614, %v858
      %860 = vst [vmem:[%s799 + $0x5c] sm:$0x1] %v859
      %v861 = vld [vmem:[%s799 + $0x60] sm:$0xf]
      %v862 = vsel %vm802, %v621, %v861
      %863 = vst [vmem:[%s799 + $0x60] sm:$0xf] %v862
      %864 = vst [vmem:[%s799 + $0x64] sm:$0xf] %v630
      %v865 = vld [vmem:[%s799 + $0x68] sm:$0x1]
      %v866 = vsel %vm808, %v631, %v865
      %867 = vst [vmem:[%s799 + $0x68] sm:$0x1] %v866
      %v868 = vld [vmem:[%s799 + $0x6c] sm:$0xf]
      %v869 = vsel %vm802, %v638, %v868
      %870 = vst [vmem:[%s799 + $0x6c] sm:$0xf] %v869
      %871 = vst [vmem:[%s799 + $0x70] sm:$0xf] %v647
      %v872 = vld [vmem:[%s799 + $0x74] sm:$0x1]
      %v873 = vsel %vm808, %v648, %v872
      %874 = vst [vmem:[%s799 + $0x74] sm:$0x1] %v873
      %v875 = vld [vmem:[%s799 + $0x78] sm:$0xf]
      %v876 = vsel %vm802, %v655, %v875
      %877 = vst [vmem:[%s799 + $0x78] sm:$0xf] %v876
      %878 = vst [vmem:[%s799 + $0x7c] sm:$0xf] %v664
      %v879 = vld [vmem:[%s799 + $0x80] sm:$0x1]
      %v880 = vsel %vm808, %v665, %v879
      %881 = vst [vmem:[%s799 + $0x80] sm:$0x1] %v880
      %v882 = vld [vmem:[%s799 + $0x84] sm:$0xf]
      %v883 = vsel %vm802, %v672, %v882
      %884 = vst [vmem:[%s799 + $0x84] sm:$0xf] %v883
      %885 = vst [vmem:[%s799 + $0x88] sm:$0xf] %v681
      %v886 = vld [vmem:[%s799 + $0x8c] sm:$0x1]
      %v887 = vsel %vm808, %v682, %v886
      %888 = vst [vmem:[%s799 + $0x8c] sm:$0x1] %v887
      %v889 = vld [vmem:[%s799 + $0x90] sm:$0xf]
      %v890 = vsel %vm802, %v689, %v889
      %891 = vst [vmem:[%s799 + $0x90] sm:$0xf] %v890
      %892 = vst [vmem:[%s799 + $0x94] sm:$0xf] %v698
      %v893 = vld [vmem:[%s799 + $0x98] sm:$0x1]
      %v894 = vsel %vm808, %v699, %v893
      %895 = vst [vmem:[%s799 + $0x98] sm:$0x1] %v894
      %v896 = vld [vmem:[%s799 + $0x9c] sm:$0xf]
      %v897 = vsel %vm802, %v706, %v896
      %898 = vst [vmem:[%s799 + $0x9c] sm:$0xf] %v897
      %899 = vst [vmem:[%s799 + $0xa0] sm:$0xf] %v715
      %v900 = vld [vmem:[%s799 + $0xa4] sm:$0x1]
      %v901 = vsel %vm808, %v716, %v900
      %902 = vst [vmem:[%s799 + $0xa4] sm:$0x1] %v901
      %v903 = vld [vmem:[%s799 + $0xa8] sm:$0xf]
      %v904 = vsel %vm802, %v723, %v903
      %905 = vst [vmem:[%s799 + $0xa8] sm:$0xf] %v904
      %906 = vst [vmem:[%s799 + $0xac] sm:$0xf] %v732
      %v907 = vld [vmem:[%s799 + $0xb0] sm:$0x1]
      %v908 = vsel %vm808, %v733, %v907
      %909 = vst [vmem:[%s799 + $0xb0] sm:$0x1] %v908
      %v910 = vld [vmem:[%s799 + $0xb4] sm:$0xf]
      %v911 = vsel %vm802, %v740, %v910
      %912 = vst [vmem:[%s799 + $0xb4] sm:$0xf] %v911
      %913 = vst [vmem:[%s799 + $0xb8] sm:$0xf] %v749
      %v914 = vld [vmem:[%s799 + $0xbc] sm:$0x1]
      %v915 = vsel %vm808, %v750, %v914
      %916 = vst [vmem:[%s799 + $0xbc] sm:$0x1] %v915
      %917 = vst [vmem:[#allocation2] sm:$0xf] 0
      %918 = vst [vmem:[#allocation2 + $0x4] sm:$0xf] 0
      %919 = vst [vmem:[#allocation2 + $0x8] sm:$0x1] 0
      %s920 = scalar_lea.vmem [#allocation2], 204
      %921 = vst [vmem:[%s920] sm:$0xf] 0
      %922 = vst [vmem:[%s920 + $0x4] sm:$0xf] 0
      %923 = vst [vmem:[%s920 + $0x8] sm:$0x1] 0
      %v924 = vld [vmem:[%s799] sm:$0x1]
      %v925 = vsel %vm808, 0, %v924
      %926 = vst [vmem:[%s799] sm:$0x1] %v925
      %v927 = vld [vmem:[%s799 + $0xc] sm:$0x1]
      %v928 = vsel %vm808, 0, %v927
      %929 = vst [vmem:[%s799 + $0xc] sm:$0x1] %v928
      %v930 = vld [vmem:[%s799 + $0x18] sm:$0x1]
      %v931 = vsel %vm808, 0, %v930
      %932 = vst [vmem:[%s799 + $0x18] sm:$0x1] %v931
      %v933 = vld [vmem:[%s799 + $0x24] sm:$0x1]
      %v934 = vsel %vm808, 0, %v933
      %935 = vst [vmem:[%s799 + $0x24] sm:$0x1] %v934
      %v936 = vld [vmem:[%s799 + $0x30] sm:$0x1]
      %v937 = vsel %vm808, 0, %v936
      %938 = vst [vmem:[%s799 + $0x30] sm:$0x1] %v937
      %v939 = vld [vmem:[%s799 + $0x3c] sm:$0x1]
      %v940 = vsel %vm808, 0, %v939
      %941 = vst [vmem:[%s799 + $0x3c] sm:$0x1] %v940
      %v942 = vld [vmem:[%s799 + $0x48] sm:$0x1]
      %v943 = vsel %vm808, 0, %v942
      %944 = vst [vmem:[%s799 + $0x48] sm:$0x1] %v943
      %v945 = vld [vmem:[%s799 + $0x54] sm:$0x1]
      %v946 = vsel %vm808, 0, %v945
      %947 = vst [vmem:[%s799 + $0x54] sm:$0x1] %v946
      %v948 = vld [vmem:[%s799 + $0x60] sm:$0x1]
      %v949 = vsel %vm808, 0, %v948
      %950 = vst [vmem:[%s799 + $0x60] sm:$0x1] %v949
      %v951 = vld [vmem:[%s799 + $0x6c] sm:$0x1]
      %v952 = vsel %vm808, 0, %v951
      %953 = vst [vmem:[%s799 + $0x6c] sm:$0x1] %v952
      %v954 = vld [vmem:[%s799 + $0x78] sm:$0x1]
      %v955 = vsel %vm808, 0, %v954
      %956 = vst [vmem:[%s799 + $0x78] sm:$0x1] %v955
      %v957 = vld [vmem:[%s799 + $0x84] sm:$0x1]
      %v958 = vsel %vm808, 0, %v957
      %959 = vst [vmem:[%s799 + $0x84] sm:$0x1] %v958
      %v960 = vld [vmem:[%s799 + $0x90] sm:$0x1]
      %v961 = vsel %vm808, 0, %v960
      %962 = vst [vmem:[%s799 + $0x90] sm:$0x1] %v961
      %v963 = vld [vmem:[%s799 + $0x9c] sm:$0x1]
      %v964 = vsel %vm808, 0, %v963
      %965 = vst [vmem:[%s799 + $0x9c] sm:$0x1] %v964
      %v966 = vld [vmem:[%s799 + $0xa8] sm:$0x1]
      %v967 = vsel %vm808, 0, %v966
      %968 = vst [vmem:[%s799 + $0xa8] sm:$0x1] %v967
      %v969 = vld [vmem:[%s799 + $0xb4] sm:$0x1]
      %v970 = vsel %vm808, 0, %v969
      %971 = vst [vmem:[%s799 + $0xb4] sm:$0x1] %v970
      %vm972 = vmand %vm807, %vm801
      %v973 = vld [vmem:[%s799 + $0x8] sm:$0x1]
      %v974 = vsel %vm972, 0, %v973
      %975 = vst [vmem:[%s799 + $0x8] sm:$0x1] %v974
      %v976 = vld [vmem:[%s799 + $0x14] sm:$0x1]
      %v977 = vsel %vm972, 0, %v976
      %978 = vst [vmem:[%s799 + $0x14] sm:$0x1] %v977
      %v979 = vld [vmem:[%s799 + $0x20] sm:$0x1]
      %v980 = vsel %vm972, 0, %v979
      %981 = vst [vmem:[%s799 + $0x20] sm:$0x1] %v980
      %v982 = vld [vmem:[%s799 + $0x2c] sm:$0x1]
      %v983 = vsel %vm972, 0, %v982
      %984 = vst [vmem:[%s799 + $0x2c] sm:$0x1] %v983
      %v985 = vld [vmem:[%s799 + $0x38] sm:$0x1]
      %v986 = vsel %vm972, 0, %v985
      %987 = vst [vmem:[%s799 + $0x38] sm:$0x1] %v986
      %v988 = vld [vmem:[%s799 + $0x44] sm:$0x1]
      %v989 = vsel %vm972, 0, %v988
      %990 = vst [vmem:[%s799 + $0x44] sm:$0x1] %v989
      %v991 = vld [vmem:[%s799 + $0x50] sm:$0x1]
      %v992 = vsel %vm972, 0, %v991
      %993 = vst [vmem:[%s799 + $0x50] sm:$0x1] %v992
      %v994 = vld [vmem:[%s799 + $0x5c] sm:$0x1]
      %v995 = vsel %vm972, 0, %v994
      %996 = vst [vmem:[%s799 + $0x5c] sm:$0x1] %v995
      %v997 = vld [vmem:[%s799 + $0x68] sm:$0x1]
      %v998 = vsel %vm972, 0, %v997
      %999 = vst [vmem:[%s799 + $0x68] sm:$0x1] %v998
      %v1000 = vld [vmem:[%s799 + $0x74] sm:$0x1]
      %v1001 = vsel %vm972, 0, %v1000
      %1002 = vst [vmem:[%s799 + $0x74] sm:$0x1] %v1001
      %v1003 = vld [vmem:[%s799 + $0x80] sm:$0x1]
      %v1004 = vsel %vm972, 0, %v1003
      %1005 = vst [vmem:[%s799 + $0x80] sm:$0x1] %v1004
      %v1006 = vld [vmem:[%s799 + $0x8c] sm:$0x1]
      %v1007 = vsel %vm972, 0, %v1006
      %1008 = vst [vmem:[%s799 + $0x8c] sm:$0x1] %v1007
      %v1009 = vld [vmem:[%s799 + $0x98] sm:$0x1]
      %v1010 = vsel %vm972, 0, %v1009
      %1011 = vst [vmem:[%s799 + $0x98] sm:$0x1] %v1010
      %v1012 = vld [vmem:[%s799 + $0xa4] sm:$0x1]
      %v1013 = vsel %vm972, 0, %v1012
      %1014 = vst [vmem:[%s799 + $0xa4] sm:$0x1] %v1013
      %v1015 = vld [vmem:[%s799 + $0xb0] sm:$0x1]
      %v1016 = vsel %vm972, 0, %v1015
      %1017 = vst [vmem:[%s799 + $0xb0] sm:$0x1] %v1016
      %v1018 = vld [vmem:[%s799 + $0xbc] sm:$0x1]
      %v1019 = vsel %vm972, 0, %v1018
      %1020 = vst [vmem:[%s799 + $0xbc] sm:$0x1] %v1019
      %v1021 = vld [vmem:[#allocation2] sm:$0xf]
      %v1022 = vld [vmem:[#allocation2 + $0x4] sm:$0xf]
      %v1023 = vld [vmem:[#allocation2 + $0xc] sm:$0xf]
      %v1024 = vld [vmem:[#allocation2 + $0x10] sm:$0xf]
      %v1025 = vld [vmem:[#allocation2 + $0x18] sm:$0xf]
      %v1026 = vld [vmem:[#allocation2 + $0x1c] sm:$0xf]
      %v1027 = vld [vmem:[#allocation2 + $0x24] sm:$0xf]
      %v1028 = vld [vmem:[#allocation2 + $0x28] sm:$0xf]
      %v1029 = vld [vmem:[#allocation2 + $0x30] sm:$0xf]
      %v1030 = vld [vmem:[#allocation2 + $0x34] sm:$0xf]
      %v1031 = vld [vmem:[#allocation2 + $0x3c] sm:$0xf]
      %v1032 = vld [vmem:[#allocation2 + $0x40] sm:$0xf]
      %v1033 = vld [vmem:[#allocation2 + $0x48] sm:$0xf]
      %v1034 = vld [vmem:[#allocation2 + $0x4c] sm:$0xf]
      %v1035 = vld [vmem:[#allocation2 + $0x54] sm:$0xf]
      %v1036 = vld [vmem:[#allocation2 + $0x58] sm:$0xf]
      %v1037 = vld [vmem:[#allocation2 + $0x60] sm:$0xf]
      %v1038 = vld [vmem:[#allocation2 + $0x64] sm:$0xf]
      %v1039 = vld [vmem:[#allocation2 + $0x6c] sm:$0xf]
      %v1040 = vld [vmem:[#allocation2 + $0x70] sm:$0xf]
      %v1041 = vld [vmem:[#allocation2 + $0x78] sm:$0xf]
      %v1042 = vld [vmem:[#allocation2 + $0x7c] sm:$0xf]
      %v1043 = vld [vmem:[#allocation2 + $0x84] sm:$0xf]
      %v1044 = vld [vmem:[#allocation2 + $0x88] sm:$0xf]
      %v1045 = vld [vmem:[#allocation2 + $0x90] sm:$0xf]
      %v1046 = vld [vmem:[#allocation2 + $0x94] sm:$0xf]
      %v1047 = vld [vmem:[#allocation2 + $0x9c] sm:$0xf]
      %v1048 = vld [vmem:[#allocation2 + $0xa0] sm:$0xf]
      %v1049 = vld [vmem:[#allocation2 + $0xa8] sm:$0xf]
      %v1050 = vld [vmem:[#allocation2 + $0xac] sm:$0xf]
      %v1051 = vld [vmem:[#allocation2 + $0xb4] sm:$0xf]
      %v1052 = vld [vmem:[#allocation2 + $0xb8] sm:$0xf]
      %v1053 = vld [vmem:[%s1] sm:$0xf]
      %v1054 = vld [vmem:[%s1 + $0x4] sm:$0xf]
      %v1055 = vld [vmem:[%s1 + $0x8] sm:$0xf]
      %v1056 = vld [vmem:[%s1 + $0xc] sm:$0xf]
      %v1057 = vld [vmem:[%s1 + $0x10] sm:$0xf]
      %v1058 = vld [vmem:[%s1 + $0x14] sm:$0xf]
      %v1059 = vld [vmem:[%s1 + $0x18] sm:$0xf]
      %v1060 = vld [vmem:[%s1 + $0x1c] sm:$0xf]
      %v1061 = vld [vmem:[%s1 + $0x20] sm:$0xf]
      %v1062 = vld [vmem:[%s1 + $0x24] sm:$0xf]
      %v1063 = vld [vmem:[%s1 + $0x28] sm:$0xf]
      %v1064 = vld [vmem:[%s1 + $0x2c] sm:$0xf]
      %v1065 = vld [vmem:[%s1 + $0x30] sm:$0xf]
      %v1066 = vld [vmem:[%s1 + $0x34] sm:$0xf]
      %v1067 = vld [vmem:[%s1 + $0x38] sm:$0xf]
      %v1068 = vld [vmem:[%s1 + $0x3c] sm:$0xf]
      %v1069 = vld [vmem:[#allocation2 + $0x8] sm:$0x1]
      %v1070 = vld [vmem:[#allocation2 + $0x14] sm:$0x1]
      %v1071 = vld [vmem:[#allocation2 + $0x20] sm:$0x1]
      %v1072 = vld [vmem:[#allocation2 + $0x2c] sm:$0x1]
      %v1073 = vld [vmem:[#allocation2 + $0x38] sm:$0x1]
      %v1074 = vld [vmem:[#allocation2 + $0x44] sm:$0x1]
      %v1075 = vld [vmem:[#allocation2 + $0x50] sm:$0x1]
      %v1076 = vld [vmem:[#allocation2 + $0x5c] sm:$0x1]
      %v1077 = vld [vmem:[#allocation2 + $0x68] sm:$0x1]
      %v1078 = vld [vmem:[#allocation2 + $0x74] sm:$0x1]
      %v1079 = vld [vmem:[#allocation2 + $0x80] sm:$0x1]
      %v1080 = vld [vmem:[#allocation2 + $0x8c] sm:$0x1]
      %v1081 = vld [vmem:[#allocation2 + $0x98] sm:$0x1]
      %v1082 = vld [vmem:[#allocation2 + $0xa4] sm:$0x1]
      %v1083 = vld [vmem:[#allocation2 + $0xb0] sm:$0x1]
      %v1084 = vld [vmem:[#allocation2 + $0xbc] sm:$0x1]
      %vm1085 = vsmask.f32 3328
      %vm1086 = vsmask.f32 7440
      %vm1087 = vmor %vm1085, %vm1086
      %v1089 = vshrl.u32 %v1021, 16
      %v1091 = vrot.slane %v1089, 4
      %v1092 = vshll.u32 %v1021, 16
      %v1094 = vrot.slane %v1092, 5
      %v1095 = vor.u32 %v1091, %v1094
      %v1096 = vrot.slane %v1095, 4
      %v1098 = vshll.u32 %v1022, 16
      %v1100 = vrot.slane %v1098, 5
      %v1101 = vsel %vm1087, %v1096, %v1100
      %v1102 = vshrl.u32 %v1022, 16
      %v1104 = vrot.slane %v1102, 4
      %v1105 = vor.u32 %v1104, %v1100
      %v1106 = vrot.slane %v1105, 4
      %v1108 = vshll.u32 %v1069, 16
      %v1110 = vrot.slane %v1108, 5
      %v1111 = vsel %vm1087, %v1106, %v1110
      %v1113 = vshrl.u32 %v1023, 16
      %v1115 = vrot.slane %v1113, 4
      %v1116 = vshll.u32 %v1023, 16
      %v1118 = vrot.slane %v1116, 5
      %v1119 = vor.u32 %v1115, %v1118
      %v1120 = vrot.slane %v1119, 4
      %v1122 = vshll.u32 %v1024, 16
      %v1124 = vrot.slane %v1122, 5
      %v1125 = vsel %vm1087, %v1120, %v1124
      %v1126 = vshrl.u32 %v1024, 16
      %v1128 = vrot.slane %v1126, 4
      %v1129 = vor.u32 %v1128, %v1124
      %v1130 = vrot.slane %v1129, 4
      %v1132 = vshll.u32 %v1070, 16
      %v1134 = vrot.slane %v1132, 5
      %v1135 = vsel %vm1087, %v1130, %v1134
      %v1137 = vshrl.u32 %v1025, 16
      %v1139 = vrot.slane %v1137, 4
      %v1140 = vshll.u32 %v1025, 16
      %v1142 = vrot.slane %v1140, 5
      %v1143 = vor.u32 %v1139, %v1142
      %v1144 = vrot.slane %v1143, 4
      %v1146 = vshll.u32 %v1026, 16
      %v1148 = vrot.slane %v1146, 5
      %v1149 = vsel %vm1087, %v1144, %v1148
      %v1150 = vshrl.u32 %v1026, 16
      %v1152 = vrot.slane %v1150, 4
      %v1153 = vor.u32 %v1152, %v1148
      %v1154 = vrot.slane %v1153, 4
      %v1156 = vshll.u32 %v1071, 16
      %v1158 = vrot.slane %v1156, 5
      %v1159 = vsel %vm1087, %v1154, %v1158
      %v1161 = vshrl.u32 %v1027, 16
      %v1163 = vrot.slane %v1161, 4
      %v1164 = vshll.u32 %v1027, 16
      %v1166 = vrot.slane %v1164, 5
      %v1167 = vor.u32 %v1163, %v1166
      %v1168 = vrot.slane %v1167, 4
      %v1170 = vshll.u32 %v1028, 16
      %v1172 = vrot.slane %v1170, 5
      %v1173 = vsel %vm1087, %v1168, %v1172
      %v1174 = vshrl.u32 %v1028, 16
      %v1176 = vrot.slane %v1174, 4
      %v1177 = vor.u32 %v1176, %v1172
      %v1178 = vrot.slane %v1177, 4
      %v1180 = vshll.u32 %v1072, 16
      %v1182 = vrot.slane %v1180, 5
      %v1183 = vsel %vm1087, %v1178, %v1182
      %v1185 = vshrl.u32 %v1029, 16
      %v1187 = vrot.slane %v1185, 4
      %v1188 = vshll.u32 %v1029, 16
      %v1190 = vrot.slane %v1188, 5
      %v1191 = vor.u32 %v1187, %v1190
      %v1192 = vrot.slane %v1191, 4
      %v1194 = vshll.u32 %v1030, 16
      %v1196 = vrot.slane %v1194, 5
      %v1197 = vsel %vm1087, %v1192, %v1196
      %v1198 = vshrl.u32 %v1030, 16
      %v1200 = vrot.slane %v1198, 4
      %v1201 = vor.u32 %v1200, %v1196
      %v1202 = vrot.slane %v1201, 4
      %v1204 = vshll.u32 %v1073, 16
      %v1206 = vrot.slane %v1204, 5
      %v1207 = vsel %vm1087, %v1202, %v1206
      %v1209 = vshrl.u32 %v1031, 16
      %v1211 = vrot.slane %v1209, 4
      %v1212 = vshll.u32 %v1031, 16
      %v1214 = vrot.slane %v1212, 5
      %v1215 = vor.u32 %v1211, %v1214
      %v1216 = vrot.slane %v1215, 4
      %v1218 = vshll.u32 %v1032, 16
      %v1220 = vrot.slane %v1218, 5
      %v1221 = vsel %vm1087, %v1216, %v1220
      %v1222 = vshrl.u32 %v1032, 16
      %v1224 = vrot.slane %v1222, 4
      %v1225 = vor.u32 %v1224, %v1220
      %v1226 = vrot.slane %v1225, 4
      %v1228 = vshll.u32 %v1074, 16
      %v1230 = vrot.slane %v1228, 5
      %v1231 = vsel %vm1087, %v1226, %v1230
      %v1233 = vshrl.u32 %v1033, 16
      %v1235 = vrot.slane %v1233, 4
      %v1236 = vshll.u32 %v1033, 16
      %v1238 = vrot.slane %v1236, 5
      %v1239 = vor.u32 %v1235, %v1238
      %v1240 = vrot.slane %v1239, 4
      %v1242 = vshll.u32 %v1034, 16
      %v1244 = vrot.slane %v1242, 5
      %v1245 = vsel %vm1087, %v1240, %v1244
      %v1246 = vshrl.u32 %v1034, 16
      %v1248 = vrot.slane %v1246, 4
      %v1249 = vor.u32 %v1248, %v1244
      %v1250 = vrot.slane %v1249, 4
      %v1252 = vshll.u32 %v1075, 16
      %v1254 = vrot.slane %v1252, 5
      %v1255 = vsel %vm1087, %v1250, %v1254
      %v1257 = vshrl.u32 %v1035, 16
      %v1259 = vrot.slane %v1257, 4
      %v1260 = vshll.u32 %v1035, 16
      %v1262 = vrot.slane %v1260, 5
      %v1263 = vor.u32 %v1259, %v1262
      %v1264 = vrot.slane %v1263, 4
      %v1266 = vshll.u32 %v1036, 16
      %v1268 = vrot.slane %v1266, 5
      %v1269 = vsel %vm1087, %v1264, %v1268
      %v1270 = vshrl.u32 %v1036, 16
      %v1272 = vrot.slane %v1270, 4
      %v1273 = vor.u32 %v1272, %v1268
      %v1274 = vrot.slane %v1273, 4
      %v1276 = vshll.u32 %v1076, 16
      %v1278 = vrot.slane %v1276, 5
      %v1279 = vsel %vm1087, %v1274, %v1278
      %v1281 = vshrl.u32 %v1037, 16
      %v1283 = vrot.slane %v1281, 4
      %v1284 = vshll.u32 %v1037, 16
      %v1286 = vrot.slane %v1284, 5
      %v1287 = vor.u32 %v1283, %v1286
      %v1288 = vrot.slane %v1287, 4
      %v1290 = vshll.u32 %v1038, 16
      %v1292 = vrot.slane %v1290, 5
      %v1293 = vsel %vm1087, %v1288, %v1292
      %v1294 = vshrl.u32 %v1038, 16
      %v1296 = vrot.slane %v1294, 4
      %v1297 = vor.u32 %v1296, %v1292
      %v1298 = vrot.slane %v1297, 4
      %v1300 = vshll.u32 %v1077, 16
      %v1302 = vrot.slane %v1300, 5
      %v1303 = vsel %vm1087, %v1298, %v1302
      %v1305 = vshrl.u32 %v1039, 16
      %v1307 = vrot.slane %v1305, 4
      %v1308 = vshll.u32 %v1039, 16
      %v1310 = vrot.slane %v1308, 5
      %v1311 = vor.u32 %v1307, %v1310
      %v1312 = vrot.slane %v1311, 4
      %v1314 = vshll.u32 %v1040, 16
      %v1316 = vrot.slane %v1314, 5
      %v1317 = vsel %vm1087, %v1312, %v1316
      %v1318 = vshrl.u32 %v1040, 16
      %v1320 = vrot.slane %v1318, 4
      %v1321 = vor.u32 %v1320, %v1316
      %v1322 = vrot.slane %v1321, 4
      %v1324 = vshll.u32 %v1078, 16
      %v1326 = vrot.slane %v1324, 5
      %v1327 = vsel %vm1087, %v1322, %v1326
      %v1329 = vshrl.u32 %v1041, 16
      %v1331 = vrot.slane %v1329, 4
      %v1332 = vshll.u32 %v1041, 16
      %v1334 = vrot.slane %v1332, 5
      %v1335 = vor.u32 %v1331, %v1334
      %v1336 = vrot.slane %v1335, 4
      %v1338 = vshll.u32 %v1042, 16
      %v1340 = vrot.slane %v1338, 5
      %v1341 = vsel %vm1087, %v1336, %v1340
      %v1342 = vshrl.u32 %v1042, 16
      %v1344 = vrot.slane %v1342, 4
      %v1345 = vor.u32 %v1344, %v1340
      %v1346 = vrot.slane %v1345, 4
      %v1348 = vshll.u32 %v1079, 16
      %v1350 = vrot.slane %v1348, 5
      %v1351 = vsel %vm1087, %v1346, %v1350
      %v1353 = vshrl.u32 %v1043, 16
      %v1355 = vrot.slane %v1353, 4
      %v1356 = vshll.u32 %v1043, 16
      %v1358 = vrot.slane %v1356, 5
      %v1359 = vor.u32 %v1355, %v1358
      %v1360 = vrot.slane %v1359, 4
      %v1362 = vshll.u32 %v1044, 16
      %v1364 = vrot.slane %v1362, 5
      %v1365 = vsel %vm1087, %v1360, %v1364
      %v1366 = vshrl.u32 %v1044, 16
      %v1368 = vrot.slane %v1366, 4
      %v1369 = vor.u32 %v1368, %v1364
      %v1370 = vrot.slane %v1369, 4
      %v1372 = vshll.u32 %v1080, 16
      %v1374 = vrot.slane %v1372, 5
      %v1375 = vsel %vm1087, %v1370, %v1374
      %v1377 = vshrl.u32 %v1045, 16
      %v1379 = vrot.slane %v1377, 4
      %v1380 = vshll.u32 %v1045, 16
      %v1382 = vrot.slane %v1380, 5
      %v1383 = vor.u32 %v1379, %v1382
      %v1384 = vrot.slane %v1383, 4
      %v1386 = vshll.u32 %v1046, 16
      %v1388 = vrot.slane %v1386, 5
      %v1389 = vsel %vm1087, %v1384, %v1388
      %v1390 = vshrl.u32 %v1046, 16
      %v1392 = vrot.slane %v1390, 4
      %v1393 = vor.u32 %v1392, %v1388
      %v1394 = vrot.slane %v1393, 4
      %v1396 = vshll.u32 %v1081, 16
      %v1398 = vrot.slane %v1396, 5
      %v1399 = vsel %vm1087, %v1394, %v1398
      %v1401 = vshrl.u32 %v1047, 16
      %v1403 = vrot.slane %v1401, 4
      %v1404 = vshll.u32 %v1047, 16
      %v1406 = vrot.slane %v1404, 5
      %v1407 = vor.u32 %v1403, %v1406
      %v1408 = vrot.slane %v1407, 4
      %v1410 = vshll.u32 %v1048, 16
      %v1412 = vrot.slane %v1410, 5
      %v1413 = vsel %vm1087, %v1408, %v1412
      %v1414 = vshrl.u32 %v1048, 16
      %v1416 = vrot.slane %v1414, 4
      %v1417 = vor.u32 %v1416, %v1412
      %v1418 = vrot.slane %v1417, 4
      %v1420 = vshll.u32 %v1082, 16
      %v1422 = vrot.slane %v1420, 5
      %v1423 = vsel %vm1087, %v1418, %v1422
      %v1425 = vshrl.u32 %v1049, 16
      %v1427 = vrot.slane %v1425, 4
      %v1428 = vshll.u32 %v1049, 16
      %v1430 = vrot.slane %v1428, 5
      %v1431 = vor.u32 %v1427, %v1430
      %v1432 = vrot.slane %v1431, 4
      %v1434 = vshll.u32 %v1050, 16
      %v1436 = vrot.slane %v1434, 5
      %v1437 = vsel %vm1087, %v1432, %v1436
      %v1438 = vshrl.u32 %v1050, 16
      %v1440 = vrot.slane %v1438, 4
      %v1441 = vor.u32 %v1440, %v1436
      %v1442 = vrot.slane %v1441, 4
      %v1444 = vshll.u32 %v1083, 16
      %v1446 = vrot.slane %v1444, 5
      %v1447 = vsel %vm1087, %v1442, %v1446
      %v1449 = vshrl.u32 %v1051, 16
      %v1451 = vrot.slane %v1449, 4
      %v1452 = vshll.u32 %v1051, 16
      %v1454 = vrot.slane %v1452, 5
      %v1455 = vor.u32 %v1451, %v1454
      %v1456 = vrot.slane %v1455, 4
      %v1458 = vshll.u32 %v1052, 16
      %v1460 = vrot.slane %v1458, 5
      %v1461 = vsel %vm1087, %v1456, %v1460
      %v1462 = vshrl.u32 %v1052, 16
      %v1464 = vrot.slane %v1462, 4
      %v1465 = vor.u32 %v1464, %v1460
      %v1466 = vrot.slane %v1465, 4
      %v1468 = vshll.u32 %v1084, 16
      %v1470 = vrot.slane %v1468, 5
      %v1471 = vsel %vm1087, %v1466, %v1470
      %v1472 = vld [vmem:[%s1 + $0x40] sm:$0xf]
      %v1473 = vld [vmem:[%s1 + $0x44] sm:$0xf]
      %v1474 = vld [vmem:[%s1 + $0x48] sm:$0xf]
      %v1475 = vld [vmem:[%s1 + $0x4c] sm:$0xf]
      %v1476 = vld [vmem:[%s1 + $0x50] sm:$0xf]
      %v1477 = vld [vmem:[%s1 + $0x54] sm:$0xf]
      %v1478 = vld [vmem:[%s1 + $0x58] sm:$0xf]
      %v1479 = vld [vmem:[%s1 + $0x5c] sm:$0xf]
      %v1480 = vld [vmem:[%s1 + $0x60] sm:$0xf]
      %v1481 = vld [vmem:[%s1 + $0x64] sm:$0xf]
      %v1482 = vld [vmem:[%s1 + $0x68] sm:$0xf]
      %v1483 = vld [vmem:[%s1 + $0x6c] sm:$0xf]
      %v1484 = vld [vmem:[%s1 + $0x70] sm:$0xf]
      %v1485 = vld [vmem:[%s1 + $0x74] sm:$0xf]
      %v1486 = vld [vmem:[%s1 + $0x78] sm:$0xf]
      %v1487 = vld [vmem:[%s1 + $0x7c] sm:$0xf]
      %v1488 = vunpack.c.l.b16 %v1101
      %v1489 = vunpack.c.l.b16 %v1111
      %v1490 = vunpack.c.l.b16 %v1125
      %v1491 = vunpack.c.l.b16 %v1135
      %v1492 = vunpack.c.l.b16 %v1149
      %v1493 = vunpack.c.l.b16 %v1159
      %v1494 = vunpack.c.l.b16 %v1173
      %v1495 = vunpack.c.l.b16 %v1183
      %v1496 = vunpack.c.l.b16 %v1197
      %v1497 = vunpack.c.l.b16 %v1207
      %v1498 = vunpack.c.l.b16 %v1221
      %v1499 = vunpack.c.l.b16 %v1231
      %v1500 = vunpack.c.l.b16 %v1245
      %v1501 = vunpack.c.l.b16 %v1255
      %v1502 = vunpack.c.l.b16 %v1269
      %v1503 = vunpack.c.l.b16 %v1279
      %v1504 = vunpack.c.l.b16 %v1293
      %v1505 = vunpack.c.l.b16 %v1303
      %v1506 = vunpack.c.l.b16 %v1317
      %v1507 = vunpack.c.l.b16 %v1327
      %v1508 = vunpack.c.l.b16 %v1341
      %v1509 = vunpack.c.l.b16 %v1351
      %v1510 = vunpack.c.l.b16 %v1365
      %v1511 = vunpack.c.l.b16 %v1375
      %v1512 = vunpack.c.l.b16 %v1389
      %v1513 = vunpack.c.l.b16 %v1399
      %v1514 = vunpack.c.l.b16 %v1413
      %v1515 = vunpack.c.l.b16 %v1423
      %v1516 = vunpack.c.l.b16 %v1437
      %v1517 = vunpack.c.l.b16 %v1447
      %v1518 = vunpack.c.l.b16 %v1461
      %v1519 = vunpack.c.l.b16 %v1471
      %v1520 = vpack.c.b16 %v1489, %v1488
      %v1521 = vpack.c.b16 %v1491, %v1490
      %v1522 = vpack.c.b16 %v1493, %v1492
      %v1523 = vpack.c.b16 %v1495, %v1494
      %v1524 = vpack.c.b16 %v1497, %v1496
      %v1525 = vpack.c.b16 %v1499, %v1498
      %v1526 = vpack.c.b16 %v1501, %v1500
      %v1527 = vpack.c.b16 %v1503, %v1502
      %v1528 = vpack.c.b16 %v1505, %v1504
      %v1529 = vpack.c.b16 %v1507, %v1506
      %v1530 = vpack.c.b16 %v1509, %v1508
      %v1531 = vpack.c.b16 %v1511, %v1510
      %v1532 = vpack.c.b16 %v1513, %v1512
      %v1533 = vpack.c.b16 %v1515, %v1514
      %v1534 = vpack.c.b16 %v1517, %v1516
      %v1535 = vpack.c.b16 %v1519, %v1518
      %v1568 = vunpack.c.l.b16 %v1472
      %v1569 = vunpack.c.l.b16 %v1473
      %v1570 = vunpack.c.l.b16 %v1474
      %v1571 = vunpack.c.l.b16 %v1475
      %v1572 = vunpack.c.l.b16 %v1476
      %v1573 = vunpack.c.l.b16 %v1477
      %v1574 = vunpack.c.l.b16 %v1478
      %v1575 = vunpack.c.l.b16 %v1479
      %v1576 = vunpack.c.l.b16 %v1480
      %v1577 = vunpack.c.l.b16 %v1481
      %v1578 = vunpack.c.l.b16 %v1482
      %v1579 = vunpack.c.l.b16 %v1483
      %v1580 = vunpack.c.l.b16 %v1484
      %v1581 = vunpack.c.l.b16 %v1485
      %v1582 = vunpack.c.l.b16 %v1486
      %v1583 = vunpack.c.l.b16 %v1487
      %v1584 = vpack.c.b16 %v1569, %v1568
      %v1585 = vpack.c.b16 %v1571, %v1570
      %v1586 = vpack.c.b16 %v1573, %v1572
      %v1587 = vpack.c.b16 %v1575, %v1574
      %v1588 = vpack.c.b16 %v1577, %v1576
      %v1589 = vpack.c.b16 %v1579, %v1578
      %v1590 = vpack.c.b16 %v1581, %v1580
      %v1591 = vpack.c.b16 %v1583, %v1582
      %1600 = vmatprep.subr.bf16.mxu0 0
      %1601 = vmatpush1.bf16.msra.mxu0 %v1584
      %1602 = vmatprep.subr.bf16.mxu0 0
      %1603 = vmatpush1.bf16.msra.mxu0 %v1585
      %1604 = vmatprep.subr.bf16.mxu0 0
      %1605 = vmatpush1.bf16.msra.mxu0 %v1586
      %1606 = vmatprep.subr.bf16.mxu0 0
      %1607 = vmatpush1.bf16.msra.mxu0 %v1587
      %1608 = vmatprep.subr.bf16.mxu0 0
      %1609 = vmatpush1.bf16.msra.mxu0 %v1588
      %1610 = vmatprep.subr.bf16.mxu0 0
      %1611 = vmatpush1.bf16.msra.mxu0 %v1589
      %1612 = vmatprep.subr.bf16.mxu0 0
      %1613 = vmatpush1.bf16.msra.mxu0 %v1590
      %1614 = vmatprep.subr.bf16.mxu0 0
      %1615 = vmatpush1.bf16.msra.mxu0 %v1591
      %1616 = vmatprep.subr.bf16.mxu0 0
      %1617 = vmatpush1.bf16.msra.mxu0 0
      %1618 = vmatprep.subr.bf16.mxu0 0
      %1619 = vmatpush1.bf16.msra.mxu0 0
      %1620 = vmatprep.subr.bf16.mxu0 0
      %1621 = vmatpush1.bf16.msra.mxu0 0
      %1622 = vmatprep.subr.bf16.mxu0 0
      %1623 = vmatpush1.bf16.msra.mxu0 0
      %1624 = vmatprep.subr.bf16.mxu0 0
      %1625 = vmatpush1.bf16.msra.mxu0 0
      %1626 = vmatprep.subr.bf16.mxu0 0
      %1627 = vmatpush1.bf16.msra.mxu0 0
      %1628 = vmatprep.subr.bf16.mxu0 0
      %1629 = vmatpush1.bf16.msra.mxu0 0
      %1630 = vmatprep.subr.bf16.mxu0 0
      %1631 = vmatpush1.bf16.msra.mxu0 0
      %1632 = vmatprep.mubr.bf16.mxu0 0
      %1633 = vmatmul.mubr.bf16.gmra.mrb[0].mxu0 %v1520
      %v1634 = vpop.f32.mrb[0].mxu0
      %v1635 = vadd.f32 0.0, %v1634
      %v1636 = vpop.f32.mrb[0].mxu0
      %v1637 = vpop.f32.mrb[0].mxu0
      %v1638 = vadd.f32 0.0, %v1637
      %v1639 = vpop.f32.mrb[0].mxu0
      %1640 = vmatprep.mubr.bf16.mxu0 0
      %1641 = vmatmul.mubr.bf16.gmra.mrb[0].mxu0 %v1521
      %v1642 = vpop.f32.mrb[0].mxu0
      %v1643 = vadd.f32 0.0, %v1642
      %v1644 = vpop.f32.mrb[0].mxu0
      %v1645 = vpop.f32.mrb[0].mxu0
      %v1646 = vadd.f32 0.0, %v1645
      %v1647 = vpop.f32.mrb[0].mxu0
      %1648 = vmatprep.mubr.bf16.mxu0 0
      %1649 = vmatmul.mubr.bf16.gmra.mrb[0].mxu0 %v1522
      %v1650 = vpop.f32.mrb[0].mxu0
      %v1651 = vadd.f32 0.0, %v1650
      %v1652 = vpop.f32.mrb[0].mxu0
      %v1653 = vpop.f32.mrb[0].mxu0
      %v1654 = vadd.f32 0.0, %v1653
      %v1655 = vpop.f32.mrb[0].mxu0
      %1656 = vmatprep.mubr.bf16.mxu0 0
      %1657 = vmatmul.mubr.bf16.gmra.mrb[0].mxu0 %v1523
      %v1658 = vpop.f32.mrb[0].mxu0
      %v1659 = vadd.f32 0.0, %v1658
      %v1660 = vpop.f32.mrb[0].mxu0
      %v1661 = vpop.f32.mrb[0].mxu0
      %v1662 = vadd.f32 0.0, %v1661
      %v1663 = vpop.f32.mrb[0].mxu0
      %1664 = vmatprep.mubr.bf16.mxu0 0
      %1665 = vmatmul.mubr.bf16.gmra.mrb[0].mxu0 %v1524
      %v1666 = vpop.f32.mrb[0].mxu0
      %v1667 = vadd.f32 0.0, %v1666
      %v1668 = vpop.f32.mrb[0].mxu0
      %v1669 = vpop.f32.mrb[0].mxu0
      %v1670 = vadd.f32 0.0, %v1669
      %v1671 = vpop.f32.mrb[0].mxu0
      %1672 = vmatprep.mubr.bf16.mxu0 0
      %1673 = vmatmul.mubr.bf16.gmra.mrb[0].mxu0 %v1525
      %v1674 = vpop.f32.mrb[0].mxu0
      %v1675 = vadd.f32 0.0, %v1674
      %v1676 = vpop.f32.mrb[0].mxu0
      %v1677 = vpop.f32.mrb[0].mxu0
      %v1678 = vadd.f32 0.0, %v1677
      %v1679 = vpop.f32.mrb[0].mxu0
      %1680 = vmatprep.mubr.bf16.mxu0 0
      %1681 = vmatmul.mubr.bf16.gmra.mrb[0].mxu0 %v1526
      %v1682 = vpop.f32.mrb[0].mxu0
      %v1683 = vadd.f32 0.0, %v1682
      %v1684 = vpop.f32.mrb[0].mxu0
      %v1685 = vpop.f32.mrb[0].mxu0
      %v1686 = vadd.f32 0.0, %v1685
      %v1687 = vpop.f32.mrb[0].mxu0
      %1688 = vmatprep.mubr.bf16.mxu0 0
      %1689 = vmatmul.mubr.bf16.gmra.mrb[0].mxu0 %v1527
      %v1690 = vpop.f32.mrb[0].mxu0
      %v1691 = vadd.f32 0.0, %v1690
      %v1692 = vpop.f32.mrb[0].mxu0
      %v1693 = vpop.f32.mrb[0].mxu0
      %v1694 = vadd.f32 0.0, %v1693
      %v1695 = vpop.f32.mrb[0].mxu0
      %1696 = vmatprep.mubr.bf16.mxu0 0
      %1697 = vmatmul.mubr.bf16.gmra.mrb[0].mxu0 %v1528
      %v1698 = vpop.f32.mrb[0].mxu0
      %v1699 = vadd.f32 0.0, %v1698
      %v1700 = vpop.f32.mrb[0].mxu0
      %v1701 = vpop.f32.mrb[0].mxu0
      %v1702 = vadd.f32 0.0, %v1701
      %v1703 = vpop.f32.mrb[0].mxu0
      %1704 = vmatprep.mubr.bf16.mxu0 0
      %1705 = vmatmul.mubr.bf16.gmra.mrb[0].mxu0 %v1529
      %v1706 = vpop.f32.mrb[0].mxu0
      %v1707 = vadd.f32 0.0, %v1706
      %v1708 = vpop.f32.mrb[0].mxu0
      %v1709 = vpop.f32.mrb[0].mxu0
      %v1710 = vadd.f32 0.0, %v1709
      %v1711 = vpop.f32.mrb[0].mxu0
      %1712 = vmatprep.mubr.bf16.mxu0 0
      %1713 = vmatmul.mubr.bf16.gmra.mrb[0].mxu0 %v1530
      %v1714 = vpop.f32.mrb[0].mxu0
      %v1715 = vadd.f32 0.0, %v1714
      %v1716 = vpop.f32.mrb[0].mxu0
      %v1717 = vpop.f32.mrb[0].mxu0
      %v1718 = vadd.f32 0.0, %v1717
      %v1719 = vpop.f32.mrb[0].mxu0
      %1720 = vmatprep.mubr.bf16.mxu0 0
      %1721 = vmatmul.mubr.bf16.gmra.mrb[0].mxu0 %v1531
      %v1722 = vpop.f32.mrb[0].mxu0
      %v1723 = vadd.f32 0.0, %v1722
      %v1724 = vpop.f32.mrb[0].mxu0
      %v1725 = vpop.f32.mrb[0].mxu0
      %v1726 = vadd.f32 0.0, %v1725
      %v1727 = vpop.f32.mrb[0].mxu0
      %1728 = vmatprep.mubr.bf16.mxu0 0
      %1729 = vmatmul.mubr.bf16.gmra.mrb[0].mxu0 %v1532
      %v1730 = vpop.f32.mrb[0].mxu0
      %v1731 = vadd.f32 0.0, %v1730
      %v1732 = vpop.f32.mrb[0].mxu0
      %v1733 = vpop.f32.mrb[0].mxu0
      %v1734 = vadd.f32 0.0, %v1733
      %v1735 = vpop.f32.mrb[0].mxu0
      %1736 = vmatprep.mubr.bf16.mxu0 0
      %1737 = vmatmul.mubr.bf16.gmra.mrb[0].mxu0 %v1533
      %v1738 = vpop.f32.mrb[0].mxu0
      %v1739 = vadd.f32 0.0, %v1738
      %v1740 = vpop.f32.mrb[0].mxu0
      %v1741 = vpop.f32.mrb[0].mxu0
      %v1742 = vadd.f32 0.0, %v1741
      %v1743 = vpop.f32.mrb[0].mxu0
      %1744 = vmatprep.mubr.bf16.mxu0 0
      %1745 = vmatmul.mubr.bf16.gmra.mrb[0].mxu0 %v1534
      %v1746 = vpop.f32.mrb[0].mxu0
      %v1747 = vadd.f32 0.0, %v1746
      %v1748 = vpop.f32.mrb[0].mxu0
      %v1749 = vpop.f32.mrb[0].mxu0
      %v1750 = vadd.f32 0.0, %v1749
      %v1751 = vpop.f32.mrb[0].mxu0
      %1752 = vmatprep.mubr.bf16.mxu0 0
      %1753 = vmatmul.mubr.bf16.gmra.mrb[0].mxu0 %v1535
      %v1754 = vpop.f32.mrb[0].mxu0
      %v1755 = vadd.f32 0.0, %v1754
      %v1756 = vpop.f32.mrb[0].mxu0
      %v1757 = vpop.f32.mrb[0].mxu0
      %v1758 = vadd.f32 0.0, %v1757
      %v1759 = vpop.f32.mrb[0].mxu0
      %1760 = vdwg.mxu0
      %v1793 = vunpack.c.l.b16 %v1021
      %v1794 = vunpack.c.l.b16 %v1022
      %v1795 = vunpack.c.l.b16 %v1023
      %v1796 = vunpack.c.l.b16 %v1024
      %v1797 = vunpack.c.l.b16 %v1025
      %v1798 = vunpack.c.l.b16 %v1026
      %v1799 = vunpack.c.l.b16 %v1027
      %v1800 = vunpack.c.l.b16 %v1028
      %v1801 = vunpack.c.l.b16 %v1029
      %v1802 = vunpack.c.l.b16 %v1030
      %v1803 = vunpack.c.l.b16 %v1031
      %v1804 = vunpack.c.l.b16 %v1032
      %v1805 = vunpack.c.l.b16 %v1033
      %v1806 = vunpack.c.l.b16 %v1034
      %v1807 = vunpack.c.l.b16 %v1035
      %v1808 = vunpack.c.l.b16 %v1036
      %v1809 = vunpack.c.l.b16 %v1037
      %v1810 = vunpack.c.l.b16 %v1038
      %v1811 = vunpack.c.l.b16 %v1039
      %v1812 = vunpack.c.l.b16 %v1040
      %v1813 = vunpack.c.l.b16 %v1041
      %v1814 = vunpack.c.l.b16 %v1042
      %v1815 = vunpack.c.l.b16 %v1043
      %v1816 = vunpack.c.l.b16 %v1044
      %v1817 = vunpack.c.l.b16 %v1045
      %v1818 = vunpack.c.l.b16 %v1046
      %v1819 = vunpack.c.l.b16 %v1047
      %v1820 = vunpack.c.l.b16 %v1048
      %v1821 = vunpack.c.l.b16 %v1049
      %v1822 = vunpack.c.l.b16 %v1050
      %v1823 = vunpack.c.l.b16 %v1051
      %v1824 = vunpack.c.l.b16 %v1052
      %v1825 = vpack.c.b16 %v1794, %v1793
      %v1826 = vpack.c.b16 %v1796, %v1795
      %v1827 = vpack.c.b16 %v1798, %v1797
      %v1828 = vpack.c.b16 %v1800, %v1799
      %v1829 = vpack.c.b16 %v1802, %v1801
      %v1830 = vpack.c.b16 %v1804, %v1803
      %v1831 = vpack.c.b16 %v1806, %v1805
      %v1832 = vpack.c.b16 %v1808, %v1807
      %v1833 = vpack.c.b16 %v1810, %v1809
      %v1834 = vpack.c.b16 %v1812, %v1811
      %v1835 = vpack.c.b16 %v1814, %v1813
      %v1836 = vpack.c.b16 %v1816, %v1815
      %v1837 = vpack.c.b16 %v1818, %v1817
      %v1838 = vpack.c.b16 %v1820, %v1819
      %v1839 = vpack.c.b16 %v1822, %v1821
      %v1840 = vpack.c.b16 %v1824, %v1823
      %v1873 = vunpack.c.l.b16 %v1053
      %v1874 = vunpack.c.l.b16 %v1054
      %v1875 = vunpack.c.l.b16 %v1055
      %v1876 = vunpack.c.l.b16 %v1056
      %v1877 = vunpack.c.l.b16 %v1057
      %v1878 = vunpack.c.l.b16 %v1058
      %v1879 = vunpack.c.l.b16 %v1059
      %v1880 = vunpack.c.l.b16 %v1060
      %v1881 = vunpack.c.l.b16 %v1061
      %v1882 = vunpack.c.l.b16 %v1062
      %v1883 = vunpack.c.l.b16 %v1063
      %v1884 = vunpack.c.l.b16 %v1064
      %v1885 = vunpack.c.l.b16 %v1065
      %v1886 = vunpack.c.l.b16 %v1066
      %v1887 = vunpack.c.l.b16 %v1067
      %v1888 = vunpack.c.l.b16 %v1068
      %v1889 = vpack.c.b16 %v1874, %v1873
      %v1890 = vpack.c.b16 %v1876, %v1875
      %v1891 = vpack.c.b16 %v1878, %v1877
      %v1892 = vpack.c.b16 %v1880, %v1879
      %v1893 = vpack.c.b16 %v1882, %v1881
      %v1894 = vpack.c.b16 %v1884, %v1883
      %v1895 = vpack.c.b16 %v1886, %v1885
      %v1896 = vpack.c.b16 %v1888, %v1887
      %1905 = vmatprep.subr.bf16.mxu0 0
      %1906 = vmatpush1.bf16.msra.mxu0 %v1889
      %1907 = vmatprep.subr.bf16.mxu0 0
      %1908 = vmatpush1.bf16.msra.mxu0 %v1890
      %1909 = vmatprep.subr.bf16.mxu0 0
      %1910 = vmatpush1.bf16.msra.mxu0 %v1891
      %1911 = vmatprep.subr.bf16.mxu0 0
      %1912 = vmatpush1.bf16.msra.mxu0 %v1892
      %1913 = vmatprep.subr.bf16.mxu0 0
      %1914 = vmatpush1.bf16.msra.mxu0 %v1893
      %1915 = vmatprep.subr.bf16.mxu0 0
      %1916 = vmatpush1.bf16.msra.mxu0 %v1894
      %1917 = vmatprep.subr.bf16.mxu0 0
      %1918 = vmatpush1.bf16.msra.mxu0 %v1895
      %1919 = vmatprep.subr.bf16.mxu0 0
      %1920 = vmatpush1.bf16.msra.mxu0 %v1896
      %1921 = vmatprep.subr.bf16.mxu0 0
      %1922 = vmatpush1.bf16.msra.mxu0 0
      %1923 = vmatprep.subr.bf16.mxu0 0
      %1924 = vmatpush1.bf16.msra.mxu0 0
      %1925 = vmatprep.subr.bf16.mxu0 0
      %1926 = vmatpush1.bf16.msra.mxu0 0
      %1927 = vmatprep.subr.bf16.mxu0 0
      %1928 = vmatpush1.bf16.msra.mxu0 0
      %1929 = vmatprep.subr.bf16.mxu0 0
      %1930 = vmatpush1.bf16.msra.mxu0 0
      %1931 = vmatprep.subr.bf16.mxu0 0
      %1932 = vmatpush1.bf16.msra.mxu0 0
      %1933 = vmatprep.subr.bf16.mxu0 0
      %1934 = vmatpush1.bf16.msra.mxu0 0
      %1935 = vmatprep.subr.bf16.mxu0 0
      %1936 = vmatpush1.bf16.msra.mxu0 0
      %1937 = vmatprep.mubr.bf16.mxu0 0
      %1938 = vmatmul.mubr.bf16.gmra.mrb[0].mxu0 %v1825
      %v1939 = vpop.f32.mrb[0].mxu0
      %v1940 = vadd.f32 %v1635, %v1939
      %v1941 = vpop.f32.mrb[0].mxu0
      %v1942 = vpop.f32.mrb[0].mxu0
      %v1943 = vadd.f32 %v1638, %v1942
      %v1944 = vpop.f32.mrb[0].mxu0
      %1945 = vmatprep.mubr.bf16.mxu0 0
      %1946 = vmatmul.mubr.bf16.gmra.mrb[0].mxu0 %v1826
      %v1947 = vpop.f32.mrb[0].mxu0
      %v1948 = vadd.f32 %v1643, %v1947
      %v1949 = vpop.f32.mrb[0].mxu0
      %v1950 = vpop.f32.mrb[0].mxu0
      %v1951 = vadd.f32 %v1646, %v1950
      %v1952 = vpop.f32.mrb[0].mxu0
      %1953 = vmatprep.mubr.bf16.mxu0 0
      %1954 = vmatmul.mubr.bf16.gmra.mrb[0].mxu0 %v1827
      %v1955 = vpop.f32.mrb[0].mxu0
      %v1956 = vadd.f32 %v1651, %v1955
      %v1957 = vpop.f32.mrb[0].mxu0
      %v1958 = vpop.f32.mrb[0].mxu0
      %v1959 = vadd.f32 %v1654, %v1958
      %v1960 = vpop.f32.mrb[0].mxu0
      %1961 = vmatprep.mubr.bf16.mxu0 0
      %1962 = vmatmul.mubr.bf16.gmra.mrb[0].mxu0 %v1828
      %v1963 = vpop.f32.mrb[0].mxu0
      %v1964 = vadd.f32 %v1659, %v1963
      %v1965 = vpop.f32.mrb[0].mxu0
      %v1966 = vpop.f32.mrb[0].mxu0
      %v1967 = vadd.f32 %v1662, %v1966
      %v1968 = vpop.f32.mrb[0].mxu0
      %1969 = vmatprep.mubr.bf16.mxu0 0
      %1970 = vmatmul.mubr.bf16.gmra.mrb[0].mxu0 %v1829
      %v1971 = vpop.f32.mrb[0].mxu0
      %v1972 = vadd.f32 %v1667, %v1971
      %v1973 = vpop.f32.mrb[0].mxu0
      %v1974 = vpop.f32.mrb[0].mxu0
      %v1975 = vadd.f32 %v1670, %v1974
      %v1976 = vpop.f32.mrb[0].mxu0
      %1977 = vmatprep.mubr.bf16.mxu0 0
      %1978 = vmatmul.mubr.bf16.gmra.mrb[0].mxu0 %v1830
      %v1979 = vpop.f32.mrb[0].mxu0
      %v1980 = vadd.f32 %v1675, %v1979
      %v1981 = vpop.f32.mrb[0].mxu0
      %v1982 = vpop.f32.mrb[0].mxu0
      %v1983 = vadd.f32 %v1678, %v1982
      %v1984 = vpop.f32.mrb[0].mxu0
      %1985 = vmatprep.mubr.bf16.mxu0 0
      %1986 = vmatmul.mubr.bf16.gmra.mrb[0].mxu0 %v1831
      %v1987 = vpop.f32.mrb[0].mxu0
      %v1988 = vadd.f32 %v1683, %v1987
      %v1989 = vpop.f32.mrb[0].mxu0
      %v1990 = vpop.f32.mrb[0].mxu0
      %v1991 = vadd.f32 %v1686, %v1990
      %v1992 = vpop.f32.mrb[0].mxu0
      %1993 = vmatprep.mubr.bf16.mxu0 0
      %1994 = vmatmul.mubr.bf16.gmra.mrb[0].mxu0 %v1832
      %v1995 = vpop.f32.mrb[0].mxu0
      %v1996 = vadd.f32 %v1691, %v1995
      %v1997 = vpop.f32.mrb[0].mxu0
      %v1998 = vpop.f32.mrb[0].mxu0
      %v1999 = vadd.f32 %v1694, %v1998
      %v2000 = vpop.f32.mrb[0].mxu0
      %2001 = vmatprep.mubr.bf16.mxu0 0
      %2002 = vmatmul.mubr.bf16.gmra.mrb[0].mxu0 %v1833
      %v2003 = vpop.f32.mrb[0].mxu0
      %v2004 = vadd.f32 %v1699, %v2003
      %v2005 = vpop.f32.mrb[0].mxu0
      %v2006 = vpop.f32.mrb[0].mxu0
      %v2007 = vadd.f32 %v1702, %v2006
      %v2008 = vpop.f32.mrb[0].mxu0
      %2009 = vmatprep.mubr.bf16.mxu0 0
      %2010 = vmatmul.mubr.bf16.gmra.mrb[0].mxu0 %v1834
      %v2011 = vpop.f32.mrb[0].mxu0
      %v2012 = vadd.f32 %v1707, %v2011
      %v2013 = vpop.f32.mrb[0].mxu0
      %v2014 = vpop.f32.mrb[0].mxu0
      %v2015 = vadd.f32 %v1710, %v2014
      %v2016 = vpop.f32.mrb[0].mxu0
      %2017 = vmatprep.mubr.bf16.mxu0 0
      %2018 = vmatmul.mubr.bf16.gmra.mrb[0].mxu0 %v1835
      %v2019 = vpop.f32.mrb[0].mxu0
      %v2020 = vadd.f32 %v1715, %v2019
      %v2021 = vpop.f32.mrb[0].mxu0
      %v2022 = vpop.f32.mrb[0].mxu0
      %v2023 = vadd.f32 %v1718, %v2022
      %v2024 = vpop.f32.mrb[0].mxu0
      %2025 = vmatprep.mubr.bf16.mxu0 0
      %2026 = vmatmul.mubr.bf16.gmra.mrb[0].mxu0 %v1836
      %v2027 = vpop.f32.mrb[0].mxu0
      %v2028 = vadd.f32 %v1723, %v2027
      %v2029 = vpop.f32.mrb[0].mxu0
      %v2030 = vpop.f32.mrb[0].mxu0
      %v2031 = vadd.f32 %v1726, %v2030
      %v2032 = vpop.f32.mrb[0].mxu0
      %2033 = vmatprep.mubr.bf16.mxu0 0
      %2034 = vmatmul.mubr.bf16.gmra.mrb[0].mxu0 %v1837
      %v2035 = vpop.f32.mrb[0].mxu0
      %v2036 = vadd.f32 %v1731, %v2035
      %v2037 = vpop.f32.mrb[0].mxu0
      %v2038 = vpop.f32.mrb[0].mxu0
      %v2039 = vadd.f32 %v1734, %v2038
      %v2040 = vpop.f32.mrb[0].mxu0
      %2041 = vmatprep.mubr.bf16.mxu0 0
      %2042 = vmatmul.mubr.bf16.gmra.mrb[0].mxu0 %v1838
      %v2043 = vpop.f32.mrb[0].mxu0
      %v2044 = vadd.f32 %v1739, %v2043
      %v2045 = vpop.f32.mrb[0].mxu0
      %v2046 = vpop.f32.mrb[0].mxu0
      %v2047 = vadd.f32 %v1742, %v2046
      %v2048 = vpop.f32.mrb[0].mxu0
      %2049 = vmatprep.mubr.bf16.mxu0 0
      %2050 = vmatmul.mubr.bf16.gmra.mrb[0].mxu0 %v1839
      %v2051 = vpop.f32.mrb[0].mxu0
      %v2052 = vadd.f32 %v1747, %v2051
      %v2053 = vpop.f32.mrb[0].mxu0
      %v2054 = vpop.f32.mrb[0].mxu0
      %v2055 = vadd.f32 %v1750, %v2054
      %v2056 = vpop.f32.mrb[0].mxu0
      %2057 = vmatprep.mubr.bf16.mxu0 0
      %2058 = vmatmul.mubr.bf16.gmra.mrb[0].mxu0 %v1840
      %v2059 = vpop.f32.mrb[0].mxu0
      %v2060 = vadd.f32 %v1755, %v2059
      %v2061 = vpop.f32.mrb[0].mxu0
      %v2062 = vpop.f32.mrb[0].mxu0
      %v2063 = vadd.f32 %v1758, %v2062
      %v2064 = vpop.f32.mrb[0].mxu0
      %2065 = vdwg.mxu0
      %v2066 = vld [vmem:[#allocation2] sm:$0xe]
      %v2067 = vld [vmem:[#allocation2 + $0xc] sm:$0xe]
      %v2068 = vld [vmem:[#allocation2 + $0x18] sm:$0xe]
      %v2069 = vld [vmem:[#allocation2 + $0x24] sm:$0xe]
      %v2070 = vld [vmem:[#allocation2 + $0x30] sm:$0xe]
      %v2071 = vld [vmem:[#allocation2 + $0x3c] sm:$0xe]
      %v2072 = vld [vmem:[#allocation2 + $0x48] sm:$0xe]
      %v2073 = vld [vmem:[#allocation2 + $0x54] sm:$0xe]
      %v2074 = vld [vmem:[#allocation2 + $0x60] sm:$0xe]
      %v2075 = vld [vmem:[#allocation2 + $0x6c] sm:$0xe]
      %v2076 = vld [vmem:[#allocation2 + $0x78] sm:$0xe]
      %v2077 = vld [vmem:[#allocation2 + $0x84] sm:$0xe]
      %v2078 = vld [vmem:[#allocation2 + $0x90] sm:$0xe]
      %v2079 = vld [vmem:[#allocation2 + $0x9c] sm:$0xe]
      %v2080 = vld [vmem:[#allocation2 + $0xa8] sm:$0xe]
      %v2081 = vld [vmem:[#allocation2 + $0xb4] sm:$0xe]
      %vm2114 = vcmask 1042432
      %vm2115 = vcmask 1046532
      %vm2116 = vmor %vm2114, %vm2115
      %v2117 = vrot.slane %v2066, 5
      %v2118 = vrot.slane %v2117, 4
      %v2119 = vrot.slane %v1022, 5
      %v2120 = vsel %vm2116, %v2118, %v2119
      %v2121 = vrot.slane %v2119, 4
      %v2122 = vrot.slane %v1069, 5
      %v2123 = vsel %vm2116, %v2121, %v2122
      %v2124 = vrot.slane %v2067, 5
      %v2125 = vrot.slane %v2124, 4
      %v2126 = vrot.slane %v1024, 5
      %v2127 = vsel %vm2116, %v2125, %v2126
      %v2128 = vrot.slane %v2126, 4
      %v2129 = vrot.slane %v1070, 5
      %v2130 = vsel %vm2116, %v2128, %v2129
      %v2131 = vrot.slane %v2068, 5
      %v2132 = vrot.slane %v2131, 4
      %v2133 = vrot.slane %v1026, 5
      %v2134 = vsel %vm2116, %v2132, %v2133
      %v2135 = vrot.slane %v2133, 4
      %v2136 = vrot.slane %v1071, 5
      %v2137 = vsel %vm2116, %v2135, %v2136
      %v2138 = vrot.slane %v2069, 5
      %v2139 = vrot.slane %v2138, 4
      %v2140 = vrot.slane %v1028, 5
      %v2141 = vsel %vm2116, %v2139, %v2140
      %v2142 = vrot.slane %v2140, 4
      %v2143 = vrot.slane %v1072, 5
      %v2144 = vsel %vm2116, %v2142, %v2143
      %v2145 = vrot.slane %v2070, 5
      %v2146 = vrot.slane %v2145, 4
      %v2147 = vrot.slane %v1030, 5
      %v2148 = vsel %vm2116, %v2146, %v2147
      %v2149 = vrot.slane %v2147, 4
      %v2150 = vrot.slane %v1073, 5
      %v2151 = vsel %vm2116, %v2149, %v2150
      %v2152 = vrot.slane %v2071, 5
      %v2153 = vrot.slane %v2152, 4
      %v2154 = vrot.slane %v1032, 5
      %v2155 = vsel %vm2116, %v2153, %v2154
      %v2156 = vrot.slane %v2154, 4
      %v2157 = vrot.slane %v1074, 5
      %v2158 = vsel %vm2116, %v2156, %v2157
      %v2159 = vrot.slane %v2072, 5
      %v2160 = vrot.slane %v2159, 4
      %v2161 = vrot.slane %v1034, 5
      %v2162 = vsel %vm2116, %v2160, %v2161
      %v2163 = vrot.slane %v2161, 4
      %v2164 = vrot.slane %v1075, 5
      %v2165 = vsel %vm2116, %v2163, %v2164
      %v2166 = vrot.slane %v2073, 5
      %v2167 = vrot.slane %v2166, 4
      %v2168 = vrot.slane %v1036, 5
      %v2169 = vsel %vm2116, %v2167, %v2168
      %v2170 = vrot.slane %v2168, 4
      %v2171 = vrot.slane %v1076, 5
      %v2172 = vsel %vm2116, %v2170, %v2171
      %v2173 = vrot.slane %v2074, 5
      %v2174 = vrot.slane %v2173, 4
      %v2175 = vrot.slane %v1038, 5
      %v2176 = vsel %vm2116, %v2174, %v2175
      %v2177 = vrot.slane %v2175, 4
      %v2178 = vrot.slane %v1077, 5
      %v2179 = vsel %vm2116, %v2177, %v2178
      %v2180 = vrot.slane %v2075, 5
      %v2181 = vrot.slane %v2180, 4
      %v2182 = vrot.slane %v1040, 5
      %v2183 = vsel %vm2116, %v2181, %v2182
      %v2184 = vrot.slane %v2182, 4
      %v2185 = vrot.slane %v1078, 5
      %v2186 = vsel %vm2116, %v2184, %v2185
      %v2187 = vrot.slane %v2076, 5
      %v2188 = vrot.slane %v2187, 4
      %v2189 = vrot.slane %v1042, 5
      %v2190 = vsel %vm2116, %v2188, %v2189
      %v2191 = vrot.slane %v2189, 4
      %v2192 = vrot.slane %v1079, 5
      %v2193 = vsel %vm2116, %v2191, %v2192
      %v2194 = vrot.slane %v2077, 5
      %v2195 = vrot.slane %v2194, 4
      %v2196 = vrot.slane %v1044, 5
      %v2197 = vsel %vm2116, %v2195, %v2196
      %v2198 = vrot.slane %v2196, 4
      %v2199 = vrot.slane %v1080, 5
      %v2200 = vsel %vm2116, %v2198, %v2199
      %v2201 = vrot.slane %v2078, 5
      %v2202 = vrot.slane %v2201, 4
      %v2203 = vrot.slane %v1046, 5
      %v2204 = vsel %vm2116, %v2202, %v2203
      %v2205 = vrot.slane %v2203, 4
      %v2206 = vrot.slane %v1081, 5
      %v2207 = vsel %vm2116, %v2205, %v2206
      %v2208 = vrot.slane %v2079, 5
      %v2209 = vrot.slane %v2208, 4
      %v2210 = vrot.slane %v1048, 5
      %v2211 = vsel %vm2116, %v2209, %v2210
      %v2212 = vrot.slane %v2210, 4
      %v2213 = vrot.slane %v1082, 5
      %v2214 = vsel %vm2116, %v2212, %v2213
      %v2215 = vrot.slane %v2080, 5
      %v2216 = vrot.slane %v2215, 4
      %v2217 = vrot.slane %v1050, 5
      %v2218 = vsel %vm2116, %v2216, %v2217
      %v2219 = vrot.slane %v2217, 4
      %v2220 = vrot.slane %v1083, 5
      %v2221 = vsel %vm2116, %v2219, %v2220
      %v2222 = vrot.slane %v2081, 5
      %v2223 = vrot.slane %v2222, 4
      %v2224 = vrot.slane %v1052, 5
      %v2225 = vsel %vm2116, %v2223, %v2224
      %v2226 = vrot.slane %v2224, 4
      %v2227 = vrot.slane %v1084, 5
      %v2228 = vsel %vm2116, %v2226, %v2227
      %v2229 = vld [vmem:[%s1 + $0x80] sm:$0xf]
      %v2230 = vld [vmem:[%s1 + $0x84] sm:$0xf]
      %v2231 = vld [vmem:[%s1 + $0x88] sm:$0xf]
      %v2232 = vld [vmem:[%s1 + $0x8c] sm:$0xf]
      %v2233 = vld [vmem:[%s1 + $0x90] sm:$0xf]
      %v2234 = vld [vmem:[%s1 + $0x94] sm:$0xf]
      %v2235 = vld [vmem:[%s1 + $0x98] sm:$0xf]
      %v2236 = vld [vmem:[%s1 + $0x9c] sm:$0xf]
      %v2237 = vld [vmem:[%s1 + $0xa0] sm:$0xf]
      %v2238 = vld [vmem:[%s1 + $0xa4] sm:$0xf]
      %v2239 = vld [vmem:[%s1 + $0xa8] sm:$0xf]
      %v2240 = vld [vmem:[%s1 + $0xac] sm:$0xf]
      %v2241 = vld [vmem:[%s1 + $0xb0] sm:$0xf]
      %v2242 = vld [vmem:[%s1 + $0xb4] sm:$0xf]
      %v2243 = vld [vmem:[%s1 + $0xb8] sm:$0xf]
      %v2244 = vld [vmem:[%s1 + $0xbc] sm:$0xf]
      %v2245 = vunpack.c.l.b16 %v2120
      %v2246 = vunpack.c.l.b16 %v2123
      %v2247 = vunpack.c.l.b16 %v2127
      %v2248 = vunpack.c.l.b16 %v2130
      %v2249 = vunpack.c.l.b16 %v2134
      %v2250 = vunpack.c.l.b16 %v2137
      %v2251 = vunpack.c.l.b16 %v2141
      %v2252 = vunpack.c.l.b16 %v2144
      %v2253 = vunpack.c.l.b16 %v2148
      %v2254 = vunpack.c.l.b16 %v2151
      %v2255 = vunpack.c.l.b16 %v2155
      %v2256 = vunpack.c.l.b16 %v2158
      %v2257 = vunpack.c.l.b16 %v2162
      %v2258 = vunpack.c.l.b16 %v2165
      %v2259 = vunpack.c.l.b16 %v2169
      %v2260 = vunpack.c.l.b16 %v2172
      %v2261 = vunpack.c.l.b16 %v2176
      %v2262 = vunpack.c.l.b16 %v2179
      %v2263 = vunpack.c.l.b16 %v2183
      %v2264 = vunpack.c.l.b16 %v2186
      %v2265 = vunpack.c.l.b16 %v2190
      %v2266 = vunpack.c.l.b16 %v2193
      %v2267 = vunpack.c.l.b16 %v2197
      %v2268 = vunpack.c.l.b16 %v2200
      %v2269 = vunpack.c.l.b16 %v2204
      %v2270 = vunpack.c.l.b16 %v2207
      %v2271 = vunpack.c.l.b16 %v2211
      %v2272 = vunpack.c.l.b16 %v2214
      %v2273 = vunpack.c.l.b16 %v2218
      %v2274 = vunpack.c.l.b16 %v2221
      %v2275 = vunpack.c.l.b16 %v2225
      %v2276 = vunpack.c.l.b16 %v2228
      %v2277 = vpack.c.b16 %v2246, %v2245
      %v2278 = vpack.c.b16 %v2248, %v2247
      %v2279 = vpack.c.b16 %v2250, %v2249
      %v2280 = vpack.c.b16 %v2252, %v2251
      %v2281 = vpack.c.b16 %v2254, %v2253
      %v2282 = vpack.c.b16 %v2256, %v2255
      %v2283 = vpack.c.b16 %v2258, %v2257
      %v2284 = vpack.c.b16 %v2260, %v2259
      %v2285 = vpack.c.b16 %v2262, %v2261
      %v2286 = vpack.c.b16 %v2264, %v2263
      %v2287 = vpack.c.b16 %v2266, %v2265
      %v2288 = vpack.c.b16 %v2268, %v2267
      %v2289 = vpack.c.b16 %v2270, %v2269
      %v2290 = vpack.c.b16 %v2272, %v2271
      %v2291 = vpack.c.b16 %v2274, %v2273
      %v2292 = vpack.c.b16 %v2276, %v2275
      %v2325 = vunpack.c.l.b16 %v2229
      %v2326 = vunpack.c.l.b16 %v2230
      %v2327 = vunpack.c.l.b16 %v2231
      %v2328 = vunpack.c.l.b16 %v2232
      %v2329 = vunpack.c.l.b16 %v2233
      %v2330 = vunpack.c.l.b16 %v2234
      %v2331 = vunpack.c.l.b16 %v2235
      %v2332 = vunpack.c.l.b16 %v2236
      %v2333 = vunpack.c.l.b16 %v2237
      %v2334 = vunpack.c.l.b16 %v2238
      %v2335 = vunpack.c.l.b16 %v2239
      %v2336 = vunpack.c.l.b16 %v2240
      %v2337 = vunpack.c.l.b16 %v2241
      %v2338 = vunpack.c.l.b16 %v2242
      %v2339 = vunpack.c.l.b16 %v2243
      %v2340 = vunpack.c.l.b16 %v2244
      %v2341 = vpack.c.b16 %v2326, %v2325
      %v2342 = vpack.c.b16 %v2328, %v2327
      %v2343 = vpack.c.b16 %v2330, %v2329
      %v2344 = vpack.c.b16 %v2332, %v2331
      %v2345 = vpack.c.b16 %v2334, %v2333
      %v2346 = vpack.c.b16 %v2336, %v2335
      %v2347 = vpack.c.b16 %v2338, %v2337
      %v2348 = vpack.c.b16 %v2340, %v2339
      %2357 = vmatprep.subr.bf16.mxu0 0
      %2358 = vmatpush1.bf16.msra.mxu0 %v2341
      %2359 = vmatprep.subr.bf16.mxu0 0
      %2360 = vmatpush1.bf16.msra.mxu0 %v2342
      %2361 = vmatprep.subr.bf16.mxu0 0
      %2362 = vmatpush1.bf16.msra.mxu0 %v2343
      %2363 = vmatprep.subr.bf16.mxu0 0
      %2364 = vmatpush1.bf16.msra.mxu0 %v2344
      %2365 = vmatprep.subr.bf16.mxu0 0
      %2366 = vmatpush1.bf16.msra.mxu0 %v2345
      %2367 = vmatprep.subr.bf16.mxu0 0
      %2368 = vmatpush1.bf16.msra.mxu0 %v2346
      %2369 = vmatprep.subr.bf16.mxu0 0
      %2370 = vmatpush1.bf16.msra.mxu0 %v2347
      %2371 = vmatprep.subr.bf16.mxu0 0
      %2372 = vmatpush1.bf16.msra.mxu0 %v2348
      %2373 = vmatprep.subr.bf16.mxu0 0
      %2374 = vmatpush1.bf16.msra.mxu0 0
      %2375 = vmatprep.subr.bf16.mxu0 0
      %2376 = vmatpush1.bf16.msra.mxu0 0
      %2377 = vmatprep.subr.bf16.mxu0 0
      %2378 = vmatpush1.bf16.msra.mxu0 0
      %2379 = vmatprep.subr.bf16.mxu0 0
      %2380 = vmatpush1.bf16.msra.mxu0 0
      %2381 = vmatprep.subr.bf16.mxu0 0
      %2382 = vmatpush1.bf16.msra.mxu0 0
      %2383 = vmatprep.subr.bf16.mxu0 0
      %2384 = vmatpush1.bf16.msra.mxu0 0
      %2385 = vmatprep.subr.bf16.mxu0 0
      %2386 = vmatpush1.bf16.msra.mxu0 0
      %2387 = vmatprep.subr.bf16.mxu0 0
      %2388 = vmatpush1.bf16.msra.mxu0 0
      %2389 = vmatprep.mubr.bf16.mxu0 0
      %2390 = vmatmul.mubr.bf16.gmra.mrb[0].mxu0 %v2277
      %v2391 = vpop.f32.mrb[0].mxu0
      %v2392 = vadd.f32 0.0, %v2391
      %v2393 = vpop.f32.mrb[0].mxu0
      %v2394 = vpop.f32.mrb[0].mxu0
      %v2395 = vadd.f32 0.0, %v2394
      %v2396 = vpop.f32.mrb[0].mxu0
      %2397 = vmatprep.mubr.bf16.mxu0 0
      %2398 = vmatmul.mubr.bf16.gmra.mrb[0].mxu0 %v2278
      %v2399 = vpop.f32.mrb[0].mxu0
      %v2400 = vadd.f32 0.0, %v2399
      %v2401 = vpop.f32.mrb[0].mxu0
      %v2402 = vpop.f32.mrb[0].mxu0
      %v2403 = vadd.f32 0.0, %v2402
      %v2404 = vpop.f32.mrb[0].mxu0
      %2405 = vmatprep.mubr.bf16.mxu0 0
      %2406 = vmatmul.mubr.bf16.gmra.mrb[0].mxu0 %v2279
      %v2407 = vpop.f32.mrb[0].mxu0
      %v2408 = vadd.f32 0.0, %v2407
      %v2409 = vpop.f32.mrb[0].mxu0
      %v2410 = vpop.f32.mrb[0].mxu0
      %v2411 = vadd.f32 0.0, %v2410
      %v2412 = vpop.f32.mrb[0].mxu0
      %2413 = vmatprep.mubr.bf16.mxu0 0
      %2414 = vmatmul.mubr.bf16.gmra.mrb[0].mxu0 %v2280
      %v2415 = vpop.f32.mrb[0].mxu0
      %v2416 = vadd.f32 0.0, %v2415
      %v2417 = vpop.f32.mrb[0].mxu0
      %v2418 = vpop.f32.mrb[0].mxu0
      %v2419 = vadd.f32 0.0, %v2418
      %v2420 = vpop.f32.mrb[0].mxu0
      %2421 = vmatprep.mubr.bf16.mxu0 0
      %2422 = vmatmul.mubr.bf16.gmra.mrb[0].mxu0 %v2281
      %v2423 = vpop.f32.mrb[0].mxu0
      %v2424 = vadd.f32 0.0, %v2423
      %v2425 = vpop.f32.mrb[0].mxu0
      %v2426 = vpop.f32.mrb[0].mxu0
      %v2427 = vadd.f32 0.0, %v2426
      %v2428 = vpop.f32.mrb[0].mxu0
      %2429 = vmatprep.mubr.bf16.mxu0 0
      %2430 = vmatmul.mubr.bf16.gmra.mrb[0].mxu0 %v2282
      %v2431 = vpop.f32.mrb[0].mxu0
      %v2432 = vadd.f32 0.0, %v2431
      %v2433 = vpop.f32.mrb[0].mxu0
      %v2434 = vpop.f32.mrb[0].mxu0
      %v2435 = vadd.f32 0.0, %v2434
      %v2436 = vpop.f32.mrb[0].mxu0
      %2437 = vmatprep.mubr.bf16.mxu0 0
      %2438 = vmatmul.mubr.bf16.gmra.mrb[0].mxu0 %v2283
      %v2439 = vpop.f32.mrb[0].mxu0
      %v2440 = vadd.f32 0.0, %v2439
      %v2441 = vpop.f32.mrb[0].mxu0
      %v2442 = vpop.f32.mrb[0].mxu0
      %v2443 = vadd.f32 0.0, %v2442
      %v2444 = vpop.f32.mrb[0].mxu0
      %2445 = vmatprep.mubr.bf16.mxu0 0
      %2446 = vmatmul.mubr.bf16.gmra.mrb[0].mxu0 %v2284
      %v2447 = vpop.f32.mrb[0].mxu0
      %v2448 = vadd.f32 0.0, %v2447
      %v2449 = vpop.f32.mrb[0].mxu0
      %v2450 = vpop.f32.mrb[0].mxu0
      %v2451 = vadd.f32 0.0, %v2450
      %v2452 = vpop.f32.mrb[0].mxu0
      %2453 = vmatprep.mubr.bf16.mxu0 0
      %2454 = vmatmul.mubr.bf16.gmra.mrb[0].mxu0 %v2285
      %v2455 = vpop.f32.mrb[0].mxu0
      %v2456 = vadd.f32 0.0, %v2455
      %v2457 = vpop.f32.mrb[0].mxu0
      %v2458 = vpop.f32.mrb[0].mxu0
      %v2459 = vadd.f32 0.0, %v2458
      %v2460 = vpop.f32.mrb[0].mxu0
      %2461 = vmatprep.mubr.bf16.mxu0 0
      %2462 = vmatmul.mubr.bf16.gmra.mrb[0].mxu0 %v2286
      %v2463 = vpop.f32.mrb[0].mxu0
      %v2464 = vadd.f32 0.0, %v2463
      %v2465 = vpop.f32.mrb[0].mxu0
      %v2466 = vpop.f32.mrb[0].mxu0
      %v2467 = vadd.f32 0.0, %v2466
      %v2468 = vpop.f32.mrb[0].mxu0
      %2469 = vmatprep.mubr.bf16.mxu0 0
      %2470 = vmatmul.mubr.bf16.gmra.mrb[0].mxu0 %v2287
      %v2471 = vpop.f32.mrb[0].mxu0
      %v2472 = vadd.f32 0.0, %v2471
      %v2473 = vpop.f32.mrb[0].mxu0
      %v2474 = vpop.f32.mrb[0].mxu0
      %v2475 = vadd.f32 0.0, %v2474
      %v2476 = vpop.f32.mrb[0].mxu0
      %2477 = vmatprep.mubr.bf16.mxu0 0
      %2478 = vmatmul.mubr.bf16.gmra.mrb[0].mxu0 %v2288
      %v2479 = vpop.f32.mrb[0].mxu0
      %v2480 = vadd.f32 0.0, %v2479
      %v2481 = vpop.f32.mrb[0].mxu0
      %v2482 = vpop.f32.mrb[0].mxu0
      %v2483 = vadd.f32 0.0, %v2482
      %v2484 = vpop.f32.mrb[0].mxu0
      %2485 = vmatprep.mubr.bf16.mxu0 0
      %2486 = vmatmul.mubr.bf16.gmra.mrb[0].mxu0 %v2289
      %v2487 = vpop.f32.mrb[0].mxu0
      %v2488 = vadd.f32 0.0, %v2487
      %v2489 = vpop.f32.mrb[0].mxu0
      %v2490 = vpop.f32.mrb[0].mxu0
      %v2491 = vadd.f32 0.0, %v2490
      %v2492 = vpop.f32.mrb[0].mxu0
      %2493 = vmatprep.mubr.bf16.mxu0 0
      %2494 = vmatmul.mubr.bf16.gmra.mrb[0].mxu0 %v2290
      %v2495 = vpop.f32.mrb[0].mxu0
      %v2496 = vadd.f32 0.0, %v2495
      %v2497 = vpop.f32.mrb[0].mxu0
      %v2498 = vpop.f32.mrb[0].mxu0
      %v2499 = vadd.f32 0.0, %v2498
      %v2500 = vpop.f32.mrb[0].mxu0
      %2501 = vmatprep.mubr.bf16.mxu0 0
      %2502 = vmatmul.mubr.bf16.gmra.mrb[0].mxu0 %v2291
      %v2503 = vpop.f32.mrb[0].mxu0
      %v2504 = vadd.f32 0.0, %v2503
      %v2505 = vpop.f32.mrb[0].mxu0
      %v2506 = vpop.f32.mrb[0].mxu0
      %v2507 = vadd.f32 0.0, %v2506
      %v2508 = vpop.f32.mrb[0].mxu0
      %2509 = vmatprep.mubr.bf16.mxu0 0
      %2510 = vmatmul.mubr.bf16.gmra.mrb[0].mxu0 %v2292
      %v2511 = vpop.f32.mrb[0].mxu0
      %v2512 = vadd.f32 0.0, %v2511
      %v2513 = vpop.f32.mrb[0].mxu0
      %v2514 = vpop.f32.mrb[0].mxu0
      %v2515 = vadd.f32 0.0, %v2514
      %v2516 = vpop.f32.mrb[0].mxu0
      %2517 = vdwg.mxu0
      %v2518 = vadd.f32 %v1940, %v2392
      %v2519 = vadd.f32 %v1943, %v2395
      %v2520 = vadd.f32 %v1948, %v2400
      %v2521 = vadd.f32 %v1951, %v2403
      %v2522 = vadd.f32 %v1956, %v2408
      %v2523 = vadd.f32 %v1959, %v2411
      %v2524 = vadd.f32 %v1964, %v2416
      %v2525 = vadd.f32 %v1967, %v2419
      %v2526 = vadd.f32 %v1972, %v2424
      %v2527 = vadd.f32 %v1975, %v2427
      %v2528 = vadd.f32 %v1980, %v2432
      %v2529 = vadd.f32 %v1983, %v2435
      %v2530 = vadd.f32 %v1988, %v2440
      %v2531 = vadd.f32 %v1991, %v2443
      %v2532 = vadd.f32 %v1996, %v2448
      %v2533 = vadd.f32 %v1999, %v2451
      %v2534 = vadd.f32 %v2004, %v2456
      %v2535 = vadd.f32 %v2007, %v2459
      %v2536 = vadd.f32 %v2012, %v2464
      %v2537 = vadd.f32 %v2015, %v2467
      %v2538 = vadd.f32 %v2020, %v2472
      %v2539 = vadd.f32 %v2023, %v2475
      %v2540 = vadd.f32 %v2028, %v2480
      %v2541 = vadd.f32 %v2031, %v2483
      %v2542 = vadd.f32 %v2036, %v2488
      %v2543 = vadd.f32 %v2039, %v2491
      %v2544 = vadd.f32 %v2044, %v2496
      %v2545 = vadd.f32 %v2047, %v2499
      %v2546 = vadd.f32 %v2052, %v2504
      %v2547 = vadd.f32 %v2055, %v2507
      %v2548 = vadd.f32 %v2060, %v2512
      %v2549 = vadd.f32 %v2063, %v2515
      %v2550 = vld [vmem:[%s799] sm:$0xf]
      %v2551 = vld [vmem:[%s799 + $0x4] sm:$0xf]
      %v2552 = vld [vmem:[%s799 + $0xc] sm:$0xf]
      %v2553 = vld [vmem:[%s799 + $0x10] sm:$0xf]
      %v2554 = vld [vmem:[%s799 + $0x18] sm:$0xf]
      %v2555 = vld [vmem:[%s799 + $0x1c] sm:$0xf]
      %v2556 = vld [vmem:[%s799 + $0x24] sm:$0xf]
      %v2557 = vld [vmem:[%s799 + $0x28] sm:$0xf]
      %v2558 = vld [vmem:[%s799 + $0x30] sm:$0xf]
      %v2559 = vld [vmem:[%s799 + $0x34] sm:$0xf]
      %v2560 = vld [vmem:[%s799 + $0x3c] sm:$0xf]
      %v2561 = vld [vmem:[%s799 + $0x40] sm:$0xf]
      %v2562 = vld [vmem:[%s799 + $0x48] sm:$0xf]
      %v2563 = vld [vmem:[%s799 + $0x4c] sm:$0xf]
      %v2564 = vld [vmem:[%s799 + $0x54] sm:$0xf]
      %v2565 = vld [vmem:[%s799 + $0x58] sm:$0xf]
      %v2566 = vld [vmem:[%s799 + $0x60] sm:$0xf]
      %v2567 = vld [vmem:[%s799 + $0x64] sm:$0xf]
      %v2568 = vld [vmem:[%s799 + $0x6c] sm:$0xf]
      %v2569 = vld [vmem:[%s799 + $0x70] sm:$0xf]
      %v2570 = vld [vmem:[%s799 + $0x78] sm:$0xf]
      %v2571 = vld [vmem:[%s799 + $0x7c] sm:$0xf]
      %v2572 = vld [vmem:[%s799 + $0x84] sm:$0xf]
      %v2573 = vld [vmem:[%s799 + $0x88] sm:$0xf]
      %v2574 = vld [vmem:[%s799 + $0x90] sm:$0xf]
      %v2575 = vld [vmem:[%s799 + $0x94] sm:$0xf]
      %v2576 = vld [vmem:[%s799 + $0x9c] sm:$0xf]
      %v2577 = vld [vmem:[%s799 + $0xa0] sm:$0xf]
      %v2578 = vld [vmem:[%s799 + $0xa8] sm:$0xf]
      %v2579 = vld [vmem:[%s799 + $0xac] sm:$0xf]
      %v2580 = vld [vmem:[%s799 + $0xb4] sm:$0xf]
      %v2581 = vld [vmem:[%s799 + $0xb8] sm:$0xf]
      %v2582 = vld [vmem:[%s1 + $0xc0] sm:$0xf]
      %v2583 = vld [vmem:[%s1 + $0xc4] sm:$0xf]
      %v2584 = vld [vmem:[%s1 + $0xc8] sm:$0xf]
      %v2585 = vld [vmem:[%s1 + $0xcc] sm:$0xf]
      %v2586 = vld [vmem:[%s1 + $0xd0] sm:$0xf]
      %v2587 = vld [vmem:[%s1 + $0xd4] sm:$0xf]
      %v2588 = vld [vmem:[%s1 + $0xd8] sm:$0xf]
      %v2589 = vld [vmem:[%s1 + $0xdc] sm:$0xf]
      %v2590 = vld [vmem:[%s1 + $0xe0] sm:$0xf]
      %v2591 = vld [vmem:[%s1 + $0xe4] sm:$0xf]
      %v2592 = vld [vmem:[%s1 + $0xe8] sm:$0xf]
      %v2593 = vld [vmem:[%s1 + $0xec] sm:$0xf]
      %v2594 = vld [vmem:[%s1 + $0xf0] sm:$0xf]
      %v2595 = vld [vmem:[%s1 + $0xf4] sm:$0xf]
      %v2596 = vld [vmem:[%s1 + $0xf8] sm:$0xf]
      %v2597 = vld [vmem:[%s1 + $0xfc] sm:$0xf]
      %v2630 = vunpack.c.l.b16 %v2550
      %v2631 = vunpack.c.l.b16 %v2551
      %v2632 = vunpack.c.l.b16 %v2552
      %v2633 = vunpack.c.l.b16 %v2553
      %v2634 = vunpack.c.l.b16 %v2554
      %v2635 = vunpack.c.l.b16 %v2555
      %v2636 = vunpack.c.l.b16 %v2556
      %v2637 = vunpack.c.l.b16 %v2557
      %v2638 = vunpack.c.l.b16 %v2558
      %v2639 = vunpack.c.l.b16 %v2559
      %v2640 = vunpack.c.l.b16 %v2560
      %v2641 = vunpack.c.l.b16 %v2561
      %v2642 = vunpack.c.l.b16 %v2562
      %v2643 = vunpack.c.l.b16 %v2563
      %v2644 = vunpack.c.l.b16 %v2564
      %v2645 = vunpack.c.l.b16 %v2565
      %v2646 = vunpack.c.l.b16 %v2566
      %v2647 = vunpack.c.l.b16 %v2567
      %v2648 = vunpack.c.l.b16 %v2568
      %v2649 = vunpack.c.l.b16 %v2569
      %v2650 = vunpack.c.l.b16 %v2570
      %v2651 = vunpack.c.l.b16 %v2571
      %v2652 = vunpack.c.l.b16 %v2572
      %v2653 = vunpack.c.l.b16 %v2573
      %v2654 = vunpack.c.l.b16 %v2574
      %v2655 = vunpack.c.l.b16 %v2575
      %v2656 = vunpack.c.l.b16 %v2576
      %v2657 = vunpack.c.l.b16 %v2577
      %v2658 = vunpack.c.l.b16 %v2578
      %v2659 = vunpack.c.l.b16 %v2579
      %v2660 = vunpack.c.l.b16 %v2580
      %v2661 = vunpack.c.l.b16 %v2581
      %v2662 = vpack.c.b16 %v2631, %v2630
      %v2663 = vpack.c.b16 %v2633, %v2632
      %v2664 = vpack.c.b16 %v2635, %v2634
      %v2665 = vpack.c.b16 %v2637, %v2636
      %v2666 = vpack.c.b16 %v2639, %v2638
      %v2667 = vpack.c.b16 %v2641, %v2640
      %v2668 = vpack.c.b16 %v2643, %v2642
      %v2669 = vpack.c.b16 %v2645, %v2644
      %v2670 = vpack.c.b16 %v2647, %v2646
      %v2671 = vpack.c.b16 %v2649, %v2648
      %v2672 = vpack.c.b16 %v2651, %v2650
      %v2673 = vpack.c.b16 %v2653, %v2652
      %v2674 = vpack.c.b16 %v2655, %v2654
      %v2675 = vpack.c.b16 %v2657, %v2656
      %v2676 = vpack.c.b16 %v2659, %v2658
      %v2677 = vpack.c.b16 %v2661, %v2660
      %v2710 = vunpack.c.l.b16 %v2582
      %v2711 = vunpack.c.l.b16 %v2583
      %v2712 = vunpack.c.l.b16 %v2584
      %v2713 = vunpack.c.l.b16 %v2585
      %v2714 = vunpack.c.l.b16 %v2586
      %v2715 = vunpack.c.l.b16 %v2587
      %v2716 = vunpack.c.l.b16 %v2588
      %v2717 = vunpack.c.l.b16 %v2589
      %v2718 = vunpack.c.l.b16 %v2590
      %v2719 = vunpack.c.l.b16 %v2591
      %v2720 = vunpack.c.l.b16 %v2592
      %v2721 = vunpack.c.l.b16 %v2593
      %v2722 = vunpack.c.l.b16 %v2594
      %v2723 = vunpack.c.l.b16 %v2595
      %v2724 = vunpack.c.l.b16 %v2596
      %v2725 = vunpack.c.l.b16 %v2597
      %v2726 = vpack.c.b16 %v2711, %v2710
      %v2727 = vpack.c.b16 %v2713, %v2712
      %v2728 = vpack.c.b16 %v2715, %v2714
      %v2729 = vpack.c.b16 %v2717, %v2716
      %v2730 = vpack.c.b16 %v2719, %v2718
      %v2731 = vpack.c.b16 %v2721, %v2720
      %v2732 = vpack.c.b16 %v2723, %v2722
      %v2733 = vpack.c.b16 %v2725, %v2724
      %2742 = vmatprep.subr.bf16.mxu0 0
      %2743 = vmatpush1.bf16.msra.mxu0 %v2726
      %2744 = vmatprep.subr.bf16.mxu0 0
      %2745 = vmatpush1.bf16.msra.mxu0 %v2727
      %2746 = vmatprep.subr.bf16.mxu0 0
      %2747 = vmatpush1.bf16.msra.mxu0 %v2728
      %2748 = vmatprep.subr.bf16.mxu0 0
      %2749 = vmatpush1.bf16.msra.mxu0 %v2729
      %2750 = vmatprep.subr.bf16.mxu0 0
      %2751 = vmatpush1.bf16.msra.mxu0 %v2730
      %2752 = vmatprep.subr.bf16.mxu0 0
      %2753 = vmatpush1.bf16.msra.mxu0 %v2731
      %2754 = vmatprep.subr.bf16.mxu0 0
      %2755 = vmatpush1.bf16.msra.mxu0 %v2732
      %2756 = vmatprep.subr.bf16.mxu0 0
      %2757 = vmatpush1.bf16.msra.mxu0 %v2733
      %2758 = vmatprep.subr.bf16.mxu0 0
      %2759 = vmatpush1.bf16.msra.mxu0 0
      %2760 = vmatprep.subr.bf16.mxu0 0
      %2761 = vmatpush1.bf16.msra.mxu0 0
      %2762 = vmatprep.subr.bf16.mxu0 0
      %2763 = vmatpush1.bf16.msra.mxu0 0
      %2764 = vmatprep.subr.bf16.mxu0 0
      %2765 = vmatpush1.bf16.msra.mxu0 0
      %2766 = vmatprep.subr.bf16.mxu0 0
      %2767 = vmatpush1.bf16.msra.mxu0 0
      %2768 = vmatprep.subr.bf16.mxu0 0
      %2769 = vmatpush1.bf16.msra.mxu0 0
      %2770 = vmatprep.subr.bf16.mxu0 0
      %2771 = vmatpush1.bf16.msra.mxu0 0
      %2772 = vmatprep.subr.bf16.mxu0 0
      %2773 = vmatpush1.bf16.msra.mxu0 0
      %2774 = vmatprep.mubr.bf16.mxu0 0
      %2775 = vmatmul.mubr.bf16.gmra.mrb[0].mxu0 %v2662
      %v2776 = vpop.f32.mrb[0].mxu0
      %v2777 = vadd.f32 0.0, %v2776
      %v2778 = vpop.f32.mrb[0].mxu0
      %v2779 = vpop.f32.mrb[0].mxu0
      %v2780 = vadd.f32 0.0, %v2779
      %v2781 = vpop.f32.mrb[0].mxu0
      %2782 = vmatprep.mubr.bf16.mxu0 0
      %2783 = vmatmul.mubr.bf16.gmra.mrb[0].mxu0 %v2663
      %v2784 = vpop.f32.mrb[0].mxu0
      %v2785 = vadd.f32 0.0, %v2784
      %v2786 = vpop.f32.mrb[0].mxu0
      %v2787 = vpop.f32.mrb[0].mxu0
      %v2788 = vadd.f32 0.0, %v2787
      %v2789 = vpop.f32.mrb[0].mxu0
      %2790 = vmatprep.mubr.bf16.mxu0 0
      %2791 = vmatmul.mubr.bf16.gmra.mrb[0].mxu0 %v2664
      %v2792 = vpop.f32.mrb[0].mxu0
      %v2793 = vadd.f32 0.0, %v2792
      %v2794 = vpop.f32.mrb[0].mxu0
      %v2795 = vpop.f32.mrb[0].mxu0
      %v2796 = vadd.f32 0.0, %v2795
      %v2797 = vpop.f32.mrb[0].mxu0
      %2798 = vmatprep.mubr.bf16.mxu0 0
      %2799 = vmatmul.mubr.bf16.gmra.mrb[0].mxu0 %v2665
      %v2800 = vpop.f32.mrb[0].mxu0
      %v2801 = vadd.f32 0.0, %v2800
      %v2802 = vpop.f32.mrb[0].mxu0
      %v2803 = vpop.f32.mrb[0].mxu0
      %v2804 = vadd.f32 0.0, %v2803
      %v2805 = vpop.f32.mrb[0].mxu0
      %2806 = vmatprep.mubr.bf16.mxu0 0
      %2807 = vmatmul.mubr.bf16.gmra.mrb[0].mxu0 %v2666
      %v2808 = vpop.f32.mrb[0].mxu0
      %v2809 = vadd.f32 0.0, %v2808
      %v2810 = vpop.f32.mrb[0].mxu0
      %v2811 = vpop.f32.mrb[0].mxu0
      %v2812 = vadd.f32 0.0, %v2811
      %v2813 = vpop.f32.mrb[0].mxu0
      %2814 = vmatprep.mubr.bf16.mxu0 0
      %2815 = vmatmul.mubr.bf16.gmra.mrb[0].mxu0 %v2667
      %v2816 = vpop.f32.mrb[0].mxu0
      %v2817 = vadd.f32 0.0, %v2816
      %v2818 = vpop.f32.mrb[0].mxu0
      %v2819 = vpop.f32.mrb[0].mxu0
      %v2820 = vadd.f32 0.0, %v2819
      %v2821 = vpop.f32.mrb[0].mxu0
      %2822 = vmatprep.mubr.bf16.mxu0 0
      %2823 = vmatmul.mubr.bf16.gmra.mrb[0].mxu0 %v2668
      %v2824 = vpop.f32.mrb[0].mxu0
      %v2825 = vadd.f32 0.0, %v2824
      %v2826 = vpop.f32.mrb[0].mxu0
      %v2827 = vpop.f32.mrb[0].mxu0
      %v2828 = vadd.f32 0.0, %v2827
      %v2829 = vpop.f32.mrb[0].mxu0
      %2830 = vmatprep.mubr.bf16.mxu0 0
      %2831 = vmatmul.mubr.bf16.gmra.mrb[0].mxu0 %v2669
      %v2832 = vpop.f32.mrb[0].mxu0
      %v2833 = vadd.f32 0.0, %v2832
      %v2834 = vpop.f32.mrb[0].mxu0
      %v2835 = vpop.f32.mrb[0].mxu0
      %v2836 = vadd.f32 0.0, %v2835
      %v2837 = vpop.f32.mrb[0].mxu0
      %2838 = vmatprep.mubr.bf16.mxu0 0
      %2839 = vmatmul.mubr.bf16.gmra.mrb[0].mxu0 %v2670
      %v2840 = vpop.f32.mrb[0].mxu0
      %v2841 = vadd.f32 0.0, %v2840
      %v2842 = vpop.f32.mrb[0].mxu0
      %v2843 = vpop.f32.mrb[0].mxu0
      %v2844 = vadd.f32 0.0, %v2843
      %v2845 = vpop.f32.mrb[0].mxu0
      %2846 = vmatprep.mubr.bf16.mxu0 0
      %2847 = vmatmul.mubr.bf16.gmra.mrb[0].mxu0 %v2671
      %v2848 = vpop.f32.mrb[0].mxu0
      %v2849 = vadd.f32 0.0, %v2848
      %v2850 = vpop.f32.mrb[0].mxu0
      %v2851 = vpop.f32.mrb[0].mxu0
      %v2852 = vadd.f32 0.0, %v2851
      %v2853 = vpop.f32.mrb[0].mxu0
      %2854 = vmatprep.mubr.bf16.mxu0 0
      %2855 = vmatmul.mubr.bf16.gmra.mrb[0].mxu0 %v2672
      %v2856 = vpop.f32.mrb[0].mxu0
      %v2857 = vadd.f32 0.0, %v2856
      %v2858 = vpop.f32.mrb[0].mxu0
      %v2859 = vpop.f32.mrb[0].mxu0
      %v2860 = vadd.f32 0.0, %v2859
      %v2861 = vpop.f32.mrb[0].mxu0
      %2862 = vmatprep.mubr.bf16.mxu0 0
      %2863 = vmatmul.mubr.bf16.gmra.mrb[0].mxu0 %v2673
      %v2864 = vpop.f32.mrb[0].mxu0
      %v2865 = vadd.f32 0.0, %v2864
      %v2866 = vpop.f32.mrb[0].mxu0
      %v2867 = vpop.f32.mrb[0].mxu0
      %v2868 = vadd.f32 0.0, %v2867
      %v2869 = vpop.f32.mrb[0].mxu0
      %2870 = vmatprep.mubr.bf16.mxu0 0
      %2871 = vmatmul.mubr.bf16.gmra.mrb[0].mxu0 %v2674
      %v2872 = vpop.f32.mrb[0].mxu0
      %v2873 = vadd.f32 0.0, %v2872
      %v2874 = vpop.f32.mrb[0].mxu0
      %v2875 = vpop.f32.mrb[0].mxu0
      %v2876 = vadd.f32 0.0, %v2875
      %v2877 = vpop.f32.mrb[0].mxu0
      %2878 = vmatprep.mubr.bf16.mxu0 0
      %2879 = vmatmul.mubr.bf16.gmra.mrb[0].mxu0 %v2675
      %v2880 = vpop.f32.mrb[0].mxu0
      %v2881 = vadd.f32 0.0, %v2880
      %v2882 = vpop.f32.mrb[0].mxu0
      %v2883 = vpop.f32.mrb[0].mxu0
      %v2884 = vadd.f32 0.0, %v2883
      %v2885 = vpop.f32.mrb[0].mxu0
      %2886 = vmatprep.mubr.bf16.mxu0 0
      %2887 = vmatmul.mubr.bf16.gmra.mrb[0].mxu0 %v2676
      %v2888 = vpop.f32.mrb[0].mxu0
      %v2889 = vadd.f32 0.0, %v2888
      %v2890 = vpop.f32.mrb[0].mxu0
      %v2891 = vpop.f32.mrb[0].mxu0
      %v2892 = vadd.f32 0.0, %v2891
      %v2893 = vpop.f32.mrb[0].mxu0
      %2894 = vmatprep.mubr.bf16.mxu0 0
      %2895 = vmatmul.mubr.bf16.gmra.mrb[0].mxu0 %v2677
      %v2896 = vpop.f32.mrb[0].mxu0
      %v2897 = vadd.f32 0.0, %v2896
      %v2898 = vpop.f32.mrb[0].mxu0
      %v2899 = vpop.f32.mrb[0].mxu0
      %v2900 = vadd.f32 0.0, %v2899
      %v2901 = vpop.f32.mrb[0].mxu0
      %2902 = vdwg.mxu0
      %v2903 = vadd.f32 %v2518, %v2777
      %v2904 = vadd.f32 %v2519, %v2780
      %v2905 = vadd.f32 %v2520, %v2785
      %v2906 = vadd.f32 %v2521, %v2788
      %v2907 = vadd.f32 %v2522, %v2793
      %v2908 = vadd.f32 %v2523, %v2796
      %v2909 = vadd.f32 %v2524, %v2801
      %v2910 = vadd.f32 %v2525, %v2804
      %v2911 = vadd.f32 %v2526, %v2809
      %v2912 = vadd.f32 %v2527, %v2812
      %v2913 = vadd.f32 %v2528, %v2817
      %v2914 = vadd.f32 %v2529, %v2820
      %v2915 = vadd.f32 %v2530, %v2825
      %v2916 = vadd.f32 %v2531, %v2828
      %v2917 = vadd.f32 %v2532, %v2833
      %v2918 = vadd.f32 %v2533, %v2836
      %v2919 = vadd.f32 %v2534, %v2841
      %v2920 = vadd.f32 %v2535, %v2844
      %v2921 = vadd.f32 %v2536, %v2849
      %v2922 = vadd.f32 %v2537, %v2852
      %v2923 = vadd.f32 %v2538, %v2857
      %v2924 = vadd.f32 %v2539, %v2860
      %v2925 = vadd.f32 %v2540, %v2865
      %v2926 = vadd.f32 %v2541, %v2868
      %v2927 = vadd.f32 %v2542, %v2873
      %v2928 = vadd.f32 %v2543, %v2876
      %v2929 = vadd.f32 %v2544, %v2881
      %v2930 = vadd.f32 %v2545, %v2884
      %v2931 = vadd.f32 %v2546, %v2889
      %v2932 = vadd.f32 %v2547, %v2892
      %v2933 = vadd.f32 %v2548, %v2897
      %v2934 = vadd.f32 %v2549, %v2900
      %v2935 = vld [vmem:[%s799] sm:$0xf]
      %v2936 = vld [vmem:[%s799 + $0x4] sm:$0xf]
      %v2937 = vld [vmem:[%s799 + $0x8] sm:$0x1]
      %v2938 = vld [vmem:[%s799 + $0xc] sm:$0xf]
      %v2939 = vld [vmem:[%s799 + $0x10] sm:$0xf]
      %v2940 = vld [vmem:[%s799 + $0x14] sm:$0x1]
      %v2941 = vld [vmem:[%s799 + $0x18] sm:$0xf]
      %v2942 = vld [vmem:[%s799 + $0x1c] sm:$0xf]
      %v2943 = vld [vmem:[%s799 + $0x20] sm:$0x1]
      %v2944 = vld [vmem:[%s799 + $0x24] sm:$0xf]
      %v2945 = vld [vmem:[%s799 + $0x28] sm:$0xf]
      %v2946 = vld [vmem:[%s799 + $0x2c] sm:$0x1]
      %v2947 = vld [vmem:[%s799 + $0x30] sm:$0xf]
      %v2948 = vld [vmem:[%s799 + $0x34] sm:$0xf]
      %v2949 = vld [vmem:[%s799 + $0x38] sm:$0x1]
      %v2950 = vld [vmem:[%s799 + $0x3c] sm:$0xf]
      %v2951 = vld [vmem:[%s799 + $0x40] sm:$0xf]
      %v2952 = vld [vmem:[%s799 + $0x44] sm:$0x1]
      %v2953 = vld [vmem:[%s799 + $0x48] sm:$0xf]
      %v2954 = vld [vmem:[%s799 + $0x4c] sm:$0xf]
      %v2955 = vld [vmem:[%s799 + $0x50] sm:$0x1]
      %v2956 = vld [vmem:[%s799 + $0x54] sm:$0xf]
      %v2957 = vld [vmem:[%s799 + $0x58] sm:$0xf]
      %v2958 = vld [vmem:[%s799 + $0x5c] sm:$0x1]
      %v2959 = vld [vmem:[%s799 + $0x60] sm:$0xf]
      %v2960 = vld [vmem:[%s799 + $0x64] sm:$0xf]
      %v2961 = vld [vmem:[%s799 + $0x68] sm:$0x1]
      %v2962 = vld [vmem:[%s799 + $0x6c] sm:$0xf]
      %v2963 = vld [vmem:[%s799 + $0x70] sm:$0xf]
      %v2964 = vld [vmem:[%s799 + $0x74] sm:$0x1]
      %v2965 = vld [vmem:[%s799 + $0x78] sm:$0xf]
      %v2966 = vld [vmem:[%s799 + $0x7c] sm:$0xf]
      %v2967 = vld [vmem:[%s799 + $0x80] sm:$0x1]
      %v2968 = vld [vmem:[%s799 + $0x84] sm:$0xf]
      %v2969 = vld [vmem:[%s799 + $0x88] sm:$0xf]
      %v2970 = vld [vmem:[%s799 + $0x8c] sm:$0x1]
      %v2971 = vld [vmem:[%s799 + $0x90] sm:$0xf]
      %v2972 = vld [vmem:[%s799 + $0x94] sm:$0xf]
      %v2973 = vld [vmem:[%s799 + $0x98] sm:$0x1]
      %v2974 = vld [vmem:[%s799 + $0x9c] sm:$0xf]
      %v2975 = vld [vmem:[%s799 + $0xa0] sm:$0xf]
      %v2976 = vld [vmem:[%s799 + $0xa4] sm:$0x1]
      %v2977 = vld [vmem:[%s799 + $0xa8] sm:$0xf]
      %v2978 = vld [vmem:[%s799 + $0xac] sm:$0xf]
      %v2979 = vld [vmem:[%s799 + $0xb0] sm:$0x1]
      %v2980 = vld [vmem:[%s799 + $0xb4] sm:$0xf]
      %v2981 = vld [vmem:[%s799 + $0xb8] sm:$0xf]
      %v2982 = vld [vmem:[%s799 + $0xbc] sm:$0x1]
      %v2984 = vshrl.u32 %v2935, 16
      %v2986 = vrot.slane %v2984, 4
      %v2987 = vshll.u32 %v2935, 16
      %v2989 = vrot.slane %v2987, 5
      %v2990 = vor.u32 %v2986, %v2989
      %v2991 = vrot.slane %v2990, 4
      %v2993 = vshll.u32 %v2936, 16
      %v2995 = vrot.slane %v2993, 5
      %v2996 = vsel %vm1087, %v2991, %v2995
      %v2997 = vshrl.u32 %v2936, 16
      %v2999 = vrot.slane %v2997, 4
      %v3000 = vor.u32 %v2999, %v2995
      %v3001 = vrot.slane %v3000, 4
      %v3003 = vshll.u32 %v2937, 16
      %v3005 = vrot.slane %v3003, 5
      %v3006 = vsel %vm1087, %v3001, %v3005
      %v3008 = vshrl.u32 %v2938, 16
      %v3010 = vrot.slane %v3008, 4
      %v3011 = vshll.u32 %v2938, 16
      %v3013 = vrot.slane %v3011, 5
      %v3014 = vor.u32 %v3010, %v3013
      %v3015 = vrot.slane %v3014, 4
      %v3017 = vshll.u32 %v2939, 16
      %v3019 = vrot.slane %v3017, 5
      %v3020 = vsel %vm1087, %v3015, %v3019
      %v3021 = vshrl.u32 %v2939, 16
      %v3023 = vrot.slane %v3021, 4
      %v3024 = vor.u32 %v3023, %v3019
      %v3025 = vrot.slane %v3024, 4
      %v3027 = vshll.u32 %v2940, 16
      %v3029 = vrot.slane %v3027, 5
      %v3030 = vsel %vm1087, %v3025, %v3029
      %v3032 = vshrl.u32 %v2941, 16
      %v3034 = vrot.slane %v3032, 4
      %v3035 = vshll.u32 %v2941, 16
      %v3037 = vrot.slane %v3035, 5
      %v3038 = vor.u32 %v3034, %v3037
      %v3039 = vrot.slane %v3038, 4
      %v3041 = vshll.u32 %v2942, 16
      %v3043 = vrot.slane %v3041, 5
      %v3044 = vsel %vm1087, %v3039, %v3043
      %v3045 = vshrl.u32 %v2942, 16
      %v3047 = vrot.slane %v3045, 4
      %v3048 = vor.u32 %v3047, %v3043
      %v3049 = vrot.slane %v3048, 4
      %v3051 = vshll.u32 %v2943, 16
      %v3053 = vrot.slane %v3051, 5
      %v3054 = vsel %vm1087, %v3049, %v3053
      %v3056 = vshrl.u32 %v2944, 16
      %v3058 = vrot.slane %v3056, 4
      %v3059 = vshll.u32 %v2944, 16
      %v3061 = vrot.slane %v3059, 5
      %v3062 = vor.u32 %v3058, %v3061
      %v3063 = vrot.slane %v3062, 4
      %v3065 = vshll.u32 %v2945, 16
      %v3067 = vrot.slane %v3065, 5
      %v3068 = vsel %vm1087, %v3063, %v3067
      %v3069 = vshrl.u32 %v2945, 16
      %v3071 = vrot.slane %v3069, 4
      %v3072 = vor.u32 %v3071, %v3067
      %v3073 = vrot.slane %v3072, 4
      %v3075 = vshll.u32 %v2946, 16
      %v3077 = vrot.slane %v3075, 5
      %v3078 = vsel %vm1087, %v3073, %v3077
      %v3080 = vshrl.u32 %v2947, 16
      %v3082 = vrot.slane %v3080, 4
      %v3083 = vshll.u32 %v2947, 16
      %v3085 = vrot.slane %v3083, 5
      %v3086 = vor.u32 %v3082, %v3085
      %v3087 = vrot.slane %v3086, 4
      %v3089 = vshll.u32 %v2948, 16
      %v3091 = vrot.slane %v3089, 5
      %v3092 = vsel %vm1087, %v3087, %v3091
      %v3093 = vshrl.u32 %v2948, 16
      %v3095 = vrot.slane %v3093, 4
      %v3096 = vor.u32 %v3095, %v3091
      %v3097 = vrot.slane %v3096, 4
      %v3099 = vshll.u32 %v2949, 16
      %v3101 = vrot.slane %v3099, 5
      %v3102 = vsel %vm1087, %v3097, %v3101
      %v3104 = vshrl.u32 %v2950, 16
      %v3106 = vrot.slane %v3104, 4
      %v3107 = vshll.u32 %v2950, 16
      %v3109 = vrot.slane %v3107, 5
      %v3110 = vor.u32 %v3106, %v3109
      %v3111 = vrot.slane %v3110, 4
      %v3113 = vshll.u32 %v2951, 16
      %v3115 = vrot.slane %v3113, 5
      %v3116 = vsel %vm1087, %v3111, %v3115
      %v3117 = vshrl.u32 %v2951, 16
      %v3119 = vrot.slane %v3117, 4
      %v3120 = vor.u32 %v3119, %v3115
      %v3121 = vrot.slane %v3120, 4
      %v3123 = vshll.u32 %v2952, 16
      %v3125 = vrot.slane %v3123, 5
      %v3126 = vsel %vm1087, %v3121, %v3125
      %v3128 = vshrl.u32 %v2953, 16
      %v3130 = vrot.slane %v3128, 4
      %v3131 = vshll.u32 %v2953, 16
      %v3133 = vrot.slane %v3131, 5
      %v3134 = vor.u32 %v3130, %v3133
      %v3135 = vrot.slane %v3134, 4
      %v3137 = vshll.u32 %v2954, 16
      %v3139 = vrot.slane %v3137, 5
      %v3140 = vsel %vm1087, %v3135, %v3139
      %v3141 = vshrl.u32 %v2954, 16
      %v3143 = vrot.slane %v3141, 4
      %v3144 = vor.u32 %v3143, %v3139
      %v3145 = vrot.slane %v3144, 4
      %v3147 = vshll.u32 %v2955, 16
      %v3149 = vrot.slane %v3147, 5
      %v3150 = vsel %vm1087, %v3145, %v3149
      %v3152 = vshrl.u32 %v2956, 16
      %v3154 = vrot.slane %v3152, 4
      %v3155 = vshll.u32 %v2956, 16
      %v3157 = vrot.slane %v3155, 5
      %v3158 = vor.u32 %v3154, %v3157
      %v3159 = vrot.slane %v3158, 4
      %v3161 = vshll.u32 %v2957, 16
      %v3163 = vrot.slane %v3161, 5
      %v3164 = vsel %vm1087, %v3159, %v3163
      %v3165 = vshrl.u32 %v2957, 16
      %v3167 = vrot.slane %v3165, 4
      %v3168 = vor.u32 %v3167, %v3163
      %v3169 = vrot.slane %v3168, 4
      %v3171 = vshll.u32 %v2958, 16
      %v3173 = vrot.slane %v3171, 5
      %v3174 = vsel %vm1087, %v3169, %v3173
      %v3176 = vshrl.u32 %v2959, 16
      %v3178 = vrot.slane %v3176, 4
      %v3179 = vshll.u32 %v2959, 16
      %v3181 = vrot.slane %v3179, 5
      %v3182 = vor.u32 %v3178, %v3181
      %v3183 = vrot.slane %v3182, 4
      %v3185 = vshll.u32 %v2960, 16
      %v3187 = vrot.slane %v3185, 5
      %v3188 = vsel %vm1087, %v3183, %v3187
      %v3189 = vshrl.u32 %v2960, 16
      %v3191 = vrot.slane %v3189, 4
      %v3192 = vor.u32 %v3191, %v3187
      %v3193 = vrot.slane %v3192, 4
      %v3195 = vshll.u32 %v2961, 16
      %v3197 = vrot.slane %v3195, 5
      %v3198 = vsel %vm1087, %v3193, %v3197
      %v3200 = vshrl.u32 %v2962, 16
      %v3202 = vrot.slane %v3200, 4
      %v3203 = vshll.u32 %v2962, 16
      %v3205 = vrot.slane %v3203, 5
      %v3206 = vor.u32 %v3202, %v3205
      %v3207 = vrot.slane %v3206, 4
      %v3209 = vshll.u32 %v2963, 16
      %v3211 = vrot.slane %v3209, 5
      %v3212 = vsel %vm1087, %v3207, %v3211
      %v3213 = vshrl.u32 %v2963, 16
      %v3215 = vrot.slane %v3213, 4
      %v3216 = vor.u32 %v3215, %v3211
      %v3217 = vrot.slane %v3216, 4
      %v3219 = vshll.u32 %v2964, 16
      %v3221 = vrot.slane %v3219, 5
      %v3222 = vsel %vm1087, %v3217, %v3221
      %v3224 = vshrl.u32 %v2965, 16
      %v3226 = vrot.slane %v3224, 4
      %v3227 = vshll.u32 %v2965, 16
      %v3229 = vrot.slane %v3227, 5
      %v3230 = vor.u32 %v3226, %v3229
      %v3231 = vrot.slane %v3230, 4
      %v3233 = vshll.u32 %v2966, 16
      %v3235 = vrot.slane %v3233, 5
      %v3236 = vsel %vm1087, %v3231, %v3235
      %v3237 = vshrl.u32 %v2966, 16
      %v3239 = vrot.slane %v3237, 4
      %v3240 = vor.u32 %v3239, %v3235
      %v3241 = vrot.slane %v3240, 4
      %v3243 = vshll.u32 %v2967, 16
      %v3245 = vrot.slane %v3243, 5
      %v3246 = vsel %vm1087, %v3241, %v3245
      %v3248 = vshrl.u32 %v2968, 16
      %v3250 = vrot.slane %v3248, 4
      %v3251 = vshll.u32 %v2968, 16
      %v3253 = vrot.slane %v3251, 5
      %v3254 = vor.u32 %v3250, %v3253
      %v3255 = vrot.slane %v3254, 4
      %v3257 = vshll.u32 %v2969, 16
      %v3259 = vrot.slane %v3257, 5
      %v3260 = vsel %vm1087, %v3255, %v3259
      %v3261 = vshrl.u32 %v2969, 16
      %v3263 = vrot.slane %v3261, 4
      %v3264 = vor.u32 %v3263, %v3259
      %v3265 = vrot.slane %v3264, 4
      %v3267 = vshll.u32 %v2970, 16
      %v3269 = vrot.slane %v3267, 5
      %v3270 = vsel %vm1087, %v3265, %v3269
      %v3272 = vshrl.u32 %v2971, 16
      %v3274 = vrot.slane %v3272, 4
      %v3275 = vshll.u32 %v2971, 16
      %v3277 = vrot.slane %v3275, 5
      %v3278 = vor.u32 %v3274, %v3277
      %v3279 = vrot.slane %v3278, 4
      %v3281 = vshll.u32 %v2972, 16
      %v3283 = vrot.slane %v3281, 5
      %v3284 = vsel %vm1087, %v3279, %v3283
      %v3285 = vshrl.u32 %v2972, 16
      %v3287 = vrot.slane %v3285, 4
      %v3288 = vor.u32 %v3287, %v3283
      %v3289 = vrot.slane %v3288, 4
      %v3291 = vshll.u32 %v2973, 16
      %v3293 = vrot.slane %v3291, 5
      %v3294 = vsel %vm1087, %v3289, %v3293
      %v3296 = vshrl.u32 %v2974, 16
      %v3298 = vrot.slane %v3296, 4
      %v3299 = vshll.u32 %v2974, 16
      %v3301 = vrot.slane %v3299, 5
      %v3302 = vor.u32 %v3298, %v3301
      %v3303 = vrot.slane %v3302, 4
      %v3305 = vshll.u32 %v2975, 16
      %v3307 = vrot.slane %v3305, 5
      %v3308 = vsel %vm1087, %v3303, %v3307
      %v3309 = vshrl.u32 %v2975, 16
      %v3311 = vrot.slane %v3309, 4
      %v3312 = vor.u32 %v3311, %v3307
      %v3313 = vrot.slane %v3312, 4
      %v3315 = vshll.u32 %v2976, 16
      %v3317 = vrot.slane %v3315, 5
      %v3318 = vsel %vm1087, %v3313, %v3317
      %v3320 = vshrl.u32 %v2977, 16
      %v3322 = vrot.slane %v3320, 4
      %v3323 = vshll.u32 %v2977, 16
      %v3325 = vrot.slane %v3323, 5
      %v3326 = vor.u32 %v3322, %v3325
      %v3327 = vrot.slane %v3326, 4
      %v3329 = vshll.u32 %v2978, 16
      %v3331 = vrot.slane %v3329, 5
      %v3332 = vsel %vm1087, %v3327, %v3331
      %v3333 = vshrl.u32 %v2978, 16
      %v3335 = vrot.slane %v3333, 4
      %v3336 = vor.u32 %v3335, %v3331
      %v3337 = vrot.slane %v3336, 4
      %v3339 = vshll.u32 %v2979, 16
      %v3341 = vrot.slane %v3339, 5
      %v3342 = vsel %vm1087, %v3337, %v3341
      %v3344 = vshrl.u32 %v2980, 16
      %v3346 = vrot.slane %v3344, 4
      %v3347 = vshll.u32 %v2980, 16
      %v3349 = vrot.slane %v3347, 5
      %v3350 = vor.u32 %v3346, %v3349
      %v3351 = vrot.slane %v3350, 4
      %v3353 = vshll.u32 %v2981, 16
      %v3355 = vrot.slane %v3353, 5
      %v3356 = vsel %vm1087, %v3351, %v3355
      %v3357 = vshrl.u32 %v2981, 16
      %v3359 = vrot.slane %v3357, 4
      %v3360 = vor.u32 %v3359, %v3355
      %v3361 = vrot.slane %v3360, 4
      %v3363 = vshll.u32 %v2982, 16
      %v3365 = vrot.slane %v3363, 5
      %v3366 = vsel %vm1087, %v3361, %v3365
      %v3367 = vld [vmem:[%s1 + $0x100] sm:$0xf]
      %v3368 = vld [vmem:[%s1 + $0x104] sm:$0xf]
      %v3369 = vld [vmem:[%s1 + $0x108] sm:$0xf]
      %v3370 = vld [vmem:[%s1 + $0x10c] sm:$0xf]
      %v3371 = vld [vmem:[%s1 + $0x110] sm:$0xf]
      %v3372 = vld [vmem:[%s1 + $0x114] sm:$0xf]
      %v3373 = vld [vmem:[%s1 + $0x118] sm:$0xf]
      %v3374 = vld [vmem:[%s1 + $0x11c] sm:$0xf]
      %v3375 = vld [vmem:[%s1 + $0x120] sm:$0xf]
      %v3376 = vld [vmem:[%s1 + $0x124] sm:$0xf]
      %v3377 = vld [vmem:[%s1 + $0x128] sm:$0xf]
      %v3378 = vld [vmem:[%s1 + $0x12c] sm:$0xf]
      %v3379 = vld [vmem:[%s1 + $0x130] sm:$0xf]
      %v3380 = vld [vmem:[%s1 + $0x134] sm:$0xf]
      %v3381 = vld [vmem:[%s1 + $0x138] sm:$0xf]
      %v3382 = vld [vmem:[%s1 + $0x13c] sm:$0xf]
      %v3383 = vunpack.c.l.b16 %v2996
      %v3384 = vunpack.c.l.b16 %v3006
      %v3385 = vunpack.c.l.b16 %v3020
      %v3386 = vunpack.c.l.b16 %v3030
      %v3387 = vunpack.c.l.b16 %v3044
      %v3388 = vunpack.c.l.b16 %v3054
      %v3389 = vunpack.c.l.b16 %v3068
      %v3390 = vunpack.c.l.b16 %v3078
      %v3391 = vunpack.c.l.b16 %v3092
      %v3392 = vunpack.c.l.b16 %v3102
      %v3393 = vunpack.c.l.b16 %v3116
      %v3394 = vunpack.c.l.b16 %v3126
      %v3395 = vunpack.c.l.b16 %v3140
      %v3396 = vunpack.c.l.b16 %v3150
      %v3397 = vunpack.c.l.b16 %v3164
      %v3398 = vunpack.c.l.b16 %v3174
      %v3399 = vunpack.c.l.b16 %v3188
      %v3400 = vunpack.c.l.b16 %v3198
      %v3401 = vunpack.c.l.b16 %v3212
      %v3402 = vunpack.c.l.b16 %v3222
      %v3403 = vunpack.c.l.b16 %v3236
      %v3404 = vunpack.c.l.b16 %v3246
      %v3405 = vunpack.c.l.b16 %v3260
      %v3406 = vunpack.c.l.b16 %v3270
      %v3407 = vunpack.c.l.b16 %v3284
      %v3408 = vunpack.c.l.b16 %v3294
      %v3409 = vunpack.c.l.b16 %v3308
      %v3410 = vunpack.c.l.b16 %v3318
      %v3411 = vunpack.c.l.b16 %v3332
      %v3412 = vunpack.c.l.b16 %v3342
      %v3413 = vunpack.c.l.b16 %v3356
      %v3414 = vunpack.c.l.b16 %v3366
      %v3415 = vpack.c.b16 %v3384, %v3383
      %v3416 = vpack.c.b16 %v3386, %v3385
      %v3417 = vpack.c.b16 %v3388, %v3387
      %v3418 = vpack.c.b16 %v3390, %v3389
      %v3419 = vpack.c.b16 %v3392, %v3391
      %v3420 = vpack.c.b16 %v3394, %v3393
      %v3421 = vpack.c.b16 %v3396, %v3395
      %v3422 = vpack.c.b16 %v3398, %v3397
      %v3423 = vpack.c.b16 %v3400, %v3399
      %v3424 = vpack.c.b16 %v3402, %v3401
      %v3425 = vpack.c.b16 %v3404, %v3403
      %v3426 = vpack.c.b16 %v3406, %v3405
      %v3427 = vpack.c.b16 %v3408, %v3407
      %v3428 = vpack.c.b16 %v3410, %v3409
      %v3429 = vpack.c.b16 %v3412, %v3411
      %v3430 = vpack.c.b16 %v3414, %v3413
      %v3463 = vunpack.c.l.b16 %v3367
      %v3464 = vunpack.c.l.b16 %v3368
      %v3465 = vunpack.c.l.b16 %v3369
      %v3466 = vunpack.c.l.b16 %v3370
      %v3467 = vunpack.c.l.b16 %v3371
      %v3468 = vunpack.c.l.b16 %v3372
      %v3469 = vunpack.c.l.b16 %v3373
      %v3470 = vunpack.c.l.b16 %v3374
      %v3471 = vunpack.c.l.b16 %v3375
      %v3472 = vunpack.c.l.b16 %v3376
      %v3473 = vunpack.c.l.b16 %v3377
      %v3474 = vunpack.c.l.b16 %v3378
      %v3475 = vunpack.c.l.b16 %v3379
      %v3476 = vunpack.c.l.b16 %v3380
      %v3477 = vunpack.c.l.b16 %v3381
      %v3478 = vunpack.c.l.b16 %v3382
      %v3479 = vpack.c.b16 %v3464, %v3463
      %v3480 = vpack.c.b16 %v3466, %v3465
      %v3481 = vpack.c.b16 %v3468, %v3467
      %v3482 = vpack.c.b16 %v3470, %v3469
      %v3483 = vpack.c.b16 %v3472, %v3471
      %v3484 = vpack.c.b16 %v3474, %v3473
      %v3485 = vpack.c.b16 %v3476, %v3475
      %v3486 = vpack.c.b16 %v3478, %v3477
      %3495 = vmatprep.subr.bf16.mxu0 0
      %3496 = vmatpush1.bf16.msra.mxu0 %v3479
      %3497 = vmatprep.subr.bf16.mxu0 0
      %3498 = vmatpush1.bf16.msra.mxu0 %v3480
      %3499 = vmatprep.subr.bf16.mxu0 0
      %3500 = vmatpush1.bf16.msra.mxu0 %v3481
      %3501 = vmatprep.subr.bf16.mxu0 0
      %3502 = vmatpush1.bf16.msra.mxu0 %v3482
      %3503 = vmatprep.subr.bf16.mxu0 0
      %3504 = vmatpush1.bf16.msra.mxu0 %v3483
      %3505 = vmatprep.subr.bf16.mxu0 0
      %3506 = vmatpush1.bf16.msra.mxu0 %v3484
      %3507 = vmatprep.subr.bf16.mxu0 0
      %3508 = vmatpush1.bf16.msra.mxu0 %v3485
      %3509 = vmatprep.subr.bf16.mxu0 0
      %3510 = vmatpush1.bf16.msra.mxu0 %v3486
      %3511 = vmatprep.subr.bf16.mxu0 0
      %3512 = vmatpush1.bf16.msra.mxu0 0
      %3513 = vmatprep.subr.bf16.mxu0 0
      %3514 = vmatpush1.bf16.msra.mxu0 0
      %3515 = vmatprep.subr.bf16.mxu0 0
      %3516 = vmatpush1.bf16.msra.mxu0 0
      %3517 = vmatprep.subr.bf16.mxu0 0
      %3518 = vmatpush1.bf16.msra.mxu0 0
      %3519 = vmatprep.subr.bf16.mxu0 0
      %3520 = vmatpush1.bf16.msra.mxu0 0
      %3521 = vmatprep.subr.bf16.mxu0 0
      %3522 = vmatpush1.bf16.msra.mxu0 0
      %3523 = vmatprep.subr.bf16.mxu0 0
      %3524 = vmatpush1.bf16.msra.mxu0 0
      %3525 = vmatprep.subr.bf16.mxu0 0
      %3526 = vmatpush1.bf16.msra.mxu0 0
      %3527 = vmatprep.mubr.bf16.mxu0 0
      %3528 = vmatmul.mubr.bf16.gmra.mrb[0].mxu0 %v3415
      %v3529 = vpop.f32.mrb[0].mxu0
      %v3530 = vadd.f32 0.0, %v3529
      %v3531 = vpop.f32.mrb[0].mxu0
      %v3532 = vpop.f32.mrb[0].mxu0
      %v3533 = vadd.f32 0.0, %v3532
      %v3534 = vpop.f32.mrb[0].mxu0
      %3535 = vmatprep.mubr.bf16.mxu0 0
      %3536 = vmatmul.mubr.bf16.gmra.mrb[0].mxu0 %v3416
      %v3537 = vpop.f32.mrb[0].mxu0
      %v3538 = vadd.f32 0.0, %v3537
      %v3539 = vpop.f32.mrb[0].mxu0
      %v3540 = vpop.f32.mrb[0].mxu0
      %v3541 = vadd.f32 0.0, %v3540
      %v3542 = vpop.f32.mrb[0].mxu0
      %3543 = vmatprep.mubr.bf16.mxu0 0
      %3544 = vmatmul.mubr.bf16.gmra.mrb[0].mxu0 %v3417
      %v3545 = vpop.f32.mrb[0].mxu0
      %v3546 = vadd.f32 0.0, %v3545
      %v3547 = vpop.f32.mrb[0].mxu0
      %v3548 = vpop.f32.mrb[0].mxu0
      %v3549 = vadd.f32 0.0, %v3548
      %v3550 = vpop.f32.mrb[0].mxu0
      %3551 = vmatprep.mubr.bf16.mxu0 0
      %3552 = vmatmul.mubr.bf16.gmra.mrb[0].mxu0 %v3418
      %v3553 = vpop.f32.mrb[0].mxu0
      %v3554 = vadd.f32 0.0, %v3553
      %v3555 = vpop.f32.mrb[0].mxu0
      %v3556 = vpop.f32.mrb[0].mxu0
      %v3557 = vadd.f32 0.0, %v3556
      %v3558 = vpop.f32.mrb[0].mxu0
      %3559 = vmatprep.mubr.bf16.mxu0 0
      %3560 = vmatmul.mubr.bf16.gmra.mrb[0].mxu0 %v3419
      %v3561 = vpop.f32.mrb[0].mxu0
      %v3562 = vadd.f32 0.0, %v3561
      %v3563 = vpop.f32.mrb[0].mxu0
      %v3564 = vpop.f32.mrb[0].mxu0
      %v3565 = vadd.f32 0.0, %v3564
      %v3566 = vpop.f32.mrb[0].mxu0
      %3567 = vmatprep.mubr.bf16.mxu0 0
      %3568 = vmatmul.mubr.bf16.gmra.mrb[0].mxu0 %v3420
      %v3569 = vpop.f32.mrb[0].mxu0
      %v3570 = vadd.f32 0.0, %v3569
      %v3571 = vpop.f32.mrb[0].mxu0
      %v3572 = vpop.f32.mrb[0].mxu0
      %v3573 = vadd.f32 0.0, %v3572
      %v3574 = vpop.f32.mrb[0].mxu0
      %3575 = vmatprep.mubr.bf16.mxu0 0
      %3576 = vmatmul.mubr.bf16.gmra.mrb[0].mxu0 %v3421
      %v3577 = vpop.f32.mrb[0].mxu0
      %v3578 = vadd.f32 0.0, %v3577
      %v3579 = vpop.f32.mrb[0].mxu0
      %v3580 = vpop.f32.mrb[0].mxu0
      %v3581 = vadd.f32 0.0, %v3580
      %v3582 = vpop.f32.mrb[0].mxu0
      %3583 = vmatprep.mubr.bf16.mxu0 0
      %3584 = vmatmul.mubr.bf16.gmra.mrb[0].mxu0 %v3422
      %v3585 = vpop.f32.mrb[0].mxu0
      %v3586 = vadd.f32 0.0, %v3585
      %v3587 = vpop.f32.mrb[0].mxu0
      %v3588 = vpop.f32.mrb[0].mxu0
      %v3589 = vadd.f32 0.0, %v3588
      %v3590 = vpop.f32.mrb[0].mxu0
      %3591 = vmatprep.mubr.bf16.mxu0 0
      %3592 = vmatmul.mubr.bf16.gmra.mrb[0].mxu0 %v3423
      %v3593 = vpop.f32.mrb[0].mxu0
      %v3594 = vadd.f32 0.0, %v3593
      %v3595 = vpop.f32.mrb[0].mxu0
      %v3596 = vpop.f32.mrb[0].mxu0
      %v3597 = vadd.f32 0.0, %v3596
      %v3598 = vpop.f32.mrb[0].mxu0
      %3599 = vmatprep.mubr.bf16.mxu0 0
      %3600 = vmatmul.mubr.bf16.gmra.mrb[0].mxu0 %v3424
      %v3601 = vpop.f32.mrb[0].mxu0
      %v3602 = vadd.f32 0.0, %v3601
      %v3603 = vpop.f32.mrb[0].mxu0
      %v3604 = vpop.f32.mrb[0].mxu0
      %v3605 = vadd.f32 0.0, %v3604
      %v3606 = vpop.f32.mrb[0].mxu0
      %3607 = vmatprep.mubr.bf16.mxu0 0
      %3608 = vmatmul.mubr.bf16.gmra.mrb[0].mxu0 %v3425
      %v3609 = vpop.f32.mrb[0].mxu0
      %v3610 = vadd.f32 0.0, %v3609
      %v3611 = vpop.f32.mrb[0].mxu0
      %v3612 = vpop.f32.mrb[0].mxu0
      %v3613 = vadd.f32 0.0, %v3612
      %v3614 = vpop.f32.mrb[0].mxu0
      %3615 = vmatprep.mubr.bf16.mxu0 0
      %3616 = vmatmul.mubr.bf16.gmra.mrb[0].mxu0 %v3426
      %v3617 = vpop.f32.mrb[0].mxu0
      %v3618 = vadd.f32 0.0, %v3617
      %v3619 = vpop.f32.mrb[0].mxu0
      %v3620 = vpop.f32.mrb[0].mxu0
      %v3621 = vadd.f32 0.0, %v3620
      %v3622 = vpop.f32.mrb[0].mxu0
      %3623 = vmatprep.mubr.bf16.mxu0 0
      %3624 = vmatmul.mubr.bf16.gmra.mrb[0].mxu0 %v3427
      %v3625 = vpop.f32.mrb[0].mxu0
      %v3626 = vadd.f32 0.0, %v3625
      %v3627 = vpop.f32.mrb[0].mxu0
      %v3628 = vpop.f32.mrb[0].mxu0
      %v3629 = vadd.f32 0.0, %v3628
      %v3630 = vpop.f32.mrb[0].mxu0
      %3631 = vmatprep.mubr.bf16.mxu0 0
      %3632 = vmatmul.mubr.bf16.gmra.mrb[0].mxu0 %v3428
      %v3633 = vpop.f32.mrb[0].mxu0
      %v3634 = vadd.f32 0.0, %v3633
      %v3635 = vpop.f32.mrb[0].mxu0
      %v3636 = vpop.f32.mrb[0].mxu0
      %v3637 = vadd.f32 0.0, %v3636
      %v3638 = vpop.f32.mrb[0].mxu0
      %3639 = vmatprep.mubr.bf16.mxu0 0
      %3640 = vmatmul.mubr.bf16.gmra.mrb[0].mxu0 %v3429
      %v3641 = vpop.f32.mrb[0].mxu0
      %v3642 = vadd.f32 0.0, %v3641
      %v3643 = vpop.f32.mrb[0].mxu0
      %v3644 = vpop.f32.mrb[0].mxu0
      %v3645 = vadd.f32 0.0, %v3644
      %v3646 = vpop.f32.mrb[0].mxu0
      %3647 = vmatprep.mubr.bf16.mxu0 0
      %3648 = vmatmul.mubr.bf16.gmra.mrb[0].mxu0 %v3430
      %v3649 = vpop.f32.mrb[0].mxu0
      %v3650 = vadd.f32 0.0, %v3649
      %v3651 = vpop.f32.mrb[0].mxu0
      %v3652 = vpop.f32.mrb[0].mxu0
      %v3653 = vadd.f32 0.0, %v3652
      %v3654 = vpop.f32.mrb[0].mxu0
      %3655 = vdwg.mxu0
      %v3656 = vadd.f32 %v2903, %v3530
      %v3657 = vadd.f32 %v2904, %v3533
      %v3658 = vadd.f32 %v2905, %v3538
      %v3659 = vadd.f32 %v2906, %v3541
      %v3660 = vadd.f32 %v2907, %v3546
      %v3661 = vadd.f32 %v2908, %v3549
      %v3662 = vadd.f32 %v2909, %v3554
      %v3663 = vadd.f32 %v2910, %v3557
      %v3664 = vadd.f32 %v2911, %v3562
      %v3665 = vadd.f32 %v2912, %v3565
      %v3666 = vadd.f32 %v2913, %v3570
      %v3667 = vadd.f32 %v2914, %v3573
      %v3668 = vadd.f32 %v2915, %v3578
      %v3669 = vadd.f32 %v2916, %v3581
      %v3670 = vadd.f32 %v2917, %v3586
      %v3671 = vadd.f32 %v2918, %v3589
      %v3672 = vadd.f32 %v2919, %v3594
      %v3673 = vadd.f32 %v2920, %v3597
      %v3674 = vadd.f32 %v2921, %v3602
      %v3675 = vadd.f32 %v2922, %v3605
      %v3676 = vadd.f32 %v2923, %v3610
      %v3677 = vadd.f32 %v2924, %v3613
      %v3678 = vadd.f32 %v2925, %v3618
      %v3679 = vadd.f32 %v2926, %v3621
      %v3680 = vadd.f32 %v2927, %v3626
      %v3681 = vadd.f32 %v2928, %v3629
      %v3682 = vadd.f32 %v2929, %v3634
      %v3683 = vadd.f32 %v2930, %v3637
      %v3684 = vadd.f32 %v2931, %v3642
      %v3685 = vadd.f32 %v2932, %v3645
      %v3686 = vadd.f32 %v2933, %v3650
      %v3687 = vadd.f32 %v2934, %v3653
      %v3688 = vld [vmem:[%s799] sm:$0xe]
      %v3689 = vld [vmem:[%s799 + $0xc] sm:$0xe]
      %v3690 = vld [vmem:[%s799 + $0x18] sm:$0xe]
      %v3691 = vld [vmem:[%s799 + $0x24] sm:$0xe]
      %v3692 = vld [vmem:[%s799 + $0x30] sm:$0xe]
      %v3693 = vld [vmem:[%s799 + $0x3c] sm:$0xe]
      %v3694 = vld [vmem:[%s799 + $0x48] sm:$0xe]
      %v3695 = vld [vmem:[%s799 + $0x54] sm:$0xe]
      %v3696 = vld [vmem:[%s799 + $0x60] sm:$0xe]
      %v3697 = vld [vmem:[%s799 + $0x6c] sm:$0xe]
      %v3698 = vld [vmem:[%s799 + $0x78] sm:$0xe]
      %v3699 = vld [vmem:[%s799 + $0x84] sm:$0xe]
      %v3700 = vld [vmem:[%s799 + $0x90] sm:$0xe]
      %v3701 = vld [vmem:[%s799 + $0x9c] sm:$0xe]
      %v3702 = vld [vmem:[%s799 + $0xa8] sm:$0xe]
      %v3703 = vld [vmem:[%s799 + $0xb4] sm:$0xe]
      %v3752 = vrot.slane %v3688, 5
      %v3753 = vrot.slane %v3752, 4
      %v3754 = vrot.slane %v2936, 5
      %v3755 = vsel %vm2116, %v3753, %v3754
      %v3756 = vrot.slane %v3754, 4
      %v3757 = vrot.slane %v2937, 5
      %v3758 = vsel %vm2116, %v3756, %v3757
      %v3759 = vrot.slane %v3689, 5
      %v3760 = vrot.slane %v3759, 4
      %v3761 = vrot.slane %v2939, 5
      %v3762 = vsel %vm2116, %v3760, %v3761
      %v3763 = vrot.slane %v3761, 4
      %v3764 = vrot.slane %v2940, 5
      %v3765 = vsel %vm2116, %v3763, %v3764
      %v3766 = vrot.slane %v3690, 5
      %v3767 = vrot.slane %v3766, 4
      %v3768 = vrot.slane %v2942, 5
      %v3769 = vsel %vm2116, %v3767, %v3768
      %v3770 = vrot.slane %v3768, 4
      %v3771 = vrot.slane %v2943, 5
      %v3772 = vsel %vm2116, %v3770, %v3771
      %v3773 = vrot.slane %v3691, 5
      %v3774 = vrot.slane %v3773, 4
      %v3775 = vrot.slane %v2945, 5
      %v3776 = vsel %vm2116, %v3774, %v3775
      %v3777 = vrot.slane %v3775, 4
      %v3778 = vrot.slane %v2946, 5
      %v3779 = vsel %vm2116, %v3777, %v3778
      %v3780 = vrot.slane %v3692, 5
      %v3781 = vrot.slane %v3780, 4
      %v3782 = vrot.slane %v2948, 5
      %v3783 = vsel %vm2116, %v3781, %v3782
      %v3784 = vrot.slane %v3782, 4
      %v3785 = vrot.slane %v2949, 5
      %v3786 = vsel %vm2116, %v3784, %v3785
      %v3787 = vrot.slane %v3693, 5
      %v3788 = vrot.slane %v3787, 4
      %v3789 = vrot.slane %v2951, 5
      %v3790 = vsel %vm2116, %v3788, %v3789
      %v3791 = vrot.slane %v3789, 4
      %v3792 = vrot.slane %v2952, 5
      %v3793 = vsel %vm2116, %v3791, %v3792
      %v3794 = vrot.slane %v3694, 5
      %v3795 = vrot.slane %v3794, 4
      %v3796 = vrot.slane %v2954, 5
      %v3797 = vsel %vm2116, %v3795, %v3796
      %v3798 = vrot.slane %v3796, 4
      %v3799 = vrot.slane %v2955, 5
      %v3800 = vsel %vm2116, %v3798, %v3799
      %v3801 = vrot.slane %v3695, 5
      %v3802 = vrot.slane %v3801, 4
      %v3803 = vrot.slane %v2957, 5
      %v3804 = vsel %vm2116, %v3802, %v3803
      %v3805 = vrot.slane %v3803, 4
      %v3806 = vrot.slane %v2958, 5
      %v3807 = vsel %vm2116, %v3805, %v3806
      %v3808 = vrot.slane %v3696, 5
      %v3809 = vrot.slane %v3808, 4
      %v3810 = vrot.slane %v2960, 5
      %v3811 = vsel %vm2116, %v3809, %v3810
      %v3812 = vrot.slane %v3810, 4
      %v3813 = vrot.slane %v2961, 5
      %v3814 = vsel %vm2116, %v3812, %v3813
      %v3815 = vrot.slane %v3697, 5
      %v3816 = vrot.slane %v3815, 4
      %v3817 = vrot.slane %v2963, 5
      %v3818 = vsel %vm2116, %v3816, %v3817
      %v3819 = vrot.slane %v3817, 4
      %v3820 = vrot.slane %v2964, 5
      %v3821 = vsel %vm2116, %v3819, %v3820
      %v3822 = vrot.slane %v3698, 5
      %v3823 = vrot.slane %v3822, 4
      %v3824 = vrot.slane %v2966, 5
      %v3825 = vsel %vm2116, %v3823, %v3824
      %v3826 = vrot.slane %v3824, 4
      %v3827 = vrot.slane %v2967, 5
      %v3828 = vsel %vm2116, %v3826, %v3827
      %v3829 = vrot.slane %v3699, 5
      %v3830 = vrot.slane %v3829, 4
      %v3831 = vrot.slane %v2969, 5
      %v3832 = vsel %vm2116, %v3830, %v3831
      %v3833 = vrot.slane %v3831, 4
      %v3834 = vrot.slane %v2970, 5
      %v3835 = vsel %vm2116, %v3833, %v3834
      %v3836 = vrot.slane %v3700, 5
      %v3837 = vrot.slane %v3836, 4
      %v3838 = vrot.slane %v2972, 5
      %v3839 = vsel %vm2116, %v3837, %v3838
      %v3840 = vrot.slane %v3838, 4
      %v3841 = vrot.slane %v2973, 5
      %v3842 = vsel %vm2116, %v3840, %v3841
      %v3843 = vrot.slane %v3701, 5
      %v3844 = vrot.slane %v3843, 4
      %v3845 = vrot.slane %v2975, 5
      %v3846 = vsel %vm2116, %v3844, %v3845
      %v3847 = vrot.slane %v3845, 4
      %v3848 = vrot.slane %v2976, 5
      %v3849 = vsel %vm2116, %v3847, %v3848
      %v3850 = vrot.slane %v3702, 5
      %v3851 = vrot.slane %v3850, 4
      %v3852 = vrot.slane %v2978, 5
      %v3853 = vsel %vm2116, %v3851, %v3852
      %v3854 = vrot.slane %v3852, 4
      %v3855 = vrot.slane %v2979, 5
      %v3856 = vsel %vm2116, %v3854, %v3855
      %v3857 = vrot.slane %v3703, 5
      %v3858 = vrot.slane %v3857, 4
      %v3859 = vrot.slane %v2981, 5
      %v3860 = vsel %vm2116, %v3858, %v3859
      %v3861 = vrot.slane %v3859, 4
      %v3862 = vrot.slane %v2982, 5
      %v3863 = vsel %vm2116, %v3861, %v3862
      %v3864 = vld [vmem:[%s1 + $0x140] sm:$0xf]
      %v3865 = vld [vmem:[%s1 + $0x144] sm:$0xf]
      %v3866 = vld [vmem:[%s1 + $0x148] sm:$0xf]
      %v3867 = vld [vmem:[%s1 + $0x14c] sm:$0xf]
      %v3868 = vld [vmem:[%s1 + $0x150] sm:$0xf]
      %v3869 = vld [vmem:[%s1 + $0x154] sm:$0xf]
      %v3870 = vld [vmem:[%s1 + $0x158] sm:$0xf]
      %v3871 = vld [vmem:[%s1 + $0x15c] sm:$0xf]
      %v3872 = vld [vmem:[%s1 + $0x160] sm:$0xf]
      %v3873 = vld [vmem:[%s1 + $0x164] sm:$0xf]
      %v3874 = vld [vmem:[%s1 + $0x168] sm:$0xf]
      %v3875 = vld [vmem:[%s1 + $0x16c] sm:$0xf]
      %v3876 = vld [vmem:[%s1 + $0x170] sm:$0xf]
      %v3877 = vld [vmem:[%s1 + $0x174] sm:$0xf]
      %v3878 = vld [vmem:[%s1 + $0x178] sm:$0xf]
      %v3879 = vld [vmem:[%s1 + $0x17c] sm:$0xf]
      %v3880 = vunpack.c.l.b16 %v3755
      %v3881 = vunpack.c.l.b16 %v3758
      %v3882 = vunpack.c.l.b16 %v3762
      %v3883 = vunpack.c.l.b16 %v3765
      %v3884 = vunpack.c.l.b16 %v3769
      %v3885 = vunpack.c.l.b16 %v3772
      %v3886 = vunpack.c.l.b16 %v3776
      %v3887 = vunpack.c.l.b16 %v3779
      %v3888 = vunpack.c.l.b16 %v3783
      %v3889 = vunpack.c.l.b16 %v3786
      %v3890 = vunpack.c.l.b16 %v3790
      %v3891 = vunpack.c.l.b16 %v3793
      %v3892 = vunpack.c.l.b16 %v3797
      %v3893 = vunpack.c.l.b16 %v3800
      %v3894 = vunpack.c.l.b16 %v3804
      %v3895 = vunpack.c.l.b16 %v3807
      %v3896 = vunpack.c.l.b16 %v3811
      %v3897 = vunpack.c.l.b16 %v3814
      %v3898 = vunpack.c.l.b16 %v3818
      %v3899 = vunpack.c.l.b16 %v3821
      %v3900 = vunpack.c.l.b16 %v3825
      %v3901 = vunpack.c.l.b16 %v3828
      %v3902 = vunpack.c.l.b16 %v3832
      %v3903 = vunpack.c.l.b16 %v3835
      %v3904 = vunpack.c.l.b16 %v3839
      %v3905 = vunpack.c.l.b16 %v3842
      %v3906 = vunpack.c.l.b16 %v3846
      %v3907 = vunpack.c.l.b16 %v3849
      %v3908 = vunpack.c.l.b16 %v3853
      %v3909 = vunpack.c.l.b16 %v3856
      %v3910 = vunpack.c.l.b16 %v3860
      %v3911 = vunpack.c.l.b16 %v3863
      %v3912 = vpack.c.b16 %v3881, %v3880
      %v3913 = vpack.c.b16 %v3883, %v3882
      %v3914 = vpack.c.b16 %v3885, %v3884
      %v3915 = vpack.c.b16 %v3887, %v3886
      %v3916 = vpack.c.b16 %v3889, %v3888
      %v3917 = vpack.c.b16 %v3891, %v3890
      %v3918 = vpack.c.b16 %v3893, %v3892
      %v3919 = vpack.c.b16 %v3895, %v3894
      %v3920 = vpack.c.b16 %v3897, %v3896
      %v3921 = vpack.c.b16 %v3899, %v3898
      %v3922 = vpack.c.b16 %v3901, %v3900
      %v3923 = vpack.c.b16 %v3903, %v3902
      %v3924 = vpack.c.b16 %v3905, %v3904
      %v3925 = vpack.c.b16 %v3907, %v3906
      %v3926 = vpack.c.b16 %v3909, %v3908
      %v3927 = vpack.c.b16 %v3911, %v3910
      %v3960 = vunpack.c.l.b16 %v3864
      %v3961 = vunpack.c.l.b16 %v3865
      %v3962 = vunpack.c.l.b16 %v3866
      %v3963 = vunpack.c.l.b16 %v3867
      %v3964 = vunpack.c.l.b16 %v3868
      %v3965 = vunpack.c.l.b16 %v3869
      %v3966 = vunpack.c.l.b16 %v3870
      %v3967 = vunpack.c.l.b16 %v3871
      %v3968 = vunpack.c.l.b16 %v3872
      %v3969 = vunpack.c.l.b16 %v3873
      %v3970 = vunpack.c.l.b16 %v3874
      %v3971 = vunpack.c.l.b16 %v3875
      %v3972 = vunpack.c.l.b16 %v3876
      %v3973 = vunpack.c.l.b16 %v3877
      %v3974 = vunpack.c.l.b16 %v3878
      %v3975 = vunpack.c.l.b16 %v3879
      %v3976 = vpack.c.b16 %v3961, %v3960
      %v3977 = vpack.c.b16 %v3963, %v3962
      %v3978 = vpack.c.b16 %v3965, %v3964
      %v3979 = vpack.c.b16 %v3967, %v3966
      %v3980 = vpack.c.b16 %v3969, %v3968
      %v3981 = vpack.c.b16 %v3971, %v3970
      %v3982 = vpack.c.b16 %v3973, %v3972
      %v3983 = vpack.c.b16 %v3975, %v3974
      %3992 = vmatprep.subr.bf16.mxu0 0
      %3993 = vmatpush1.bf16.msra.mxu0 %v3976
      %3994 = vmatprep.subr.bf16.mxu0 0
      %3995 = vmatpush1.bf16.msra.mxu0 %v3977
      %3996 = vmatprep.subr.bf16.mxu0 0
      %3997 = vmatpush1.bf16.msra.mxu0 %v3978
      %3998 = vmatprep.subr.bf16.mxu0 0
      %3999 = vmatpush1.bf16.msra.mxu0 %v3979
      %4000 = vmatprep.subr.bf16.mxu0 0
      %4001 = vmatpush1.bf16.msra.mxu0 %v3980
      %4002 = vmatprep.subr.bf16.mxu0 0
      %4003 = vmatpush1.bf16.msra.mxu0 %v3981
      %4004 = vmatprep.subr.bf16.mxu0 0
      %4005 = vmatpush1.bf16.msra.mxu0 %v3982
      %4006 = vmatprep.subr.bf16.mxu0 0
      %4007 = vmatpush1.bf16.msra.mxu0 %v3983
      %4008 = vmatprep.subr.bf16.mxu0 0
      %4009 = vmatpush1.bf16.msra.mxu0 0
      %4010 = vmatprep.subr.bf16.mxu0 0
      %4011 = vmatpush1.bf16.msra.mxu0 0
      %4012 = vmatprep.subr.bf16.mxu0 0
      %4013 = vmatpush1.bf16.msra.mxu0 0
      %4014 = vmatprep.subr.bf16.mxu0 0
      %4015 = vmatpush1.bf16.msra.mxu0 0
      %4016 = vmatprep.subr.bf16.mxu0 0
      %4017 = vmatpush1.bf16.msra.mxu0 0
      %4018 = vmatprep.subr.bf16.mxu0 0
      %4019 = vmatpush1.bf16.msra.mxu0 0
      %4020 = vmatprep.subr.bf16.mxu0 0
      %4021 = vmatpush1.bf16.msra.mxu0 0
      %4022 = vmatprep.subr.bf16.mxu0 0
      %4023 = vmatpush1.bf16.msra.mxu0 0
      %4024 = vmatprep.mubr.bf16.mxu0 0
      %4025 = vmatmul.mubr.bf16.gmra.mrb[0].mxu0 %v3912
      %v4026 = vpop.f32.mrb[0].mxu0
      %v4027 = vadd.f32 0.0, %v4026
      %v4028 = vpop.f32.mrb[0].mxu0
      %v4029 = vpop.f32.mrb[0].mxu0
      %v4030 = vadd.f32 0.0, %v4029
      %v4031 = vpop.f32.mrb[0].mxu0
      %4032 = vmatprep.mubr.bf16.mxu0 0
      %4033 = vmatmul.mubr.bf16.gmra.mrb[0].mxu0 %v3913
      %v4034 = vpop.f32.mrb[0].mxu0
      %v4035 = vadd.f32 0.0, %v4034
      %v4036 = vpop.f32.mrb[0].mxu0
      %v4037 = vpop.f32.mrb[0].mxu0
      %v4038 = vadd.f32 0.0, %v4037
      %v4039 = vpop.f32.mrb[0].mxu0
      %4040 = vmatprep.mubr.bf16.mxu0 0
      %4041 = vmatmul.mubr.bf16.gmra.mrb[0].mxu0 %v3914
      %v4042 = vpop.f32.mrb[0].mxu0
      %v4043 = vadd.f32 0.0, %v4042
      %v4044 = vpop.f32.mrb[0].mxu0
      %v4045 = vpop.f32.mrb[0].mxu0
      %v4046 = vadd.f32 0.0, %v4045
      %v4047 = vpop.f32.mrb[0].mxu0
      %4048 = vmatprep.mubr.bf16.mxu0 0
      %4049 = vmatmul.mubr.bf16.gmra.mrb[0].mxu0 %v3915
      %v4050 = vpop.f32.mrb[0].mxu0
      %v4051 = vadd.f32 0.0, %v4050
      %v4052 = vpop.f32.mrb[0].mxu0
      %v4053 = vpop.f32.mrb[0].mxu0
      %v4054 = vadd.f32 0.0, %v4053
      %v4055 = vpop.f32.mrb[0].mxu0
      %4056 = vmatprep.mubr.bf16.mxu0 0
      %4057 = vmatmul.mubr.bf16.gmra.mrb[0].mxu0 %v3916
      %v4058 = vpop.f32.mrb[0].mxu0
      %v4059 = vadd.f32 0.0, %v4058
      %v4060 = vpop.f32.mrb[0].mxu0
      %v4061 = vpop.f32.mrb[0].mxu0
      %v4062 = vadd.f32 0.0, %v4061
      %v4063 = vpop.f32.mrb[0].mxu0
      %4064 = vmatprep.mubr.bf16.mxu0 0
      %4065 = vmatmul.mubr.bf16.gmra.mrb[0].mxu0 %v3917
      %v4066 = vpop.f32.mrb[0].mxu0
      %v4067 = vadd.f32 0.0, %v4066
      %v4068 = vpop.f32.mrb[0].mxu0
      %v4069 = vpop.f32.mrb[0].mxu0
      %v4070 = vadd.f32 0.0, %v4069
      %v4071 = vpop.f32.mrb[0].mxu0
      %4072 = vmatprep.mubr.bf16.mxu0 0
      %4073 = vmatmul.mubr.bf16.gmra.mrb[0].mxu0 %v3918
      %v4074 = vpop.f32.mrb[0].mxu0
      %v4075 = vadd.f32 0.0, %v4074
      %v4076 = vpop.f32.mrb[0].mxu0
      %v4077 = vpop.f32.mrb[0].mxu0
      %v4078 = vadd.f32 0.0, %v4077
      %v4079 = vpop.f32.mrb[0].mxu0
      %4080 = vmatprep.mubr.bf16.mxu0 0
      %4081 = vmatmul.mubr.bf16.gmra.mrb[0].mxu0 %v3919
      %v4082 = vpop.f32.mrb[0].mxu0
      %v4083 = vadd.f32 0.0, %v4082
      %v4084 = vpop.f32.mrb[0].mxu0
      %v4085 = vpop.f32.mrb[0].mxu0
      %v4086 = vadd.f32 0.0, %v4085
      %v4087 = vpop.f32.mrb[0].mxu0
      %4088 = vmatprep.mubr.bf16.mxu0 0
      %4089 = vmatmul.mubr.bf16.gmra.mrb[0].mxu0 %v3920
      %v4090 = vpop.f32.mrb[0].mxu0
      %v4091 = vadd.f32 0.0, %v4090
      %v4092 = vpop.f32.mrb[0].mxu0
      %v4093 = vpop.f32.mrb[0].mxu0
      %v4094 = vadd.f32 0.0, %v4093
      %v4095 = vpop.f32.mrb[0].mxu0
      %4096 = vmatprep.mubr.bf16.mxu0 0
      %4097 = vmatmul.mubr.bf16.gmra.mrb[0].mxu0 %v3921
      %v4098 = vpop.f32.mrb[0].mxu0
      %v4099 = vadd.f32 0.0, %v4098
      %v4100 = vpop.f32.mrb[0].mxu0
      %v4101 = vpop.f32.mrb[0].mxu0
      %v4102 = vadd.f32 0.0, %v4101
      %v4103 = vpop.f32.mrb[0].mxu0
      %4104 = vmatprep.mubr.bf16.mxu0 0
      %4105 = vmatmul.mubr.bf16.gmra.mrb[0].mxu0 %v3922
      %v4106 = vpop.f32.mrb[0].mxu0
      %v4107 = vadd.f32 0.0, %v4106
      %v4108 = vpop.f32.mrb[0].mxu0
      %v4109 = vpop.f32.mrb[0].mxu0
      %v4110 = vadd.f32 0.0, %v4109
      %v4111 = vpop.f32.mrb[0].mxu0
      %4112 = vmatprep.mubr.bf16.mxu0 0
      %4113 = vmatmul.mubr.bf16.gmra.mrb[0].mxu0 %v3923
      %v4114 = vpop.f32.mrb[0].mxu0
      %v4115 = vadd.f32 0.0, %v4114
      %v4116 = vpop.f32.mrb[0].mxu0
      %v4117 = vpop.f32.mrb[0].mxu0
      %v4118 = vadd.f32 0.0, %v4117
      %v4119 = vpop.f32.mrb[0].mxu0
      %4120 = vmatprep.mubr.bf16.mxu0 0
      %4121 = vmatmul.mubr.bf16.gmra.mrb[0].mxu0 %v3924
      %v4122 = vpop.f32.mrb[0].mxu0
      %v4123 = vadd.f32 0.0, %v4122
      %v4124 = vpop.f32.mrb[0].mxu0
      %v4125 = vpop.f32.mrb[0].mxu0
      %v4126 = vadd.f32 0.0, %v4125
      %v4127 = vpop.f32.mrb[0].mxu0
      %4128 = vmatprep.mubr.bf16.mxu0 0
      %4129 = vmatmul.mubr.bf16.gmra.mrb[0].mxu0 %v3925
      %v4130 = vpop.f32.mrb[0].mxu0
      %v4131 = vadd.f32 0.0, %v4130
      %v4132 = vpop.f32.mrb[0].mxu0
      %v4133 = vpop.f32.mrb[0].mxu0
      %v4134 = vadd.f32 0.0, %v4133
      %v4135 = vpop.f32.mrb[0].mxu0
      %4136 = vmatprep.mubr.bf16.mxu0 0
      %4137 = vmatmul.mubr.bf16.gmra.mrb[0].mxu0 %v3926
      %v4138 = vpop.f32.mrb[0].mxu0
      %v4139 = vadd.f32 0.0, %v4138
      %v4140 = vpop.f32.mrb[0].mxu0
      %v4141 = vpop.f32.mrb[0].mxu0
      %v4142 = vadd.f32 0.0, %v4141
      %v4143 = vpop.f32.mrb[0].mxu0
      %4144 = vmatprep.mubr.bf16.mxu0 0
      %4145 = vmatmul.mubr.bf16.gmra.mrb[0].mxu0 %v3927
      %v4146 = vpop.f32.mrb[0].mxu0
      %v4147 = vadd.f32 0.0, %v4146
      %v4148 = vpop.f32.mrb[0].mxu0
      %v4149 = vpop.f32.mrb[0].mxu0
      %v4150 = vadd.f32 0.0, %v4149
      %v4151 = vpop.f32.mrb[0].mxu0
      %4152 = vdwg.mxu0
      %v4153 = vadd.f32 %v3656, %v4027
      %v4154 = vadd.f32 %v3657, %v4030
      %v4155 = vadd.f32 %v3658, %v4035
      %v4156 = vadd.f32 %v3659, %v4038
      %v4157 = vadd.f32 %v3660, %v4043
      %v4158 = vadd.f32 %v3661, %v4046
      %v4159 = vadd.f32 %v3662, %v4051
      %v4160 = vadd.f32 %v3663, %v4054
      %v4161 = vadd.f32 %v3664, %v4059
      %v4162 = vadd.f32 %v3665, %v4062
      %v4163 = vadd.f32 %v3666, %v4067
      %v4164 = vadd.f32 %v3667, %v4070
      %v4165 = vadd.f32 %v3668, %v4075
      %v4166 = vadd.f32 %v3669, %v4078
      %v4167 = vadd.f32 %v3670, %v4083
      %v4168 = vadd.f32 %v3671, %v4086
      %v4169 = vadd.f32 %v3672, %v4091
      %v4170 = vadd.f32 %v3673, %v4094
      %v4171 = vadd.f32 %v3674, %v4099
      %v4172 = vadd.f32 %v3675, %v4102
      %v4173 = vadd.f32 %v3676, %v4107
      %v4174 = vadd.f32 %v3677, %v4110
      %v4175 = vadd.f32 %v3678, %v4115
      %v4176 = vadd.f32 %v3679, %v4118
      %v4177 = vadd.f32 %v3680, %v4123
      %v4178 = vadd.f32 %v3681, %v4126
      %v4179 = vadd.f32 %v3682, %v4131
      %v4180 = vadd.f32 %v3683, %v4134
      %v4181 = vadd.f32 %v3684, %v4139
      %v4182 = vadd.f32 %v3685, %v4142
      %v4183 = vadd.f32 %v3686, %v4147
      %v4184 = vadd.f32 %v3687, %v4150
      %s4185 = scalar_lea.vmem [#allocation2], 24
      %v4186 = vld [vmem:[%s4185] sm:$0xf]
      %v4187 = vld [vmem:[%s4185 + $0x4] sm:$0xf]
      %v4188 = vld [vmem:[%s4185 + $0xc] sm:$0xf]
      %v4189 = vld [vmem:[%s4185 + $0x10] sm:$0xf]
      %v4190 = vld [vmem:[%s4185 + $0x18] sm:$0xf]
      %v4191 = vld [vmem:[%s4185 + $0x1c] sm:$0xf]
      %v4192 = vld [vmem:[%s4185 + $0x24] sm:$0xf]
      %v4193 = vld [vmem:[%s4185 + $0x28] sm:$0xf]
      %v4194 = vld [vmem:[%s4185 + $0x30] sm:$0xf]
      %v4195 = vld [vmem:[%s4185 + $0x34] sm:$0xf]
      %v4196 = vld [vmem:[%s4185 + $0x3c] sm:$0xf]
      %v4197 = vld [vmem:[%s4185 + $0x40] sm:$0xf]
      %v4198 = vld [vmem:[%s4185 + $0x48] sm:$0xf]
      %v4199 = vld [vmem:[%s4185 + $0x4c] sm:$0xf]
      %v4200 = vld [vmem:[%s4185 + $0x54] sm:$0xf]
      %v4201 = vld [vmem:[%s4185 + $0x58] sm:$0xf]
      %v4202 = vld [vmem:[%s4185 + $0x60] sm:$0xf]
      %v4203 = vld [vmem:[%s4185 + $0x64] sm:$0xf]
      %v4204 = vld [vmem:[%s4185 + $0x6c] sm:$0xf]
      %v4205 = vld [vmem:[%s4185 + $0x70] sm:$0xf]
      %v4206 = vld [vmem:[%s4185 + $0x78] sm:$0xf]
      %v4207 = vld [vmem:[%s4185 + $0x7c] sm:$0xf]
      %v4208 = vld [vmem:[%s4185 + $0x84] sm:$0xf]
      %v4209 = vld [vmem:[%s4185 + $0x88] sm:$0xf]
      %v4210 = vld [vmem:[%s4185 + $0x90] sm:$0xf]
      %v4211 = vld [vmem:[%s4185 + $0x94] sm:$0xf]
      %v4212 = vld [vmem:[%s4185 + $0x9c] sm:$0xf]
      %v4213 = vld [vmem:[%s4185 + $0xa0] sm:$0xf]
      %v4214 = vld [vmem:[%s4185 + $0xa8] sm:$0xf]
      %v4215 = vld [vmem:[%s4185 + $0xac] sm:$0xf]
      %v4216 = vld [vmem:[%s4185 + $0xb4] sm:$0xf]
      %v4217 = vld [vmem:[%s4185 + $0xb8] sm:$0xf]
      %v4218 = vld [vmem:[%s1 + $0x180] sm:$0xf]
      %v4219 = vld [vmem:[%s1 + $0x184] sm:$0xf]
      %v4220 = vld [vmem:[%s1 + $0x188] sm:$0xf]
      %v4221 = vld [vmem:[%s1 + $0x18c] sm:$0xf]
      %v4222 = vld [vmem:[%s1 + $0x190] sm:$0xf]
      %v4223 = vld [vmem:[%s1 + $0x194] sm:$0xf]
      %v4224 = vld [vmem:[%s1 + $0x198] sm:$0xf]
      %v4225 = vld [vmem:[%s1 + $0x19c] sm:$0xf]
      %v4226 = vld [vmem:[%s1 + $0x1a0] sm:$0xf]
      %v4227 = vld [vmem:[%s1 + $0x1a4] sm:$0xf]
      %v4228 = vld [vmem:[%s1 + $0x1a8] sm:$0xf]
      %v4229 = vld [vmem:[%s1 + $0x1ac] sm:$0xf]
      %v4230 = vld [vmem:[%s1 + $0x1b0] sm:$0xf]
      %v4231 = vld [vmem:[%s1 + $0x1b4] sm:$0xf]
      %v4232 = vld [vmem:[%s1 + $0x1b8] sm:$0xf]
      %v4233 = vld [vmem:[%s1 + $0x1bc] sm:$0xf]
      %v4266 = vunpack.c.l.b16 %v4186
      %v4267 = vunpack.c.l.b16 %v4187
      %v4268 = vunpack.c.l.b16 %v4188
      %v4269 = vunpack.c.l.b16 %v4189
      %v4270 = vunpack.c.l.b16 %v4190
      %v4271 = vunpack.c.l.b16 %v4191
      %v4272 = vunpack.c.l.b16 %v4192
      %v4273 = vunpack.c.l.b16 %v4193
      %v4274 = vunpack.c.l.b16 %v4194
      %v4275 = vunpack.c.l.b16 %v4195
      %v4276 = vunpack.c.l.b16 %v4196
      %v4277 = vunpack.c.l.b16 %v4197
      %v4278 = vunpack.c.l.b16 %v4198
      %v4279 = vunpack.c.l.b16 %v4199
      %v4280 = vunpack.c.l.b16 %v4200
      %v4281 = vunpack.c.l.b16 %v4201
      %v4282 = vunpack.c.l.b16 %v4202
      %v4283 = vunpack.c.l.b16 %v4203
      %v4284 = vunpack.c.l.b16 %v4204
      %v4285 = vunpack.c.l.b16 %v4205
      %v4286 = vunpack.c.l.b16 %v4206
      %v4287 = vunpack.c.l.b16 %v4207
      %v4288 = vunpack.c.l.b16 %v4208
      %v4289 = vunpack.c.l.b16 %v4209
      %v4290 = vunpack.c.l.b16 %v4210
      %v4291 = vunpack.c.l.b16 %v4211
      %v4292 = vunpack.c.l.b16 %v4212
      %v4293 = vunpack.c.l.b16 %v4213
      %v4294 = vunpack.c.l.b16 %v4214
      %v4295 = vunpack.c.l.b16 %v4215
      %v4296 = vunpack.c.l.b16 %v4216
      %v4297 = vunpack.c.l.b16 %v4217
      %v4298 = vpack.c.b16 %v4267, %v4266
      %v4299 = vpack.c.b16 %v4269, %v4268
      %v4300 = vpack.c.b16 %v4271, %v4270
      %v4301 = vpack.c.b16 %v4273, %v4272
      %v4302 = vpack.c.b16 %v4275, %v4274
      %v4303 = vpack.c.b16 %v4277, %v4276
      %v4304 = vpack.c.b16 %v4279, %v4278
      %v4305 = vpack.c.b16 %v4281, %v4280
      %v4306 = vpack.c.b16 %v4283, %v4282
      %v4307 = vpack.c.b16 %v4285, %v4284
      %v4308 = vpack.c.b16 %v4287, %v4286
      %v4309 = vpack.c.b16 %v4289, %v4288
      %v4310 = vpack.c.b16 %v4291, %v4290
      %v4311 = vpack.c.b16 %v4293, %v4292
      %v4312 = vpack.c.b16 %v4295, %v4294
      %v4313 = vpack.c.b16 %v4297, %v4296
      %v4346 = vunpack.c.l.b16 %v4218
      %v4347 = vunpack.c.l.b16 %v4219
      %v4348 = vunpack.c.l.b16 %v4220
      %v4349 = vunpack.c.l.b16 %v4221
      %v4350 = vunpack.c.l.b16 %v4222
      %v4351 = vunpack.c.l.b16 %v4223
      %v4352 = vunpack.c.l.b16 %v4224
      %v4353 = vunpack.c.l.b16 %v4225
      %v4354 = vunpack.c.l.b16 %v4226
      %v4355 = vunpack.c.l.b16 %v4227
      %v4356 = vunpack.c.l.b16 %v4228
      %v4357 = vunpack.c.l.b16 %v4229
      %v4358 = vunpack.c.l.b16 %v4230
      %v4359 = vunpack.c.l.b16 %v4231
      %v4360 = vunpack.c.l.b16 %v4232
      %v4361 = vunpack.c.l.b16 %v4233
      %v4362 = vpack.c.b16 %v4347, %v4346
      %v4363 = vpack.c.b16 %v4349, %v4348
      %v4364 = vpack.c.b16 %v4351, %v4350
      %v4365 = vpack.c.b16 %v4353, %v4352
      %v4366 = vpack.c.b16 %v4355, %v4354
      %v4367 = vpack.c.b16 %v4357, %v4356
      %v4368 = vpack.c.b16 %v4359, %v4358
      %v4369 = vpack.c.b16 %v4361, %v4360
      %4378 = vmatprep.subr.bf16.mxu0 0
      %4379 = vmatpush1.bf16.msra.mxu0 %v4362
      %4380 = vmatprep.subr.bf16.mxu0 0
      %4381 = vmatpush1.bf16.msra.mxu0 %v4363
      %4382 = vmatprep.subr.bf16.mxu0 0
      %4383 = vmatpush1.bf16.msra.mxu0 %v4364
      %4384 = vmatprep.subr.bf16.mxu0 0
      %4385 = vmatpush1.bf16.msra.mxu0 %v4365
      %4386 = vmatprep.subr.bf16.mxu0 0
      %4387 = vmatpush1.bf16.msra.mxu0 %v4366
      %4388 = vmatprep.subr.bf16.mxu0 0
      %4389 = vmatpush1.bf16.msra.mxu0 %v4367
      %4390 = vmatprep.subr.bf16.mxu0 0
      %4391 = vmatpush1.bf16.msra.mxu0 %v4368
      %4392 = vmatprep.subr.bf16.mxu0 0
      %4393 = vmatpush1.bf16.msra.mxu0 %v4369
      %4394 = vmatprep.subr.bf16.mxu0 0
      %4395 = vmatpush1.bf16.msra.mxu0 0
      %4396 = vmatprep.subr.bf16.mxu0 0
      %4397 = vmatpush1.bf16.msra.mxu0 0
      %4398 = vmatprep.subr.bf16.mxu0 0
      %4399 = vmatpush1.bf16.msra.mxu0 0
      %4400 = vmatprep.subr.bf16.mxu0 0
      %4401 = vmatpush1.bf16.msra.mxu0 0
      %4402 = vmatprep.subr.bf16.mxu0 0
      %4403 = vmatpush1.bf16.msra.mxu0 0
      %4404 = vmatprep.subr.bf16.mxu0 0
      %4405 = vmatpush1.bf16.msra.mxu0 0
      %4406 = vmatprep.subr.bf16.mxu0 0
      %4407 = vmatpush1.bf16.msra.mxu0 0
      %4408 = vmatprep.subr.bf16.mxu0 0
      %4409 = vmatpush1.bf16.msra.mxu0 0
      %4410 = vmatprep.mubr.bf16.mxu0 0
      %4411 = vmatmul.mubr.bf16.gmra.mrb[0].mxu0 %v4298
      %v4412 = vpop.f32.mrb[0].mxu0
      %v4413 = vadd.f32 0.0, %v4412
      %v4414 = vpop.f32.mrb[0].mxu0
      %v4415 = vpop.f32.mrb[0].mxu0
      %v4416 = vadd.f32 0.0, %v4415
      %v4417 = vpop.f32.mrb[0].mxu0
      %4418 = vmatprep.mubr.bf16.mxu0 0
      %4419 = vmatmul.mubr.bf16.gmra.mrb[0].mxu0 %v4299
      %v4420 = vpop.f32.mrb[0].mxu0
      %v4421 = vadd.f32 0.0, %v4420
      %v4422 = vpop.f32.mrb[0].mxu0
      %v4423 = vpop.f32.mrb[0].mxu0
      %v4424 = vadd.f32 0.0, %v4423
      %v4425 = vpop.f32.mrb[0].mxu0
      %4426 = vmatprep.mubr.bf16.mxu0 0
      %4427 = vmatmul.mubr.bf16.gmra.mrb[0].mxu0 %v4300
      %v4428 = vpop.f32.mrb[0].mxu0
      %v4429 = vadd.f32 0.0, %v4428
      %v4430 = vpop.f32.mrb[0].mxu0
      %v4431 = vpop.f32.mrb[0].mxu0
      %v4432 = vadd.f32 0.0, %v4431
      %v4433 = vpop.f32.mrb[0].mxu0
      %4434 = vmatprep.mubr.bf16.mxu0 0
      %4435 = vmatmul.mubr.bf16.gmra.mrb[0].mxu0 %v4301
      %v4436 = vpop.f32.mrb[0].mxu0
      %v4437 = vadd.f32 0.0, %v4436
      %v4438 = vpop.f32.mrb[0].mxu0
      %v4439 = vpop.f32.mrb[0].mxu0
      %v4440 = vadd.f32 0.0, %v4439
      %v4441 = vpop.f32.mrb[0].mxu0
      %4442 = vmatprep.mubr.bf16.mxu0 0
      %4443 = vmatmul.mubr.bf16.gmra.mrb[0].mxu0 %v4302
      %v4444 = vpop.f32.mrb[0].mxu0
      %v4445 = vadd.f32 0.0, %v4444
      %v4446 = vpop.f32.mrb[0].mxu0
      %v4447 = vpop.f32.mrb[0].mxu0
      %v4448 = vadd.f32 0.0, %v4447
      %v4449 = vpop.f32.mrb[0].mxu0
      %4450 = vmatprep.mubr.bf16.mxu0 0
      %4451 = vmatmul.mubr.bf16.gmra.mrb[0].mxu0 %v4303
      %v4452 = vpop.f32.mrb[0].mxu0
      %v4453 = vadd.f32 0.0, %v4452
      %v4454 = vpop.f32.mrb[0].mxu0
      %v4455 = vpop.f32.mrb[0].mxu0
      %v4456 = vadd.f32 0.0, %v4455
      %v4457 = vpop.f32.mrb[0].mxu0
      %4458 = vmatprep.mubr.bf16.mxu0 0
      %4459 = vmatmul.mubr.bf16.gmra.mrb[0].mxu0 %v4304
      %v4460 = vpop.f32.mrb[0].mxu0
      %v4461 = vadd.f32 0.0, %v4460
      %v4462 = vpop.f32.mrb[0].mxu0
      %v4463 = vpop.f32.mrb[0].mxu0
      %v4464 = vadd.f32 0.0, %v4463
      %v4465 = vpop.f32.mrb[0].mxu0
      %4466 = vmatprep.mubr.bf16.mxu0 0
      %4467 = vmatmul.mubr.bf16.gmra.mrb[0].mxu0 %v4305
      %v4468 = vpop.f32.mrb[0].mxu0
      %v4469 = vadd.f32 0.0, %v4468
      %v4470 = vpop.f32.mrb[0].mxu0
      %v4471 = vpop.f32.mrb[0].mxu0
      %v4472 = vadd.f32 0.0, %v4471
      %v4473 = vpop.f32.mrb[0].mxu0
      %4474 = vmatprep.mubr.bf16.mxu0 0
      %4475 = vmatmul.mubr.bf16.gmra.mrb[0].mxu0 %v4306
      %v4476 = vpop.f32.mrb[0].mxu0
      %v4477 = vadd.f32 0.0, %v4476
      %v4478 = vpop.f32.mrb[0].mxu0
      %v4479 = vpop.f32.mrb[0].mxu0
      %v4480 = vadd.f32 0.0, %v4479
      %v4481 = vpop.f32.mrb[0].mxu0
      %4482 = vmatprep.mubr.bf16.mxu0 0
      %4483 = vmatmul.mubr.bf16.gmra.mrb[0].mxu0 %v4307
      %v4484 = vpop.f32.mrb[0].mxu0
      %v4485 = vadd.f32 0.0, %v4484
      %v4486 = vpop.f32.mrb[0].mxu0
      %v4487 = vpop.f32.mrb[0].mxu0
      %v4488 = vadd.f32 0.0, %v4487
      %v4489 = vpop.f32.mrb[0].mxu0
      %4490 = vmatprep.mubr.bf16.mxu0 0
      %4491 = vmatmul.mubr.bf16.gmra.mrb[0].mxu0 %v4308
      %v4492 = vpop.f32.mrb[0].mxu0
      %v4493 = vadd.f32 0.0, %v4492
      %v4494 = vpop.f32.mrb[0].mxu0
      %v4495 = vpop.f32.mrb[0].mxu0
      %v4496 = vadd.f32 0.0, %v4495
      %v4497 = vpop.f32.mrb[0].mxu0
      %4498 = vmatprep.mubr.bf16.mxu0 0
      %4499 = vmatmul.mubr.bf16.gmra.mrb[0].mxu0 %v4309
      %v4500 = vpop.f32.mrb[0].mxu0
      %v4501 = vadd.f32 0.0, %v4500
      %v4502 = vpop.f32.mrb[0].mxu0
      %v4503 = vpop.f32.mrb[0].mxu0
      %v4504 = vadd.f32 0.0, %v4503
      %v4505 = vpop.f32.mrb[0].mxu0
      %4506 = vmatprep.mubr.bf16.mxu0 0
      %4507 = vmatmul.mubr.bf16.gmra.mrb[0].mxu0 %v4310
      %v4508 = vpop.f32.mrb[0].mxu0
      %v4509 = vadd.f32 0.0, %v4508
      %v4510 = vpop.f32.mrb[0].mxu0
      %v4511 = vpop.f32.mrb[0].mxu0
      %v4512 = vadd.f32 0.0, %v4511
      %v4513 = vpop.f32.mrb[0].mxu0
      %4514 = vmatprep.mubr.bf16.mxu0 0
      %4515 = vmatmul.mubr.bf16.gmra.mrb[0].mxu0 %v4311
      %v4516 = vpop.f32.mrb[0].mxu0
      %v4517 = vadd.f32 0.0, %v4516
      %v4518 = vpop.f32.mrb[0].mxu0
      %v4519 = vpop.f32.mrb[0].mxu0
      %v4520 = vadd.f32 0.0, %v4519
      %v4521 = vpop.f32.mrb[0].mxu0
      %4522 = vmatprep.mubr.bf16.mxu0 0
      %4523 = vmatmul.mubr.bf16.gmra.mrb[0].mxu0 %v4312
      %v4524 = vpop.f32.mrb[0].mxu0
      %v4525 = vadd.f32 0.0, %v4524
      %v4526 = vpop.f32.mrb[0].mxu0
      %v4527 = vpop.f32.mrb[0].mxu0
      %v4528 = vadd.f32 0.0, %v4527
      %v4529 = vpop.f32.mrb[0].mxu0
      %4530 = vmatprep.mubr.bf16.mxu0 0
      %4531 = vmatmul.mubr.bf16.gmra.mrb[0].mxu0 %v4313
      %v4532 = vpop.f32.mrb[0].mxu0
      %v4533 = vadd.f32 0.0, %v4532
      %v4534 = vpop.f32.mrb[0].mxu0
      %v4535 = vpop.f32.mrb[0].mxu0
      %v4536 = vadd.f32 0.0, %v4535
      %v4537 = vpop.f32.mrb[0].mxu0
      %4538 = vdwg.mxu0
      %v4539 = vadd.f32 %v4153, %v4413
      %v4540 = vadd.f32 %v4154, %v4416
      %v4541 = vadd.f32 %v4155, %v4421
      %v4542 = vadd.f32 %v4156, %v4424
      %v4543 = vadd.f32 %v4157, %v4429
      %v4544 = vadd.f32 %v4158, %v4432
      %v4545 = vadd.f32 %v4159, %v4437
      %v4546 = vadd.f32 %v4160, %v4440
      %v4547 = vadd.f32 %v4161, %v4445
      %v4548 = vadd.f32 %v4162, %v4448
      %v4549 = vadd.f32 %v4163, %v4453
      %v4550 = vadd.f32 %v4164, %v4456
      %v4551 = vadd.f32 %v4165, %v4461
      %v4552 = vadd.f32 %v4166, %v4464
      %v4553 = vadd.f32 %v4167, %v4469
      %v4554 = vadd.f32 %v4168, %v4472
      %v4555 = vadd.f32 %v4169, %v4477
      %v4556 = vadd.f32 %v4170, %v4480
      %v4557 = vadd.f32 %v4171, %v4485
      %v4558 = vadd.f32 %v4172, %v4488
      %v4559 = vadd.f32 %v4173, %v4493
      %v4560 = vadd.f32 %v4174, %v4496
      %v4561 = vadd.f32 %v4175, %v4501
      %v4562 = vadd.f32 %v4176, %v4504
      %v4563 = vadd.f32 %v4177, %v4509
      %v4564 = vadd.f32 %v4178, %v4512
      %v4565 = vadd.f32 %v4179, %v4517
      %v4566 = vadd.f32 %v4180, %v4520
      %v4567 = vadd.f32 %v4181, %v4525
      %v4568 = vadd.f32 %v4182, %v4528
      %v4569 = vadd.f32 %v4183, %v4533
      %v4570 = vadd.f32 %v4184, %v4536
      %v4571 = vld [vmem:[%s4185] sm:$0xf]
      %v4572 = vld [vmem:[%s4185 + $0x4] sm:$0xf]
      %v4573 = vld [vmem:[%s4185 + $0x8] sm:$0x1]
      %v4574 = vld [vmem:[%s4185 + $0xc] sm:$0xf]
      %v4575 = vld [vmem:[%s4185 + $0x10] sm:$0xf]
      %v4576 = vld [vmem:[%s4185 + $0x14] sm:$0x1]
      %v4577 = vld [vmem:[%s4185 + $0x18] sm:$0xf]
      %v4578 = vld [vmem:[%s4185 + $0x1c] sm:$0xf]
      %v4579 = vld [vmem:[%s4185 + $0x20] sm:$0x1]
      %v4580 = vld [vmem:[%s4185 + $0x24] sm:$0xf]
      %v4581 = vld [vmem:[%s4185 + $0x28] sm:$0xf]
      %v4582 = vld [vmem:[%s4185 + $0x2c] sm:$0x1]
      %v4583 = vld [vmem:[%s4185 + $0x30] sm:$0xf]
      %v4584 = vld [vmem:[%s4185 + $0x34] sm:$0xf]
      %v4585 = vld [vmem:[%s4185 + $0x38] sm:$0x1]
      %v4586 = vld [vmem:[%s4185 + $0x3c] sm:$0xf]
      %v4587 = vld [vmem:[%s4185 + $0x40] sm:$0xf]
      %v4588 = vld [vmem:[%s4185 + $0x44] sm:$0x1]
      %v4589 = vld [vmem:[%s4185 + $0x48] sm:$0xf]
      %v4590 = vld [vmem:[%s4185 + $0x4c] sm:$0xf]
      %v4591 = vld [vmem:[%s4185 + $0x50] sm:$0x1]
      %v4592 = vld [vmem:[%s4185 + $0x54] sm:$0xf]
      %v4593 = vld [vmem:[%s4185 + $0x58] sm:$0xf]
      %v4594 = vld [vmem:[%s4185 + $0x5c] sm:$0x1]
      %v4595 = vld [vmem:[%s4185 + $0x60] sm:$0xf]
      %v4596 = vld [vmem:[%s4185 + $0x64] sm:$0xf]
      %v4597 = vld [vmem:[%s4185 + $0x68] sm:$0x1]
      %v4598 = vld [vmem:[%s4185 + $0x6c] sm:$0xf]
      %v4599 = vld [vmem:[%s4185 + $0x70] sm:$0xf]
      %v4600 = vld [vmem:[%s4185 + $0x74] sm:$0x1]
      %v4601 = vld [vmem:[%s4185 + $0x78] sm:$0xf]
      %v4602 = vld [vmem:[%s4185 + $0x7c] sm:$0xf]
      %v4603 = vld [vmem:[%s4185 + $0x80] sm:$0x1]
      %v4604 = vld [vmem:[%s4185 + $0x84] sm:$0xf]
      %v4605 = vld [vmem:[%s4185 + $0x88] sm:$0xf]
      %v4606 = vld [vmem:[%s4185 + $0x8c] sm:$0x1]
      %v4607 = vld [vmem:[%s4185 + $0x90] sm:$0xf]
      %v4608 = vld [vmem:[%s4185 + $0x94] sm:$0xf]
      %v4609 = vld [vmem:[%s4185 + $0x98] sm:$0x1]
      %v4610 = vld [vmem:[%s4185 + $0x9c] sm:$0xf]
      %v4611 = vld [vmem:[%s4185 + $0xa0] sm:$0xf]
      %v4612 = vld [vmem:[%s4185 + $0xa4] sm:$0x1]
      %v4613 = vld [vmem:[%s4185 + $0xa8] sm:$0xf]
      %v4614 = vld [vmem:[%s4185 + $0xac] sm:$0xf]
      %v4615 = vld [vmem:[%s4185 + $0xb0] sm:$0x1]
      %v4616 = vld [vmem:[%s4185 + $0xb4] sm:$0xf]
      %v4617 = vld [vmem:[%s4185 + $0xb8] sm:$0xf]
      %v4618 = vld [vmem:[%s4185 + $0xbc] sm:$0x1]
      %v4620 = vshrl.u32 %v4571, 16
      %v4622 = vrot.slane %v4620, 4
      %v4623 = vshll.u32 %v4571, 16
      %v4625 = vrot.slane %v4623, 5
      %v4626 = vor.u32 %v4622, %v4625
      %v4627 = vrot.slane %v4626, 4
      %v4629 = vshll.u32 %v4572, 16
      %v4631 = vrot.slane %v4629, 5
      %v4632 = vsel %vm1087, %v4627, %v4631
      %v4633 = vshrl.u32 %v4572, 16
      %v4635 = vrot.slane %v4633, 4
      %v4636 = vor.u32 %v4635, %v4631
      %v4637 = vrot.slane %v4636, 4
      %v4639 = vshll.u32 %v4573, 16
      %v4641 = vrot.slane %v4639, 5
      %v4642 = vsel %vm1087, %v4637, %v4641
      %v4644 = vshrl.u32 %v4574, 16
      %v4646 = vrot.slane %v4644, 4
      %v4647 = vshll.u32 %v4574, 16
      %v4649 = vrot.slane %v4647, 5
      %v4650 = vor.u32 %v4646, %v4649
      %v4651 = vrot.slane %v4650, 4
      %v4653 = vshll.u32 %v4575, 16
      %v4655 = vrot.slane %v4653, 5
      %v4656 = vsel %vm1087, %v4651, %v4655
      %v4657 = vshrl.u32 %v4575, 16
      %v4659 = vrot.slane %v4657, 4
      %v4660 = vor.u32 %v4659, %v4655
      %v4661 = vrot.slane %v4660, 4
      %v4663 = vshll.u32 %v4576, 16
      %v4665 = vrot.slane %v4663, 5
      %v4666 = vsel %vm1087, %v4661, %v4665
      %v4668 = vshrl.u32 %v4577, 16
      %v4670 = vrot.slane %v4668, 4
      %v4671 = vshll.u32 %v4577, 16
      %v4673 = vrot.slane %v4671, 5
      %v4674 = vor.u32 %v4670, %v4673
      %v4675 = vrot.slane %v4674, 4
      %v4677 = vshll.u32 %v4578, 16
      %v4679 = vrot.slane %v4677, 5
      %v4680 = vsel %vm1087, %v4675, %v4679
      %v4681 = vshrl.u32 %v4578, 16
      %v4683 = vrot.slane %v4681, 4
      %v4684 = vor.u32 %v4683, %v4679
      %v4685 = vrot.slane %v4684, 4
      %v4687 = vshll.u32 %v4579, 16
      %v4689 = vrot.slane %v4687, 5
      %v4690 = vsel %vm1087, %v4685, %v4689
      %v4692 = vshrl.u32 %v4580, 16
      %v4694 = vrot.slane %v4692, 4
      %v4695 = vshll.u32 %v4580, 16
      %v4697 = vrot.slane %v4695, 5
      %v4698 = vor.u32 %v4694, %v4697
      %v4699 = vrot.slane %v4698, 4
      %v4701 = vshll.u32 %v4581, 16
      %v4703 = vrot.slane %v4701, 5
      %v4704 = vsel %vm1087, %v4699, %v4703
      %v4705 = vshrl.u32 %v4581, 16
      %v4707 = vrot.slane %v4705, 4
      %v4708 = vor.u32 %v4707, %v4703
      %v4709 = vrot.slane %v4708, 4
      %v4711 = vshll.u32 %v4582, 16
      %v4713 = vrot.slane %v4711, 5
      %v4714 = vsel %vm1087, %v4709, %v4713
      %v4716 = vshrl.u32 %v4583, 16
      %v4718 = vrot.slane %v4716, 4
      %v4719 = vshll.u32 %v4583, 16
      %v4721 = vrot.slane %v4719, 5
      %v4722 = vor.u32 %v4718, %v4721
      %v4723 = vrot.slane %v4722, 4
      %v4725 = vshll.u32 %v4584, 16
      %v4727 = vrot.slane %v4725, 5
      %v4728 = vsel %vm1087, %v4723, %v4727
      %v4729 = vshrl.u32 %v4584, 16
      %v4731 = vrot.slane %v4729, 4
      %v4732 = vor.u32 %v4731, %v4727
      %v4733 = vrot.slane %v4732, 4
      %v4735 = vshll.u32 %v4585, 16
      %v4737 = vrot.slane %v4735, 5
      %v4738 = vsel %vm1087, %v4733, %v4737
      %v4740 = vshrl.u32 %v4586, 16
      %v4742 = vrot.slane %v4740, 4
      %v4743 = vshll.u32 %v4586, 16
      %v4745 = vrot.slane %v4743, 5
      %v4746 = vor.u32 %v4742, %v4745
      %v4747 = vrot.slane %v4746, 4
      %v4749 = vshll.u32 %v4587, 16
      %v4751 = vrot.slane %v4749, 5
      %v4752 = vsel %vm1087, %v4747, %v4751
      %v4753 = vshrl.u32 %v4587, 16
      %v4755 = vrot.slane %v4753, 4
      %v4756 = vor.u32 %v4755, %v4751
      %v4757 = vrot.slane %v4756, 4
      %v4759 = vshll.u32 %v4588, 16
      %v4761 = vrot.slane %v4759, 5
      %v4762 = vsel %vm1087, %v4757, %v4761
      %v4764 = vshrl.u32 %v4589, 16
      %v4766 = vrot.slane %v4764, 4
      %v4767 = vshll.u32 %v4589, 16
      %v4769 = vrot.slane %v4767, 5
      %v4770 = vor.u32 %v4766, %v4769
      %v4771 = vrot.slane %v4770, 4
      %v4773 = vshll.u32 %v4590, 16
      %v4775 = vrot.slane %v4773, 5
      %v4776 = vsel %vm1087, %v4771, %v4775
      %v4777 = vshrl.u32 %v4590, 16
      %v4779 = vrot.slane %v4777, 4
      %v4780 = vor.u32 %v4779, %v4775
      %v4781 = vrot.slane %v4780, 4
      %v4783 = vshll.u32 %v4591, 16
      %v4785 = vrot.slane %v4783, 5
      %v4786 = vsel %vm1087, %v4781, %v4785
      %v4788 = vshrl.u32 %v4592, 16
      %v4790 = vrot.slane %v4788, 4
      %v4791 = vshll.u32 %v4592, 16
      %v4793 = vrot.slane %v4791, 5
      %v4794 = vor.u32 %v4790, %v4793
      %v4795 = vrot.slane %v4794, 4
      %v4797 = vshll.u32 %v4593, 16
      %v4799 = vrot.slane %v4797, 5
      %v4800 = vsel %vm1087, %v4795, %v4799
      %v4801 = vshrl.u32 %v4593, 16
      %v4803 = vrot.slane %v4801, 4
      %v4804 = vor.u32 %v4803, %v4799
      %v4805 = vrot.slane %v4804, 4
      %v4807 = vshll.u32 %v4594, 16
      %v4809 = vrot.slane %v4807, 5
      %v4810 = vsel %vm1087, %v4805, %v4809
      %v4812 = vshrl.u32 %v4595, 16
      %v4814 = vrot.slane %v4812, 4
      %v4815 = vshll.u32 %v4595, 16
      %v4817 = vrot.slane %v4815, 5
      %v4818 = vor.u32 %v4814, %v4817
      %v4819 = vrot.slane %v4818, 4
      %v4821 = vshll.u32 %v4596, 16
      %v4823 = vrot.slane %v4821, 5
      %v4824 = vsel %vm1087, %v4819, %v4823
      %v4825 = vshrl.u32 %v4596, 16
      %v4827 = vrot.slane %v4825, 4
      %v4828 = vor.u32 %v4827, %v4823
      %v4829 = vrot.slane %v4828, 4
      %v4831 = vshll.u32 %v4597, 16
      %v4833 = vrot.slane %v4831, 5
      %v4834 = vsel %vm1087, %v4829, %v4833
      %v4836 = vshrl.u32 %v4598, 16
      %v4838 = vrot.slane %v4836, 4
      %v4839 = vshll.u32 %v4598, 16
      %v4841 = vrot.slane %v4839, 5
      %v4842 = vor.u32 %v4838, %v4841
      %v4843 = vrot.slane %v4842, 4
      %v4845 = vshll.u32 %v4599, 16
      %v4847 = vrot.slane %v4845, 5
      %v4848 = vsel %vm1087, %v4843, %v4847
      %v4849 = vshrl.u32 %v4599, 16
      %v4851 = vrot.slane %v4849, 4
      %v4852 = vor.u32 %v4851, %v4847
      %v4853 = vrot.slane %v4852, 4
      %v4855 = vshll.u32 %v4600, 16
      %v4857 = vrot.slane %v4855, 5
      %v4858 = vsel %vm1087, %v4853, %v4857
      %v4860 = vshrl.u32 %v4601, 16
      %v4862 = vrot.slane %v4860, 4
      %v4863 = vshll.u32 %v4601, 16
      %v4865 = vrot.slane %v4863, 5
      %v4866 = vor.u32 %v4862, %v4865
      %v4867 = vrot.slane %v4866, 4
      %v4869 = vshll.u32 %v4602, 16
      %v4871 = vrot.slane %v4869, 5
      %v4872 = vsel %vm1087, %v4867, %v4871
      %v4873 = vshrl.u32 %v4602, 16
      %v4875 = vrot.slane %v4873, 4
      %v4876 = vor.u32 %v4875, %v4871
      %v4877 = vrot.slane %v4876, 4
      %v4879 = vshll.u32 %v4603, 16
      %v4881 = vrot.slane %v4879, 5
      %v4882 = vsel %vm1087, %v4877, %v4881
      %v4884 = vshrl.u32 %v4604, 16
      %v4886 = vrot.slane %v4884, 4
      %v4887 = vshll.u32 %v4604, 16
      %v4889 = vrot.slane %v4887, 5
      %v4890 = vor.u32 %v4886, %v4889
      %v4891 = vrot.slane %v4890, 4
      %v4893 = vshll.u32 %v4605, 16
      %v4895 = vrot.slane %v4893, 5
      %v4896 = vsel %vm1087, %v4891, %v4895
      %v4897 = vshrl.u32 %v4605, 16
      %v4899 = vrot.slane %v4897, 4
      %v4900 = vor.u32 %v4899, %v4895
      %v4901 = vrot.slane %v4900, 4
      %v4903 = vshll.u32 %v4606, 16
      %v4905 = vrot.slane %v4903, 5
      %v4906 = vsel %vm1087, %v4901, %v4905
      %v4908 = vshrl.u32 %v4607, 16
      %v4910 = vrot.slane %v4908, 4
      %v4911 = vshll.u32 %v4607, 16
      %v4913 = vrot.slane %v4911, 5
      %v4914 = vor.u32 %v4910, %v4913
      %v4915 = vrot.slane %v4914, 4
      %v4917 = vshll.u32 %v4608, 16
      %v4919 = vrot.slane %v4917, 5
      %v4920 = vsel %vm1087, %v4915, %v4919
      %v4921 = vshrl.u32 %v4608, 16
      %v4923 = vrot.slane %v4921, 4
      %v4924 = vor.u32 %v4923, %v4919
      %v4925 = vrot.slane %v4924, 4
      %v4927 = vshll.u32 %v4609, 16
      %v4929 = vrot.slane %v4927, 5
      %v4930 = vsel %vm1087, %v4925, %v4929
      %v4932 = vshrl.u32 %v4610, 16
      %v4934 = vrot.slane %v4932, 4
      %v4935 = vshll.u32 %v4610, 16
      %v4937 = vrot.slane %v4935, 5
      %v4938 = vor.u32 %v4934, %v4937
      %v4939 = vrot.slane %v4938, 4
      %v4941 = vshll.u32 %v4611, 16
      %v4943 = vrot.slane %v4941, 5
      %v4944 = vsel %vm1087, %v4939, %v4943
      %v4945 = vshrl.u32 %v4611, 16
      %v4947 = vrot.slane %v4945, 4
      %v4948 = vor.u32 %v4947, %v4943
      %v4949 = vrot.slane %v4948, 4
      %v4951 = vshll.u32 %v4612, 16
      %v4953 = vrot.slane %v4951, 5
      %v4954 = vsel %vm1087, %v4949, %v4953
      %v4956 = vshrl.u32 %v4613, 16
      %v4958 = vrot.slane %v4956, 4
      %v4959 = vshll.u32 %v4613, 16
      %v4961 = vrot.slane %v4959, 5
      %v4962 = vor.u32 %v4958, %v4961
      %v4963 = vrot.slane %v4962, 4
      %v4965 = vshll.u32 %v4614, 16
      %v4967 = vrot.slane %v4965, 5
      %v4968 = vsel %vm1087, %v4963, %v4967
      %v4969 = vshrl.u32 %v4614, 16
      %v4971 = vrot.slane %v4969, 4
      %v4972 = vor.u32 %v4971, %v4967
      %v4973 = vrot.slane %v4972, 4
      %v4975 = vshll.u32 %v4615, 16
      %v4977 = vrot.slane %v4975, 5
      %v4978 = vsel %vm1087, %v4973, %v4977
      %v4980 = vshrl.u32 %v4616, 16
      %v4982 = vrot.slane %v4980, 4
      %v4983 = vshll.u32 %v4616, 16
      %v4985 = vrot.slane %v4983, 5
      %v4986 = vor.u32 %v4982, %v4985
      %v4987 = vrot.slane %v4986, 4
      %v4989 = vshll.u32 %v4617, 16
      %v4991 = vrot.slane %v4989, 5
      %v4992 = vsel %vm1087, %v4987, %v4991
      %v4993 = vshrl.u32 %v4617, 16
      %v4995 = vrot.slane %v4993, 4
      %v4996 = vor.u32 %v4995, %v4991
      %v4997 = vrot.slane %v4996, 4
      %v4999 = vshll.u32 %v4618, 16
      %v5001 = vrot.slane %v4999, 5
      %v5002 = vsel %vm1087, %v4997, %v5001
      %v5003 = vld [vmem:[%s1 + $0x1c0] sm:$0xf]
      %v5004 = vld [vmem:[%s1 + $0x1c4] sm:$0xf]
      %v5005 = vld [vmem:[%s1 + $0x1c8] sm:$0xf]
      %v5006 = vld [vmem:[%s1 + $0x1cc] sm:$0xf]
      %v5007 = vld [vmem:[%s1 + $0x1d0] sm:$0xf]
      %v5008 = vld [vmem:[%s1 + $0x1d4] sm:$0xf]
      %v5009 = vld [vmem:[%s1 + $0x1d8] sm:$0xf]
      %v5010 = vld [vmem:[%s1 + $0x1dc] sm:$0xf]
      %v5011 = vld [vmem:[%s1 + $0x1e0] sm:$0xf]
      %v5012 = vld [vmem:[%s1 + $0x1e4] sm:$0xf]
      %v5013 = vld [vmem:[%s1 + $0x1e8] sm:$0xf]
      %v5014 = vld [vmem:[%s1 + $0x1ec] sm:$0xf]
      %v5015 = vld [vmem:[%s1 + $0x1f0] sm:$0xf]
      %v5016 = vld [vmem:[%s1 + $0x1f4] sm:$0xf]
      %v5017 = vld [vmem:[%s1 + $0x1f8] sm:$0xf]
      %v5018 = vld [vmem:[%s1 + $0x1fc] sm:$0xf]
      %v5019 = vunpack.c.l.b16 %v4632
      %v5020 = vunpack.c.l.b16 %v4642
      %v5021 = vunpack.c.l.b16 %v4656
      %v5022 = vunpack.c.l.b16 %v4666
      %v5023 = vunpack.c.l.b16 %v4680
      %v5024 = vunpack.c.l.b16 %v4690
      %v5025 = vunpack.c.l.b16 %v4704
      %v5026 = vunpack.c.l.b16 %v4714
      %v5027 = vunpack.c.l.b16 %v4728
      %v5028 = vunpack.c.l.b16 %v4738
      %v5029 = vunpack.c.l.b16 %v4752
      %v5030 = vunpack.c.l.b16 %v4762
      %v5031 = vunpack.c.l.b16 %v4776
      %v5032 = vunpack.c.l.b16 %v4786
      %v5033 = vunpack.c.l.b16 %v4800
      %v5034 = vunpack.c.l.b16 %v4810
      %v5035 = vunpack.c.l.b16 %v4824
      %v5036 = vunpack.c.l.b16 %v4834
      %v5037 = vunpack.c.l.b16 %v4848
      %v5038 = vunpack.c.l.b16 %v4858
      %v5039 = vunpack.c.l.b16 %v4872
      %v5040 = vunpack.c.l.b16 %v4882
      %v5041 = vunpack.c.l.b16 %v4896
      %v5042 = vunpack.c.l.b16 %v4906
      %v5043 = vunpack.c.l.b16 %v4920
      %v5044 = vunpack.c.l.b16 %v4930
      %v5045 = vunpack.c.l.b16 %v4944
      %v5046 = vunpack.c.l.b16 %v4954
      %v5047 = vunpack.c.l.b16 %v4968
      %v5048 = vunpack.c.l.b16 %v4978
      %v5049 = vunpack.c.l.b16 %v4992
      %v5050 = vunpack.c.l.b16 %v5002
      %v5051 = vpack.c.b16 %v5020, %v5019
      %v5052 = vpack.c.b16 %v5022, %v5021
      %v5053 = vpack.c.b16 %v5024, %v5023
      %v5054 = vpack.c.b16 %v5026, %v5025
      %v5055 = vpack.c.b16 %v5028, %v5027
      %v5056 = vpack.c.b16 %v5030, %v5029
      %v5057 = vpack.c.b16 %v5032, %v5031
      %v5058 = vpack.c.b16 %v5034, %v5033
      %v5059 = vpack.c.b16 %v5036, %v5035
      %v5060 = vpack.c.b16 %v5038, %v5037
      %v5061 = vpack.c.b16 %v5040, %v5039
      %v5062 = vpack.c.b16 %v5042, %v5041
      %v5063 = vpack.c.b16 %v5044, %v5043
      %v5064 = vpack.c.b16 %v5046, %v5045
      %v5065 = vpack.c.b16 %v5048, %v5047
      %v5066 = vpack.c.b16 %v5050, %v5049
      %v5099 = vunpack.c.l.b16 %v5003
      %v5100 = vunpack.c.l.b16 %v5004
      %v5101 = vunpack.c.l.b16 %v5005
      %v5102 = vunpack.c.l.b16 %v5006
      %v5103 = vunpack.c.l.b16 %v5007
      %v5104 = vunpack.c.l.b16 %v5008
      %v5105 = vunpack.c.l.b16 %v5009
      %v5106 = vunpack.c.l.b16 %v5010
      %v5107 = vunpack.c.l.b16 %v5011
      %v5108 = vunpack.c.l.b16 %v5012
      %v5109 = vunpack.c.l.b16 %v5013
      %v5110 = vunpack.c.l.b16 %v5014
      %v5111 = vunpack.c.l.b16 %v5015
      %v5112 = vunpack.c.l.b16 %v5016
      %v5113 = vunpack.c.l.b16 %v5017
      %v5114 = vunpack.c.l.b16 %v5018
      %v5115 = vpack.c.b16 %v5100, %v5099
      %v5116 = vpack.c.b16 %v5102, %v5101
      %v5117 = vpack.c.b16 %v5104, %v5103
      %v5118 = vpack.c.b16 %v5106, %v5105
      %v5119 = vpack.c.b16 %v5108, %v5107
      %v5120 = vpack.c.b16 %v5110, %v5109
      %v5121 = vpack.c.b16 %v5112, %v5111
      %v5122 = vpack.c.b16 %v5114, %v5113
      %5131 = vmatprep.subr.bf16.mxu0 0
      %5132 = vmatpush1.bf16.msra.mxu0 %v5115
      %5133 = vmatprep.subr.bf16.mxu0 0
      %5134 = vmatpush1.bf16.msra.mxu0 %v5116
      %5135 = vmatprep.subr.bf16.mxu0 0
      %5136 = vmatpush1.bf16.msra.mxu0 %v5117
      %5137 = vmatprep.subr.bf16.mxu0 0
      %5138 = vmatpush1.bf16.msra.mxu0 %v5118
      %5139 = vmatprep.subr.bf16.mxu0 0
      %5140 = vmatpush1.bf16.msra.mxu0 %v5119
      %5141 = vmatprep.subr.bf16.mxu0 0
      %5142 = vmatpush1.bf16.msra.mxu0 %v5120
      %5143 = vmatprep.subr.bf16.mxu0 0
      %5144 = vmatpush1.bf16.msra.mxu0 %v5121
      %5145 = vmatprep.subr.bf16.mxu0 0
      %5146 = vmatpush1.bf16.msra.mxu0 %v5122
      %5147 = vmatprep.subr.bf16.mxu0 0
      %5148 = vmatpush1.bf16.msra.mxu0 0
      %5149 = vmatprep.subr.bf16.mxu0 0
      %5150 = vmatpush1.bf16.msra.mxu0 0
      %5151 = vmatprep.subr.bf16.mxu0 0
      %5152 = vmatpush1.bf16.msra.mxu0 0
      %5153 = vmatprep.subr.bf16.mxu0 0
      %5154 = vmatpush1.bf16.msra.mxu0 0
      %5155 = vmatprep.subr.bf16.mxu0 0
      %5156 = vmatpush1.bf16.msra.mxu0 0
      %5157 = vmatprep.subr.bf16.mxu0 0
      %5158 = vmatpush1.bf16.msra.mxu0 0
      %5159 = vmatprep.subr.bf16.mxu0 0
      %5160 = vmatpush1.bf16.msra.mxu0 0
      %5161 = vmatprep.subr.bf16.mxu0 0
      %5162 = vmatpush1.bf16.msra.mxu0 0
      %5163 = vmatprep.mubr.bf16.mxu0 0
      %5164 = vmatmul.mubr.bf16.gmra.mrb[0].mxu0 %v5051
      %v5165 = vpop.f32.mrb[0].mxu0
      %v5166 = vadd.f32 0.0, %v5165
      %v5167 = vpop.f32.mrb[0].mxu0
      %v5168 = vpop.f32.mrb[0].mxu0
      %v5169 = vadd.f32 0.0, %v5168
      %v5170 = vpop.f32.mrb[0].mxu0
      %5171 = vmatprep.mubr.bf16.mxu0 0
      %5172 = vmatmul.mubr.bf16.gmra.mrb[0].mxu0 %v5052
      %v5173 = vpop.f32.mrb[0].mxu0
      %v5174 = vadd.f32 0.0, %v5173
      %v5175 = vpop.f32.mrb[0].mxu0
      %v5176 = vpop.f32.mrb[0].mxu0
      %v5177 = vadd.f32 0.0, %v5176
      %v5178 = vpop.f32.mrb[0].mxu0
      %5179 = vmatprep.mubr.bf16.mxu0 0
      %5180 = vmatmul.mubr.bf16.gmra.mrb[0].mxu0 %v5053
      %v5181 = vpop.f32.mrb[0].mxu0
      %v5182 = vadd.f32 0.0, %v5181
      %v5183 = vpop.f32.mrb[0].mxu0
      %v5184 = vpop.f32.mrb[0].mxu0
      %v5185 = vadd.f32 0.0, %v5184
      %v5186 = vpop.f32.mrb[0].mxu0
      %5187 = vmatprep.mubr.bf16.mxu0 0
      %5188 = vmatmul.mubr.bf16.gmra.mrb[0].mxu0 %v5054
      %v5189 = vpop.f32.mrb[0].mxu0
      %v5190 = vadd.f32 0.0, %v5189
      %v5191 = vpop.f32.mrb[0].mxu0
      %v5192 = vpop.f32.mrb[0].mxu0
      %v5193 = vadd.f32 0.0, %v5192
      %v5194 = vpop.f32.mrb[0].mxu0
      %5195 = vmatprep.mubr.bf16.mxu0 0
      %5196 = vmatmul.mubr.bf16.gmra.mrb[0].mxu0 %v5055
      %v5197 = vpop.f32.mrb[0].mxu0
      %v5198 = vadd.f32 0.0, %v5197
      %v5199 = vpop.f32.mrb[0].mxu0
      %v5200 = vpop.f32.mrb[0].mxu0
      %v5201 = vadd.f32 0.0, %v5200
      %v5202 = vpop.f32.mrb[0].mxu0
      %5203 = vmatprep.mubr.bf16.mxu0 0
      %5204 = vmatmul.mubr.bf16.gmra.mrb[0].mxu0 %v5056
      %v5205 = vpop.f32.mrb[0].mxu0
      %v5206 = vadd.f32 0.0, %v5205
      %v5207 = vpop.f32.mrb[0].mxu0
      %v5208 = vpop.f32.mrb[0].mxu0
      %v5209 = vadd.f32 0.0, %v5208
      %v5210 = vpop.f32.mrb[0].mxu0
      %5211 = vmatprep.mubr.bf16.mxu0 0
      %5212 = vmatmul.mubr.bf16.gmra.mrb[0].mxu0 %v5057
      %v5213 = vpop.f32.mrb[0].mxu0
      %v5214 = vadd.f32 0.0, %v5213
      %v5215 = vpop.f32.mrb[0].mxu0
      %v5216 = vpop.f32.mrb[0].mxu0
      %v5217 = vadd.f32 0.0, %v5216
      %v5218 = vpop.f32.mrb[0].mxu0
      %5219 = vmatprep.mubr.bf16.mxu0 0
      %5220 = vmatmul.mubr.bf16.gmra.mrb[0].mxu0 %v5058
      %v5221 = vpop.f32.mrb[0].mxu0
      %v5222 = vadd.f32 0.0, %v5221
      %v5223 = vpop.f32.mrb[0].mxu0
      %v5224 = vpop.f32.mrb[0].mxu0
      %v5225 = vadd.f32 0.0, %v5224
      %v5226 = vpop.f32.mrb[0].mxu0
      %5227 = vmatprep.mubr.bf16.mxu0 0
      %5228 = vmatmul.mubr.bf16.gmra.mrb[0].mxu0 %v5059
      %v5229 = vpop.f32.mrb[0].mxu0
      %v5230 = vadd.f32 0.0, %v5229
      %v5231 = vpop.f32.mrb[0].mxu0
      %v5232 = vpop.f32.mrb[0].mxu0
      %v5233 = vadd.f32 0.0, %v5232
      %v5234 = vpop.f32.mrb[0].mxu0
      %5235 = vmatprep.mubr.bf16.mxu0 0
      %5236 = vmatmul.mubr.bf16.gmra.mrb[0].mxu0 %v5060
      %v5237 = vpop.f32.mrb[0].mxu0
      %v5238 = vadd.f32 0.0, %v5237
      %v5239 = vpop.f32.mrb[0].mxu0
      %v5240 = vpop.f32.mrb[0].mxu0
      %v5241 = vadd.f32 0.0, %v5240
      %v5242 = vpop.f32.mrb[0].mxu0
      %5243 = vmatprep.mubr.bf16.mxu0 0
      %5244 = vmatmul.mubr.bf16.gmra.mrb[0].mxu0 %v5061
      %v5245 = vpop.f32.mrb[0].mxu0
      %v5246 = vadd.f32 0.0, %v5245
      %v5247 = vpop.f32.mrb[0].mxu0
      %v5248 = vpop.f32.mrb[0].mxu0
      %v5249 = vadd.f32 0.0, %v5248
      %v5250 = vpop.f32.mrb[0].mxu0
      %5251 = vmatprep.mubr.bf16.mxu0 0
      %5252 = vmatmul.mubr.bf16.gmra.mrb[0].mxu0 %v5062
      %v5253 = vpop.f32.mrb[0].mxu0
      %v5254 = vadd.f32 0.0, %v5253
      %v5255 = vpop.f32.mrb[0].mxu0
      %v5256 = vpop.f32.mrb[0].mxu0
      %v5257 = vadd.f32 0.0, %v5256
      %v5258 = vpop.f32.mrb[0].mxu0
      %5259 = vmatprep.mubr.bf16.mxu0 0
      %5260 = vmatmul.mubr.bf16.gmra.mrb[0].mxu0 %v5063
      %v5261 = vpop.f32.mrb[0].mxu0
      %v5262 = vadd.f32 0.0, %v5261
      %v5263 = vpop.f32.mrb[0].mxu0
      %v5264 = vpop.f32.mrb[0].mxu0
      %v5265 = vadd.f32 0.0, %v5264
      %v5266 = vpop.f32.mrb[0].mxu0
      %5267 = vmatprep.mubr.bf16.mxu0 0
      %5268 = vmatmul.mubr.bf16.gmra.mrb[0].mxu0 %v5064
      %v5269 = vpop.f32.mrb[0].mxu0
      %v5270 = vadd.f32 0.0, %v5269
      %v5271 = vpop.f32.mrb[0].mxu0
      %v5272 = vpop.f32.mrb[0].mxu0
      %v5273 = vadd.f32 0.0, %v5272
      %v5274 = vpop.f32.mrb[0].mxu0
      %5275 = vmatprep.mubr.bf16.mxu0 0
      %5276 = vmatmul.mubr.bf16.gmra.mrb[0].mxu0 %v5065
      %v5277 = vpop.f32.mrb[0].mxu0
      %v5278 = vadd.f32 0.0, %v5277
      %v5279 = vpop.f32.mrb[0].mxu0
      %v5280 = vpop.f32.mrb[0].mxu0
      %v5281 = vadd.f32 0.0, %v5280
      %v5282 = vpop.f32.mrb[0].mxu0
      %5283 = vmatprep.mubr.bf16.mxu0 0
      %5284 = vmatmul.mubr.bf16.gmra.mrb[0].mxu0 %v5066
      %v5285 = vpop.f32.mrb[0].mxu0
      %v5286 = vadd.f32 0.0, %v5285
      %v5287 = vpop.f32.mrb[0].mxu0
      %v5288 = vpop.f32.mrb[0].mxu0
      %v5289 = vadd.f32 0.0, %v5288
      %v5290 = vpop.f32.mrb[0].mxu0
      %5291 = vdwg.mxu0
      %v5292 = vadd.f32 %v4539, %v5166
      %v5293 = vadd.f32 %v4540, %v5169
      %v5294 = vadd.f32 %v4541, %v5174
      %v5295 = vadd.f32 %v4542, %v5177
      %v5296 = vadd.f32 %v4543, %v5182
      %v5297 = vadd.f32 %v4544, %v5185
      %v5298 = vadd.f32 %v4545, %v5190
      %v5299 = vadd.f32 %v4546, %v5193
      %v5300 = vadd.f32 %v4547, %v5198
      %v5301 = vadd.f32 %v4548, %v5201
      %v5302 = vadd.f32 %v4549, %v5206
      %v5303 = vadd.f32 %v4550, %v5209
      %v5304 = vadd.f32 %v4551, %v5214
      %v5305 = vadd.f32 %v4552, %v5217
      %v5306 = vadd.f32 %v4553, %v5222
      %v5307 = vadd.f32 %v4554, %v5225
      %v5308 = vadd.f32 %v4555, %v5230
      %v5309 = vadd.f32 %v4556, %v5233
      %v5310 = vadd.f32 %v4557, %v5238
      %v5311 = vadd.f32 %v4558, %v5241
      %v5312 = vadd.f32 %v4559, %v5246
      %v5313 = vadd.f32 %v4560, %v5249
      %v5314 = vadd.f32 %v4561, %v5254
      %v5315 = vadd.f32 %v4562, %v5257
      %v5316 = vadd.f32 %v4563, %v5262
      %v5317 = vadd.f32 %v4564, %v5265
      %v5318 = vadd.f32 %v4565, %v5270
      %v5319 = vadd.f32 %v4566, %v5273
      %v5320 = vadd.f32 %v4567, %v5278
      %v5321 = vadd.f32 %v4568, %v5281
      %v5322 = vadd.f32 %v4569, %v5286
      %v5323 = vadd.f32 %v4570, %v5289
      %v5324 = vld [vmem:[%s4185] sm:$0xe]
      %v5325 = vld [vmem:[%s4185 + $0xc] sm:$0xe]
      %v5326 = vld [vmem:[%s4185 + $0x18] sm:$0xe]
      %v5327 = vld [vmem:[%s4185 + $0x24] sm:$0xe]
      %v5328 = vld [vmem:[%s4185 + $0x30] sm:$0xe]
      %v5329 = vld [vmem:[%s4185 + $0x3c] sm:$0xe]
      %v5330 = vld [vmem:[%s4185 + $0x48] sm:$0xe]
      %v5331 = vld [vmem:[%s4185 + $0x54] sm:$0xe]
      %v5332 = vld [vmem:[%s4185 + $0x60] sm:$0xe]
      %v5333 = vld [vmem:[%s4185 + $0x6c] sm:$0xe]
      %v5334 = vld [vmem:[%s4185 + $0x78] sm:$0xe]
      %v5335 = vld [vmem:[%s4185 + $0x84] sm:$0xe]
      %v5336 = vld [vmem:[%s4185 + $0x90] sm:$0xe]
      %v5337 = vld [vmem:[%s4185 + $0x9c] sm:$0xe]
      %v5338 = vld [vmem:[%s4185 + $0xa8] sm:$0xe]
      %v5339 = vld [vmem:[%s4185 + $0xb4] sm:$0xe]
      %v5388 = vrot.slane %v5324, 5
      %v5389 = vrot.slane %v5388, 4
      %v5390 = vrot.slane %v4572, 5
      %v5391 = vsel %vm2116, %v5389, %v5390
      %v5392 = vrot.slane %v5390, 4
      %v5393 = vrot.slane %v4573, 5
      %v5394 = vsel %vm2116, %v5392, %v5393
      %v5395 = vrot.slane %v5325, 5
      %v5396 = vrot.slane %v5395, 4
      %v5397 = vrot.slane %v4575, 5
      %v5398 = vsel %vm2116, %v5396, %v5397
      %v5399 = vrot.slane %v5397, 4
      %v5400 = vrot.slane %v4576, 5
      %v5401 = vsel %vm2116, %v5399, %v5400
      %v5402 = vrot.slane %v5326, 5
      %v5403 = vrot.slane %v5402, 4
      %v5404 = vrot.slane %v4578, 5
      %v5405 = vsel %vm2116, %v5403, %v5404
      %v5406 = vrot.slane %v5404, 4
      %v5407 = vrot.slane %v4579, 5
      %v5408 = vsel %vm2116, %v5406, %v5407
      %v5409 = vrot.slane %v5327, 5
      %v5410 = vrot.slane %v5409, 4
      %v5411 = vrot.slane %v4581, 5
      %v5412 = vsel %vm2116, %v5410, %v5411
      %v5413 = vrot.slane %v5411, 4
      %v5414 = vrot.slane %v4582, 5
      %v5415 = vsel %vm2116, %v5413, %v5414
      %v5416 = vrot.slane %v5328, 5
      %v5417 = vrot.slane %v5416, 4
      %v5418 = vrot.slane %v4584, 5
      %v5419 = vsel %vm2116, %v5417, %v5418
      %v5420 = vrot.slane %v5418, 4
      %v5421 = vrot.slane %v4585, 5
      %v5422 = vsel %vm2116, %v5420, %v5421
      %v5423 = vrot.slane %v5329, 5
      %v5424 = vrot.slane %v5423, 4
      %v5425 = vrot.slane %v4587, 5
      %v5426 = vsel %vm2116, %v5424, %v5425
      %v5427 = vrot.slane %v5425, 4
      %v5428 = vrot.slane %v4588, 5
      %v5429 = vsel %vm2116, %v5427, %v5428
      %v5430 = vrot.slane %v5330, 5
      %v5431 = vrot.slane %v5430, 4
      %v5432 = vrot.slane %v4590, 5
      %v5433 = vsel %vm2116, %v5431, %v5432
      %v5434 = vrot.slane %v5432, 4
      %v5435 = vrot.slane %v4591, 5
      %v5436 = vsel %vm2116, %v5434, %v5435
      %v5437 = vrot.slane %v5331, 5
      %v5438 = vrot.slane %v5437, 4
      %v5439 = vrot.slane %v4593, 5
      %v5440 = vsel %vm2116, %v5438, %v5439
      %v5441 = vrot.slane %v5439, 4
      %v5442 = vrot.slane %v4594, 5
      %v5443 = vsel %vm2116, %v5441, %v5442
      %v5444 = vrot.slane %v5332, 5
      %v5445 = vrot.slane %v5444, 4
      %v5446 = vrot.slane %v4596, 5
      %v5447 = vsel %vm2116, %v5445, %v5446
      %v5448 = vrot.slane %v5446, 4
      %v5449 = vrot.slane %v4597, 5
      %v5450 = vsel %vm2116, %v5448, %v5449
      %v5451 = vrot.slane %v5333, 5
      %v5452 = vrot.slane %v5451, 4
      %v5453 = vrot.slane %v4599, 5
      %v5454 = vsel %vm2116, %v5452, %v5453
      %v5455 = vrot.slane %v5453, 4
      %v5456 = vrot.slane %v4600, 5
      %v5457 = vsel %vm2116, %v5455, %v5456
      %v5458 = vrot.slane %v5334, 5
      %v5459 = vrot.slane %v5458, 4
      %v5460 = vrot.slane %v4602, 5
      %v5461 = vsel %vm2116, %v5459, %v5460
      %v5462 = vrot.slane %v5460, 4
      %v5463 = vrot.slane %v4603, 5
      %v5464 = vsel %vm2116, %v5462, %v5463
      %v5465 = vrot.slane %v5335, 5
      %v5466 = vrot.slane %v5465, 4
      %v5467 = vrot.slane %v4605, 5
      %v5468 = vsel %vm2116, %v5466, %v5467
      %v5469 = vrot.slane %v5467, 4
      %v5470 = vrot.slane %v4606, 5
      %v5471 = vsel %vm2116, %v5469, %v5470
      %v5472 = vrot.slane %v5336, 5
      %v5473 = vrot.slane %v5472, 4
      %v5474 = vrot.slane %v4608, 5
      %v5475 = vsel %vm2116, %v5473, %v5474
      %v5476 = vrot.slane %v5474, 4
      %v5477 = vrot.slane %v4609, 5
      %v5478 = vsel %vm2116, %v5476, %v5477
      %v5479 = vrot.slane %v5337, 5
      %v5480 = vrot.slane %v5479, 4
      %v5481 = vrot.slane %v4611, 5
      %v5482 = vsel %vm2116, %v5480, %v5481
      %v5483 = vrot.slane %v5481, 4
      %v5484 = vrot.slane %v4612, 5
      %v5485 = vsel %vm2116, %v5483, %v5484
      %v5486 = vrot.slane %v5338, 5
      %v5487 = vrot.slane %v5486, 4
      %v5488 = vrot.slane %v4614, 5
      %v5489 = vsel %vm2116, %v5487, %v5488
      %v5490 = vrot.slane %v5488, 4
      %v5491 = vrot.slane %v4615, 5
      %v5492 = vsel %vm2116, %v5490, %v5491
      %v5493 = vrot.slane %v5339, 5
      %v5494 = vrot.slane %v5493, 4
      %v5495 = vrot.slane %v4617, 5
      %v5496 = vsel %vm2116, %v5494, %v5495
      %v5497 = vrot.slane %v5495, 4
      %v5498 = vrot.slane %v4618, 5
      %v5499 = vsel %vm2116, %v5497, %v5498
      %v5500 = vld [vmem:[%s1 + $0x200] sm:$0xf]
      %v5501 = vld [vmem:[%s1 + $0x204] sm:$0xf]
      %v5502 = vld [vmem:[%s1 + $0x208] sm:$0xf]
      %v5503 = vld [vmem:[%s1 + $0x20c] sm:$0xf]
      %v5504 = vld [vmem:[%s1 + $0x210] sm:$0xf]
      %v5505 = vld [vmem:[%s1 + $0x214] sm:$0xf]
      %v5506 = vld [vmem:[%s1 + $0x218] sm:$0xf]
      %v5507 = vld [vmem:[%s1 + $0x21c] sm:$0xf]
      %v5508 = vld [vmem:[%s1 + $0x220] sm:$0xf]
      %v5509 = vld [vmem:[%s1 + $0x224] sm:$0xf]
      %v5510 = vld [vmem:[%s1 + $0x228] sm:$0xf]
      %v5511 = vld [vmem:[%s1 + $0x22c] sm:$0xf]
      %v5512 = vld [vmem:[%s1 + $0x230] sm:$0xf]
      %v5513 = vld [vmem:[%s1 + $0x234] sm:$0xf]
      %v5514 = vld [vmem:[%s1 + $0x238] sm:$0xf]
      %v5515 = vld [vmem:[%s1 + $0x23c] sm:$0xf]
      %v5516 = vunpack.c.l.b16 %v5391
      %v5517 = vunpack.c.l.b16 %v5394
      %v5518 = vunpack.c.l.b16 %v5398
      %v5519 = vunpack.c.l.b16 %v5401
      %v5520 = vunpack.c.l.b16 %v5405
      %v5521 = vunpack.c.l.b16 %v5408
      %v5522 = vunpack.c.l.b16 %v5412
      %v5523 = vunpack.c.l.b16 %v5415
      %v5524 = vunpack.c.l.b16 %v5419
      %v5525 = vunpack.c.l.b16 %v5422
      %v5526 = vunpack.c.l.b16 %v5426
      %v5527 = vunpack.c.l.b16 %v5429
      %v5528 = vunpack.c.l.b16 %v5433
      %v5529 = vunpack.c.l.b16 %v5436
      %v5530 = vunpack.c.l.b16 %v5440
      %v5531 = vunpack.c.l.b16 %v5443
      %v5532 = vunpack.c.l.b16 %v5447
      %v5533 = vunpack.c.l.b16 %v5450
      %v5534 = vunpack.c.l.b16 %v5454
      %v5535 = vunpack.c.l.b16 %v5457
      %v5536 = vunpack.c.l.b16 %v5461
      %v5537 = vunpack.c.l.b16 %v5464
      %v5538 = vunpack.c.l.b16 %v5468
      %v5539 = vunpack.c.l.b16 %v5471
      %v5540 = vunpack.c.l.b16 %v5475
      %v5541 = vunpack.c.l.b16 %v5478
      %v5542 = vunpack.c.l.b16 %v5482
      %v5543 = vunpack.c.l.b16 %v5485
      %v5544 = vunpack.c.l.b16 %v5489
      %v5545 = vunpack.c.l.b16 %v5492
      %v5546 = vunpack.c.l.b16 %v5496
      %v5547 = vunpack.c.l.b16 %v5499
      %v5548 = vpack.c.b16 %v5517, %v5516
      %v5549 = vpack.c.b16 %v5519, %v5518
      %v5550 = vpack.c.b16 %v5521, %v5520
      %v5551 = vpack.c.b16 %v5523, %v5522
      %v5552 = vpack.c.b16 %v5525, %v5524
      %v5553 = vpack.c.b16 %v5527, %v5526
      %v5554 = vpack.c.b16 %v5529, %v5528
      %v5555 = vpack.c.b16 %v5531, %v5530
      %v5556 = vpack.c.b16 %v5533, %v5532
      %v5557 = vpack.c.b16 %v5535, %v5534
      %v5558 = vpack.c.b16 %v5537, %v5536
      %v5559 = vpack.c.b16 %v5539, %v5538
      %v5560 = vpack.c.b16 %v5541, %v5540
      %v5561 = vpack.c.b16 %v5543, %v5542
      %v5562 = vpack.c.b16 %v5545, %v5544
      %v5563 = vpack.c.b16 %v5547, %v5546
      %v5596 = vunpack.c.l.b16 %v5500
      %v5597 = vunpack.c.l.b16 %v5501
      %v5598 = vunpack.c.l.b16 %v5502
      %v5599 = vunpack.c.l.b16 %v5503
      %v5600 = vunpack.c.l.b16 %v5504
      %v5601 = vunpack.c.l.b16 %v5505
      %v5602 = vunpack.c.l.b16 %v5506
      %v5603 = vunpack.c.l.b16 %v5507
      %v5604 = vunpack.c.l.b16 %v5508
      %v5605 = vunpack.c.l.b16 %v5509
      %v5606 = vunpack.c.l.b16 %v5510
      %v5607 = vunpack.c.l.b16 %v5511
      %v5608 = vunpack.c.l.b16 %v5512
      %v5609 = vunpack.c.l.b16 %v5513
      %v5610 = vunpack.c.l.b16 %v5514
      %v5611 = vunpack.c.l.b16 %v5515
      %v5612 = vpack.c.b16 %v5597, %v5596
      %v5613 = vpack.c.b16 %v5599, %v5598
      %v5614 = vpack.c.b16 %v5601, %v5600
      %v5615 = vpack.c.b16 %v5603, %v5602
      %v5616 = vpack.c.b16 %v5605, %v5604
      %v5617 = vpack.c.b16 %v5607, %v5606
      %v5618 = vpack.c.b16 %v5609, %v5608
      %v5619 = vpack.c.b16 %v5611, %v5610
      %5628 = vmatprep.subr.bf16.mxu0 0
      %5629 = vmatpush1.bf16.msra.mxu0 %v5612
      %5630 = vmatprep.subr.bf16.mxu0 0
      %5631 = vmatpush1.bf16.msra.mxu0 %v5613
      %5632 = vmatprep.subr.bf16.mxu0 0
      %5633 = vmatpush1.bf16.msra.mxu0 %v5614
      %5634 = vmatprep.subr.bf16.mxu0 0
      %5635 = vmatpush1.bf16.msra.mxu0 %v5615
      %5636 = vmatprep.subr.bf16.mxu0 0
      %5637 = vmatpush1.bf16.msra.mxu0 %v5616
      %5638 = vmatprep.subr.bf16.mxu0 0
      %5639 = vmatpush1.bf16.msra.mxu0 %v5617
      %5640 = vmatprep.subr.bf16.mxu0 0
      %5641 = vmatpush1.bf16.msra.mxu0 %v5618
      %5642 = vmatprep.subr.bf16.mxu0 0
      %5643 = vmatpush1.bf16.msra.mxu0 %v5619
      %5644 = vmatprep.subr.bf16.mxu0 0
      %5645 = vmatpush1.bf16.msra.mxu0 0
      %5646 = vmatprep.subr.bf16.mxu0 0
      %5647 = vmatpush1.bf16.msra.mxu0 0
      %5648 = vmatprep.subr.bf16.mxu0 0
      %5649 = vmatpush1.bf16.msra.mxu0 0
      %5650 = vmatprep.subr.bf16.mxu0 0
      %5651 = vmatpush1.bf16.msra.mxu0 0
      %5652 = vmatprep.subr.bf16.mxu0 0
      %5653 = vmatpush1.bf16.msra.mxu0 0
      %5654 = vmatprep.subr.bf16.mxu0 0
      %5655 = vmatpush1.bf16.msra.mxu0 0
      %5656 = vmatprep.subr.bf16.mxu0 0
      %5657 = vmatpush1.bf16.msra.mxu0 0
      %5658 = vmatprep.subr.bf16.mxu0 0
      %5659 = vmatpush1.bf16.msra.mxu0 0
      %5660 = vmatprep.mubr.bf16.mxu0 0
      %5661 = vmatmul.mubr.bf16.gmra.mrb[0].mxu0 %v5548
      %v5662 = vpop.f32.mrb[0].mxu0
      %v5663 = vadd.f32 0.0, %v5662
      %v5664 = vpop.f32.mrb[0].mxu0
      %v5665 = vpop.f32.mrb[0].mxu0
      %v5666 = vadd.f32 0.0, %v5665
      %v5667 = vpop.f32.mrb[0].mxu0
      %5668 = vmatprep.mubr.bf16.mxu0 0
      %5669 = vmatmul.mubr.bf16.gmra.mrb[0].mxu0 %v5549
      %v5670 = vpop.f32.mrb[0].mxu0
      %v5671 = vadd.f32 0.0, %v5670
      %v5672 = vpop.f32.mrb[0].mxu0
      %v5673 = vpop.f32.mrb[0].mxu0
      %v5674 = vadd.f32 0.0, %v5673
      %v5675 = vpop.f32.mrb[0].mxu0
      %5676 = vmatprep.mubr.bf16.mxu0 0
      %5677 = vmatmul.mubr.bf16.gmra.mrb[0].mxu0 %v5550
      %v5678 = vpop.f32.mrb[0].mxu0
      %v5679 = vadd.f32 0.0, %v5678
      %v5680 = vpop.f32.mrb[0].mxu0
      %v5681 = vpop.f32.mrb[0].mxu0
      %v5682 = vadd.f32 0.0, %v5681
      %v5683 = vpop.f32.mrb[0].mxu0
      %5684 = vmatprep.mubr.bf16.mxu0 0
      %5685 = vmatmul.mubr.bf16.gmra.mrb[0].mxu0 %v5551
      %v5686 = vpop.f32.mrb[0].mxu0
      %v5687 = vadd.f32 0.0, %v5686
      %v5688 = vpop.f32.mrb[0].mxu0
      %v5689 = vpop.f32.mrb[0].mxu0
      %v5690 = vadd.f32 0.0, %v5689
      %v5691 = vpop.f32.mrb[0].mxu0
      %5692 = vmatprep.mubr.bf16.mxu0 0
      %5693 = vmatmul.mubr.bf16.gmra.mrb[0].mxu0 %v5552
      %v5694 = vpop.f32.mrb[0].mxu0
      %v5695 = vadd.f32 0.0, %v5694
      %v5696 = vpop.f32.mrb[0].mxu0
      %v5697 = vpop.f32.mrb[0].mxu0
      %v5698 = vadd.f32 0.0, %v5697
      %v5699 = vpop.f32.mrb[0].mxu0
      %5700 = vmatprep.mubr.bf16.mxu0 0
      %5701 = vmatmul.mubr.bf16.gmra.mrb[0].mxu0 %v5553
      %v5702 = vpop.f32.mrb[0].mxu0
      %v5703 = vadd.f32 0.0, %v5702
      %v5704 = vpop.f32.mrb[0].mxu0
      %v5705 = vpop.f32.mrb[0].mxu0
      %v5706 = vadd.f32 0.0, %v5705
      %v5707 = vpop.f32.mrb[0].mxu0
      %5708 = vmatprep.mubr.bf16.mxu0 0
      %5709 = vmatmul.mubr.bf16.gmra.mrb[0].mxu0 %v5554
      %v5710 = vpop.f32.mrb[0].mxu0
      %v5711 = vadd.f32 0.0, %v5710
      %v5712 = vpop.f32.mrb[0].mxu0
      %v5713 = vpop.f32.mrb[0].mxu0
      %v5714 = vadd.f32 0.0, %v5713
      %v5715 = vpop.f32.mrb[0].mxu0
      %5716 = vmatprep.mubr.bf16.mxu0 0
      %5717 = vmatmul.mubr.bf16.gmra.mrb[0].mxu0 %v5555
      %v5718 = vpop.f32.mrb[0].mxu0
      %v5719 = vadd.f32 0.0, %v5718
      %v5720 = vpop.f32.mrb[0].mxu0
      %v5721 = vpop.f32.mrb[0].mxu0
      %v5722 = vadd.f32 0.0, %v5721
      %v5723 = vpop.f32.mrb[0].mxu0
      %5724 = vmatprep.mubr.bf16.mxu0 0
      %5725 = vmatmul.mubr.bf16.gmra.mrb[0].mxu0 %v5556
      %v5726 = vpop.f32.mrb[0].mxu0
      %v5727 = vadd.f32 0.0, %v5726
      %v5728 = vpop.f32.mrb[0].mxu0
      %v5729 = vpop.f32.mrb[0].mxu0
      %v5730 = vadd.f32 0.0, %v5729
      %v5731 = vpop.f32.mrb[0].mxu0
      %5732 = vmatprep.mubr.bf16.mxu0 0
      %5733 = vmatmul.mubr.bf16.gmra.mrb[0].mxu0 %v5557
      %v5734 = vpop.f32.mrb[0].mxu0
      %v5735 = vadd.f32 0.0, %v5734
      %v5736 = vpop.f32.mrb[0].mxu0
      %v5737 = vpop.f32.mrb[0].mxu0
      %v5738 = vadd.f32 0.0, %v5737
      %v5739 = vpop.f32.mrb[0].mxu0
      %5740 = vmatprep.mubr.bf16.mxu0 0
      %5741 = vmatmul.mubr.bf16.gmra.mrb[0].mxu0 %v5558
      %v5742 = vpop.f32.mrb[0].mxu0
      %v5743 = vadd.f32 0.0, %v5742
      %v5744 = vpop.f32.mrb[0].mxu0
      %v5745 = vpop.f32.mrb[0].mxu0
      %v5746 = vadd.f32 0.0, %v5745
      %v5747 = vpop.f32.mrb[0].mxu0
      %5748 = vmatprep.mubr.bf16.mxu0 0
      %5749 = vmatmul.mubr.bf16.gmra.mrb[0].mxu0 %v5559
      %v5750 = vpop.f32.mrb[0].mxu0
      %v5751 = vadd.f32 0.0, %v5750
      %v5752 = vpop.f32.mrb[0].mxu0
      %v5753 = vpop.f32.mrb[0].mxu0
      %v5754 = vadd.f32 0.0, %v5753
      %v5755 = vpop.f32.mrb[0].mxu0
      %5756 = vmatprep.mubr.bf16.mxu0 0
      %5757 = vmatmul.mubr.bf16.gmra.mrb[0].mxu0 %v5560
      %v5758 = vpop.f32.mrb[0].mxu0
      %v5759 = vadd.f32 0.0, %v5758
      %v5760 = vpop.f32.mrb[0].mxu0
      %v5761 = vpop.f32.mrb[0].mxu0
      %v5762 = vadd.f32 0.0, %v5761
      %v5763 = vpop.f32.mrb[0].mxu0
      %5764 = vmatprep.mubr.bf16.mxu0 0
      %5765 = vmatmul.mubr.bf16.gmra.mrb[0].mxu0 %v5561
      %v5766 = vpop.f32.mrb[0].mxu0
      %v5767 = vadd.f32 0.0, %v5766
      %v5768 = vpop.f32.mrb[0].mxu0
      %v5769 = vpop.f32.mrb[0].mxu0
      %v5770 = vadd.f32 0.0, %v5769
      %v5771 = vpop.f32.mrb[0].mxu0
      %5772 = vmatprep.mubr.bf16.mxu0 0
      %5773 = vmatmul.mubr.bf16.gmra.mrb[0].mxu0 %v5562
      %v5774 = vpop.f32.mrb[0].mxu0
      %v5775 = vadd.f32 0.0, %v5774
      %v5776 = vpop.f32.mrb[0].mxu0
      %v5777 = vpop.f32.mrb[0].mxu0
      %v5778 = vadd.f32 0.0, %v5777
      %v5779 = vpop.f32.mrb[0].mxu0
      %5780 = vmatprep.mubr.bf16.mxu0 0
      %5781 = vmatmul.mubr.bf16.gmra.mrb[0].mxu0 %v5563
      %v5782 = vpop.f32.mrb[0].mxu0
      %v5783 = vadd.f32 0.0, %v5782
      %v5784 = vpop.f32.mrb[0].mxu0
      %v5785 = vpop.f32.mrb[0].mxu0
      %v5786 = vadd.f32 0.0, %v5785
      %v5787 = vpop.f32.mrb[0].mxu0
      %5788 = vdwg.mxu0
      %v5789 = vadd.f32 %v5292, %v5663
      %v5790 = vadd.f32 %v5293, %v5666
      %v5791 = vadd.f32 %v5294, %v5671
      %v5792 = vadd.f32 %v5295, %v5674
      %v5793 = vadd.f32 %v5296, %v5679
      %v5794 = vadd.f32 %v5297, %v5682
      %v5795 = vadd.f32 %v5298, %v5687
      %v5796 = vadd.f32 %v5299, %v5690
      %v5797 = vadd.f32 %v5300, %v5695
      %v5798 = vadd.f32 %v5301, %v5698
      %v5799 = vadd.f32 %v5302, %v5703
      %v5800 = vadd.f32 %v5303, %v5706
      %v5801 = vadd.f32 %v5304, %v5711
      %v5802 = vadd.f32 %v5305, %v5714
      %v5803 = vadd.f32 %v5306, %v5719
      %v5804 = vadd.f32 %v5307, %v5722
      %v5805 = vadd.f32 %v5308, %v5727
      %v5806 = vadd.f32 %v5309, %v5730
      %v5807 = vadd.f32 %v5310, %v5735
      %v5808 = vadd.f32 %v5311, %v5738
      %v5809 = vadd.f32 %v5312, %v5743
      %v5810 = vadd.f32 %v5313, %v5746
      %v5811 = vadd.f32 %v5314, %v5751
      %v5812 = vadd.f32 %v5315, %v5754
      %v5813 = vadd.f32 %v5316, %v5759
      %v5814 = vadd.f32 %v5317, %v5762
      %v5815 = vadd.f32 %v5318, %v5767
      %v5816 = vadd.f32 %v5319, %v5770
      %v5817 = vadd.f32 %v5320, %v5775
      %v5818 = vadd.f32 %v5321, %v5778
      %v5819 = vadd.f32 %v5322, %v5783
      %v5820 = vadd.f32 %v5323, %v5786
      %v5821 = vpack.c.bf16 %v5790, %v5789
      %v5822 = vpack.c.bf16 %v5792, %v5791
      %v5823 = vpack.c.bf16 %v5794, %v5793
      %v5824 = vpack.c.bf16 %v5796, %v5795
      %v5825 = vpack.c.bf16 %v5798, %v5797
      %v5826 = vpack.c.bf16 %v5800, %v5799
      %v5827 = vpack.c.bf16 %v5802, %v5801
      %v5828 = vpack.c.bf16 %v5804, %v5803
      %v5829 = vpack.c.bf16 %v5806, %v5805
      %v5830 = vpack.c.bf16 %v5808, %v5807
      %v5831 = vpack.c.bf16 %v5810, %v5809
      %v5832 = vpack.c.bf16 %v5812, %v5811
      %v5833 = vpack.c.bf16 %v5814, %v5813
      %v5834 = vpack.c.bf16 %v5816, %v5815
      %v5835 = vpack.c.bf16 %v5818, %v5817
      %v5836 = vpack.c.bf16 %v5820, %v5819
      %v5853 = vunpack.c.l.b16 %v5821
      %v5854 = vunpack.c.h.b16 %v5821
      %v5855 = vunpack.c.l.b16 %v5822
      %v5856 = vunpack.c.h.b16 %v5822
      %v5857 = vunpack.c.l.b16 %v5823
      %v5858 = vunpack.c.h.b16 %v5823
      %v5859 = vunpack.c.l.b16 %v5824
      %v5860 = vunpack.c.h.b16 %v5824
      %v5861 = vunpack.c.l.b16 %v5825
      %v5862 = vunpack.c.h.b16 %v5825
      %v5863 = vunpack.c.l.b16 %v5826
      %v5864 = vunpack.c.h.b16 %v5826
      %v5865 = vunpack.c.l.b16 %v5827
      %v5866 = vunpack.c.h.b16 %v5827
      %v5867 = vunpack.c.l.b16 %v5828
      %v5868 = vunpack.c.h.b16 %v5828
      %v5869 = vunpack.c.l.b16 %v5829
      %v5870 = vunpack.c.h.b16 %v5829
      %v5871 = vunpack.c.l.b16 %v5830
      %v5872 = vunpack.c.h.b16 %v5830
      %v5873 = vunpack.c.l.b16 %v5831
      %v5874 = vunpack.c.h.b16 %v5831
      %v5875 = vunpack.c.l.b16 %v5832
      %v5876 = vunpack.c.h.b16 %v5832
      %v5877 = vunpack.c.l.b16 %v5833
      %v5878 = vunpack.c.h.b16 %v5833
      %v5879 = vunpack.c.l.b16 %v5834
      %v5880 = vunpack.c.h.b16 %v5834
      %v5881 = vunpack.c.l.b16 %v5835
      %v5882 = vunpack.c.h.b16 %v5835
      %v5883 = vunpack.c.l.b16 %v5836
      %v5884 = vunpack.c.h.b16 %v5836
      %v5885 = vpack.c.b16 %v5853, %v5853
      %v5886 = vpack.c.b16 %v5854, %v5854
      %v5887 = vpack.c.b16 %v5855, %v5855
      %v5888 = vpack.c.b16 %v5856, %v5856
      %v5889 = vpack.c.b16 %v5857, %v5857
      %v5890 = vpack.c.b16 %v5858, %v5858
      %v5891 = vpack.c.b16 %v5859, %v5859
      %v5892 = vpack.c.b16 %v5860, %v5860
      %v5893 = vpack.c.b16 %v5861, %v5861
      %v5894 = vpack.c.b16 %v5862, %v5862
      %v5895 = vpack.c.b16 %v5863, %v5863
      %v5896 = vpack.c.b16 %v5864, %v5864
      %v5897 = vpack.c.b16 %v5865, %v5865
      %v5898 = vpack.c.b16 %v5866, %v5866
      %v5899 = vpack.c.b16 %v5867, %v5867
      %v5900 = vpack.c.b16 %v5868, %v5868
      %v5901 = vpack.c.b16 %v5869, %v5869
      %v5902 = vpack.c.b16 %v5870, %v5870
      %v5903 = vpack.c.b16 %v5871, %v5871
      %v5904 = vpack.c.b16 %v5872, %v5872
      %v5905 = vpack.c.b16 %v5873, %v5873
      %v5906 = vpack.c.b16 %v5874, %v5874
      %v5907 = vpack.c.b16 %v5875, %v5875
      %v5908 = vpack.c.b16 %v5876, %v5876
      %v5909 = vpack.c.b16 %v5877, %v5877
      %v5910 = vpack.c.b16 %v5878, %v5878
      %v5911 = vpack.c.b16 %v5879, %v5879
      %v5912 = vpack.c.b16 %v5880, %v5880
      %v5913 = vpack.c.b16 %v5881, %v5881
      %v5914 = vpack.c.b16 %v5882, %v5882
      %v5915 = vpack.c.b16 %v5883, %v5883
      %v5916 = vpack.c.b16 %v5884, %v5884
      %5949 = vst [vmem:[%s204] sm:$0xf] %v5885
      %5950 = vst [vmem:[%s204 + $0x4] sm:$0xf] %v5886
      %5951 = vst [vmem:[%s204 + $0x8] sm:$0xf] %v5887
      %5952 = vst [vmem:[%s204 + $0xc] sm:$0xf] %v5888
      %5953 = vst [vmem:[%s204 + $0x10] sm:$0xf] %v5889
      %5954 = vst [vmem:[%s204 + $0x14] sm:$0xf] %v5890
      %5955 = vst [vmem:[%s204 + $0x18] sm:$0xf] %v5891
      %5956 = vst [vmem:[%s204 + $0x1c] sm:$0xf] %v5892
      %5957 = vst [vmem:[%s204 + $0x20] sm:$0xf] %v5893
      %5958 = vst [vmem:[%s204 + $0x24] sm:$0xf] %v5894
      %5959 = vst [vmem:[%s204 + $0x28] sm:$0xf] %v5895
      %5960 = vst [vmem:[%s204 + $0x2c] sm:$0xf] %v5896
      %5961 = vst [vmem:[%s204 + $0x30] sm:$0xf] %v5897
      %5962 = vst [vmem:[%s204 + $0x34] sm:$0xf] %v5898
      %5963 = vst [vmem:[%s204 + $0x38] sm:$0xf] %v5899
      %5964 = vst [vmem:[%s204 + $0x3c] sm:$0xf] %v5900
      %5965 = vst [vmem:[%s204 + $0x40] sm:$0xf] %v5901
      %5966 = vst [vmem:[%s204 + $0x44] sm:$0xf] %v5902
      %5967 = vst [vmem:[%s204 + $0x48] sm:$0xf] %v5903
      %5968 = vst [vmem:[%s204 + $0x4c] sm:$0xf] %v5904
      %5969 = vst [vmem:[%s204 + $0x50] sm:$0xf] %v5905
      %5970 = vst [vmem:[%s204 + $0x54] sm:$0xf] %v5906
      %5971 = vst [vmem:[%s204 + $0x58] sm:$0xf] %v5907
      %5972 = vst [vmem:[%s204 + $0x5c] sm:$0xf] %v5908
      %5973 = vst [vmem:[%s204 + $0x60] sm:$0xf] %v5909
      %5974 = vst [vmem:[%s204 + $0x64] sm:$0xf] %v5910
      %5975 = vst [vmem:[%s204 + $0x68] sm:$0xf] %v5911
      %5976 = vst [vmem:[%s204 + $0x6c] sm:$0xf] %v5912
      %5977 = vst [vmem:[%s204 + $0x70] sm:$0xf] %v5913
      %5978 = vst [vmem:[%s204 + $0x74] sm:$0xf] %v5914
      %5979 = vst [vmem:[%s204 + $0x78] sm:$0xf] %v5915
      %5980 = vst [vmem:[%s204 + $0x7c] sm:$0xf] %v5916
      %v5981 = vadd.f32 %v5789, %v5790
      %v5982 = vadd.f32 %v5981, %v5791
      %v5983 = vadd.f32 %v5982, %v5792
      %v5984 = vadd.f32 %v5983, %v5793
      %v5985 = vadd.f32 %v5984, %v5794
      %v5986 = vadd.f32 %v5985, %v5795
      %v5987 = vadd.f32 %v5986, %v5796
      %v5988 = vadd.f32 %v5987, %v5797
      %v5989 = vadd.f32 %v5988, %v5798
      %v5990 = vadd.f32 %v5989, %v5799
      %v5991 = vadd.f32 %v5990, %v5800
      %v5992 = vadd.f32 %v5991, %v5801
      %v5993 = vadd.f32 %v5992, %v5802
      %v5994 = vadd.f32 %v5993, %v5803
      %v5995 = vadd.f32 %v5994, %v5804
      %v5996 = vadd.f32 %v5995, %v5805
      %v5997 = vadd.f32 %v5996, %v5806
      %v5998 = vadd.f32 %v5997, %v5807
      %v5999 = vadd.f32 %v5998, %v5808
      %v6000 = vadd.f32 %v5999, %v5809
      %v6001 = vadd.f32 %v6000, %v5810
      %v6002 = vadd.f32 %v6001, %v5811
      %v6003 = vadd.f32 %v6002, %v5812
      %v6004 = vadd.f32 %v6003, %v5813
      %v6005 = vadd.f32 %v6004, %v5814
      %v6006 = vadd.f32 %v6005, %v5815
      %v6007 = vadd.f32 %v6006, %v5816
      %v6008 = vadd.f32 %v6007, %v5817
      %v6009 = vadd.f32 %v6008, %v5818
      %v6010 = vadd.f32 %v6009, %v5819
      %v6011 = vadd.f32 %v6010, %v5820
      %v6012 = vrot.slane %v6011, 4
      %v6013 = vadd.f32 %v6011, %v6012
      %v6014 = vrot.slane %v6013, 2
      %v6015 = vadd.f32 %v6013, %v6014
      %v6016 = vrot.slane %v6015, 1
      %v6017 = vadd.f32 %v6015, %v6016
      %6018 = vst [vmem:[%s208] sm:$0x1] %v6017
      %v6019 = vmul.f32 %v5789, %v5789
      %v6020 = vmul.f32 %v5790, %v5790
      %v6021 = vmul.f32 %v5791, %v5791
      %v6022 = vmul.f32 %v5792, %v5792
      %v6023 = vmul.f32 %v5793, %v5793
      %v6024 = vmul.f32 %v5794, %v5794
      %v6025 = vmul.f32 %v5795, %v5795
      %v6026 = vmul.f32 %v5796, %v5796
      %v6027 = vmul.f32 %v5797, %v5797
      %v6028 = vmul.f32 %v5798, %v5798
      %v6029 = vmul.f32 %v5799, %v5799
      %v6030 = vmul.f32 %v5800, %v5800
      %v6031 = vmul.f32 %v5801, %v5801
      %v6032 = vmul.f32 %v5802, %v5802
      %v6033 = vmul.f32 %v5803, %v5803
      %v6034 = vmul.f32 %v5804, %v5804
      %v6035 = vmul.f32 %v5805, %v5805
      %v6036 = vmul.f32 %v5806, %v5806
      %v6037 = vmul.f32 %v5807, %v5807
      %v6038 = vmul.f32 %v5808, %v5808
      %v6039 = vmul.f32 %v5809, %v5809
      %v6040 = vmul.f32 %v5810, %v5810
      %v6041 = vmul.f32 %v5811, %v5811
      %v6042 = vmul.f32 %v5812, %v5812
      %v6043 = vmul.f32 %v5813, %v5813
      %v6044 = vmul.f32 %v5814, %v5814
      %v6045 = vmul.f32 %v5815, %v5815
      %v6046 = vmul.f32 %v5816, %v5816
      %v6047 = vmul.f32 %v5817, %v5817
      %v6048 = vmul.f32 %v5818, %v5818
      %v6049 = vmul.f32 %v5819, %v5819
      %v6050 = vmul.f32 %v5820, %v5820
      %v6051 = vadd.f32 %v6019, %v6020
      %v6052 = vadd.f32 %v6051, %v6021
      %v6053 = vadd.f32 %v6052, %v6022
      %v6054 = vadd.f32 %v6053, %v6023
      %v6055 = vadd.f32 %v6054, %v6024
      %v6056 = vadd.f32 %v6055, %v6025
      %v6057 = vadd.f32 %v6056, %v6026
      %v6058 = vadd.f32 %v6057, %v6027
      %v6059 = vadd.f32 %v6058, %v6028
      %v6060 = vadd.f32 %v6059, %v6029
      %v6061 = vadd.f32 %v6060, %v6030
      %v6062 = vadd.f32 %v6061, %v6031
      %v6063 = vadd.f32 %v6062, %v6032
      %v6064 = vadd.f32 %v6063, %v6033
      %v6065 = vadd.f32 %v6064, %v6034
      %v6066 = vadd.f32 %v6065, %v6035
      %v6067 = vadd.f32 %v6066, %v6036
      %v6068 = vadd.f32 %v6067, %v6037
      %v6069 = vadd.f32 %v6068, %v6038
      %v6070 = vadd.f32 %v6069, %v6039
      %v6071 = vadd.f32 %v6070, %v6040
      %v6072 = vadd.f32 %v6071, %v6041
      %v6073 = vadd.f32 %v6072, %v6042
      %v6074 = vadd.f32 %v6073, %v6043
      %v6075 = vadd.f32 %v6074, %v6044
      %v6076 = vadd.f32 %v6075, %v6045
      %v6077 = vadd.f32 %v6076, %v6046
      %v6078 = vadd.f32 %v6077, %v6047
      %v6079 = vadd.f32 %v6078, %v6048
      %v6080 = vadd.f32 %v6079, %v6049
      %v6081 = vadd.f32 %v6080, %v6050
      %v6082 = vrot.slane %v6081, 4
      %v6083 = vadd.f32 %v6081, %v6082
      %v6084 = vrot.slane %v6083, 2
      %v6085 = vadd.f32 %v6083, %v6084
      %v6086 = vrot.slane %v6085, 1
      %v6087 = vadd.f32 %v6085, %v6086
      %6088 = vst [vmem:[%s208 + $0x1] sm:$0x1] %v6087
      %p6089 = scmp.lt.s32.totalorder %s16, 1
      %s6090 = scalar_select %p6089, %s16, 1
      %s6091 = smul.addr %s6090, 32
      %s6092 = smul.addr %s6091, 4
      %s6093 = scalar_lea.vmem %s3, %s6092
      %p6094 = scmp.lt.s32.totalorder %s16, 1
      %s6095 = scalar_select %p6094, %s16, 1
      %s6096 = smul.addr %s6095, 2
      %s6097 = scalar_lea.vmem %s4, %s6096
      // Predicated region
      $region33: #{bottleneck_forward.5} parent=31 // pred_check
        %p6098 = pneg %p102
      $region34: #{bottleneck_forward.5} parent=31 // pred_check_branch
        %6100 = sbr.rel (%p6098) target = $region36
      $region35: #{bottleneck_forward.5} parent=31 // pred_region
        _
      $region36: #{bottleneck_forward.5} parent=31 // pred_fallthru
        _
      // Predicated region
      $region37: #{bottleneck_forward.5} parent=31 // pred_check
        %p6101 = pneg %p128
      $region38: #{bottleneck_forward.5} parent=31 // pred_check_branch
        %6103 = sbr.rel (%p6101) target = $region40
      $region39: #{bottleneck_forward.5} parent=31 // pred_region
        _
      $region40: #{bottleneck_forward.5} parent=31 // pred_fallthru
        _
    $region32: #{bottleneck_forward.5} parent=5 // pred_fallthru
      _
    %p6104 = scmp.le.s32.totalorder 2, %s11
    // Predicated region
    $region41: #{bottleneck_forward.5} parent=5 // pred_check
      %p6105 = pneg %p6104
    $region42: #{bottleneck_forward.5} parent=5 // pred_check_branch
      %6107 = sbr.rel (%p6105) target = $region44
    $region43: #{bottleneck_forward.5} parent=5 // pred_region
      %s6108 = ssub.s32 %s11, 2
      // Predicated region
      $region45: #{bottleneck_forward.5} parent=43 // pred_check
        %p6109 = pneg %p108
      $region46: #{bottleneck_forward.5} parent=43 // pred_check_branch
        %6111 = sbr.rel (%p6109) target = $region48
      $region47: #{bottleneck_forward.5} parent=43 // pred_region
        %p6112 = scmp.lt.s32.totalorder %s17, 1
        %s6113 = scalar_select %p6112, %s17, 1
        %s6114 = smul.addr %s6113, 32
        %s6115 = smul.addr %s6114, 4
        %s6116 = scalar_lea.vmem %s3, %s6115
      $region48: #{bottleneck_forward.5} parent=43 // pred_fallthru
        _
      // Predicated region
      $region49: #{bottleneck_forward.5} parent=43 // pred_check
        %p6117 = pneg %p134
      $region50: #{bottleneck_forward.5} parent=43 // pred_check_branch
        %6119 = sbr.rel (%p6117) target = $region52
      $region51: #{bottleneck_forward.5} parent=43 // pred_region
        %p6120 = scmp.lt.s32.totalorder %s17, 1
        %s6121 = scalar_select %p6120, %s17, 1
        %s6122 = smul.addr %s6121, 2
        %s6123 = scalar_lea.vmem %s4, %s6122
      $region52: #{bottleneck_forward.5} parent=43 // pred_fallthru
        _
    $region44: #{bottleneck_forward.5} parent=5 // pred_fallthru
      _
  $region6: #{bottleneck_forward.5} parent=0 // loop_footer
    %s15 = sadd.s32 1, %s11
  $region7: #{bottleneck_forward.5} parent=0 // loop_footer_branch
    %10 = sbr.rel target = $region3
  $region8: #{bottleneck_forward.5} parent=0 // loop_exit
    _

</llo_original>
